<compile_context>
chip_gen: v7x
topology: tpu7x:2x2x1
jax: 0.10.0
libtpu: 0.0.40
codegen_flags: <defaults>
</compile_context>

<pallas_src>
import jax
import jax.numpy as jnp
from jax import lax
from jax.experimental import pallas as pl
from jax.experimental.pallas import tpu as pltpu

CP = 128        # lane-dense padded channel width
EPS = 1e-5      # torch.nn.BatchNorm2d default eps


# ----------------------------- fused Pallas kernel -------------------------

def _down_conv_v2_kernel(x_ref, w1_ref, b1_ref, g1_ref, bt1_ref,
                         w2_ref, b2_ref, g2_ref, bt2_ref,
                         out_ref,
                         acc1_ref, y1p_ref, acc2_ref):
    """conv3x3(s1)+BN+ReLU+conv3x3(s2)+BN+ReLU, fully VMEM-resident.

    x_ref   : (N, H+2, W+2, C_in)   spatially padded NHWC input
    w1_ref  : (3, 3, C_in, CP)      conv1 weight, C_out zero-padded to CP
    w2_ref  : (3, 3, CP,  CP)       conv2 weight, both channel dims padded
    b/g/bt  : (1, CP)               bias / BN gamma / BN beta (zero padded)
    out_ref : (N, H//2, W//2, CP)   lane-dense output (padded channels == 0)
    acc1_ref: (N*H*W, CP)           f32 conv1 accumulator (VMEM scratch)
    y1p_ref : (N, H+2, W+2, CP)     stage-1 activation, re-padded for conv2
    acc2_ref: (N*(H//2)*(W//2), CP) f32 conv2 accumulator (VMEM scratch)
    """
    N, Hp, Wp, Cin = x_ref.shape
    H, W = Hp - 2, Wp - 2
    H2, W2 = H // 2, W // 2
    M1 = N * H * W
    M2 = N * H2 * W2

    # -------- stage 1: conv3x3, stride 1, pad 1  (9 MXU dots, no im2col) ----
    acc1_ref[...] = jnp.zeros_like(acc1_ref)
    for kh in range(3):
        for kw in range(3):
            tap = x_ref[:, kh:kh + H, kw:kw + W, :].reshape(M1, Cin)
            acc1_ref[...] += jnp.dot(tap, w1_ref[kh, kw],
                                     preferred_element_type=jnp.float32)
    y1 = acc1_ref[...] + b1_ref[...]

    # BatchNorm2d (train-mode batch stats over N*H*W, biased var) + ReLU.
    mean1 = jnp.mean(y1, axis=0, keepdims=True)
    d1 = y1 - mean1
    var1 = jnp.mean(d1 * d1, axis=0, keepdims=True)
    scale1 = g1_ref[...] * lax.rsqrt(var1 + EPS)          # rsqrt -> EUP slot
    y1 = jnp.maximum(d1 * scale1 + bt1_ref[...], 0.0)

    # Re-pad spatially (pad=1) for the second conv; border & padded channels 0.
    y1p_ref[...] = jnp.zeros_like(y1p_ref)
    y1p_ref[:, 1:1 + H, 1:1 + W, :] = y1.reshape(N, H, W, CP)

    # -------- stage 2: conv3x3, stride 2, pad 1 (strided VMEM tap reads) ----
    acc2_ref[...] = jnp.zeros_like(acc2_ref)
    for kh in range(3):
        for kw in range(3):
            tap = y1p_ref[:, pl.ds(kh, H2, stride=2),
                          pl.ds(kw, W2, stride=2), :].reshape(M2, CP)
            acc2_ref[...] += jnp.dot(tap, w2_ref[kh, kw],
                                     preferred_element_type=jnp.float32)
    y2 = acc2_ref[...] + b2_ref[...]

    mean2 = jnp.mean(y2, axis=0, keepdims=True)
    d2 = y2 - mean2
    var2 = jnp.mean(d2 * d2, axis=0, keepdims=True)
    scale2 = g2_ref[...] * lax.rsqrt(var2 + EPS)
    y2 = jnp.maximum(d2 * scale2 + bt2_ref[...], 0.0)

    out_ref[...] = y2.reshape(N, H2, W2, CP)              # lane-dense store


# ----------------------------- wrapper --------------------------------------

def _prep_w(w_oihw, cout_pad, cin_pad=None):
    # torch Conv2d weight (C_out, C_in, 3, 3) -> (3, 3, C_in[_pad], C_out_pad)
    w = jnp.transpose(jnp.asarray(w_oihw, jnp.float32), (2, 3, 1, 0))
    cin = w.shape[2]
    cin_pad = cin if cin_pad is None else cin_pad
    return jnp.pad(w, ((0, 0), (0, 0),
                       (0, cin_pad - cin), (0, cout_pad - w.shape[3])))


def _prep_vec(v, cpad):
    v = jnp.asarray(v, jnp.float32).reshape(1, -1)
    return jnp.pad(v, ((0, 0), (0, cpad - v.shape[1])))


def down_conv_v2(x_nchw, params):
    """Forward pass of DownConv_v2 (PyTorch train-mode BN). NCHW in/out."""
    N, C_in, H, W = x_nchw.shape
    C_out = params["w1"].shape[0]
    assert H % 2 == 0 and W % 2 == 0, "even spatial dims expected (stride-2 conv)"
    H2, W2 = H // 2, W // 2

    # NCHW -> NHWC, spatial pad=1 once in the wrapper (tiny); true C_in kept.
    x = jnp.transpose(jnp.asarray(x_nchw, jnp.float32), (0, 2, 3, 1))
    x = jnp.pad(x, ((0, 0), (1, 1), (1, 1), (0, 0)))

    w1 = _prep_w(params["w1"], CP)          # (3, 3, C_in, CP)
    w2 = _prep_w(params["w2"], CP, CP)      # (3, 3, CP,   CP)
    b1, g1, bt1 = (_prep_vec(params[k], CP) for k in ("b1", "gamma1", "beta1"))
    b2, g2, bt2 = (_prep_vec(params[k], CP) for k in ("b2", "gamma2", "beta2"))

    out = pl.pallas_call(
        _down_conv_v2_kernel,
        out_shape=jax.ShapeDtypeStruct((N, H2, W2, CP), jnp.float32),
        scratch_shapes=[
            pltpu.VMEM((N * H * W, CP), jnp.float32),        # acc1
            pltpu.VMEM((N, H + 2, W + 2, CP), jnp.float32),  # padded stage-1 act
            pltpu.VMEM((N * H2 * W2, CP), jnp.float32),      # acc2
        ],
        # Working set is a few MiB: fits the 16/32 MiB default scoped VMEM on
        # v5e/v6e/v7x; set an explicit limit with headroom anyway.
        compiler_params=pltpu.CompilerParams(vmem_limit_bytes=32 * 1024 * 1024),
    )(x, w1, b1, g1, bt1, w2, b2, g2, bt2)

    # Drop channel padding, NHWC -> NCHW to match the PyTorch module.
    return jnp.transpose(out[..., :C_out], (0, 3, 1, 2))


# ----------------------------- pure-JAX reference ---------------------------

def _reference(x_nchw, params, eps=EPS):
    def block(x, w, b, g, bt, stride):
        y = lax.conv_general_dilated(
            x, jnp.asarray(w, jnp.float32),
            window_strides=(stride, stride), padding=((1, 1), (1, 1)),
            dimension_numbers=("NCHW", "OIHW", "NCHW"),
            precision=lax.Precision.HIGHEST)
        y = y + b.reshape(1, -1, 1, 1)
        mean = jnp.mean(y, axis=(0, 2, 3), keepdims=True)
        var = jnp.var(y, axis=(0, 2, 3), keepdims=True)
        y = (y - mean) * lax.rsqrt(var + eps) * g.reshape(1, -1, 1, 1) \
            + bt.reshape(1, -1, 1, 1)
        return jnp.maximum(y, 0.0)

    x = block(x_nchw, params["w1"], params["b1"], params["gamma1"],
              params["beta1"], 1)
    x = block(x, params["w2"], params["b2"], params["gamma2"],
              params["beta2"], 2)
    return x


# ----------------------------- main -----------------------------------------

if __name__ == "__main__":
    in_channels, out_channels = 4, 8
    N, H, W = 2, 16, 16

    key = jax.random.PRNGKey(0)
    k_x, k_w1, k_b1, k_w2, k_b2 = jax.random.split(key, 5)

    x = jax.random.normal(k_x, (N, in_channels, H, W), dtype=jnp.float32)
    params = {
        # conv1: Conv2d(in_channels, out_channels, k=3, s=1, p=1, bias=True)
        "w1": 0.1 * jax.random.normal(k_w1, (out_channels, in_channels, 3, 3), jnp.float32),
        "b1": 0.1 * jax.random.normal(k_b1, (out_channels,), jnp.float32),
        # BatchNorm2d(out_channels) default init
        "gamma1": jnp.ones((out_channels,), jnp.float32),
        "beta1": jnp.zeros((out_channels,), jnp.float32),
        # conv2: Conv2d(out_channels, out_channels, k=3, s=2, p=1, bias=True)
        "w2": 0.1 * jax.random.normal(k_w2, (out_channels, out_channels, 3, 3), jnp.float32),
        "b2": 0.1 * jax.random.normal(k_b2, (out_channels,), jnp.float32),
        "gamma2": jnp.ones((out_channels,), jnp.float32),
        "beta2": jnp.zeros((out_channels,), jnp.float32),
    }

    out = jax.jit(down_conv_v2)(x, params)
    out = jax.block_until_ready(out)
    assert out.shape == (N, out_channels, H // 2, W // 2), out.shape

    ref = jax.block_until_ready(jax.jit(_reference)(x, params))
    max_err = float(jnp.max(jnp.abs(out - ref)))
    assert max_err < 2e-3, f"mismatch vs reference: max |err| = {max_err}"

    print("KERNEL_OK")
</pallas_src>

<mosaic_0001>
module attributes {stable_mosaic.version = 11 : i64} {
  func.func @_down_conv_v2_kernel(%arg0: memref<2x18x18x4xf32, #tpu.memory_space<vmem>>, %arg1: memref<3x3x4x128xf32, #tpu.memory_space<vmem>>, %arg2: memref<1x128xf32, #tpu.memory_space<vmem>>, %arg3: memref<1x128xf32, #tpu.memory_space<vmem>>, %arg4: memref<1x128xf32, #tpu.memory_space<vmem>>, %arg5: memref<3x3x128x128xf32, #tpu.memory_space<vmem>>, %arg6: memref<1x128xf32, #tpu.memory_space<vmem>>, %arg7: memref<1x128xf32, #tpu.memory_space<vmem>>, %arg8: memref<1x128xf32, #tpu.memory_space<vmem>>, %arg9: memref<2x8x8x128xf32, #tpu.memory_space<vmem>>, %arg10: memref<512x128xf32, #tpu.memory_space<vmem>>, %arg11: memref<2x18x18x128xf32, #tpu.memory_space<vmem>>, %arg12: memref<128x128xf32, #tpu.memory_space<vmem>>) attributes {dimension_semantics = [], scalar_prefetch = 0 : i64, scratch_operands = 3 : i64, tpu.core_type = #tpu.core_type<tc>} {
    %cst = arith.constant 0.000000e+00 : f32
    %0 = vector.broadcast %cst : f32 to vector<512x128xf32>
    %c0 = arith.constant 0 : index
    %c0_0 = arith.constant 0 : index
    %1 = vector.load %arg10[%c0, %c0_0] : memref<512x128xf32, #tpu.memory_space<vmem>>, vector<512x128xf32>
    tpu.vector_store %arg10[%c0, %c0_0], %0 {strides = array<i32>} : memref<512x128xf32, #tpu.memory_space<vmem>>, vector<512x128xf32>,
    %c0_1 = arith.constant 0 : index
    %c0_2 = arith.constant 0 : index
    %c0_3 = arith.constant 0 : index
    %c0_4 = arith.constant 0 : index
    %2 = vector.load %arg0[%c0_1, %c0_2, %c0_3, %c0_4] : memref<2x18x18x4xf32, #tpu.memory_space<vmem>>, vector<2x16x16x4xf32>
    %3 = vector.shape_cast %2 : vector<2x16x16x4xf32> to vector<512x4xf32>
    %c0_5 = arith.constant 0 : index
    %c0_6 = arith.constant 0 : index
    %4 = vector.load %arg10[%c0_5, %c0_6] : memref<512x128xf32, #tpu.memory_space<vmem>>, vector<512x128xf32>
    %c0_7 = arith.constant 0 : index
    %c0_8 = arith.constant 0 : index
    %c0_9 = arith.constant 0 : index
    %c0_10 = arith.constant 0 : index
    %5 = vector.load %arg1[%c0_7, %c0_8, %c0_9, %c0_10] : memref<3x3x4x128xf32, #tpu.memory_space<vmem>>, vector<1x1x4x128xf32>
    %6 = vector.shape_cast %5 : vector<1x1x4x128xf32> to vector<4x128xf32>
    %cst_11 = arith.constant dense<0.000000e+00> : vector<512x128xf32>
    %7 = tpu.matmul %3, %6, %cst_11 {dimension_numbers = #tpu.dot_dimension_numbers<[1], [0], [0], [1], [0, 0, 1, 1], [], []>} : vector<512x4xf32>, vector<4x128xf32>, vector<512x128xf32> -> vector<512x128xf32>
    %8 = arith.addf %4, %7 : vector<512x128xf32>
    %c0_12 = arith.constant 0 : index
    %c0_13 = arith.constant 0 : index
    %9 = vector.load %arg10[%c0_12, %c0_13] : memref<512x128xf32, #tpu.memory_space<vmem>>, vector<512x128xf32>
    tpu.vector_store %arg10[%c0_12, %c0_13], %8 {strides = array<i32>} : memref<512x128xf32, #tpu.memory_space<vmem>>, vector<512x128xf32>,
    %c0_14 = arith.constant 0 : index
    %c0_15 = arith.constant 0 : index
    %c1 = arith.constant 1 : index
    %c0_16 = arith.constant 0 : index
    %10 = vector.load %arg0[%c0_14, %c0_15, %c1, %c0_16] : memref<2x18x18x4xf32, #tpu.memory_space<vmem>>, vector<2x16x16x4xf32>
    %11 = vector.shape_cast %10 : vector<2x16x16x4xf32> to vector<512x4xf32>
    %c0_17 = arith.constant 0 : index
    %c0_18 = arith.constant 0 : index
    %12 = vector.load %arg10[%c0_17, %c0_18] : memref<512x128xf32, #tpu.memory_space<vmem>>, vector<512x128xf32>
    %c0_19 = arith.constant 0 : index
    %c1_20 = arith.constant 1 : index
    %c0_21 = arith.constant 0 : index
    %c0_22 = arith.constant 0 : index
    %13 = vector.load %arg1[%c0_19, %c1_20, %c0_21, %c0_22] : memref<3x3x4x128xf32, #tpu.memory_space<vmem>>, vector<1x1x4x128xf32>
    %14 = vector.shape_cast %13 : vector<1x1x4x128xf32> to vector<4x128xf32>
    %cst_23 = arith.constant dense<0.000000e+00> : vector<512x128xf32>
    %15 = tpu.matmul %11, %14, %cst_23 {dimension_numbers = #tpu.dot_dimension_numbers<[1], [0], [0], [1], [0, 0, 1, 1], [], []>} : vector<512x4xf32>, vector<4x128xf32>, vector<512x128xf32> -> vector<512x128xf32>
    %16 = arith.addf %12, %15 : vector<512x128xf32>
    %c0_24 = arith.constant 0 : index
    %c0_25 = arith.constant 0 : index
    %17 = vector.load %arg10[%c0_24, %c0_25] : memref<512x128xf32, #tpu.memory_space<vmem>>, vector<512x128xf32>
    tpu.vector_store %arg10[%c0_24, %c0_25], %16 {strides = array<i32>} : memref<512x128xf32, #tpu.memory_space<vmem>>, vector<512x128xf32>,
    %c0_26 = arith.constant 0 : index
    %c0_27 = arith.constant 0 : index
    %c2 = arith.constant 2 : index
    %c0_28 = arith.constant 0 : index
    %18 = vector.load %arg0[%c0_26, %c0_27, %c2, %c0_28] : memref<2x18x18x4xf32, #tpu.memory_space<vmem>>, vector<2x16x16x4xf32>
    %19 = vector.shape_cast %18 : vector<2x16x16x4xf32> to vector<512x4xf32>
    %c0_29 = arith.constant 0 : index
    %c0_30 = arith.constant 0 : index
    %20 = vector.load %arg10[%c0_29, %c0_30] : memref<512x128xf32, #tpu.memory_space<vmem>>, vector<512x128xf32>
    %c0_31 = arith.constant 0 : index
    %c2_32 = arith.constant 2 : index
    %c0_33 = arith.constant 0 : index
    %c0_34 = arith.constant 0 : index
    %21 = vector.load %arg1[%c0_31, %c2_32, %c0_33, %c0_34] : memref<3x3x4x128xf32, #tpu.memory_space<vmem>>, vector<1x1x4x128xf32>
    %22 = vector.shape_cast %21 : vector<1x1x4x128xf32> to vector<4x128xf32>
    %cst_35 = arith.constant dense<0.000000e+00> : vector<512x128xf32>
    %23 = tpu.matmul %19, %22, %cst_35 {dimension_numbers = #tpu.dot_dimension_numbers<[1], [0], [0], [1], [0, 0, 1, 1], [], []>} : vector<512x4xf32>, vector<4x128xf32>, vector<512x128xf32> -> vector<512x128xf32>
    %24 = arith.addf %20, %23 : vector<512x128xf32>
    %c0_36 = arith.constant 0 : index
    %c0_37 = arith.constant 0 : index
    %25 = vector.load %arg10[%c0_36, %c0_37] : memref<512x128xf32, #tpu.memory_space<vmem>>, vector<512x128xf32>
    tpu.vector_store %arg10[%c0_36, %c0_37], %24 {strides = array<i32>} : memref<512x128xf32, #tpu.memory_space<vmem>>, vector<512x128xf32>,
    %c0_38 = arith.constant 0 : index
    %c1_39 = arith.constant 1 : index
    %c0_40 = arith.constant 0 : index
    %c0_41 = arith.constant 0 : index
    %26 = vector.load %arg0[%c0_38, %c1_39, %c0_40, %c0_41] : memref<2x18x18x4xf32, #tpu.memory_space<vmem>>, vector<2x16x16x4xf32>
    %27 = vector.shape_cast %26 : vector<2x16x16x4xf32> to vector<512x4xf32>
    %c0_42 = arith.constant 0 : index
    %c0_43 = arith.constant 0 : index
    %28 = vector.load %arg10[%c0_42, %c0_43] : memref<512x128xf32, #tpu.memory_space<vmem>>, vector<512x128xf32>
    %c1_44 = arith.constant 1 : index
    %c0_45 = arith.constant 0 : index
    %c0_46 = arith.constant 0 : index
    %c0_47 = arith.constant 0 : index
    %29 = vector.load %arg1[%c1_44, %c0_45, %c0_46, %c0_47] : memref<3x3x4x128xf32, #tpu.memory_space<vmem>>, vector<1x1x4x128xf32>
    %30 = vector.shape_cast %29 : vector<1x1x4x128xf32> to vector<4x128xf32>
    %cst_48 = arith.constant dense<0.000000e+00> : vector<512x128xf32>
    %31 = tpu.matmul %27, %30, %cst_48 {dimension_numbers = #tpu.dot_dimension_numbers<[1], [0], [0], [1], [0, 0, 1, 1], [], []>} : vector<512x4xf32>, vector<4x128xf32>, vector<512x128xf32> -> vector<512x128xf32>
    %32 = arith.addf %28, %31 : vector<512x128xf32>
    %c0_49 = arith.constant 0 : index
    %c0_50 = arith.constant 0 : index
    %33 = vector.load %arg10[%c0_49, %c0_50] : memref<512x128xf32, #tpu.memory_space<vmem>>, vector<512x128xf32>
    tpu.vector_store %arg10[%c0_49, %c0_50], %32 {strides = array<i32>} : memref<512x128xf32, #tpu.memory_space<vmem>>, vector<512x128xf32>,
    %c0_51 = arith.constant 0 : index
    %c1_52 = arith.constant 1 : index
    %c1_53 = arith.constant 1 : index
    %c0_54 = arith.constant 0 : index
    %34 = vector.load %arg0[%c0_51, %c1_52, %c1_53, %c0_54] : memref<2x18x18x4xf32, #tpu.memory_space<vmem>>, vector<2x16x16x4xf32>
    %35 = vector.shape_cast %34 : vector<2x16x16x4xf32> to vector<512x4xf32>
    %c0_55 = arith.constant 0 : index
    %c0_56 = arith.constant 0 : index
    %36 = vector.load %arg10[%c0_55, %c0_56] : memref<512x128xf32, #tpu.memory_space<vmem>>, vector<512x128xf32>
    %c1_57 = arith.constant 1 : index
    %c1_58 = arith.constant 1 : index
    %c0_59 = arith.constant 0 : index
    %c0_60 = arith.constant 0 : index
    %37 = vector.load %arg1[%c1_57, %c1_58, %c0_59, %c0_60] : memref<3x3x4x128xf32, #tpu.memory_space<vmem>>, vector<1x1x4x128xf32>
    %38 = vector.shape_cast %37 : vector<1x1x4x128xf32> to vector<4x128xf32>
    %cst_61 = arith.constant dense<0.000000e+00> : vector<512x128xf32>
    %39 = tpu.matmul %35, %38, %cst_61 {dimension_numbers = #tpu.dot_dimension_numbers<[1], [0], [0], [1], [0, 0, 1, 1], [], []>} : vector<512x4xf32>, vector<4x128xf32>, vector<512x128xf32> -> vector<512x128xf32>
    %40 = arith.addf %36, %39 : vector<512x128xf32>
    %c0_62 = arith.constant 0 : index
    %c0_63 = arith.constant 0 : index
    %41 = vector.load %arg10[%c0_62, %c0_63] : memref<512x128xf32, #tpu.memory_space<vmem>>, vector<512x128xf32>
    tpu.vector_store %arg10[%c0_62, %c0_63], %40 {strides = array<i32>} : memref<512x128xf32, #tpu.memory_space<vmem>>, vector<512x128xf32>,
    %c0_64 = arith.constant 0 : index
    %c1_65 = arith.constant 1 : index
    %c2_66 = arith.constant 2 : index
    %c0_67 = arith.constant 0 : index
    %42 = vector.load %arg0[%c0_64, %c1_65, %c2_66, %c0_67] : memref<2x18x18x4xf32, #tpu.memory_space<vmem>>, vector<2x16x16x4xf32>
    %43 = vector.shape_cast %42 : vector<2x16x16x4xf32> to vector<512x4xf32>
    %c0_68 = arith.constant 0 : index
    %c0_69 = arith.constant 0 : index
    %44 = vector.load %arg10[%c0_68, %c0_69] : memref<512x128xf32, #tpu.memory_space<vmem>>, vector<512x128xf32>
    %c1_70 = arith.constant 1 : index
    %c2_71 = arith.constant 2 : index
    %c0_72 = arith.constant 0 : index
    %c0_73 = arith.constant 0 : index
    %45 = vector.load %arg1[%c1_70, %c2_71, %c0_72, %c0_73] : memref<3x3x4x128xf32, #tpu.memory_space<vmem>>, vector<1x1x4x128xf32>
    %46 = vector.shape_cast %45 : vector<1x1x4x128xf32> to vector<4x128xf32>
    %cst_74 = arith.constant dense<0.000000e+00> : vector<512x128xf32>
    %47 = tpu.matmul %43, %46, %cst_74 {dimension_numbers = #tpu.dot_dimension_numbers<[1], [0], [0], [1], [0, 0, 1, 1], [], []>} : vector<512x4xf32>, vector<4x128xf32>, vector<512x128xf32> -> vector<512x128xf32>
    %48 = arith.addf %44, %47 : vector<512x128xf32>
    %c0_75 = arith.constant 0 : index
    %c0_76 = arith.constant 0 : index
    %49 = vector.load %arg10[%c0_75, %c0_76] : memref<512x128xf32, #tpu.memory_space<vmem>>, vector<512x128xf32>
    tpu.vector_store %arg10[%c0_75, %c0_76], %48 {strides = array<i32>} : memref<512x128xf32, #tpu.memory_space<vmem>>, vector<512x128xf32>,
    %c0_77 = arith.constant 0 : index
    %c2_78 = arith.constant 2 : index
    %c0_79 = arith.constant 0 : index
    %c0_80 = arith.constant 0 : index
    %50 = vector.load %arg0[%c0_77, %c2_78, %c0_79, %c0_80] : memref<2x18x18x4xf32, #tpu.memory_space<vmem>>, vector<2x16x16x4xf32>
    %51 = vector.shape_cast %50 : vector<2x16x16x4xf32> to vector<512x4xf32>
    %c0_81 = arith.constant 0 : index
    %c0_82 = arith.constant 0 : index
    %52 = vector.load %arg10[%c0_81, %c0_82] : memref<512x128xf32, #tpu.memory_space<vmem>>, vector<512x128xf32>
    %c2_83 = arith.constant 2 : index
    %c0_84 = arith.constant 0 : index
    %c0_85 = arith.constant 0 : index
    %c0_86 = arith.constant 0 : index
    %53 = vector.load %arg1[%c2_83, %c0_84, %c0_85, %c0_86] : memref<3x3x4x128xf32, #tpu.memory_space<vmem>>, vector<1x1x4x128xf32>
    %54 = vector.shape_cast %53 : vector<1x1x4x128xf32> to vector<4x128xf32>
    %cst_87 = arith.constant dense<0.000000e+00> : vector<512x128xf32>
    %55 = tpu.matmul %51, %54, %cst_87 {dimension_numbers = #tpu.dot_dimension_numbers<[1], [0], [0], [1], [0, 0, 1, 1], [], []>} : vector<512x4xf32>, vector<4x128xf32>, vector<512x128xf32> -> vector<512x128xf32>
    %56 = arith.addf %52, %55 : vector<512x128xf32>
    %c0_88 = arith.constant 0 : index
    %c0_89 = arith.constant 0 : index
    %57 = vector.load %arg10[%c0_88, %c0_89] : memref<512x128xf32, #tpu.memory_space<vmem>>, vector<512x128xf32>
    tpu.vector_store %arg10[%c0_88, %c0_89], %56 {strides = array<i32>} : memref<512x128xf32, #tpu.memory_space<vmem>>, vector<512x128xf32>,
    %c0_90 = arith.constant 0 : index
    %c2_91 = arith.constant 2 : index
    %c1_92 = arith.constant 1 : index
    %c0_93 = arith.constant 0 : index
    %58 = vector.load %arg0[%c0_90, %c2_91, %c1_92, %c0_93] : memref<2x18x18x4xf32, #tpu.memory_space<vmem>>, vector<2x16x16x4xf32>
    %59 = vector.shape_cast %58 : vector<2x16x16x4xf32> to vector<512x4xf32>
    %c0_94 = arith.constant 0 : index
    %c0_95 = arith.constant 0 : index
    %60 = vector.load %arg10[%c0_94, %c0_95] : memref<512x128xf32, #tpu.memory_space<vmem>>, vector<512x128xf32>
    %c2_96 = arith.constant 2 : index
    %c1_97 = arith.constant 1 : index
    %c0_98 = arith.constant 0 : index
    %c0_99 = arith.constant 0 : index
    %61 = vector.load %arg1[%c2_96, %c1_97, %c0_98, %c0_99] : memref<3x3x4x128xf32, #tpu.memory_space<vmem>>, vector<1x1x4x128xf32>
    %62 = vector.shape_cast %61 : vector<1x1x4x128xf32> to vector<4x128xf32>
    %cst_100 = arith.constant dense<0.000000e+00> : vector<512x128xf32>
    %63 = tpu.matmul %59, %62, %cst_100 {dimension_numbers = #tpu.dot_dimension_numbers<[1], [0], [0], [1], [0, 0, 1, 1], [], []>} : vector<512x4xf32>, vector<4x128xf32>, vector<512x128xf32> -> vector<512x128xf32>
    %64 = arith.addf %60, %63 : vector<512x128xf32>
    %c0_101 = arith.constant 0 : index
    %c0_102 = arith.constant 0 : index
    %65 = vector.load %arg10[%c0_101, %c0_102] : memref<512x128xf32, #tpu.memory_space<vmem>>, vector<512x128xf32>
    tpu.vector_store %arg10[%c0_101, %c0_102], %64 {strides = array<i32>} : memref<512x128xf32, #tpu.memory_space<vmem>>, vector<512x128xf32>,
    %c0_103 = arith.constant 0 : index
    %c2_104 = arith.constant 2 : index
    %c2_105 = arith.constant 2 : index
    %c0_106 = arith.constant 0 : index
    %66 = vector.load %arg0[%c0_103, %c2_104, %c2_105, %c0_106] : memref<2x18x18x4xf32, #tpu.memory_space<vmem>>, vector<2x16x16x4xf32>
    %67 = vector.shape_cast %66 : vector<2x16x16x4xf32> to vector<512x4xf32>
    %c0_107 = arith.constant 0 : index
    %c0_108 = arith.constant 0 : index
    %68 = vector.load %arg10[%c0_107, %c0_108] : memref<512x128xf32, #tpu.memory_space<vmem>>, vector<512x128xf32>
    %c2_109 = arith.constant 2 : index
    %c2_110 = arith.constant 2 : index
    %c0_111 = arith.constant 0 : index
    %c0_112 = arith.constant 0 : index
    %69 = vector.load %arg1[%c2_109, %c2_110, %c0_111, %c0_112] : memref<3x3x4x128xf32, #tpu.memory_space<vmem>>, vector<1x1x4x128xf32>
    %70 = vector.shape_cast %69 : vector<1x1x4x128xf32> to vector<4x128xf32>
    %cst_113 = arith.constant dense<0.000000e+00> : vector<512x128xf32>
    %71 = tpu.matmul %67, %70, %cst_113 {dimension_numbers = #tpu.dot_dimension_numbers<[1], [0], [0], [1], [0, 0, 1, 1], [], []>} : vector<512x4xf32>, vector<4x128xf32>, vector<512x128xf32> -> vector<512x128xf32>
    %72 = arith.addf %68, %71 : vector<512x128xf32>
    %c0_114 = arith.constant 0 : index
    %c0_115 = arith.constant 0 : index
    %73 = vector.load %arg10[%c0_114, %c0_115] : memref<512x128xf32, #tpu.memory_space<vmem>>, vector<512x128xf32>
    tpu.vector_store %arg10[%c0_114, %c0_115], %72 {strides = array<i32>} : memref<512x128xf32, #tpu.memory_space<vmem>>, vector<512x128xf32>,
    %c0_116 = arith.constant 0 : index
    %c0_117 = arith.constant 0 : index
    %74 = vector.load %arg10[%c0_116, %c0_117] : memref<512x128xf32, #tpu.memory_space<vmem>>, vector<512x128xf32>
    %c0_118 = arith.constant 0 : index
    %c0_119 = arith.constant 0 : index
    %75 = vector.load %arg2[%c0_118, %c0_119] : memref<1x128xf32, #tpu.memory_space<vmem>>, vector<1x128xf32>
    %76 = vector.broadcast %75 : vector<1x128xf32> to vector<512x128xf32>
    %77 = arith.addf %74, %76 : vector<512x128xf32>
    %cst_120 = arith.constant dense<0.000000e+00> : vector<128xf32>
    %78 = vector.multi_reduction <add>, %77, %cst_120 [0] : vector<512x128xf32> to vector<128xf32>
    %79 = vector.shape_cast %78 : vector<128xf32> to vector<1x128xf32>
    %cst_121 = arith.constant 5.120000e+02 : f32
    %80 = vector.broadcast %cst_121 : f32 to vector<1x128xf32>
    %81 = arith.divf %79, %80 : vector<1x128xf32>
    %82 = vector.broadcast %81 : vector<1x128xf32> to vector<512x128xf32>
    %83 = arith.subf %77, %82 : vector<512x128xf32>
    %84 = arith.mulf %83, %83 : vector<512x128xf32>
    %cst_122 = arith.constant dense<0.000000e+00> : vector<128xf32>
    %85 = vector.multi_reduction <add>, %84, %cst_122 [0] : vector<512x128xf32> to vector<128xf32>
    %86 = vector.shape_cast %85 : vector<128xf32> to vector<1x128xf32>
    %cst_123 = arith.constant 5.120000e+02 : f32
    %87 = vector.broadcast %cst_123 : f32 to vector<1x128xf32>
    %88 = arith.divf %86, %87 : vector<1x128xf32>
    %c0_124 = arith.constant 0 : index
    %c0_125 = arith.constant 0 : index
    %89 = vector.load %arg3[%c0_124, %c0_125] : memref<1x128xf32, #tpu.memory_space<vmem>>, vector<1x128xf32>
    %cst_126 = arith.constant 9.99999974E-6 : f32
    %90 = vector.broadcast %cst_126 : f32 to vector<1x128xf32>
    %91 = arith.addf %88, %90 : vector<1x128xf32>
    %92 = math.rsqrt %91 : vector<1x128xf32>
    %93 = arith.mulf %89, %92 : vector<1x128xf32>
    %94 = vector.broadcast %93 : vector<1x128xf32> to vector<512x128xf32>
    %95 = arith.mulf %83, %94 : vector<512x128xf32>
    %c0_127 = arith.constant 0 : index
    %c0_128 = arith.constant 0 : index
    %96 = vector.load %arg4[%c0_127, %c0_128] : memref<1x128xf32, #tpu.memory_space<vmem>>, vector<1x128xf32>
    %97 = vector.broadcast %96 : vector<1x128xf32> to vector<512x128xf32>
    %98 = arith.addf %95, %97 : vector<512x128xf32>
    %cst_129 = arith.constant 0.000000e+00 : f32
    %99 = vector.broadcast %cst_129 : f32 to vector<512x128xf32>
    %100 = arith.maximumf %98, %99 : vector<512x128xf32>
    %cst_130 = arith.constant 0.000000e+00 : f32
    %101 = vector.broadcast %cst_130 : f32 to vector<2x18x18x128xf32>
    %c0_131 = arith.constant 0 : index
    %c0_132 = arith.constant 0 : index
    %c0_133 = arith.constant 0 : index
    %c0_134 = arith.constant 0 : index
    %102 = vector.load %arg11[%c0_131, %c0_132, %c0_133, %c0_134] : memref<2x18x18x128xf32, #tpu.memory_space<vmem>>, vector<2x18x18x128xf32>
    tpu.vector_store %arg11[%c0_131, %c0_132, %c0_133, %c0_134], %101 {strides = array<i32>} : memref<2x18x18x128xf32, #tpu.memory_space<vmem>>, vector<2x18x18x128xf32>,
    %103 = vector.shape_cast %100 : vector<512x128xf32> to vector<2x16x16x128xf32>
    %c0_135 = arith.constant 0 : index
    %c1_136 = arith.constant 1 : index
    %c1_137 = arith.constant 1 : index
    %c0_138 = arith.constant 0 : index
    %104 = vector.load %arg11[%c0_135, %c1_136, %c1_137, %c0_138] : memref<2x18x18x128xf32, #tpu.memory_space<vmem>>, vector<2x16x16x128xf32>
    tpu.vector_store %arg11[%c0_135, %c1_136, %c1_137, %c0_138], %103 {strides = array<i32>} : memref<2x18x18x128xf32, #tpu.memory_space<vmem>>, vector<2x16x16x128xf32>,
    %cst_139 = arith.constant 0.000000e+00 : f32
    %105 = vector.broadcast %cst_139 : f32 to vector<128x128xf32>
    %c0_140 = arith.constant 0 : index
    %c0_141 = arith.constant 0 : index
    %106 = vector.load %arg12[%c0_140, %c0_141] : memref<128x128xf32, #tpu.memory_space<vmem>>, vector<128x128xf32>
    tpu.vector_store %arg12[%c0_140, %c0_141], %105 {strides = array<i32>} : memref<128x128xf32, #tpu.memory_space<vmem>>, vector<128x128xf32>,
    %c0_142 = arith.constant 0 : index
    %c0_143 = arith.constant 0 : index
    %c0_144 = arith.constant 0 : index
    %c0_145 = arith.constant 0 : index
    %107 = tpu.strided_load %arg11[%c0_142, %c0_143, %c0_144, %c0_145] {strides = array<i32: 1, 2, 2, 1>} : memref<2x18x18x128xf32, #tpu.memory_space<vmem>>, vector<2x8x8x128xf32>
    %108 = vector.shape_cast %107 : vector<2x8x8x128xf32> to vector<128x128xf32>
    %c0_146 = arith.constant 0 : index
    %c0_147 = arith.constant 0 : index
    %109 = vector.load %arg12[%c0_146, %c0_147] : memref<128x128xf32, #tpu.memory_space<vmem>>, vector<128x128xf32>
    %c0_148 = arith.constant 0 : index
    %c0_149 = arith.constant 0 : index
    %c0_150 = arith.constant 0 : index
    %c0_151 = arith.constant 0 : index
    %110 = vector.load %arg5[%c0_148, %c0_149, %c0_150, %c0_151] : memref<3x3x128x128xf32, #tpu.memory_space<vmem>>, vector<1x1x128x128xf32>
    %111 = vector.shape_cast %110 : vector<1x1x128x128xf32> to vector<128x128xf32>
    %cst_152 = arith.constant dense<0.000000e+00> : vector<128x128xf32>
    %112 = tpu.matmul %108, %111, %cst_152 {dimension_numbers = #tpu.dot_dimension_numbers<[1], [0], [0], [1], [0, 0, 1, 1], [], []>} : vector<128x128xf32>, vector<128x128xf32>, vector<128x128xf32> -> vector<128x128xf32>
    %113 = arith.addf %109, %112 : vector<128x128xf32>
    %c0_153 = arith.constant 0 : index
    %c0_154 = arith.constant 0 : index
    %114 = vector.load %arg12[%c0_153, %c0_154] : memref<128x128xf32, #tpu.memory_space<vmem>>, vector<128x128xf32>
    tpu.vector_store %arg12[%c0_153, %c0_154], %113 {strides = array<i32>} : memref<128x128xf32, #tpu.memory_space<vmem>>, vector<128x128xf32>,
    %c0_155 = arith.constant 0 : index
    %c0_156 = arith.constant 0 : index
    %c1_157 = arith.constant 1 : index
    %c0_158 = arith.constant 0 : index
    %115 = tpu.strided_load %arg11[%c0_155, %c0_156, %c1_157, %c0_158] {strides = array<i32: 1, 2, 2, 1>} : memref<2x18x18x128xf32, #tpu.memory_space<vmem>>, vector<2x8x8x128xf32>
    %116 = vector.shape_cast %115 : vector<2x8x8x128xf32> to vector<128x128xf32>
    %c0_159 = arith.constant 0 : index
    %c0_160 = arith.constant 0 : index
    %117 = vector.load %arg12[%c0_159, %c0_160] : memref<128x128xf32, #tpu.memory_space<vmem>>, vector<128x128xf32>
    %c0_161 = arith.constant 0 : index
    %c1_162 = arith.constant 1 : index
    %c0_163 = arith.constant 0 : index
    %c0_164 = arith.constant 0 : index
    %118 = vector.load %arg5[%c0_161, %c1_162, %c0_163, %c0_164] : memref<3x3x128x128xf32, #tpu.memory_space<vmem>>, vector<1x1x128x128xf32>
    %119 = vector.shape_cast %118 : vector<1x1x128x128xf32> to vector<128x128xf32>
    %cst_165 = arith.constant dense<0.000000e+00> : vector<128x128xf32>
    %120 = tpu.matmul %116, %119, %cst_165 {dimension_numbers = #tpu.dot_dimension_numbers<[1], [0], [0], [1], [0, 0, 1, 1], [], []>} : vector<128x128xf32>, vector<128x128xf32>, vector<128x128xf32> -> vector<128x128xf32>
    %121 = arith.addf %117, %120 : vector<128x128xf32>
    %c0_166 = arith.constant 0 : index
    %c0_167 = arith.constant 0 : index
    %122 = vector.load %arg12[%c0_166, %c0_167] : memref<128x128xf32, #tpu.memory_space<vmem>>, vector<128x128xf32>
    tpu.vector_store %arg12[%c0_166, %c0_167], %121 {strides = array<i32>} : memref<128x128xf32, #tpu.memory_space<vmem>>, vector<128x128xf32>,
    %c0_168 = arith.constant 0 : index
    %c0_169 = arith.constant 0 : index
    %c2_170 = arith.constant 2 : index
    %c0_171 = arith.constant 0 : index
    %123 = tpu.strided_load %arg11[%c0_168, %c0_169, %c2_170, %c0_171] {strides = array<i32: 1, 2, 2, 1>} : memref<2x18x18x128xf32, #tpu.memory_space<vmem>>, vector<2x8x8x128xf32>
    %124 = vector.shape_cast %123 : vector<2x8x8x128xf32> to vector<128x128xf32>
    %c0_172 = arith.constant 0 : index
    %c0_173 = arith.constant 0 : index
    %125 = vector.load %arg12[%c0_172, %c0_173] : memref<128x128xf32, #tpu.memory_space<vmem>>, vector<128x128xf32>
    %c0_174 = arith.constant 0 : index
    %c2_175 = arith.constant 2 : index
    %c0_176 = arith.constant 0 : index
    %c0_177 = arith.constant 0 : index
    %126 = vector.load %arg5[%c0_174, %c2_175, %c0_176, %c0_177] : memref<3x3x128x128xf32, #tpu.memory_space<vmem>>, vector<1x1x128x128xf32>
    %127 = vector.shape_cast %126 : vector<1x1x128x128xf32> to vector<128x128xf32>
    %cst_178 = arith.constant dense<0.000000e+00> : vector<128x128xf32>
    %128 = tpu.matmul %124, %127, %cst_178 {dimension_numbers = #tpu.dot_dimension_numbers<[1], [0], [0], [1], [0, 0, 1, 1], [], []>} : vector<128x128xf32>, vector<128x128xf32>, vector<128x128xf32> -> vector<128x128xf32>
    %129 = arith.addf %125, %128 : vector<128x128xf32>
    %c0_179 = arith.constant 0 : index
    %c0_180 = arith.constant 0 : index
    %130 = vector.load %arg12[%c0_179, %c0_180] : memref<128x128xf32, #tpu.memory_space<vmem>>, vector<128x128xf32>
    tpu.vector_store %arg12[%c0_179, %c0_180], %129 {strides = array<i32>} : memref<128x128xf32, #tpu.memory_space<vmem>>, vector<128x128xf32>,
    %c0_181 = arith.constant 0 : index
    %c1_182 = arith.constant 1 : index
    %c0_183 = arith.constant 0 : index
    %c0_184 = arith.constant 0 : index
    %131 = tpu.strided_load %arg11[%c0_181, %c1_182, %c0_183, %c0_184] {strides = array<i32: 1, 2, 2, 1>} : memref<2x18x18x128xf32, #tpu.memory_space<vmem>>, vector<2x8x8x128xf32>
    %132 = vector.shape_cast %131 : vector<2x8x8x128xf32> to vector<128x128xf32>
    %c0_185 = arith.constant 0 : index
    %c0_186 = arith.constant 0 : index
    %133 = vector.load %arg12[%c0_185, %c0_186] : memref<128x128xf32, #tpu.memory_space<vmem>>, vector<128x128xf32>
    %c1_187 = arith.constant 1 : index
    %c0_188 = arith.constant 0 : index
    %c0_189 = arith.constant 0 : index
    %c0_190 = arith.constant 0 : index
    %134 = vector.load %arg5[%c1_187, %c0_188, %c0_189, %c0_190] : memref<3x3x128x128xf32, #tpu.memory_space<vmem>>, vector<1x1x128x128xf32>
    %135 = vector.shape_cast %134 : vector<1x1x128x128xf32> to vector<128x128xf32>
    %cst_191 = arith.constant dense<0.000000e+00> : vector<128x128xf32>
    %136 = tpu.matmul %132, %135, %cst_191 {dimension_numbers = #tpu.dot_dimension_numbers<[1], [0], [0], [1], [0, 0, 1, 1], [], []>} : vector<128x128xf32>, vector<128x128xf32>, vector<128x128xf32> -> vector<128x128xf32>
    %137 = arith.addf %133, %136 : vector<128x128xf32>
    %c0_192 = arith.constant 0 : index
    %c0_193 = arith.constant 0 : index
    %138 = vector.load %arg12[%c0_192, %c0_193] : memref<128x128xf32, #tpu.memory_space<vmem>>, vector<128x128xf32>
    tpu.vector_store %arg12[%c0_192, %c0_193], %137 {strides = array<i32>} : memref<128x128xf32, #tpu.memory_space<vmem>>, vector<128x128xf32>,
    %c0_194 = arith.constant 0 : index
    %c1_195 = arith.constant 1 : index
    %c1_196 = arith.constant 1 : index
    %c0_197 = arith.constant 0 : index
    %139 = tpu.strided_load %arg11[%c0_194, %c1_195, %c1_196, %c0_197] {strides = array<i32: 1, 2, 2, 1>} : memref<2x18x18x128xf32, #tpu.memory_space<vmem>>, vector<2x8x8x128xf32>
    %140 = vector.shape_cast %139 : vector<2x8x8x128xf32> to vector<128x128xf32>
    %c0_198 = arith.constant 0 : index
    %c0_199 = arith.constant 0 : index
    %141 = vector.load %arg12[%c0_198, %c0_199] : memref<128x128xf32, #tpu.memory_space<vmem>>, vector<128x128xf32>
    %c1_200 = arith.constant 1 : index
    %c1_201 = arith.constant 1 : index
    %c0_202 = arith.constant 0 : index
    %c0_203 = arith.constant 0 : index
    %142 = vector.load %arg5[%c1_200, %c1_201, %c0_202, %c0_203] : memref<3x3x128x128xf32, #tpu.memory_space<vmem>>, vector<1x1x128x128xf32>
    %143 = vector.shape_cast %142 : vector<1x1x128x128xf32> to vector<128x128xf32>
    %cst_204 = arith.constant dense<0.000000e+00> : vector<128x128xf32>
    %144 = tpu.matmul %140, %143, %cst_204 {dimension_numbers = #tpu.dot_dimension_numbers<[1], [0], [0], [1], [0, 0, 1, 1], [], []>} : vector<128x128xf32>, vector<128x128xf32>, vector<128x128xf32> -> vector<128x128xf32>
    %145 = arith.addf %141, %144 : vector<128x128xf32>
    %c0_205 = arith.constant 0 : index
    %c0_206 = arith.constant 0 : index
    %146 = vector.load %arg12[%c0_205, %c0_206] : memref<128x128xf32, #tpu.memory_space<vmem>>, vector<128x128xf32>
    tpu.vector_store %arg12[%c0_205, %c0_206], %145 {strides = array<i32>} : memref<128x128xf32, #tpu.memory_space<vmem>>, vector<128x128xf32>,
    %c0_207 = arith.constant 0 : index
    %c1_208 = arith.constant 1 : index
    %c2_209 = arith.constant 2 : index
    %c0_210 = arith.constant 0 : index
    %147 = tpu.strided_load %arg11[%c0_207, %c1_208, %c2_209, %c0_210] {strides = array<i32: 1, 2, 2, 1>} : memref<2x18x18x128xf32, #tpu.memory_space<vmem>>, vector<2x8x8x128xf32>
    %148 = vector.shape_cast %147 : vector<2x8x8x128xf32> to vector<128x128xf32>
    %c0_211 = arith.constant 0 : index
    %c0_212 = arith.constant 0 : index
    %149 = vector.load %arg12[%c0_211, %c0_212] : memref<128x128xf32, #tpu.memory_space<vmem>>, vector<128x128xf32>
    %c1_213 = arith.constant 1 : index
    %c2_214 = arith.constant 2 : index
    %c0_215 = arith.constant 0 : index
    %c0_216 = arith.constant 0 : index
    %150 = vector.load %arg5[%c1_213, %c2_214, %c0_215, %c0_216] : memref<3x3x128x128xf32, #tpu.memory_space<vmem>>, vector<1x1x128x128xf32>
    %151 = vector.shape_cast %150 : vector<1x1x128x128xf32> to vector<128x128xf32>
    %cst_217 = arith.constant dense<0.000000e+00> : vector<128x128xf32>
    %152 = tpu.matmul %148, %151, %cst_217 {dimension_numbers = #tpu.dot_dimension_numbers<[1], [0], [0], [1], [0, 0, 1, 1], [], []>} : vector<128x128xf32>, vector<128x128xf32>, vector<128x128xf32> -> vector<128x128xf32>
    %153 = arith.addf %149, %152 : vector<128x128xf32>
    %c0_218 = arith.constant 0 : index
    %c0_219 = arith.constant 0 : index
    %154 = vector.load %arg12[%c0_218, %c0_219] : memref<128x128xf32, #tpu.memory_space<vmem>>, vector<128x128xf32>
    tpu.vector_store %arg12[%c0_218, %c0_219], %153 {strides = array<i32>} : memref<128x128xf32, #tpu.memory_space<vmem>>, vector<128x128xf32>,
    %c0_220 = arith.constant 0 : index
    %c2_221 = arith.constant 2 : index
    %c0_222 = arith.constant 0 : index
    %c0_223 = arith.constant 0 : index
    %155 = tpu.strided_load %arg11[%c0_220, %c2_221, %c0_222, %c0_223] {strides = array<i32: 1, 2, 2, 1>} : memref<2x18x18x128xf32, #tpu.memory_space<vmem>>, vector<2x8x8x128xf32>
    %156 = vector.shape_cast %155 : vector<2x8x8x128xf32> to vector<128x128xf32>
    %c0_224 = arith.constant 0 : index
    %c0_225 = arith.constant 0 : index
    %157 = vector.load %arg12[%c0_224, %c0_225] : memref<128x128xf32, #tpu.memory_space<vmem>>, vector<128x128xf32>
    %c2_226 = arith.constant 2 : index
    %c0_227 = arith.constant 0 : index
    %c0_228 = arith.constant 0 : index
    %c0_229 = arith.constant 0 : index
    %158 = vector.load %arg5[%c2_226, %c0_227, %c0_228, %c0_229] : memref<3x3x128x128xf32, #tpu.memory_space<vmem>>, vector<1x1x128x128xf32>
    %159 = vector.shape_cast %158 : vector<1x1x128x128xf32> to vector<128x128xf32>
    %cst_230 = arith.constant dense<0.000000e+00> : vector<128x128xf32>
    %160 = tpu.matmul %156, %159, %cst_230 {dimension_numbers = #tpu.dot_dimension_numbers<[1], [0], [0], [1], [0, 0, 1, 1], [], []>} : vector<128x128xf32>, vector<128x128xf32>, vector<128x128xf32> -> vector<128x128xf32>
    %161 = arith.addf %157, %160 : vector<128x128xf32>
    %c0_231 = arith.constant 0 : index
    %c0_232 = arith.constant 0 : index
    %162 = vector.load %arg12[%c0_231, %c0_232] : memref<128x128xf32, #tpu.memory_space<vmem>>, vector<128x128xf32>
    tpu.vector_store %arg12[%c0_231, %c0_232], %161 {strides = array<i32>} : memref<128x128xf32, #tpu.memory_space<vmem>>, vector<128x128xf32>,
    %c0_233 = arith.constant 0 : index
    %c2_234 = arith.constant 2 : index
    %c1_235 = arith.constant 1 : index
    %c0_236 = arith.constant 0 : index
    %163 = tpu.strided_load %arg11[%c0_233, %c2_234, %c1_235, %c0_236] {strides = array<i32: 1, 2, 2, 1>} : memref<2x18x18x128xf32, #tpu.memory_space<vmem>>, vector<2x8x8x128xf32>
    %164 = vector.shape_cast %163 : vector<2x8x8x128xf32> to vector<128x128xf32>
    %c0_237 = arith.constant 0 : index
    %c0_238 = arith.constant 0 : index
    %165 = vector.load %arg12[%c0_237, %c0_238] : memref<128x128xf32, #tpu.memory_space<vmem>>, vector<128x128xf32>
    %c2_239 = arith.constant 2 : index
    %c1_240 = arith.constant 1 : index
    %c0_241 = arith.constant 0 : index
    %c0_242 = arith.constant 0 : index
    %166 = vector.load %arg5[%c2_239, %c1_240, %c0_241, %c0_242] : memref<3x3x128x128xf32, #tpu.memory_space<vmem>>, vector<1x1x128x128xf32>
    %167 = vector.shape_cast %166 : vector<1x1x128x128xf32> to vector<128x128xf32>
    %cst_243 = arith.constant dense<0.000000e+00> : vector<128x128xf32>
    %168 = tpu.matmul %164, %167, %cst_243 {dimension_numbers = #tpu.dot_dimension_numbers<[1], [0], [0], [1], [0, 0, 1, 1], [], []>} : vector<128x128xf32>, vector<128x128xf32>, vector<128x128xf32> -> vector<128x128xf32>
    %169 = arith.addf %165, %168 : vector<128x128xf32>
    %c0_244 = arith.constant 0 : index
    %c0_245 = arith.constant 0 : index
    %170 = vector.load %arg12[%c0_244, %c0_245] : memref<128x128xf32, #tpu.memory_space<vmem>>, vector<128x128xf32>
    tpu.vector_store %arg12[%c0_244, %c0_245], %169 {strides = array<i32>} : memref<128x128xf32, #tpu.memory_space<vmem>>, vector<128x128xf32>,
    %c0_246 = arith.constant 0 : index
    %c2_247 = arith.constant 2 : index
    %c2_248 = arith.constant 2 : index
    %c0_249 = arith.constant 0 : index
    %171 = tpu.strided_load %arg11[%c0_246, %c2_247, %c2_248, %c0_249] {strides = array<i32: 1, 2, 2, 1>} : memref<2x18x18x128xf32, #tpu.memory_space<vmem>>, vector<2x8x8x128xf32>
    %172 = vector.shape_cast %171 : vector<2x8x8x128xf32> to vector<128x128xf32>
    %c0_250 = arith.constant 0 : index
    %c0_251 = arith.constant 0 : index
    %173 = vector.load %arg12[%c0_250, %c0_251] : memref<128x128xf32, #tpu.memory_space<vmem>>, vector<128x128xf32>
    %c2_252 = arith.constant 2 : index
    %c2_253 = arith.constant 2 : index
    %c0_254 = arith.constant 0 : index
    %c0_255 = arith.constant 0 : index
    %174 = vector.load %arg5[%c2_252, %c2_253, %c0_254, %c0_255] : memref<3x3x128x128xf32, #tpu.memory_space<vmem>>, vector<1x1x128x128xf32>
    %175 = vector.shape_cast %174 : vector<1x1x128x128xf32> to vector<128x128xf32>
    %cst_256 = arith.constant dense<0.000000e+00> : vector<128x128xf32>
    %176 = tpu.matmul %172, %175, %cst_256 {dimension_numbers = #tpu.dot_dimension_numbers<[1], [0], [0], [1], [0, 0, 1, 1], [], []>} : vector<128x128xf32>, vector<128x128xf32>, vector<128x128xf32> -> vector<128x128xf32>
    %177 = arith.addf %173, %176 : vector<128x128xf32>
    %c0_257 = arith.constant 0 : index
    %c0_258 = arith.constant 0 : index
    %178 = vector.load %arg12[%c0_257, %c0_258] : memref<128x128xf32, #tpu.memory_space<vmem>>, vector<128x128xf32>
    tpu.vector_store %arg12[%c0_257, %c0_258], %177 {strides = array<i32>} : memref<128x128xf32, #tpu.memory_space<vmem>>, vector<128x128xf32>,
    %c0_259 = arith.constant 0 : index
    %c0_260 = arith.constant 0 : index
    %179 = vector.load %arg12[%c0_259, %c0_260] : memref<128x128xf32, #tpu.memory_space<vmem>>, vector<128x128xf32>
    %c0_261 = arith.constant 0 : index
    %c0_262 = arith.constant 0 : index
    %180 = vector.load %arg6[%c0_261, %c0_262] : memref<1x128xf32, #tpu.memory_space<vmem>>, vector<1x128xf32>
    %181 = vector.broadcast %180 : vector<1x128xf32> to vector<128x128xf32>
    %182 = arith.addf %179, %181 : vector<128x128xf32>
    %cst_263 = arith.constant dense<0.000000e+00> : vector<128xf32>
    %183 = vector.multi_reduction <add>, %182, %cst_263 [0] : vector<128x128xf32> to vector<128xf32>
    %184 = vector.shape_cast %183 : vector<128xf32> to vector<1x128xf32>
    %cst_264 = arith.constant 1.280000e+02 : f32
    %185 = vector.broadcast %cst_264 : f32 to vector<1x128xf32>
    %186 = arith.divf %184, %185 : vector<1x128xf32>
    %187 = vector.broadcast %186 : vector<1x128xf32> to vector<128x128xf32>
    %188 = arith.subf %182, %187 : vector<128x128xf32>
    %189 = arith.mulf %188, %188 : vector<128x128xf32>
    %cst_265 = arith.constant dense<0.000000e+00> : vector<128xf32>
    %190 = vector.multi_reduction <add>, %189, %cst_265 [0] : vector<128x128xf32> to vector<128xf32>
    %191 = vector.shape_cast %190 : vector<128xf32> to vector<1x128xf32>
    %cst_266 = arith.constant 1.280000e+02 : f32
    %192 = vector.broadcast %cst_266 : f32 to vector<1x128xf32>
    %193 = arith.divf %191, %192 : vector<1x128xf32>
    %c0_267 = arith.constant 0 : index
    %c0_268 = arith.constant 0 : index
    %194 = vector.load %arg7[%c0_267, %c0_268] : memref<1x128xf32, #tpu.memory_space<vmem>>, vector<1x128xf32>
    %cst_269 = arith.constant 9.99999974E-6 : f32
    %195 = vector.broadcast %cst_269 : f32 to vector<1x128xf32>
    %196 = arith.addf %193, %195 : vector<1x128xf32>
    %197 = math.rsqrt %196 : vector<1x128xf32>
    %198 = arith.mulf %194, %197 : vector<1x128xf32>
    %199 = vector.broadcast %198 : vector<1x128xf32> to vector<128x128xf32>
    %200 = arith.mulf %188, %199 : vector<128x128xf32>
    %c0_270 = arith.constant 0 : index
    %c0_271 = arith.constant 0 : index
    %201 = vector.load %arg8[%c0_270, %c0_271] : memref<1x128xf32, #tpu.memory_space<vmem>>, vector<1x128xf32>
    %202 = vector.broadcast %201 : vector<1x128xf32> to vector<128x128xf32>
    %203 = arith.addf %200, %202 : vector<128x128xf32>
    %cst_272 = arith.constant 0.000000e+00 : f32
    %204 = vector.broadcast %cst_272 : f32 to vector<128x128xf32>
    %205 = arith.maximumf %203, %204 : vector<128x128xf32>
    %206 = vector.shape_cast %205 : vector<128x128xf32> to vector<2x8x8x128xf32>
    %c0_273 = arith.constant 0 : index
    %c0_274 = arith.constant 0 : index
    %c0_275 = arith.constant 0 : index
    %c0_276 = arith.constant 0 : index
    %207 = vector.load %arg9[%c0_273, %c0_274, %c0_275, %c0_276] : memref<2x8x8x128xf32, #tpu.memory_space<vmem>>, vector<2x8x8x128xf32>
    tpu.vector_store %arg9[%c0_273, %c0_274, %c0_275, %c0_276], %206 {strides = array<i32>} : memref<2x8x8x128xf32, #tpu.memory_space<vmem>>, vector<2x8x8x128xf32>,
    return
  }
}

</mosaic_0001>

<llo_original>
// kernel: down_conv_v2.1
$region0: #{down_conv_v2.1}
  #allocation0 [shape = 'u32[]', space=smem, size = 0x4, offset = 0x4, fixed_abs, tag = 'smem constant byte address 0x4 - core index']
  #allocation1 [shape = 'u32[144,128]{1,0:T(1,128)}', space=vmem, size = 0x12000, scoped, tag = 'internal scratch']
  #allocation2 [shape = 'f32[512,128]{1,0:T(8,128)}', space=vmem, size = 0x40000, scoped, tag = 'scratch operand']
  #allocation3 [shape = 'f32[2,18,18,128]{3,2,1,0:T(8,128)}', space=vmem, size = 0x6c000, scoped, tag = 'scratch operand']
  #allocation4 [shape = 'f32[128,128]{1,0:T(8,128)}', space=vmem, size = 0x10000, scoped, tag = 'scratch operand']
  %s0 = inlined_call_operand.vmem [shape: f32[2,18,18,4], index: 0, kind: input, shape index: {}]
  %s1 = inlined_call_operand.vmem [shape: f32[3,3,4,128], index: 1, kind: input, shape index: {}]
  %s2 = inlined_call_operand.vmem [shape: f32[1,128], index: 2, kind: input, shape index: {}]
  %s3 = inlined_call_operand.vmem [shape: f32[1,128], index: 3, kind: input, shape index: {}]
  %s4 = inlined_call_operand.vmem [shape: f32[1,128], index: 4, kind: input, shape index: {}]
  %s5 = inlined_call_operand.vmem [shape: f32[3,3,128,128], index: 5, kind: input, shape index: {}]
  %s6 = inlined_call_operand.vmem [shape: f32[1,128], index: 6, kind: input, shape index: {}]
  %s7 = inlined_call_operand.vmem [shape: f32[1,128], index: 7, kind: input, shape index: {}]
  %s8 = inlined_call_operand.vmem [shape: f32[1,128], index: 8, kind: input, shape index: {}]
  %s9 = inlined_call_operand.vmem [shape: f32[2,8,8,128], index: 9, kind: output, shape index: {}]
  %s10 = sld [smem:[#allocation0]]
  $region46: #{down_conv_v2.1} parent=0
    _
  %s12 = ssub.s32 1, %s10
  %s13 = scalar_select 0, %s12, %s10
  // Predicated region
  $region2: #{down_conv_v2.1} parent=0 // pred_check
    _
  $region3: #{down_conv_v2.1} parent=0 // pred_check_branch
    %15 = sbr.rel (0) target = $region5
  $region4: #{down_conv_v2.1} parent=0 // pred_region
    _
  $region5: #{down_conv_v2.1} parent=0 // pred_fallthru
    _
  // Predicated region
  $region6: #{down_conv_v2.1} parent=0 // pred_check
    _
  $region7: #{down_conv_v2.1} parent=0 // pred_check_branch
    %17 = sbr.rel (0) target = $region9
  $region8: #{down_conv_v2.1} parent=0 // pred_region
    _
  $region9: #{down_conv_v2.1} parent=0 // pred_fallthru
    _
  // Predicated region
  $region10: #{down_conv_v2.1} parent=0 // pred_check
    _
  $region11: #{down_conv_v2.1} parent=0 // pred_check_branch
    %19 = sbr.rel (0) target = $region13
  $region12: #{down_conv_v2.1} parent=0 // pred_region
    _
  $region13: #{down_conv_v2.1} parent=0 // pred_fallthru
    _
  // Predicated region
  $region14: #{down_conv_v2.1} parent=0 // pred_check
    _
  $region15: #{down_conv_v2.1} parent=0 // pred_check_branch
    %21 = sbr.rel (0) target = $region17
  $region16: #{down_conv_v2.1} parent=0 // pred_region
    _
  $region17: #{down_conv_v2.1} parent=0 // pred_fallthru
    _
  // Predicated region
  $region18: #{down_conv_v2.1} parent=0 // pred_check
    _
  $region19: #{down_conv_v2.1} parent=0 // pred_check_branch
    %23 = sbr.rel (0) target = $region21
  $region20: #{down_conv_v2.1} parent=0 // pred_region
    _
  $region21: #{down_conv_v2.1} parent=0 // pred_fallthru
    _
  // Predicated region
  $region22: #{down_conv_v2.1} parent=0 // pred_check
    _
  $region23: #{down_conv_v2.1} parent=0 // pred_check_branch
    %25 = sbr.rel (0) target = $region25
  $region24: #{down_conv_v2.1} parent=0 // pred_region
    _
  $region25: #{down_conv_v2.1} parent=0 // pred_fallthru
    _
  // Predicated region
  $region26: #{down_conv_v2.1} parent=0 // pred_check
    _
  $region27: #{down_conv_v2.1} parent=0 // pred_check_branch
    %27 = sbr.rel (0) target = $region29
  $region28: #{down_conv_v2.1} parent=0 // pred_region
    _
  $region29: #{down_conv_v2.1} parent=0 // pred_fallthru
    _
  // Predicated region
  $region30: #{down_conv_v2.1} parent=0 // pred_check
    _
  $region31: #{down_conv_v2.1} parent=0 // pred_check_branch
    %29 = sbr.rel (0) target = $region33
  $region32: #{down_conv_v2.1} parent=0 // pred_region
    _
  $region33: #{down_conv_v2.1} parent=0 // pred_fallthru
    _
  // Predicated region
  $region34: #{down_conv_v2.1} parent=0 // pred_check
    _
  $region35: #{down_conv_v2.1} parent=0 // pred_check_branch
    %31 = sbr.rel (0) target = $region37
  $region36: #{down_conv_v2.1} parent=0 // pred_region
    _
  $region37: #{down_conv_v2.1} parent=0 // pred_fallthru
    _
  %32 = vst [vmem:[#allocation2] sm:$0xff] 0.0
  %33 = vst [vmem:[#allocation2 + $0x8] sm:$0xff] 0.0
  %34 = vst [vmem:[#allocation2 + $0x10] sm:$0xff] 0.0
  %35 = vst [vmem:[#allocation2 + $0x18] sm:$0xff] 0.0
  %36 = vst [vmem:[#allocation2 + $0x20] sm:$0xff] 0.0
  %37 = vst [vmem:[#allocation2 + $0x28] sm:$0xff] 0.0
  %38 = vst [vmem:[#allocation2 + $0x30] sm:$0xff] 0.0
  %39 = vst [vmem:[#allocation2 + $0x38] sm:$0xff] 0.0
  %40 = vst [vmem:[#allocation2 + $0x40] sm:$0xff] 0.0
  %41 = vst [vmem:[#allocation2 + $0x48] sm:$0xff] 0.0
  %42 = vst [vmem:[#allocation2 + $0x50] sm:$0xff] 0.0
  %43 = vst [vmem:[#allocation2 + $0x58] sm:$0xff] 0.0
  %44 = vst [vmem:[#allocation2 + $0x60] sm:$0xff] 0.0
  %45 = vst [vmem:[#allocation2 + $0x68] sm:$0xff] 0.0
  %46 = vst [vmem:[#allocation2 + $0x70] sm:$0xff] 0.0
  %47 = vst [vmem:[#allocation2 + $0x78] sm:$0xff] 0.0
  %48 = vst [vmem:[#allocation2 + $0x80] sm:$0xff] 0.0
  %49 = vst [vmem:[#allocation2 + $0x88] sm:$0xff] 0.0
  %50 = vst [vmem:[#allocation2 + $0x90] sm:$0xff] 0.0
  %51 = vst [vmem:[#allocation2 + $0x98] sm:$0xff] 0.0
  %52 = vst [vmem:[#allocation2 + $0xa0] sm:$0xff] 0.0
  %53 = vst [vmem:[#allocation2 + $0xa8] sm:$0xff] 0.0
  %54 = vst [vmem:[#allocation2 + $0xb0] sm:$0xff] 0.0
  %55 = vst [vmem:[#allocation2 + $0xb8] sm:$0xff] 0.0
  %56 = vst [vmem:[#allocation2 + $0xc0] sm:$0xff] 0.0
  %57 = vst [vmem:[#allocation2 + $0xc8] sm:$0xff] 0.0
  %58 = vst [vmem:[#allocation2 + $0xd0] sm:$0xff] 0.0
  %59 = vst [vmem:[#allocation2 + $0xd8] sm:$0xff] 0.0
  %60 = vst [vmem:[#allocation2 + $0xe0] sm:$0xff] 0.0
  %61 = vst [vmem:[#allocation2 + $0xe8] sm:$0xff] 0.0
  %62 = vst [vmem:[#allocation2 + $0xf0] sm:$0xff] 0.0
  %63 = vst [vmem:[#allocation2 + $0xf8] sm:$0xff] 0.0
  %64 = vst [vmem:[#allocation2 + $0x100] sm:$0xff] 0.0
  %65 = vst [vmem:[#allocation2 + $0x108] sm:$0xff] 0.0
  %66 = vst [vmem:[#allocation2 + $0x110] sm:$0xff] 0.0
  %67 = vst [vmem:[#allocation2 + $0x118] sm:$0xff] 0.0
  %68 = vst [vmem:[#allocation2 + $0x120] sm:$0xff] 0.0
  %69 = vst [vmem:[#allocation2 + $0x128] sm:$0xff] 0.0
  %70 = vst [vmem:[#allocation2 + $0x130] sm:$0xff] 0.0
  %71 = vst [vmem:[#allocation2 + $0x138] sm:$0xff] 0.0
  %72 = vst [vmem:[#allocation2 + $0x140] sm:$0xff] 0.0
  %73 = vst [vmem:[#allocation2 + $0x148] sm:$0xff] 0.0
  %74 = vst [vmem:[#allocation2 + $0x150] sm:$0xff] 0.0
  %75 = vst [vmem:[#allocation2 + $0x158] sm:$0xff] 0.0
  %76 = vst [vmem:[#allocation2 + $0x160] sm:$0xff] 0.0
  %77 = vst [vmem:[#allocation2 + $0x168] sm:$0xff] 0.0
  %78 = vst [vmem:[#allocation2 + $0x170] sm:$0xff] 0.0
  %79 = vst [vmem:[#allocation2 + $0x178] sm:$0xff] 0.0
  %80 = vst [vmem:[#allocation2 + $0x180] sm:$0xff] 0.0
  %81 = vst [vmem:[#allocation2 + $0x188] sm:$0xff] 0.0
  %82 = vst [vmem:[#allocation2 + $0x190] sm:$0xff] 0.0
  %83 = vst [vmem:[#allocation2 + $0x198] sm:$0xff] 0.0
  %84 = vst [vmem:[#allocation2 + $0x1a0] sm:$0xff] 0.0
  %85 = vst [vmem:[#allocation2 + $0x1a8] sm:$0xff] 0.0
  %86 = vst [vmem:[#allocation2 + $0x1b0] sm:$0xff] 0.0
  %87 = vst [vmem:[#allocation2 + $0x1b8] sm:$0xff] 0.0
  %88 = vst [vmem:[#allocation2 + $0x1c0] sm:$0xff] 0.0
  %89 = vst [vmem:[#allocation2 + $0x1c8] sm:$0xff] 0.0
  %90 = vst [vmem:[#allocation2 + $0x1d0] sm:$0xff] 0.0
  %91 = vst [vmem:[#allocation2 + $0x1d8] sm:$0xff] 0.0
  %92 = vst [vmem:[#allocation2 + $0x1e0] sm:$0xff] 0.0
  %93 = vst [vmem:[#allocation2 + $0x1e8] sm:$0xff] 0.0
  %94 = vst [vmem:[#allocation2 + $0x1f0] sm:$0xff] 0.0
  %95 = vst [vmem:[#allocation2 + $0x1f8] sm:$0xff] 0.0
  %v96 = vld [vmem:[%s0] sm:$0xff]
  %v97 = vld [vmem:[%s0 + $0x8] sm:$0xff]
  %v98 = vld [vmem:[%s0 + $0x18] sm:$0xff]
  %v99 = vld [vmem:[%s0 + $0x20] sm:$0xff]
  %v100 = vld [vmem:[%s0 + $0x30] sm:$0xff]
  %v101 = vld [vmem:[%s0 + $0x38] sm:$0xff]
  %v102 = vld [vmem:[%s0 + $0x48] sm:$0xff]
  %v103 = vld [vmem:[%s0 + $0x50] sm:$0xff]
  %v104 = vld [vmem:[%s0 + $0x60] sm:$0xff]
  %v105 = vld [vmem:[%s0 + $0x68] sm:$0xff]
  %v106 = vld [vmem:[%s0 + $0x78] sm:$0xff]
  %v107 = vld [vmem:[%s0 + $0x80] sm:$0xff]
  %v108 = vld [vmem:[%s0 + $0x90] sm:$0xff]
  %v109 = vld [vmem:[%s0 + $0x98] sm:$0xff]
  %v110 = vld [vmem:[%s0 + $0xa8] sm:$0xff]
  %v111 = vld [vmem:[%s0 + $0xb0] sm:$0xff]
  %v112 = vld [vmem:[%s0 + $0xc0] sm:$0xff]
  %v113 = vld [vmem:[%s0 + $0xc8] sm:$0xff]
  %v114 = vld [vmem:[%s0 + $0xd8] sm:$0xff]
  %v115 = vld [vmem:[%s0 + $0xe0] sm:$0xff]
  %v116 = vld [vmem:[%s0 + $0xf0] sm:$0xff]
  %v117 = vld [vmem:[%s0 + $0xf8] sm:$0xff]
  %v118 = vld [vmem:[%s0 + $0x108] sm:$0xff]
  %v119 = vld [vmem:[%s0 + $0x110] sm:$0xff]
  %v120 = vld [vmem:[%s0 + $0x120] sm:$0xff]
  %v121 = vld [vmem:[%s0 + $0x128] sm:$0xff]
  %v122 = vld [vmem:[%s0 + $0x138] sm:$0xff]
  %v123 = vld [vmem:[%s0 + $0x140] sm:$0xff]
  %v124 = vld [vmem:[%s0 + $0x150] sm:$0xff]
  %v125 = vld [vmem:[%s0 + $0x158] sm:$0xff]
  %v126 = vld [vmem:[%s0 + $0x168] sm:$0xff]
  %v127 = vld [vmem:[%s0 + $0x170] sm:$0xff]
  %v128 = vld [vmem:[%s0 + $0x1b0] sm:$0xff]
  %v129 = vld [vmem:[%s0 + $0x1b8] sm:$0xff]
  %v130 = vld [vmem:[%s0 + $0x1c8] sm:$0xff]
  %v131 = vld [vmem:[%s0 + $0x1d0] sm:$0xff]
  %v132 = vld [vmem:[%s0 + $0x1e0] sm:$0xff]
  %v133 = vld [vmem:[%s0 + $0x1e8] sm:$0xff]
  %v134 = vld [vmem:[%s0 + $0x1f8] sm:$0xff]
  %v135 = vld [vmem:[%s0 + $0x200] sm:$0xff]
  %v136 = vld [vmem:[%s0 + $0x210] sm:$0xff]
  %v137 = vld [vmem:[%s0 + $0x218] sm:$0xff]
  %v138 = vld [vmem:[%s0 + $0x228] sm:$0xff]
  %v139 = vld [vmem:[%s0 + $0x230] sm:$0xff]
  %v140 = vld [vmem:[%s0 + $0x240] sm:$0xff]
  %v141 = vld [vmem:[%s0 + $0x248] sm:$0xff]
  %v142 = vld [vmem:[%s0 + $0x258] sm:$0xff]
  %v143 = vld [vmem:[%s0 + $0x260] sm:$0xff]
  %v144 = vld [vmem:[%s0 + $0x270] sm:$0xff]
  %v145 = vld [vmem:[%s0 + $0x278] sm:$0xff]
  %v146 = vld [vmem:[%s0 + $0x288] sm:$0xff]
  %v147 = vld [vmem:[%s0 + $0x290] sm:$0xff]
  %v148 = vld [vmem:[%s0 + $0x2a0] sm:$0xff]
  %v149 = vld [vmem:[%s0 + $0x2a8] sm:$0xff]
  %v150 = vld [vmem:[%s0 + $0x2b8] sm:$0xff]
  %v151 = vld [vmem:[%s0 + $0x2c0] sm:$0xff]
  %v152 = vld [vmem:[%s0 + $0x2d0] sm:$0xff]
  %v153 = vld [vmem:[%s0 + $0x2d8] sm:$0xff]
  %v154 = vld [vmem:[%s0 + $0x2e8] sm:$0xff]
  %v155 = vld [vmem:[%s0 + $0x2f0] sm:$0xff]
  %v156 = vld [vmem:[%s0 + $0x300] sm:$0xff]
  %v157 = vld [vmem:[%s0 + $0x308] sm:$0xff]
  %v158 = vld [vmem:[%s0 + $0x318] sm:$0xff]
  %v159 = vld [vmem:[%s0 + $0x320] sm:$0xff]
  %v160 = vld [vmem:[#allocation2] sm:$0xff]
  %v161 = vld [vmem:[#allocation2 + $0x8] sm:$0xff]
  %v162 = vld [vmem:[#allocation2 + $0x10] sm:$0xff]
  %v163 = vld [vmem:[#allocation2 + $0x18] sm:$0xff]
  %v164 = vld [vmem:[#allocation2 + $0x20] sm:$0xff]
  %v165 = vld [vmem:[#allocation2 + $0x28] sm:$0xff]
  %v166 = vld [vmem:[#allocation2 + $0x30] sm:$0xff]
  %v167 = vld [vmem:[#allocation2 + $0x38] sm:$0xff]
  %v168 = vld [vmem:[#allocation2 + $0x40] sm:$0xff]
  %v169 = vld [vmem:[#allocation2 + $0x48] sm:$0xff]
  %v170 = vld [vmem:[#allocation2 + $0x50] sm:$0xff]
  %v171 = vld [vmem:[#allocation2 + $0x58] sm:$0xff]
  %v172 = vld [vmem:[#allocation2 + $0x60] sm:$0xff]
  %v173 = vld [vmem:[#allocation2 + $0x68] sm:$0xff]
  %v174 = vld [vmem:[#allocation2 + $0x70] sm:$0xff]
  %v175 = vld [vmem:[#allocation2 + $0x78] sm:$0xff]
  %v176 = vld [vmem:[#allocation2 + $0x80] sm:$0xff]
  %v177 = vld [vmem:[#allocation2 + $0x88] sm:$0xff]
  %v178 = vld [vmem:[#allocation2 + $0x90] sm:$0xff]
  %v179 = vld [vmem:[#allocation2 + $0x98] sm:$0xff]
  %v180 = vld [vmem:[#allocation2 + $0xa0] sm:$0xff]
  %v181 = vld [vmem:[#allocation2 + $0xa8] sm:$0xff]
  %v182 = vld [vmem:[#allocation2 + $0xb0] sm:$0xff]
  %v183 = vld [vmem:[#allocation2 + $0xb8] sm:$0xff]
  %v184 = vld [vmem:[#allocation2 + $0xc0] sm:$0xff]
  %v185 = vld [vmem:[#allocation2 + $0xc8] sm:$0xff]
  %v186 = vld [vmem:[#allocation2 + $0xd0] sm:$0xff]
  %v187 = vld [vmem:[#allocation2 + $0xd8] sm:$0xff]
  %v188 = vld [vmem:[#allocation2 + $0xe0] sm:$0xff]
  %v189 = vld [vmem:[#allocation2 + $0xe8] sm:$0xff]
  %v190 = vld [vmem:[#allocation2 + $0xf0] sm:$0xff]
  %v191 = vld [vmem:[#allocation2 + $0xf8] sm:$0xff]
  %v192 = vld [vmem:[#allocation2 + $0x100] sm:$0xff]
  %v193 = vld [vmem:[#allocation2 + $0x108] sm:$0xff]
  %v194 = vld [vmem:[#allocation2 + $0x110] sm:$0xff]
  %v195 = vld [vmem:[#allocation2 + $0x118] sm:$0xff]
  %v196 = vld [vmem:[#allocation2 + $0x120] sm:$0xff]
  %v197 = vld [vmem:[#allocation2 + $0x128] sm:$0xff]
  %v198 = vld [vmem:[#allocation2 + $0x130] sm:$0xff]
  %v199 = vld [vmem:[#allocation2 + $0x138] sm:$0xff]
  %v200 = vld [vmem:[#allocation2 + $0x140] sm:$0xff]
  %v201 = vld [vmem:[#allocation2 + $0x148] sm:$0xff]
  %v202 = vld [vmem:[#allocation2 + $0x150] sm:$0xff]
  %v203 = vld [vmem:[#allocation2 + $0x158] sm:$0xff]
  %v204 = vld [vmem:[#allocation2 + $0x160] sm:$0xff]
  %v205 = vld [vmem:[#allocation2 + $0x168] sm:$0xff]
  %v206 = vld [vmem:[#allocation2 + $0x170] sm:$0xff]
  %v207 = vld [vmem:[#allocation2 + $0x178] sm:$0xff]
  %v208 = vld [vmem:[#allocation2 + $0x180] sm:$0xff]
  %v209 = vld [vmem:[#allocation2 + $0x188] sm:$0xff]
  %v210 = vld [vmem:[#allocation2 + $0x190] sm:$0xff]
  %v211 = vld [vmem:[#allocation2 + $0x198] sm:$0xff]
  %v212 = vld [vmem:[#allocation2 + $0x1a0] sm:$0xff]
  %v213 = vld [vmem:[#allocation2 + $0x1a8] sm:$0xff]
  %v214 = vld [vmem:[#allocation2 + $0x1b0] sm:$0xff]
  %v215 = vld [vmem:[#allocation2 + $0x1b8] sm:$0xff]
  %v216 = vld [vmem:[#allocation2 + $0x1c0] sm:$0xff]
  %v217 = vld [vmem:[#allocation2 + $0x1c8] sm:$0xff]
  %v218 = vld [vmem:[#allocation2 + $0x1d0] sm:$0xff]
  %v219 = vld [vmem:[#allocation2 + $0x1d8] sm:$0xff]
  %v220 = vld [vmem:[#allocation2 + $0x1e0] sm:$0xff]
  %v221 = vld [vmem:[#allocation2 + $0x1e8] sm:$0xff]
  %v222 = vld [vmem:[#allocation2 + $0x1f0] sm:$0xff]
  %v223 = vld [vmem:[#allocation2 + $0x1f8] sm:$0xff]
  %v224 = vld [vmem:[%s1] sm:$0xf]
  %vm225 = vcmask 31744
  %v227 = vsel %vm225, %v96, 0
  %v230 = vsel %vm225, %v97, 0
  %v233 = vsel %vm225, %v98, 0
  %v236 = vsel %vm225, %v99, 0
  %v239 = vsel %vm225, %v100, 0
  %v242 = vsel %vm225, %v101, 0
  %v245 = vsel %vm225, %v102, 0
  %v248 = vsel %vm225, %v103, 0
  %v251 = vsel %vm225, %v104, 0
  %v254 = vsel %vm225, %v105, 0
  %v257 = vsel %vm225, %v106, 0
  %v260 = vsel %vm225, %v107, 0
  %v263 = vsel %vm225, %v108, 0
  %v266 = vsel %vm225, %v109, 0
  %v269 = vsel %vm225, %v110, 0
  %v272 = vsel %vm225, %v111, 0
  %v275 = vsel %vm225, %v112, 0
  %v278 = vsel %vm225, %v113, 0
  %v281 = vsel %vm225, %v114, 0
  %v284 = vsel %vm225, %v115, 0
  %v287 = vsel %vm225, %v116, 0
  %v290 = vsel %vm225, %v117, 0
  %v293 = vsel %vm225, %v118, 0
  %v296 = vsel %vm225, %v119, 0
  %v299 = vsel %vm225, %v120, 0
  %v302 = vsel %vm225, %v121, 0
  %v305 = vsel %vm225, %v122, 0
  %v308 = vsel %vm225, %v123, 0
  %v311 = vsel %vm225, %v124, 0
  %v314 = vsel %vm225, %v125, 0
  %v317 = vsel %vm225, %v126, 0
  %v320 = vsel %vm225, %v127, 0
  %v323 = vsel %vm225, %v128, 0
  %v326 = vsel %vm225, %v129, 0
  %v329 = vsel %vm225, %v130, 0
  %v332 = vsel %vm225, %v131, 0
  %v335 = vsel %vm225, %v132, 0
  %v338 = vsel %vm225, %v133, 0
  %v341 = vsel %vm225, %v134, 0
  %v344 = vsel %vm225, %v135, 0
  %v347 = vsel %vm225, %v136, 0
  %v350 = vsel %vm225, %v137, 0
  %v353 = vsel %vm225, %v138, 0
  %v356 = vsel %vm225, %v139, 0
  %v359 = vsel %vm225, %v140, 0
  %v362 = vsel %vm225, %v141, 0
  %v365 = vsel %vm225, %v142, 0
  %v368 = vsel %vm225, %v143, 0
  %v371 = vsel %vm225, %v144, 0
  %v374 = vsel %vm225, %v145, 0
  %v377 = vsel %vm225, %v146, 0
  %v380 = vsel %vm225, %v147, 0
  %v383 = vsel %vm225, %v148, 0
  %v386 = vsel %vm225, %v149, 0
  %v389 = vsel %vm225, %v150, 0
  %v392 = vsel %vm225, %v151, 0
  %v395 = vsel %vm225, %v152, 0
  %v398 = vsel %vm225, %v153, 0
  %v401 = vsel %vm225, %v154, 0
  %v404 = vsel %vm225, %v155, 0
  %v407 = vsel %vm225, %v156, 0
  %v410 = vsel %vm225, %v157, 0
  %v413 = vsel %vm225, %v158, 0
  %v416 = vsel %vm225, %v159, 0
  %vm418 = vcmask 1043456
  %v420 = vsel %vm418, %v224, 0
  %422 = vmatprep.subr.mxu0 0.0
  %423 = vmatpush1.msra.mxu0 %v420
  %424 = vmatprep.subr.mxu0 0.0
  %425 = vmatpush1.msra.mxu0 0.0
  %426 = vmatprep.subr.mxu0 0.0
  %427 = vmatpush1.msra.mxu0 0.0
  %428 = vmatprep.subr.mxu0 0.0
  %429 = vmatpush1.msra.mxu0 0.0
  %430 = vmatprep.subr.mxu0 0.0
  %431 = vmatpush1.msra.mxu0 0.0
  %432 = vmatprep.subr.mxu0 0.0
  %433 = vmatpush1.msra.mxu0 0.0
  %434 = vmatprep.subr.mxu0 0.0
  %435 = vmatpush1.msra.mxu0 0.0
  %436 = vmatprep.subr.mxu0 0.0
  %437 = vmatpush1.msra.mxu0 0.0
  %438 = vmatprep.subr.mxu0 0.0
  %439 = vmatpush1.msra.mxu0 0.0
  %440 = vmatprep.subr.mxu0 0.0
  %441 = vmatpush1.msra.mxu0 0.0
  %442 = vmatprep.subr.mxu0 0.0
  %443 = vmatpush1.msra.mxu0 0.0
  %444 = vmatprep.subr.mxu0 0.0
  %445 = vmatpush1.msra.mxu0 0.0
  %446 = vmatprep.subr.mxu0 0.0
  %447 = vmatpush1.msra.mxu0 0.0
  %448 = vmatprep.subr.mxu0 0.0
  %449 = vmatpush1.msra.mxu0 0.0
  %450 = vmatprep.subr.mxu0 0.0
  %451 = vmatpush1.msra.mxu0 0.0
  %452 = vmatprep.subr.mxu0 0.0
  %453 = vmatpush1.msra.mxu0 0.0
  %454 = vmatprep.subr.mxu0 0.0
  %455 = vmatpush1.msra.mxu0 0.0
  %456 = vmatprep.subr.mxu0 0.0
  %457 = vmatpush1.msra.mxu0 0.0
  %458 = vmatprep.subr.mxu0 0.0
  %459 = vmatpush1.msra.mxu0 0.0
  %460 = vmatprep.subr.mxu0 0.0
  %461 = vmatpush1.msra.mxu0 0.0
  %462 = vmatprep.subr.mxu0 0.0
  %463 = vmatpush1.msra.mxu0 0.0
  %464 = vmatprep.subr.mxu0 0.0
  %465 = vmatpush1.msra.mxu0 0.0
  %466 = vmatprep.subr.mxu0 0.0
  %467 = vmatpush1.msra.mxu0 0.0
  %468 = vmatprep.subr.mxu0 0.0
  %469 = vmatpush1.msra.mxu0 0.0
  %470 = vmatprep.subr.mxu0 0.0
  %471 = vmatpush1.msra.mxu0 0.0
  %472 = vmatprep.subr.mxu0 0.0
  %473 = vmatpush1.msra.mxu0 0.0
  %474 = vmatprep.subr.mxu0 0.0
  %475 = vmatpush1.msra.mxu0 0.0
  %476 = vmatprep.subr.mxu0 0.0
  %477 = vmatpush1.msra.mxu0 0.0
  %478 = vmatprep.subr.mxu0 0.0
  %479 = vmatpush1.msra.mxu0 0.0
  %480 = vmatprep.subr.mxu0 0.0
  %481 = vmatpush1.msra.mxu0 0.0
  %482 = vmatprep.subr.mxu0 0.0
  %483 = vmatpush1.msra.mxu0 0.0
  %484 = vmatprep.subr.mxu0 0.0
  %485 = vmatpush1.msra.mxu0 0.0
  %486 = vmatprep.mubr.f32.mxu0 0.0
  %487 = vmatmul.mubr.f32.gmra.mrb[0].mxu0 %v227
  %v488 = vpop.f32.mrb[0].mxu0
  %v489 = vadd.f32 0.0, %v488
  %v490 = vpop.f32.mrb[0].mxu0
  %491 = vmatprep.mubr.f32.mxu0 0.0
  %492 = vmatmul.mubr.f32.gmra.mrb[0].mxu0 %v230
  %v493 = vpop.f32.mrb[0].mxu0
  %v494 = vadd.f32 0.0, %v493
  %v495 = vpop.f32.mrb[0].mxu0
  %496 = vmatprep.mubr.f32.mxu0 0.0
  %497 = vmatmul.mubr.f32.gmra.mrb[0].mxu0 %v233
  %v498 = vpop.f32.mrb[0].mxu0
  %v499 = vadd.f32 0.0, %v498
  %v500 = vpop.f32.mrb[0].mxu0
  %501 = vmatprep.mubr.f32.mxu0 0.0
  %502 = vmatmul.mubr.f32.gmra.mrb[0].mxu0 %v236
  %v503 = vpop.f32.mrb[0].mxu0
  %v504 = vadd.f32 0.0, %v503
  %v505 = vpop.f32.mrb[0].mxu0
  %506 = vmatprep.mubr.f32.mxu0 0.0
  %507 = vmatmul.mubr.f32.gmra.mrb[0].mxu0 %v239
  %v508 = vpop.f32.mrb[0].mxu0
  %v509 = vadd.f32 0.0, %v508
  %v510 = vpop.f32.mrb[0].mxu0
  %511 = vmatprep.mubr.f32.mxu0 0.0
  %512 = vmatmul.mubr.f32.gmra.mrb[0].mxu0 %v242
  %v513 = vpop.f32.mrb[0].mxu0
  %v514 = vadd.f32 0.0, %v513
  %v515 = vpop.f32.mrb[0].mxu0
  %516 = vmatprep.mubr.f32.mxu0 0.0
  %517 = vmatmul.mubr.f32.gmra.mrb[0].mxu0 %v245
  %v518 = vpop.f32.mrb[0].mxu0
  %v519 = vadd.f32 0.0, %v518
  %v520 = vpop.f32.mrb[0].mxu0
  %521 = vmatprep.mubr.f32.mxu0 0.0
  %522 = vmatmul.mubr.f32.gmra.mrb[0].mxu0 %v248
  %v523 = vpop.f32.mrb[0].mxu0
  %v524 = vadd.f32 0.0, %v523
  %v525 = vpop.f32.mrb[0].mxu0
  %526 = vmatprep.mubr.f32.mxu0 0.0
  %527 = vmatmul.mubr.f32.gmra.mrb[0].mxu0 %v251
  %v528 = vpop.f32.mrb[0].mxu0
  %v529 = vadd.f32 0.0, %v528
  %v530 = vpop.f32.mrb[0].mxu0
  %531 = vmatprep.mubr.f32.mxu0 0.0
  %532 = vmatmul.mubr.f32.gmra.mrb[0].mxu0 %v254
  %v533 = vpop.f32.mrb[0].mxu0
  %v534 = vadd.f32 0.0, %v533
  %v535 = vpop.f32.mrb[0].mxu0
  %536 = vmatprep.mubr.f32.mxu0 0.0
  %537 = vmatmul.mubr.f32.gmra.mrb[0].mxu0 %v257
  %v538 = vpop.f32.mrb[0].mxu0
  %v539 = vadd.f32 0.0, %v538
  %v540 = vpop.f32.mrb[0].mxu0
  %541 = vmatprep.mubr.f32.mxu0 0.0
  %542 = vmatmul.mubr.f32.gmra.mrb[0].mxu0 %v260
  %v543 = vpop.f32.mrb[0].mxu0
  %v544 = vadd.f32 0.0, %v543
  %v545 = vpop.f32.mrb[0].mxu0
  %546 = vmatprep.mubr.f32.mxu0 0.0
  %547 = vmatmul.mubr.f32.gmra.mrb[0].mxu0 %v263
  %v548 = vpop.f32.mrb[0].mxu0
  %v549 = vadd.f32 0.0, %v548
  %v550 = vpop.f32.mrb[0].mxu0
  %551 = vmatprep.mubr.f32.mxu0 0.0
  %552 = vmatmul.mubr.f32.gmra.mrb[0].mxu0 %v266
  %v553 = vpop.f32.mrb[0].mxu0
  %v554 = vadd.f32 0.0, %v553
  %v555 = vpop.f32.mrb[0].mxu0
  %556 = vmatprep.mubr.f32.mxu0 0.0
  %557 = vmatmul.mubr.f32.gmra.mrb[0].mxu0 %v269
  %v558 = vpop.f32.mrb[0].mxu0
  %v559 = vadd.f32 0.0, %v558
  %v560 = vpop.f32.mrb[0].mxu0
  %561 = vmatprep.mubr.f32.mxu0 0.0
  %562 = vmatmul.mubr.f32.gmra.mrb[0].mxu0 %v272
  %v563 = vpop.f32.mrb[0].mxu0
  %v564 = vadd.f32 0.0, %v563
  %v565 = vpop.f32.mrb[0].mxu0
  %566 = vmatprep.mubr.f32.mxu0 0.0
  %567 = vmatmul.mubr.f32.gmra.mrb[0].mxu0 %v275
  %v568 = vpop.f32.mrb[0].mxu0
  %v569 = vadd.f32 0.0, %v568
  %v570 = vpop.f32.mrb[0].mxu0
  %571 = vmatprep.mubr.f32.mxu0 0.0
  %572 = vmatmul.mubr.f32.gmra.mrb[0].mxu0 %v278
  %v573 = vpop.f32.mrb[0].mxu0
  %v574 = vadd.f32 0.0, %v573
  %v575 = vpop.f32.mrb[0].mxu0
  %576 = vmatprep.mubr.f32.mxu0 0.0
  %577 = vmatmul.mubr.f32.gmra.mrb[0].mxu0 %v281
  %v578 = vpop.f32.mrb[0].mxu0
  %v579 = vadd.f32 0.0, %v578
  %v580 = vpop.f32.mrb[0].mxu0
  %581 = vmatprep.mubr.f32.mxu0 0.0
  %582 = vmatmul.mubr.f32.gmra.mrb[0].mxu0 %v284
  %v583 = vpop.f32.mrb[0].mxu0
  %v584 = vadd.f32 0.0, %v583
  %v585 = vpop.f32.mrb[0].mxu0
  %586 = vmatprep.mubr.f32.mxu0 0.0
  %587 = vmatmul.mubr.f32.gmra.mrb[0].mxu0 %v287
  %v588 = vpop.f32.mrb[0].mxu0
  %v589 = vadd.f32 0.0, %v588
  %v590 = vpop.f32.mrb[0].mxu0
  %591 = vmatprep.mubr.f32.mxu0 0.0
  %592 = vmatmul.mubr.f32.gmra.mrb[0].mxu0 %v290
  %v593 = vpop.f32.mrb[0].mxu0
  %v594 = vadd.f32 0.0, %v593
  %v595 = vpop.f32.mrb[0].mxu0
  %596 = vmatprep.mubr.f32.mxu0 0.0
  %597 = vmatmul.mubr.f32.gmra.mrb[0].mxu0 %v293
  %v598 = vpop.f32.mrb[0].mxu0
  %v599 = vadd.f32 0.0, %v598
  %v600 = vpop.f32.mrb[0].mxu0
  %601 = vmatprep.mubr.f32.mxu0 0.0
  %602 = vmatmul.mubr.f32.gmra.mrb[0].mxu0 %v296
  %v603 = vpop.f32.mrb[0].mxu0
  %v604 = vadd.f32 0.0, %v603
  %v605 = vpop.f32.mrb[0].mxu0
  %606 = vmatprep.mubr.f32.mxu0 0.0
  %607 = vmatmul.mubr.f32.gmra.mrb[0].mxu0 %v299
  %v608 = vpop.f32.mrb[0].mxu0
  %v609 = vadd.f32 0.0, %v608
  %v610 = vpop.f32.mrb[0].mxu0
  %611 = vmatprep.mubr.f32.mxu0 0.0
  %612 = vmatmul.mubr.f32.gmra.mrb[0].mxu0 %v302
  %v613 = vpop.f32.mrb[0].mxu0
  %v614 = vadd.f32 0.0, %v613
  %v615 = vpop.f32.mrb[0].mxu0
  %616 = vmatprep.mubr.f32.mxu0 0.0
  %617 = vmatmul.mubr.f32.gmra.mrb[0].mxu0 %v305
  %v618 = vpop.f32.mrb[0].mxu0
  %v619 = vadd.f32 0.0, %v618
  %v620 = vpop.f32.mrb[0].mxu0
  %621 = vmatprep.mubr.f32.mxu0 0.0
  %622 = vmatmul.mubr.f32.gmra.mrb[0].mxu0 %v308
  %v623 = vpop.f32.mrb[0].mxu0
  %v624 = vadd.f32 0.0, %v623
  %v625 = vpop.f32.mrb[0].mxu0
  %626 = vmatprep.mubr.f32.mxu0 0.0
  %627 = vmatmul.mubr.f32.gmra.mrb[0].mxu0 %v311
  %v628 = vpop.f32.mrb[0].mxu0
  %v629 = vadd.f32 0.0, %v628
  %v630 = vpop.f32.mrb[0].mxu0
  %631 = vmatprep.mubr.f32.mxu0 0.0
  %632 = vmatmul.mubr.f32.gmra.mrb[0].mxu0 %v314
  %v633 = vpop.f32.mrb[0].mxu0
  %v634 = vadd.f32 0.0, %v633
  %v635 = vpop.f32.mrb[0].mxu0
  %636 = vmatprep.mubr.f32.mxu0 0.0
  %637 = vmatmul.mubr.f32.gmra.mrb[0].mxu0 %v317
  %v638 = vpop.f32.mrb[0].mxu0
  %v639 = vadd.f32 0.0, %v638
  %v640 = vpop.f32.mrb[0].mxu0
  %641 = vmatprep.mubr.f32.mxu0 0.0
  %642 = vmatmul.mubr.f32.gmra.mrb[0].mxu0 %v320
  %v643 = vpop.f32.mrb[0].mxu0
  %v644 = vadd.f32 0.0, %v643
  %v645 = vpop.f32.mrb[0].mxu0
  %646 = vmatprep.mubr.f32.mxu0 0.0
  %647 = vmatmul.mubr.f32.gmra.mrb[0].mxu0 %v323
  %v648 = vpop.f32.mrb[0].mxu0
  %v649 = vadd.f32 0.0, %v648
  %v650 = vpop.f32.mrb[0].mxu0
  %651 = vmatprep.mubr.f32.mxu0 0.0
  %652 = vmatmul.mubr.f32.gmra.mrb[0].mxu0 %v326
  %v653 = vpop.f32.mrb[0].mxu0
  %v654 = vadd.f32 0.0, %v653
  %v655 = vpop.f32.mrb[0].mxu0
  %656 = vmatprep.mubr.f32.mxu0 0.0
  %657 = vmatmul.mubr.f32.gmra.mrb[0].mxu0 %v329
  %v658 = vpop.f32.mrb[0].mxu0
  %v659 = vadd.f32 0.0, %v658
  %v660 = vpop.f32.mrb[0].mxu0
  %661 = vmatprep.mubr.f32.mxu0 0.0
  %662 = vmatmul.mubr.f32.gmra.mrb[0].mxu0 %v332
  %v663 = vpop.f32.mrb[0].mxu0
  %v664 = vadd.f32 0.0, %v663
  %v665 = vpop.f32.mrb[0].mxu0
  %666 = vmatprep.mubr.f32.mxu0 0.0
  %667 = vmatmul.mubr.f32.gmra.mrb[0].mxu0 %v335
  %v668 = vpop.f32.mrb[0].mxu0
  %v669 = vadd.f32 0.0, %v668
  %v670 = vpop.f32.mrb[0].mxu0
  %671 = vmatprep.mubr.f32.mxu0 0.0
  %672 = vmatmul.mubr.f32.gmra.mrb[0].mxu0 %v338
  %v673 = vpop.f32.mrb[0].mxu0
  %v674 = vadd.f32 0.0, %v673
  %v675 = vpop.f32.mrb[0].mxu0
  %676 = vmatprep.mubr.f32.mxu0 0.0
  %677 = vmatmul.mubr.f32.gmra.mrb[0].mxu0 %v341
  %v678 = vpop.f32.mrb[0].mxu0
  %v679 = vadd.f32 0.0, %v678
  %v680 = vpop.f32.mrb[0].mxu0
  %681 = vmatprep.mubr.f32.mxu0 0.0
  %682 = vmatmul.mubr.f32.gmra.mrb[0].mxu0 %v344
  %v683 = vpop.f32.mrb[0].mxu0
  %v684 = vadd.f32 0.0, %v683
  %v685 = vpop.f32.mrb[0].mxu0
  %686 = vmatprep.mubr.f32.mxu0 0.0
  %687 = vmatmul.mubr.f32.gmra.mrb[0].mxu0 %v347
  %v688 = vpop.f32.mrb[0].mxu0
  %v689 = vadd.f32 0.0, %v688
  %v690 = vpop.f32.mrb[0].mxu0
  %691 = vmatprep.mubr.f32.mxu0 0.0
  %692 = vmatmul.mubr.f32.gmra.mrb[0].mxu0 %v350
  %v693 = vpop.f32.mrb[0].mxu0
  %v694 = vadd.f32 0.0, %v693
  %v695 = vpop.f32.mrb[0].mxu0
  %696 = vmatprep.mubr.f32.mxu0 0.0
  %697 = vmatmul.mubr.f32.gmra.mrb[0].mxu0 %v353
  %v698 = vpop.f32.mrb[0].mxu0
  %v699 = vadd.f32 0.0, %v698
  %v700 = vpop.f32.mrb[0].mxu0
  %701 = vmatprep.mubr.f32.mxu0 0.0
  %702 = vmatmul.mubr.f32.gmra.mrb[0].mxu0 %v356
  %v703 = vpop.f32.mrb[0].mxu0
  %v704 = vadd.f32 0.0, %v703
  %v705 = vpop.f32.mrb[0].mxu0
  %706 = vmatprep.mubr.f32.mxu0 0.0
  %707 = vmatmul.mubr.f32.gmra.mrb[0].mxu0 %v359
  %v708 = vpop.f32.mrb[0].mxu0
  %v709 = vadd.f32 0.0, %v708
  %v710 = vpop.f32.mrb[0].mxu0
  %711 = vmatprep.mubr.f32.mxu0 0.0
  %712 = vmatmul.mubr.f32.gmra.mrb[0].mxu0 %v362
  %v713 = vpop.f32.mrb[0].mxu0
  %v714 = vadd.f32 0.0, %v713
  %v715 = vpop.f32.mrb[0].mxu0
  %716 = vmatprep.mubr.f32.mxu0 0.0
  %717 = vmatmul.mubr.f32.gmra.mrb[0].mxu0 %v365
  %v718 = vpop.f32.mrb[0].mxu0
  %v719 = vadd.f32 0.0, %v718
  %v720 = vpop.f32.mrb[0].mxu0
  %721 = vmatprep.mubr.f32.mxu0 0.0
  %722 = vmatmul.mubr.f32.gmra.mrb[0].mxu0 %v368
  %v723 = vpop.f32.mrb[0].mxu0
  %v724 = vadd.f32 0.0, %v723
  %v725 = vpop.f32.mrb[0].mxu0
  %726 = vmatprep.mubr.f32.mxu0 0.0
  %727 = vmatmul.mubr.f32.gmra.mrb[0].mxu0 %v371
  %v728 = vpop.f32.mrb[0].mxu0
  %v729 = vadd.f32 0.0, %v728
  %v730 = vpop.f32.mrb[0].mxu0
  %731 = vmatprep.mubr.f32.mxu0 0.0
  %732 = vmatmul.mubr.f32.gmra.mrb[0].mxu0 %v374
  %v733 = vpop.f32.mrb[0].mxu0
  %v734 = vadd.f32 0.0, %v733
  %v735 = vpop.f32.mrb[0].mxu0
  %736 = vmatprep.mubr.f32.mxu0 0.0
  %737 = vmatmul.mubr.f32.gmra.mrb[0].mxu0 %v377
  %v738 = vpop.f32.mrb[0].mxu0
  %v739 = vadd.f32 0.0, %v738
  %v740 = vpop.f32.mrb[0].mxu0
  %741 = vmatprep.mubr.f32.mxu0 0.0
  %742 = vmatmul.mubr.f32.gmra.mrb[0].mxu0 %v380
  %v743 = vpop.f32.mrb[0].mxu0
  %v744 = vadd.f32 0.0, %v743
  %v745 = vpop.f32.mrb[0].mxu0
  %746 = vmatprep.mubr.f32.mxu0 0.0
  %747 = vmatmul.mubr.f32.gmra.mrb[0].mxu0 %v383
  %v748 = vpop.f32.mrb[0].mxu0
  %v749 = vadd.f32 0.0, %v748
  %v750 = vpop.f32.mrb[0].mxu0
  %751 = vmatprep.mubr.f32.mxu0 0.0
  %752 = vmatmul.mubr.f32.gmra.mrb[0].mxu0 %v386
  %v753 = vpop.f32.mrb[0].mxu0
  %v754 = vadd.f32 0.0, %v753
  %v755 = vpop.f32.mrb[0].mxu0
  %756 = vmatprep.mubr.f32.mxu0 0.0
  %757 = vmatmul.mubr.f32.gmra.mrb[0].mxu0 %v389
  %v758 = vpop.f32.mrb[0].mxu0
  %v759 = vadd.f32 0.0, %v758
  %v760 = vpop.f32.mrb[0].mxu0
  %761 = vmatprep.mubr.f32.mxu0 0.0
  %762 = vmatmul.mubr.f32.gmra.mrb[0].mxu0 %v392
  %v763 = vpop.f32.mrb[0].mxu0
  %v764 = vadd.f32 0.0, %v763
  %v765 = vpop.f32.mrb[0].mxu0
  %766 = vmatprep.mubr.f32.mxu0 0.0
  %767 = vmatmul.mubr.f32.gmra.mrb[0].mxu0 %v395
  %v768 = vpop.f32.mrb[0].mxu0
  %v769 = vadd.f32 0.0, %v768
  %v770 = vpop.f32.mrb[0].mxu0
  %771 = vmatprep.mubr.f32.mxu0 0.0
  %772 = vmatmul.mubr.f32.gmra.mrb[0].mxu0 %v398
  %v773 = vpop.f32.mrb[0].mxu0
  %v774 = vadd.f32 0.0, %v773
  %v775 = vpop.f32.mrb[0].mxu0
  %776 = vmatprep.mubr.f32.mxu0 0.0
  %777 = vmatmul.mubr.f32.gmra.mrb[0].mxu0 %v401
  %v778 = vpop.f32.mrb[0].mxu0
  %v779 = vadd.f32 0.0, %v778
  %v780 = vpop.f32.mrb[0].mxu0
  %781 = vmatprep.mubr.f32.mxu0 0.0
  %782 = vmatmul.mubr.f32.gmra.mrb[0].mxu0 %v404
  %v783 = vpop.f32.mrb[0].mxu0
  %v784 = vadd.f32 0.0, %v783
  %v785 = vpop.f32.mrb[0].mxu0
  %786 = vmatprep.mubr.f32.mxu0 0.0
  %787 = vmatmul.mubr.f32.gmra.mrb[0].mxu0 %v407
  %v788 = vpop.f32.mrb[0].mxu0
  %v789 = vadd.f32 0.0, %v788
  %v790 = vpop.f32.mrb[0].mxu0
  %791 = vmatprep.mubr.f32.mxu0 0.0
  %792 = vmatmul.mubr.f32.gmra.mrb[0].mxu0 %v410
  %v793 = vpop.f32.mrb[0].mxu0
  %v794 = vadd.f32 0.0, %v793
  %v795 = vpop.f32.mrb[0].mxu0
  %796 = vmatprep.mubr.f32.mxu0 0.0
  %797 = vmatmul.mubr.f32.gmra.mrb[0].mxu0 %v413
  %v798 = vpop.f32.mrb[0].mxu0
  %v799 = vadd.f32 0.0, %v798
  %v800 = vpop.f32.mrb[0].mxu0
  %801 = vmatprep.mubr.f32.mxu0 0.0
  %802 = vmatmul.mubr.f32.gmra.mrb[0].mxu0 %v416
  %v803 = vpop.f32.mrb[0].mxu0
  %v804 = vadd.f32 0.0, %v803
  %v805 = vpop.f32.mrb[0].mxu0
  %806 = vdwg.mxu0
  %v807 = vadd.f32 %v160, %v489
  %v808 = vadd.f32 %v161, %v494
  %v809 = vadd.f32 %v162, %v499
  %v810 = vadd.f32 %v163, %v504
  %v811 = vadd.f32 %v164, %v509
  %v812 = vadd.f32 %v165, %v514
  %v813 = vadd.f32 %v166, %v519
  %v814 = vadd.f32 %v167, %v524
  %v815 = vadd.f32 %v168, %v529
  %v816 = vadd.f32 %v169, %v534
  %v817 = vadd.f32 %v170, %v539
  %v818 = vadd.f32 %v171, %v544
  %v819 = vadd.f32 %v172, %v549
  %v820 = vadd.f32 %v173, %v554
  %v821 = vadd.f32 %v174, %v559
  %v822 = vadd.f32 %v175, %v564
  %v823 = vadd.f32 %v176, %v569
  %v824 = vadd.f32 %v177, %v574
  %v825 = vadd.f32 %v178, %v579
  %v826 = vadd.f32 %v179, %v584
  %v827 = vadd.f32 %v180, %v589
  %v828 = vadd.f32 %v181, %v594
  %v829 = vadd.f32 %v182, %v599
  %v830 = vadd.f32 %v183, %v604
  %v831 = vadd.f32 %v184, %v609
  %v832 = vadd.f32 %v185, %v614
  %v833 = vadd.f32 %v186, %v619
  %v834 = vadd.f32 %v187, %v624
  %v835 = vadd.f32 %v188, %v629
  %v836 = vadd.f32 %v189, %v634
  %v837 = vadd.f32 %v190, %v639
  %v838 = vadd.f32 %v191, %v644
  %v839 = vadd.f32 %v192, %v649
  %v840 = vadd.f32 %v193, %v654
  %v841 = vadd.f32 %v194, %v659
  %v842 = vadd.f32 %v195, %v664
  %v843 = vadd.f32 %v196, %v669
  %v844 = vadd.f32 %v197, %v674
  %v845 = vadd.f32 %v198, %v679
  %v846 = vadd.f32 %v199, %v684
  %v847 = vadd.f32 %v200, %v689
  %v848 = vadd.f32 %v201, %v694
  %v849 = vadd.f32 %v202, %v699
  %v850 = vadd.f32 %v203, %v704
  %v851 = vadd.f32 %v204, %v709
  %v852 = vadd.f32 %v205, %v714
  %v853 = vadd.f32 %v206, %v719
  %v854 = vadd.f32 %v207, %v724
  %v855 = vadd.f32 %v208, %v729
  %v856 = vadd.f32 %v209, %v734
  %v857 = vadd.f32 %v210, %v739
  %v858 = vadd.f32 %v211, %v744
  %v859 = vadd.f32 %v212, %v749
  %v860 = vadd.f32 %v213, %v754
  %v861 = vadd.f32 %v214, %v759
  %v862 = vadd.f32 %v215, %v764
  %v863 = vadd.f32 %v216, %v769
  %v864 = vadd.f32 %v217, %v774
  %v865 = vadd.f32 %v218, %v779
  %v866 = vadd.f32 %v219, %v784
  %v867 = vadd.f32 %v220, %v789
  %v868 = vadd.f32 %v221, %v794
  %v869 = vadd.f32 %v222, %v799
  %v870 = vadd.f32 %v223, %v804
  %871 = vst [vmem:[#allocation2] sm:$0xff] %v807
  %872 = vst [vmem:[#allocation2 + $0x8] sm:$0xff] %v808
  %873 = vst [vmem:[#allocation2 + $0x10] sm:$0xff] %v809
  %874 = vst [vmem:[#allocation2 + $0x18] sm:$0xff] %v810
  %875 = vst [vmem:[#allocation2 + $0x20] sm:$0xff] %v811
  %876 = vst [vmem:[#allocation2 + $0x28] sm:$0xff] %v812
  %877 = vst [vmem:[#allocation2 + $0x30] sm:$0xff] %v813
  %878 = vst [vmem:[#allocation2 + $0x38] sm:$0xff] %v814
  %879 = vst [vmem:[#allocation2 + $0x40] sm:$0xff] %v815
  %880 = vst [vmem:[#allocation2 + $0x48] sm:$0xff] %v816
  %881 = vst [vmem:[#allocation2 + $0x50] sm:$0xff] %v817
  %882 = vst [vmem:[#allocation2 + $0x58] sm:$0xff] %v818
  %883 = vst [vmem:[#allocation2 + $0x60] sm:$0xff] %v819
  %884 = vst [vmem:[#allocation2 + $0x68] sm:$0xff] %v820
  %885 = vst [vmem:[#allocation2 + $0x70] sm:$0xff] %v821
  %886 = vst [vmem:[#allocation2 + $0x78] sm:$0xff] %v822
  %887 = vst [vmem:[#allocation2 + $0x80] sm:$0xff] %v823
  %888 = vst [vmem:[#allocation2 + $0x88] sm:$0xff] %v824
  %889 = vst [vmem:[#allocation2 + $0x90] sm:$0xff] %v825
  %890 = vst [vmem:[#allocation2 + $0x98] sm:$0xff] %v826
  %891 = vst [vmem:[#allocation2 + $0xa0] sm:$0xff] %v827
  %892 = vst [vmem:[#allocation2 + $0xa8] sm:$0xff] %v828
  %893 = vst [vmem:[#allocation2 + $0xb0] sm:$0xff] %v829
  %894 = vst [vmem:[#allocation2 + $0xb8] sm:$0xff] %v830
  %895 = vst [vmem:[#allocation2 + $0xc0] sm:$0xff] %v831
  %896 = vst [vmem:[#allocation2 + $0xc8] sm:$0xff] %v832
  %897 = vst [vmem:[#allocation2 + $0xd0] sm:$0xff] %v833
  %898 = vst [vmem:[#allocation2 + $0xd8] sm:$0xff] %v834
  %899 = vst [vmem:[#allocation2 + $0xe0] sm:$0xff] %v835
  %900 = vst [vmem:[#allocation2 + $0xe8] sm:$0xff] %v836
  %901 = vst [vmem:[#allocation2 + $0xf0] sm:$0xff] %v837
  %902 = vst [vmem:[#allocation2 + $0xf8] sm:$0xff] %v838
  %903 = vst [vmem:[#allocation2 + $0x100] sm:$0xff] %v839
  %904 = vst [vmem:[#allocation2 + $0x108] sm:$0xff] %v840
  %905 = vst [vmem:[#allocation2 + $0x110] sm:$0xff] %v841
  %906 = vst [vmem:[#allocation2 + $0x118] sm:$0xff] %v842
  %907 = vst [vmem:[#allocation2 + $0x120] sm:$0xff] %v843
  %908 = vst [vmem:[#allocation2 + $0x128] sm:$0xff] %v844
  %909 = vst [vmem:[#allocation2 + $0x130] sm:$0xff] %v845
  %910 = vst [vmem:[#allocation2 + $0x138] sm:$0xff] %v846
  %911 = vst [vmem:[#allocation2 + $0x140] sm:$0xff] %v847
  %912 = vst [vmem:[#allocation2 + $0x148] sm:$0xff] %v848
  %913 = vst [vmem:[#allocation2 + $0x150] sm:$0xff] %v849
  %914 = vst [vmem:[#allocation2 + $0x158] sm:$0xff] %v850
  %915 = vst [vmem:[#allocation2 + $0x160] sm:$0xff] %v851
  %916 = vst [vmem:[#allocation2 + $0x168] sm:$0xff] %v852
  %917 = vst [vmem:[#allocation2 + $0x170] sm:$0xff] %v853
  %918 = vst [vmem:[#allocation2 + $0x178] sm:$0xff] %v854
  %919 = vst [vmem:[#allocation2 + $0x180] sm:$0xff] %v855
  %920 = vst [vmem:[#allocation2 + $0x188] sm:$0xff] %v856
  %921 = vst [vmem:[#allocation2 + $0x190] sm:$0xff] %v857
  %922 = vst [vmem:[#allocation2 + $0x198] sm:$0xff] %v858
  %923 = vst [vmem:[#allocation2 + $0x1a0] sm:$0xff] %v859
  %924 = vst [vmem:[#allocation2 + $0x1a8] sm:$0xff] %v860
  %925 = vst [vmem:[#allocation2 + $0x1b0] sm:$0xff] %v861
  %926 = vst [vmem:[#allocation2 + $0x1b8] sm:$0xff] %v862
  %927 = vst [vmem:[#allocation2 + $0x1c0] sm:$0xff] %v863
  %928 = vst [vmem:[#allocation2 + $0x1c8] sm:$0xff] %v864
  %929 = vst [vmem:[#allocation2 + $0x1d0] sm:$0xff] %v865
  %930 = vst [vmem:[#allocation2 + $0x1d8] sm:$0xff] %v866
  %931 = vst [vmem:[#allocation2 + $0x1e0] sm:$0xff] %v867
  %932 = vst [vmem:[#allocation2 + $0x1e8] sm:$0xff] %v868
  %933 = vst [vmem:[#allocation2 + $0x1f0] sm:$0xff] %v869
  %934 = vst [vmem:[#allocation2 + $0x1f8] sm:$0xff] %v870
  %v935 = vld [vmem:[%s0 + $0x1] sm:$0xff]
  %v936 = vld [vmem:[%s0 + $0x9] sm:$0xff]
  %v937 = vld [vmem:[%s0 + $0x19] sm:$0xff]
  %v938 = vld [vmem:[%s0 + $0x21] sm:$0xff]
  %v939 = vld [vmem:[%s0 + $0x31] sm:$0xff]
  %v940 = vld [vmem:[%s0 + $0x39] sm:$0xff]
  %v941 = vld [vmem:[%s0 + $0x49] sm:$0xff]
  %v942 = vld [vmem:[%s0 + $0x51] sm:$0xff]
  %v943 = vld [vmem:[%s0 + $0x61] sm:$0xff]
  %v944 = vld [vmem:[%s0 + $0x69] sm:$0xff]
  %v945 = vld [vmem:[%s0 + $0x79] sm:$0xff]
  %v946 = vld [vmem:[%s0 + $0x81] sm:$0xff]
  %v947 = vld [vmem:[%s0 + $0x91] sm:$0xff]
  %v948 = vld [vmem:[%s0 + $0x99] sm:$0xff]
  %v949 = vld [vmem:[%s0 + $0xa9] sm:$0xff]
  %v950 = vld [vmem:[%s0 + $0xb1] sm:$0xff]
  %v951 = vld [vmem:[%s0 + $0xc1] sm:$0xff]
  %v952 = vld [vmem:[%s0 + $0xc9] sm:$0xff]
  %v953 = vld [vmem:[%s0 + $0xd9] sm:$0xff]
  %v954 = vld [vmem:[%s0 + $0xe1] sm:$0xff]
  %v955 = vld [vmem:[%s0 + $0xf1] sm:$0xff]
  %v956 = vld [vmem:[%s0 + $0xf9] sm:$0xff]
  %v957 = vld [vmem:[%s0 + $0x109] sm:$0xff]
  %v958 = vld [vmem:[%s0 + $0x111] sm:$0xff]
  %v959 = vld [vmem:[%s0 + $0x121] sm:$0xff]
  %v960 = vld [vmem:[%s0 + $0x129] sm:$0xff]
  %v961 = vld [vmem:[%s0 + $0x139] sm:$0xff]
  %v962 = vld [vmem:[%s0 + $0x141] sm:$0xff]
  %v963 = vld [vmem:[%s0 + $0x151] sm:$0xff]
  %v964 = vld [vmem:[%s0 + $0x159] sm:$0xff]
  %v965 = vld [vmem:[%s0 + $0x169] sm:$0xff]
  %v966 = vld [vmem:[%s0 + $0x171] sm:$0xff]
  %v967 = vld [vmem:[%s0 + $0x1b1] sm:$0xff]
  %v968 = vld [vmem:[%s0 + $0x1b9] sm:$0xff]
  %v969 = vld [vmem:[%s0 + $0x1c9] sm:$0xff]
  %v970 = vld [vmem:[%s0 + $0x1d1] sm:$0xff]
  %v971 = vld [vmem:[%s0 + $0x1e1] sm:$0xff]
  %v972 = vld [vmem:[%s0 + $0x1e9] sm:$0xff]
  %v973 = vld [vmem:[%s0 + $0x1f9] sm:$0xff]
  %v974 = vld [vmem:[%s0 + $0x201] sm:$0xff]
  %v975 = vld [vmem:[%s0 + $0x211] sm:$0xff]
  %v976 = vld [vmem:[%s0 + $0x219] sm:$0xff]
  %v977 = vld [vmem:[%s0 + $0x229] sm:$0xff]
  %v978 = vld [vmem:[%s0 + $0x231] sm:$0xff]
  %v979 = vld [vmem:[%s0 + $0x241] sm:$0xff]
  %v980 = vld [vmem:[%s0 + $0x249] sm:$0xff]
  %v981 = vld [vmem:[%s0 + $0x259] sm:$0xff]
  %v982 = vld [vmem:[%s0 + $0x261] sm:$0xff]
  %v983 = vld [vmem:[%s0 + $0x271] sm:$0xff]
  %v984 = vld [vmem:[%s0 + $0x279] sm:$0xff]
  %v985 = vld [vmem:[%s0 + $0x289] sm:$0xff]
  %v986 = vld [vmem:[%s0 + $0x291] sm:$0xff]
  %v987 = vld [vmem:[%s0 + $0x2a1] sm:$0xff]
  %v988 = vld [vmem:[%s0 + $0x2a9] sm:$0xff]
  %v989 = vld [vmem:[%s0 + $0x2b9] sm:$0xff]
  %v990 = vld [vmem:[%s0 + $0x2c1] sm:$0xff]
  %v991 = vld [vmem:[%s0 + $0x2d1] sm:$0xff]
  %v992 = vld [vmem:[%s0 + $0x2d9] sm:$0xff]
  %v993 = vld [vmem:[%s0 + $0x2e9] sm:$0xff]
  %v994 = vld [vmem:[%s0 + $0x2f1] sm:$0xff]
  %v995 = vld [vmem:[%s0 + $0x301] sm:$0xff]
  %v996 = vld [vmem:[%s0 + $0x309] sm:$0xff]
  %v997 = vld [vmem:[%s0 + $0x319] sm:$0xff]
  %v998 = vld [vmem:[%s0 + $0x321] sm:$0xff]
  %v999 = vld [vmem:[#allocation2] sm:$0xff]
  %v1000 = vld [vmem:[#allocation2 + $0x8] sm:$0xff]
  %v1001 = vld [vmem:[#allocation2 + $0x10] sm:$0xff]
  %v1002 = vld [vmem:[#allocation2 + $0x18] sm:$0xff]
  %v1003 = vld [vmem:[#allocation2 + $0x20] sm:$0xff]
  %v1004 = vld [vmem:[#allocation2 + $0x28] sm:$0xff]
  %v1005 = vld [vmem:[#allocation2 + $0x30] sm:$0xff]
  %v1006 = vld [vmem:[#allocation2 + $0x38] sm:$0xff]
  %v1007 = vld [vmem:[#allocation2 + $0x40] sm:$0xff]
  %v1008 = vld [vmem:[#allocation2 + $0x48] sm:$0xff]
  %v1009 = vld [vmem:[#allocation2 + $0x50] sm:$0xff]
  %v1010 = vld [vmem:[#allocation2 + $0x58] sm:$0xff]
  %v1011 = vld [vmem:[#allocation2 + $0x60] sm:$0xff]
  %v1012 = vld [vmem:[#allocation2 + $0x68] sm:$0xff]
  %v1013 = vld [vmem:[#allocation2 + $0x70] sm:$0xff]
  %v1014 = vld [vmem:[#allocation2 + $0x78] sm:$0xff]
  %v1015 = vld [vmem:[#allocation2 + $0x80] sm:$0xff]
  %v1016 = vld [vmem:[#allocation2 + $0x88] sm:$0xff]
  %v1017 = vld [vmem:[#allocation2 + $0x90] sm:$0xff]
  %v1018 = vld [vmem:[#allocation2 + $0x98] sm:$0xff]
  %v1019 = vld [vmem:[#allocation2 + $0xa0] sm:$0xff]
  %v1020 = vld [vmem:[#allocation2 + $0xa8] sm:$0xff]
  %v1021 = vld [vmem:[#allocation2 + $0xb0] sm:$0xff]
  %v1022 = vld [vmem:[#allocation2 + $0xb8] sm:$0xff]
  %v1023 = vld [vmem:[#allocation2 + $0xc0] sm:$0xff]
  %v1024 = vld [vmem:[#allocation2 + $0xc8] sm:$0xff]
  %v1025 = vld [vmem:[#allocation2 + $0xd0] sm:$0xff]
  %v1026 = vld [vmem:[#allocation2 + $0xd8] sm:$0xff]
  %v1027 = vld [vmem:[#allocation2 + $0xe0] sm:$0xff]
  %v1028 = vld [vmem:[#allocation2 + $0xe8] sm:$0xff]
  %v1029 = vld [vmem:[#allocation2 + $0xf0] sm:$0xff]
  %v1030 = vld [vmem:[#allocation2 + $0xf8] sm:$0xff]
  %v1031 = vld [vmem:[#allocation2 + $0x100] sm:$0xff]
  %v1032 = vld [vmem:[#allocation2 + $0x108] sm:$0xff]
  %v1033 = vld [vmem:[#allocation2 + $0x110] sm:$0xff]
  %v1034 = vld [vmem:[#allocation2 + $0x118] sm:$0xff]
  %v1035 = vld [vmem:[#allocation2 + $0x120] sm:$0xff]
  %v1036 = vld [vmem:[#allocation2 + $0x128] sm:$0xff]
  %v1037 = vld [vmem:[#allocation2 + $0x130] sm:$0xff]
  %v1038 = vld [vmem:[#allocation2 + $0x138] sm:$0xff]
  %v1039 = vld [vmem:[#allocation2 + $0x140] sm:$0xff]
  %v1040 = vld [vmem:[#allocation2 + $0x148] sm:$0xff]
  %v1041 = vld [vmem:[#allocation2 + $0x150] sm:$0xff]
  %v1042 = vld [vmem:[#allocation2 + $0x158] sm:$0xff]
  %v1043 = vld [vmem:[#allocation2 + $0x160] sm:$0xff]
  %v1044 = vld [vmem:[#allocation2 + $0x168] sm:$0xff]
  %v1045 = vld [vmem:[#allocation2 + $0x170] sm:$0xff]
  %v1046 = vld [vmem:[#allocation2 + $0x178] sm:$0xff]
  %v1047 = vld [vmem:[#allocation2 + $0x180] sm:$0xff]
  %v1048 = vld [vmem:[#allocation2 + $0x188] sm:$0xff]
  %v1049 = vld [vmem:[#allocation2 + $0x190] sm:$0xff]
  %v1050 = vld [vmem:[#allocation2 + $0x198] sm:$0xff]
  %v1051 = vld [vmem:[#allocation2 + $0x1a0] sm:$0xff]
  %v1052 = vld [vmem:[#allocation2 + $0x1a8] sm:$0xff]
  %v1053 = vld [vmem:[#allocation2 + $0x1b0] sm:$0xff]
  %v1054 = vld [vmem:[#allocation2 + $0x1b8] sm:$0xff]
  %v1055 = vld [vmem:[#allocation2 + $0x1c0] sm:$0xff]
  %v1056 = vld [vmem:[#allocation2 + $0x1c8] sm:$0xff]
  %v1057 = vld [vmem:[#allocation2 + $0x1d0] sm:$0xff]
  %v1058 = vld [vmem:[#allocation2 + $0x1d8] sm:$0xff]
  %v1059 = vld [vmem:[#allocation2 + $0x1e0] sm:$0xff]
  %v1060 = vld [vmem:[#allocation2 + $0x1e8] sm:$0xff]
  %v1061 = vld [vmem:[#allocation2 + $0x1f0] sm:$0xff]
  %v1062 = vld [vmem:[#allocation2 + $0x1f8] sm:$0xff]
  %s1063 = scalar_lea.vmem %s1, 4
  %v1064 = vld [vmem:[%s1063] sm:$0xf]
  %v1066 = vsel %vm225, %v935, 0
  %v1069 = vsel %vm225, %v936, 0
  %v1072 = vsel %vm225, %v937, 0
  %v1075 = vsel %vm225, %v938, 0
  %v1078 = vsel %vm225, %v939, 0
  %v1081 = vsel %vm225, %v940, 0
  %v1084 = vsel %vm225, %v941, 0
  %v1087 = vsel %vm225, %v942, 0
  %v1090 = vsel %vm225, %v943, 0
  %v1093 = vsel %vm225, %v944, 0
  %v1096 = vsel %vm225, %v945, 0
  %v1099 = vsel %vm225, %v946, 0
  %v1102 = vsel %vm225, %v947, 0
  %v1105 = vsel %vm225, %v948, 0
  %v1108 = vsel %vm225, %v949, 0
  %v1111 = vsel %vm225, %v950, 0
  %v1114 = vsel %vm225, %v951, 0
  %v1117 = vsel %vm225, %v952, 0
  %v1120 = vsel %vm225, %v953, 0
  %v1123 = vsel %vm225, %v954, 0
  %v1126 = vsel %vm225, %v955, 0
  %v1129 = vsel %vm225, %v956, 0
  %v1132 = vsel %vm225, %v957, 0
  %v1135 = vsel %vm225, %v958, 0
  %v1138 = vsel %vm225, %v959, 0
  %v1141 = vsel %vm225, %v960, 0
  %v1144 = vsel %vm225, %v961, 0
  %v1147 = vsel %vm225, %v962, 0
  %v1150 = vsel %vm225, %v963, 0
  %v1153 = vsel %vm225, %v964, 0
  %v1156 = vsel %vm225, %v965, 0
  %v1159 = vsel %vm225, %v966, 0
  %v1162 = vsel %vm225, %v967, 0
  %v1165 = vsel %vm225, %v968, 0
  %v1168 = vsel %vm225, %v969, 0
  %v1171 = vsel %vm225, %v970, 0
  %v1174 = vsel %vm225, %v971, 0
  %v1177 = vsel %vm225, %v972, 0
  %v1180 = vsel %vm225, %v973, 0
  %v1183 = vsel %vm225, %v974, 0
  %v1186 = vsel %vm225, %v975, 0
  %v1189 = vsel %vm225, %v976, 0
  %v1192 = vsel %vm225, %v977, 0
  %v1195 = vsel %vm225, %v978, 0
  %v1198 = vsel %vm225, %v979, 0
  %v1201 = vsel %vm225, %v980, 0
  %v1204 = vsel %vm225, %v981, 0
  %v1207 = vsel %vm225, %v982, 0
  %v1210 = vsel %vm225, %v983, 0
  %v1213 = vsel %vm225, %v984, 0
  %v1216 = vsel %vm225, %v985, 0
  %v1219 = vsel %vm225, %v986, 0
  %v1222 = vsel %vm225, %v987, 0
  %v1225 = vsel %vm225, %v988, 0
  %v1228 = vsel %vm225, %v989, 0
  %v1231 = vsel %vm225, %v990, 0
  %v1234 = vsel %vm225, %v991, 0
  %v1237 = vsel %vm225, %v992, 0
  %v1240 = vsel %vm225, %v993, 0
  %v1243 = vsel %vm225, %v994, 0
  %v1246 = vsel %vm225, %v995, 0
  %v1249 = vsel %vm225, %v996, 0
  %v1252 = vsel %vm225, %v997, 0
  %v1255 = vsel %vm225, %v998, 0
  %v1258 = vsel %vm418, %v1064, 0
  %1260 = vmatprep.subr.mxu0 0.0
  %1261 = vmatpush1.msra.mxu0 %v1258
  %1262 = vmatprep.subr.mxu0 0.0
  %1263 = vmatpush1.msra.mxu0 0.0
  %1264 = vmatprep.subr.mxu0 0.0
  %1265 = vmatpush1.msra.mxu0 0.0
  %1266 = vmatprep.subr.mxu0 0.0
  %1267 = vmatpush1.msra.mxu0 0.0
  %1268 = vmatprep.subr.mxu0 0.0
  %1269 = vmatpush1.msra.mxu0 0.0
  %1270 = vmatprep.subr.mxu0 0.0
  %1271 = vmatpush1.msra.mxu0 0.0
  %1272 = vmatprep.subr.mxu0 0.0
  %1273 = vmatpush1.msra.mxu0 0.0
  %1274 = vmatprep.subr.mxu0 0.0
  %1275 = vmatpush1.msra.mxu0 0.0
  %1276 = vmatprep.subr.mxu0 0.0
  %1277 = vmatpush1.msra.mxu0 0.0
  %1278 = vmatprep.subr.mxu0 0.0
  %1279 = vmatpush1.msra.mxu0 0.0
  %1280 = vmatprep.subr.mxu0 0.0
  %1281 = vmatpush1.msra.mxu0 0.0
  %1282 = vmatprep.subr.mxu0 0.0
  %1283 = vmatpush1.msra.mxu0 0.0
  %1284 = vmatprep.subr.mxu0 0.0
  %1285 = vmatpush1.msra.mxu0 0.0
  %1286 = vmatprep.subr.mxu0 0.0
  %1287 = vmatpush1.msra.mxu0 0.0
  %1288 = vmatprep.subr.mxu0 0.0
  %1289 = vmatpush1.msra.mxu0 0.0
  %1290 = vmatprep.subr.mxu0 0.0
  %1291 = vmatpush1.msra.mxu0 0.0
  %1292 = vmatprep.subr.mxu0 0.0
  %1293 = vmatpush1.msra.mxu0 0.0
  %1294 = vmatprep.subr.mxu0 0.0
  %1295 = vmatpush1.msra.mxu0 0.0
  %1296 = vmatprep.subr.mxu0 0.0
  %1297 = vmatpush1.msra.mxu0 0.0
  %1298 = vmatprep.subr.mxu0 0.0
  %1299 = vmatpush1.msra.mxu0 0.0
  %1300 = vmatprep.subr.mxu0 0.0
  %1301 = vmatpush1.msra.mxu0 0.0
  %1302 = vmatprep.subr.mxu0 0.0
  %1303 = vmatpush1.msra.mxu0 0.0
  %1304 = vmatprep.subr.mxu0 0.0
  %1305 = vmatpush1.msra.mxu0 0.0
  %1306 = vmatprep.subr.mxu0 0.0
  %1307 = vmatpush1.msra.mxu0 0.0
  %1308 = vmatprep.subr.mxu0 0.0
  %1309 = vmatpush1.msra.mxu0 0.0
  %1310 = vmatprep.subr.mxu0 0.0
  %1311 = vmatpush1.msra.mxu0 0.0
  %1312 = vmatprep.subr.mxu0 0.0
  %1313 = vmatpush1.msra.mxu0 0.0
  %1314 = vmatprep.subr.mxu0 0.0
  %1315 = vmatpush1.msra.mxu0 0.0
  %1316 = vmatprep.subr.mxu0 0.0
  %1317 = vmatpush1.msra.mxu0 0.0
  %1318 = vmatprep.subr.mxu0 0.0
  %1319 = vmatpush1.msra.mxu0 0.0
  %1320 = vmatprep.subr.mxu0 0.0
  %1321 = vmatpush1.msra.mxu0 0.0
  %1322 = vmatprep.subr.mxu0 0.0
  %1323 = vmatpush1.msra.mxu0 0.0
  %1324 = vmatprep.mubr.f32.mxu0 0.0
  %1325 = vmatmul.mubr.f32.gmra.mrb[0].mxu0 %v1066
  %v1326 = vpop.f32.mrb[0].mxu0
  %v1327 = vadd.f32 0.0, %v1326
  %v1328 = vpop.f32.mrb[0].mxu0
  %1329 = vmatprep.mubr.f32.mxu0 0.0
  %1330 = vmatmul.mubr.f32.gmra.mrb[0].mxu0 %v1069
  %v1331 = vpop.f32.mrb[0].mxu0
  %v1332 = vadd.f32 0.0, %v1331
  %v1333 = vpop.f32.mrb[0].mxu0
  %1334 = vmatprep.mubr.f32.mxu0 0.0
  %1335 = vmatmul.mubr.f32.gmra.mrb[0].mxu0 %v1072
  %v1336 = vpop.f32.mrb[0].mxu0
  %v1337 = vadd.f32 0.0, %v1336
  %v1338 = vpop.f32.mrb[0].mxu0
  %1339 = vmatprep.mubr.f32.mxu0 0.0
  %1340 = vmatmul.mubr.f32.gmra.mrb[0].mxu0 %v1075
  %v1341 = vpop.f32.mrb[0].mxu0
  %v1342 = vadd.f32 0.0, %v1341
  %v1343 = vpop.f32.mrb[0].mxu0
  %1344 = vmatprep.mubr.f32.mxu0 0.0
  %1345 = vmatmul.mubr.f32.gmra.mrb[0].mxu0 %v1078
  %v1346 = vpop.f32.mrb[0].mxu0
  %v1347 = vadd.f32 0.0, %v1346
  %v1348 = vpop.f32.mrb[0].mxu0
  %1349 = vmatprep.mubr.f32.mxu0 0.0
  %1350 = vmatmul.mubr.f32.gmra.mrb[0].mxu0 %v1081
  %v1351 = vpop.f32.mrb[0].mxu0
  %v1352 = vadd.f32 0.0, %v1351
  %v1353 = vpop.f32.mrb[0].mxu0
  %1354 = vmatprep.mubr.f32.mxu0 0.0
  %1355 = vmatmul.mubr.f32.gmra.mrb[0].mxu0 %v1084
  %v1356 = vpop.f32.mrb[0].mxu0
  %v1357 = vadd.f32 0.0, %v1356
  %v1358 = vpop.f32.mrb[0].mxu0
  %1359 = vmatprep.mubr.f32.mxu0 0.0
  %1360 = vmatmul.mubr.f32.gmra.mrb[0].mxu0 %v1087
  %v1361 = vpop.f32.mrb[0].mxu0
  %v1362 = vadd.f32 0.0, %v1361
  %v1363 = vpop.f32.mrb[0].mxu0
  %1364 = vmatprep.mubr.f32.mxu0 0.0
  %1365 = vmatmul.mubr.f32.gmra.mrb[0].mxu0 %v1090
  %v1366 = vpop.f32.mrb[0].mxu0
  %v1367 = vadd.f32 0.0, %v1366
  %v1368 = vpop.f32.mrb[0].mxu0
  %1369 = vmatprep.mubr.f32.mxu0 0.0
  %1370 = vmatmul.mubr.f32.gmra.mrb[0].mxu0 %v1093
  %v1371 = vpop.f32.mrb[0].mxu0
  %v1372 = vadd.f32 0.0, %v1371
  %v1373 = vpop.f32.mrb[0].mxu0
  %1374 = vmatprep.mubr.f32.mxu0 0.0
  %1375 = vmatmul.mubr.f32.gmra.mrb[0].mxu0 %v1096
  %v1376 = vpop.f32.mrb[0].mxu0
  %v1377 = vadd.f32 0.0, %v1376
  %v1378 = vpop.f32.mrb[0].mxu0
  %1379 = vmatprep.mubr.f32.mxu0 0.0
  %1380 = vmatmul.mubr.f32.gmra.mrb[0].mxu0 %v1099
  %v1381 = vpop.f32.mrb[0].mxu0
  %v1382 = vadd.f32 0.0, %v1381
  %v1383 = vpop.f32.mrb[0].mxu0
  %1384 = vmatprep.mubr.f32.mxu0 0.0
  %1385 = vmatmul.mubr.f32.gmra.mrb[0].mxu0 %v1102
  %v1386 = vpop.f32.mrb[0].mxu0
  %v1387 = vadd.f32 0.0, %v1386
  %v1388 = vpop.f32.mrb[0].mxu0
  %1389 = vmatprep.mubr.f32.mxu0 0.0
  %1390 = vmatmul.mubr.f32.gmra.mrb[0].mxu0 %v1105
  %v1391 = vpop.f32.mrb[0].mxu0
  %v1392 = vadd.f32 0.0, %v1391
  %v1393 = vpop.f32.mrb[0].mxu0
  %1394 = vmatprep.mubr.f32.mxu0 0.0
  %1395 = vmatmul.mubr.f32.gmra.mrb[0].mxu0 %v1108
  %v1396 = vpop.f32.mrb[0].mxu0
  %v1397 = vadd.f32 0.0, %v1396
  %v1398 = vpop.f32.mrb[0].mxu0
  %1399 = vmatprep.mubr.f32.mxu0 0.0
  %1400 = vmatmul.mubr.f32.gmra.mrb[0].mxu0 %v1111
  %v1401 = vpop.f32.mrb[0].mxu0
  %v1402 = vadd.f32 0.0, %v1401
  %v1403 = vpop.f32.mrb[0].mxu0
  %1404 = vmatprep.mubr.f32.mxu0 0.0
  %1405 = vmatmul.mubr.f32.gmra.mrb[0].mxu0 %v1114
  %v1406 = vpop.f32.mrb[0].mxu0
  %v1407 = vadd.f32 0.0, %v1406
  %v1408 = vpop.f32.mrb[0].mxu0
  %1409 = vmatprep.mubr.f32.mxu0 0.0
  %1410 = vmatmul.mubr.f32.gmra.mrb[0].mxu0 %v1117
  %v1411 = vpop.f32.mrb[0].mxu0
  %v1412 = vadd.f32 0.0, %v1411
  %v1413 = vpop.f32.mrb[0].mxu0
  %1414 = vmatprep.mubr.f32.mxu0 0.0
  %1415 = vmatmul.mubr.f32.gmra.mrb[0].mxu0 %v1120
  %v1416 = vpop.f32.mrb[0].mxu0
  %v1417 = vadd.f32 0.0, %v1416
  %v1418 = vpop.f32.mrb[0].mxu0
  %1419 = vmatprep.mubr.f32.mxu0 0.0
  %1420 = vmatmul.mubr.f32.gmra.mrb[0].mxu0 %v1123
  %v1421 = vpop.f32.mrb[0].mxu0
  %v1422 = vadd.f32 0.0, %v1421
  %v1423 = vpop.f32.mrb[0].mxu0
  %1424 = vmatprep.mubr.f32.mxu0 0.0
  %1425 = vmatmul.mubr.f32.gmra.mrb[0].mxu0 %v1126
  %v1426 = vpop.f32.mrb[0].mxu0
  %v1427 = vadd.f32 0.0, %v1426
  %v1428 = vpop.f32.mrb[0].mxu0
  %1429 = vmatprep.mubr.f32.mxu0 0.0
  %1430 = vmatmul.mubr.f32.gmra.mrb[0].mxu0 %v1129
  %v1431 = vpop.f32.mrb[0].mxu0
  %v1432 = vadd.f32 0.0, %v1431
  %v1433 = vpop.f32.mrb[0].mxu0
  %1434 = vmatprep.mubr.f32.mxu0 0.0
  %1435 = vmatmul.mubr.f32.gmra.mrb[0].mxu0 %v1132
  %v1436 = vpop.f32.mrb[0].mxu0
  %v1437 = vadd.f32 0.0, %v1436
  %v1438 = vpop.f32.mrb[0].mxu0
  %1439 = vmatprep.mubr.f32.mxu0 0.0
  %1440 = vmatmul.mubr.f32.gmra.mrb[0].mxu0 %v1135
  %v1441 = vpop.f32.mrb[0].mxu0
  %v1442 = vadd.f32 0.0, %v1441
  %v1443 = vpop.f32.mrb[0].mxu0
  %1444 = vmatprep.mubr.f32.mxu0 0.0
  %1445 = vmatmul.mubr.f32.gmra.mrb[0].mxu0 %v1138
  %v1446 = vpop.f32.mrb[0].mxu0
  %v1447 = vadd.f32 0.0, %v1446
  %v1448 = vpop.f32.mrb[0].mxu0
  %1449 = vmatprep.mubr.f32.mxu0 0.0
  %1450 = vmatmul.mubr.f32.gmra.mrb[0].mxu0 %v1141
  %v1451 = vpop.f32.mrb[0].mxu0
  %v1452 = vadd.f32 0.0, %v1451
  %v1453 = vpop.f32.mrb[0].mxu0
  %1454 = vmatprep.mubr.f32.mxu0 0.0
  %1455 = vmatmul.mubr.f32.gmra.mrb[0].mxu0 %v1144
  %v1456 = vpop.f32.mrb[0].mxu0
  %v1457 = vadd.f32 0.0, %v1456
  %v1458 = vpop.f32.mrb[0].mxu0
  %1459 = vmatprep.mubr.f32.mxu0 0.0
  %1460 = vmatmul.mubr.f32.gmra.mrb[0].mxu0 %v1147
  %v1461 = vpop.f32.mrb[0].mxu0
  %v1462 = vadd.f32 0.0, %v1461
  %v1463 = vpop.f32.mrb[0].mxu0
  %1464 = vmatprep.mubr.f32.mxu0 0.0
  %1465 = vmatmul.mubr.f32.gmra.mrb[0].mxu0 %v1150
  %v1466 = vpop.f32.mrb[0].mxu0
  %v1467 = vadd.f32 0.0, %v1466
  %v1468 = vpop.f32.mrb[0].mxu0
  %1469 = vmatprep.mubr.f32.mxu0 0.0
  %1470 = vmatmul.mubr.f32.gmra.mrb[0].mxu0 %v1153
  %v1471 = vpop.f32.mrb[0].mxu0
  %v1472 = vadd.f32 0.0, %v1471
  %v1473 = vpop.f32.mrb[0].mxu0
  %1474 = vmatprep.mubr.f32.mxu0 0.0
  %1475 = vmatmul.mubr.f32.gmra.mrb[0].mxu0 %v1156
  %v1476 = vpop.f32.mrb[0].mxu0
  %v1477 = vadd.f32 0.0, %v1476
  %v1478 = vpop.f32.mrb[0].mxu0
  %1479 = vmatprep.mubr.f32.mxu0 0.0
  %1480 = vmatmul.mubr.f32.gmra.mrb[0].mxu0 %v1159
  %v1481 = vpop.f32.mrb[0].mxu0
  %v1482 = vadd.f32 0.0, %v1481
  %v1483 = vpop.f32.mrb[0].mxu0
  %1484 = vmatprep.mubr.f32.mxu0 0.0
  %1485 = vmatmul.mubr.f32.gmra.mrb[0].mxu0 %v1162
  %v1486 = vpop.f32.mrb[0].mxu0
  %v1487 = vadd.f32 0.0, %v1486
  %v1488 = vpop.f32.mrb[0].mxu0
  %1489 = vmatprep.mubr.f32.mxu0 0.0
  %1490 = vmatmul.mubr.f32.gmra.mrb[0].mxu0 %v1165
  %v1491 = vpop.f32.mrb[0].mxu0
  %v1492 = vadd.f32 0.0, %v1491
  %v1493 = vpop.f32.mrb[0].mxu0
  %1494 = vmatprep.mubr.f32.mxu0 0.0
  %1495 = vmatmul.mubr.f32.gmra.mrb[0].mxu0 %v1168
  %v1496 = vpop.f32.mrb[0].mxu0
  %v1497 = vadd.f32 0.0, %v1496
  %v1498 = vpop.f32.mrb[0].mxu0
  %1499 = vmatprep.mubr.f32.mxu0 0.0
  %1500 = vmatmul.mubr.f32.gmra.mrb[0].mxu0 %v1171
  %v1501 = vpop.f32.mrb[0].mxu0
  %v1502 = vadd.f32 0.0, %v1501
  %v1503 = vpop.f32.mrb[0].mxu0
  %1504 = vmatprep.mubr.f32.mxu0 0.0
  %1505 = vmatmul.mubr.f32.gmra.mrb[0].mxu0 %v1174
  %v1506 = vpop.f32.mrb[0].mxu0
  %v1507 = vadd.f32 0.0, %v1506
  %v1508 = vpop.f32.mrb[0].mxu0
  %1509 = vmatprep.mubr.f32.mxu0 0.0
  %1510 = vmatmul.mubr.f32.gmra.mrb[0].mxu0 %v1177
  %v1511 = vpop.f32.mrb[0].mxu0
  %v1512 = vadd.f32 0.0, %v1511
  %v1513 = vpop.f32.mrb[0].mxu0
  %1514 = vmatprep.mubr.f32.mxu0 0.0
  %1515 = vmatmul.mubr.f32.gmra.mrb[0].mxu0 %v1180
  %v1516 = vpop.f32.mrb[0].mxu0
  %v1517 = vadd.f32 0.0, %v1516
  %v1518 = vpop.f32.mrb[0].mxu0
  %1519 = vmatprep.mubr.f32.mxu0 0.0
  %1520 = vmatmul.mubr.f32.gmra.mrb[0].mxu0 %v1183
  %v1521 = vpop.f32.mrb[0].mxu0
  %v1522 = vadd.f32 0.0, %v1521
  %v1523 = vpop.f32.mrb[0].mxu0
  %1524 = vmatprep.mubr.f32.mxu0 0.0
  %1525 = vmatmul.mubr.f32.gmra.mrb[0].mxu0 %v1186
  %v1526 = vpop.f32.mrb[0].mxu0
  %v1527 = vadd.f32 0.0, %v1526
  %v1528 = vpop.f32.mrb[0].mxu0
  %1529 = vmatprep.mubr.f32.mxu0 0.0
  %1530 = vmatmul.mubr.f32.gmra.mrb[0].mxu0 %v1189
  %v1531 = vpop.f32.mrb[0].mxu0
  %v1532 = vadd.f32 0.0, %v1531
  %v1533 = vpop.f32.mrb[0].mxu0
  %1534 = vmatprep.mubr.f32.mxu0 0.0
  %1535 = vmatmul.mubr.f32.gmra.mrb[0].mxu0 %v1192
  %v1536 = vpop.f32.mrb[0].mxu0
  %v1537 = vadd.f32 0.0, %v1536
  %v1538 = vpop.f32.mrb[0].mxu0
  %1539 = vmatprep.mubr.f32.mxu0 0.0
  %1540 = vmatmul.mubr.f32.gmra.mrb[0].mxu0 %v1195
  %v1541 = vpop.f32.mrb[0].mxu0
  %v1542 = vadd.f32 0.0, %v1541
  %v1543 = vpop.f32.mrb[0].mxu0
  %1544 = vmatprep.mubr.f32.mxu0 0.0
  %1545 = vmatmul.mubr.f32.gmra.mrb[0].mxu0 %v1198
  %v1546 = vpop.f32.mrb[0].mxu0
  %v1547 = vadd.f32 0.0, %v1546
  %v1548 = vpop.f32.mrb[0].mxu0
  %1549 = vmatprep.mubr.f32.mxu0 0.0
  %1550 = vmatmul.mubr.f32.gmra.mrb[0].mxu0 %v1201
  %v1551 = vpop.f32.mrb[0].mxu0
  %v1552 = vadd.f32 0.0, %v1551
  %v1553 = vpop.f32.mrb[0].mxu0
  %1554 = vmatprep.mubr.f32.mxu0 0.0
  %1555 = vmatmul.mubr.f32.gmra.mrb[0].mxu0 %v1204
  %v1556 = vpop.f32.mrb[0].mxu0
  %v1557 = vadd.f32 0.0, %v1556
  %v1558 = vpop.f32.mrb[0].mxu0
  %1559 = vmatprep.mubr.f32.mxu0 0.0
  %1560 = vmatmul.mubr.f32.gmra.mrb[0].mxu0 %v1207
  %v1561 = vpop.f32.mrb[0].mxu0
  %v1562 = vadd.f32 0.0, %v1561
  %v1563 = vpop.f32.mrb[0].mxu0
  %1564 = vmatprep.mubr.f32.mxu0 0.0
  %1565 = vmatmul.mubr.f32.gmra.mrb[0].mxu0 %v1210
  %v1566 = vpop.f32.mrb[0].mxu0
  %v1567 = vadd.f32 0.0, %v1566
  %v1568 = vpop.f32.mrb[0].mxu0
  %1569 = vmatprep.mubr.f32.mxu0 0.0
  %1570 = vmatmul.mubr.f32.gmra.mrb[0].mxu0 %v1213
  %v1571 = vpop.f32.mrb[0].mxu0
  %v1572 = vadd.f32 0.0, %v1571
  %v1573 = vpop.f32.mrb[0].mxu0
  %1574 = vmatprep.mubr.f32.mxu0 0.0
  %1575 = vmatmul.mubr.f32.gmra.mrb[0].mxu0 %v1216
  %v1576 = vpop.f32.mrb[0].mxu0
  %v1577 = vadd.f32 0.0, %v1576
  %v1578 = vpop.f32.mrb[0].mxu0
  %1579 = vmatprep.mubr.f32.mxu0 0.0
  %1580 = vmatmul.mubr.f32.gmra.mrb[0].mxu0 %v1219
  %v1581 = vpop.f32.mrb[0].mxu0
  %v1582 = vadd.f32 0.0, %v1581
  %v1583 = vpop.f32.mrb[0].mxu0
  %1584 = vmatprep.mubr.f32.mxu0 0.0
  %1585 = vmatmul.mubr.f32.gmra.mrb[0].mxu0 %v1222
  %v1586 = vpop.f32.mrb[0].mxu0
  %v1587 = vadd.f32 0.0, %v1586
  %v1588 = vpop.f32.mrb[0].mxu0
  %1589 = vmatprep.mubr.f32.mxu0 0.0
  %1590 = vmatmul.mubr.f32.gmra.mrb[0].mxu0 %v1225
  %v1591 = vpop.f32.mrb[0].mxu0
  %v1592 = vadd.f32 0.0, %v1591
  %v1593 = vpop.f32.mrb[0].mxu0
  %1594 = vmatprep.mubr.f32.mxu0 0.0
  %1595 = vmatmul.mubr.f32.gmra.mrb[0].mxu0 %v1228
  %v1596 = vpop.f32.mrb[0].mxu0
  %v1597 = vadd.f32 0.0, %v1596
  %v1598 = vpop.f32.mrb[0].mxu0
  %1599 = vmatprep.mubr.f32.mxu0 0.0
  %1600 = vmatmul.mubr.f32.gmra.mrb[0].mxu0 %v1231
  %v1601 = vpop.f32.mrb[0].mxu0
  %v1602 = vadd.f32 0.0, %v1601
  %v1603 = vpop.f32.mrb[0].mxu0
  %1604 = vmatprep.mubr.f32.mxu0 0.0
  %1605 = vmatmul.mubr.f32.gmra.mrb[0].mxu0 %v1234
  %v1606 = vpop.f32.mrb[0].mxu0
  %v1607 = vadd.f32 0.0, %v1606
  %v1608 = vpop.f32.mrb[0].mxu0
  %1609 = vmatprep.mubr.f32.mxu0 0.0
  %1610 = vmatmul.mubr.f32.gmra.mrb[0].mxu0 %v1237
  %v1611 = vpop.f32.mrb[0].mxu0
  %v1612 = vadd.f32 0.0, %v1611
  %v1613 = vpop.f32.mrb[0].mxu0
  %1614 = vmatprep.mubr.f32.mxu0 0.0
  %1615 = vmatmul.mubr.f32.gmra.mrb[0].mxu0 %v1240
  %v1616 = vpop.f32.mrb[0].mxu0
  %v1617 = vadd.f32 0.0, %v1616
  %v1618 = vpop.f32.mrb[0].mxu0
  %1619 = vmatprep.mubr.f32.mxu0 0.0
  %1620 = vmatmul.mubr.f32.gmra.mrb[0].mxu0 %v1243
  %v1621 = vpop.f32.mrb[0].mxu0
  %v1622 = vadd.f32 0.0, %v1621
  %v1623 = vpop.f32.mrb[0].mxu0
  %1624 = vmatprep.mubr.f32.mxu0 0.0
  %1625 = vmatmul.mubr.f32.gmra.mrb[0].mxu0 %v1246
  %v1626 = vpop.f32.mrb[0].mxu0
  %v1627 = vadd.f32 0.0, %v1626
  %v1628 = vpop.f32.mrb[0].mxu0
  %1629 = vmatprep.mubr.f32.mxu0 0.0
  %1630 = vmatmul.mubr.f32.gmra.mrb[0].mxu0 %v1249
  %v1631 = vpop.f32.mrb[0].mxu0
  %v1632 = vadd.f32 0.0, %v1631
  %v1633 = vpop.f32.mrb[0].mxu0
  %1634 = vmatprep.mubr.f32.mxu0 0.0
  %1635 = vmatmul.mubr.f32.gmra.mrb[0].mxu0 %v1252
  %v1636 = vpop.f32.mrb[0].mxu0
  %v1637 = vadd.f32 0.0, %v1636
  %v1638 = vpop.f32.mrb[0].mxu0
  %1639 = vmatprep.mubr.f32.mxu0 0.0
  %1640 = vmatmul.mubr.f32.gmra.mrb[0].mxu0 %v1255
  %v1641 = vpop.f32.mrb[0].mxu0
  %v1642 = vadd.f32 0.0, %v1641
  %v1643 = vpop.f32.mrb[0].mxu0
  %1644 = vdwg.mxu0
  %v1645 = vadd.f32 %v999, %v1327
  %v1646 = vadd.f32 %v1000, %v1332
  %v1647 = vadd.f32 %v1001, %v1337
  %v1648 = vadd.f32 %v1002, %v1342
  %v1649 = vadd.f32 %v1003, %v1347
  %v1650 = vadd.f32 %v1004, %v1352
  %v1651 = vadd.f32 %v1005, %v1357
  %v1652 = vadd.f32 %v1006, %v1362
  %v1653 = vadd.f32 %v1007, %v1367
  %v1654 = vadd.f32 %v1008, %v1372
  %v1655 = vadd.f32 %v1009, %v1377
  %v1656 = vadd.f32 %v1010, %v1382
  %v1657 = vadd.f32 %v1011, %v1387
  %v1658 = vadd.f32 %v1012, %v1392
  %v1659 = vadd.f32 %v1013, %v1397
  %v1660 = vadd.f32 %v1014, %v1402
  %v1661 = vadd.f32 %v1015, %v1407
  %v1662 = vadd.f32 %v1016, %v1412
  %v1663 = vadd.f32 %v1017, %v1417
  %v1664 = vadd.f32 %v1018, %v1422
  %v1665 = vadd.f32 %v1019, %v1427
  %v1666 = vadd.f32 %v1020, %v1432
  %v1667 = vadd.f32 %v1021, %v1437
  %v1668 = vadd.f32 %v1022, %v1442
  %v1669 = vadd.f32 %v1023, %v1447
  %v1670 = vadd.f32 %v1024, %v1452
  %v1671 = vadd.f32 %v1025, %v1457
  %v1672 = vadd.f32 %v1026, %v1462
  %v1673 = vadd.f32 %v1027, %v1467
  %v1674 = vadd.f32 %v1028, %v1472
  %v1675 = vadd.f32 %v1029, %v1477
  %v1676 = vadd.f32 %v1030, %v1482
  %v1677 = vadd.f32 %v1031, %v1487
  %v1678 = vadd.f32 %v1032, %v1492
  %v1679 = vadd.f32 %v1033, %v1497
  %v1680 = vadd.f32 %v1034, %v1502
  %v1681 = vadd.f32 %v1035, %v1507
  %v1682 = vadd.f32 %v1036, %v1512
  %v1683 = vadd.f32 %v1037, %v1517
  %v1684 = vadd.f32 %v1038, %v1522
  %v1685 = vadd.f32 %v1039, %v1527
  %v1686 = vadd.f32 %v1040, %v1532
  %v1687 = vadd.f32 %v1041, %v1537
  %v1688 = vadd.f32 %v1042, %v1542
  %v1689 = vadd.f32 %v1043, %v1547
  %v1690 = vadd.f32 %v1044, %v1552
  %v1691 = vadd.f32 %v1045, %v1557
  %v1692 = vadd.f32 %v1046, %v1562
  %v1693 = vadd.f32 %v1047, %v1567
  %v1694 = vadd.f32 %v1048, %v1572
  %v1695 = vadd.f32 %v1049, %v1577
  %v1696 = vadd.f32 %v1050, %v1582
  %v1697 = vadd.f32 %v1051, %v1587
  %v1698 = vadd.f32 %v1052, %v1592
  %v1699 = vadd.f32 %v1053, %v1597
  %v1700 = vadd.f32 %v1054, %v1602
  %v1701 = vadd.f32 %v1055, %v1607
  %v1702 = vadd.f32 %v1056, %v1612
  %v1703 = vadd.f32 %v1057, %v1617
  %v1704 = vadd.f32 %v1058, %v1622
  %v1705 = vadd.f32 %v1059, %v1627
  %v1706 = vadd.f32 %v1060, %v1632
  %v1707 = vadd.f32 %v1061, %v1637
  %v1708 = vadd.f32 %v1062, %v1642
  %1709 = vst [vmem:[#allocation2] sm:$0xff] %v1645
  %1710 = vst [vmem:[#allocation2 + $0x8] sm:$0xff] %v1646
  %1711 = vst [vmem:[#allocation2 + $0x10] sm:$0xff] %v1647
  %1712 = vst [vmem:[#allocation2 + $0x18] sm:$0xff] %v1648
  %1713 = vst [vmem:[#allocation2 + $0x20] sm:$0xff] %v1649
  %1714 = vst [vmem:[#allocation2 + $0x28] sm:$0xff] %v1650
  %1715 = vst [vmem:[#allocation2 + $0x30] sm:$0xff] %v1651
  %1716 = vst [vmem:[#allocation2 + $0x38] sm:$0xff] %v1652
  %1717 = vst [vmem:[#allocation2 + $0x40] sm:$0xff] %v1653
  %1718 = vst [vmem:[#allocation2 + $0x48] sm:$0xff] %v1654
  %1719 = vst [vmem:[#allocation2 + $0x50] sm:$0xff] %v1655
  %1720 = vst [vmem:[#allocation2 + $0x58] sm:$0xff] %v1656
  %1721 = vst [vmem:[#allocation2 + $0x60] sm:$0xff] %v1657
  %1722 = vst [vmem:[#allocation2 + $0x68] sm:$0xff] %v1658
  %1723 = vst [vmem:[#allocation2 + $0x70] sm:$0xff] %v1659
  %1724 = vst [vmem:[#allocation2 + $0x78] sm:$0xff] %v1660
  %1725 = vst [vmem:[#allocation2 + $0x80] sm:$0xff] %v1661
  %1726 = vst [vmem:[#allocation2 + $0x88] sm:$0xff] %v1662
  %1727 = vst [vmem:[#allocation2 + $0x90] sm:$0xff] %v1663
  %1728 = vst [vmem:[#allocation2 + $0x98] sm:$0xff] %v1664
  %1729 = vst [vmem:[#allocation2 + $0xa0] sm:$0xff] %v1665
  %1730 = vst [vmem:[#allocation2 + $0xa8] sm:$0xff] %v1666
  %1731 = vst [vmem:[#allocation2 + $0xb0] sm:$0xff] %v1667
  %1732 = vst [vmem:[#allocation2 + $0xb8] sm:$0xff] %v1668
  %1733 = vst [vmem:[#allocation2 + $0xc0] sm:$0xff] %v1669
  %1734 = vst [vmem:[#allocation2 + $0xc8] sm:$0xff] %v1670
  %1735 = vst [vmem:[#allocation2 + $0xd0] sm:$0xff] %v1671
  %1736 = vst [vmem:[#allocation2 + $0xd8] sm:$0xff] %v1672
  %1737 = vst [vmem:[#allocation2 + $0xe0] sm:$0xff] %v1673
  %1738 = vst [vmem:[#allocation2 + $0xe8] sm:$0xff] %v1674
  %1739 = vst [vmem:[#allocation2 + $0xf0] sm:$0xff] %v1675
  %1740 = vst [vmem:[#allocation2 + $0xf8] sm:$0xff] %v1676
  %1741 = vst [vmem:[#allocation2 + $0x100] sm:$0xff] %v1677
  %1742 = vst [vmem:[#allocation2 + $0x108] sm:$0xff] %v1678
  %1743 = vst [vmem:[#allocation2 + $0x110] sm:$0xff] %v1679
  %1744 = vst [vmem:[#allocation2 + $0x118] sm:$0xff] %v1680
  %1745 = vst [vmem:[#allocation2 + $0x120] sm:$0xff] %v1681
  %1746 = vst [vmem:[#allocation2 + $0x128] sm:$0xff] %v1682
  %1747 = vst [vmem:[#allocation2 + $0x130] sm:$0xff] %v1683
  %1748 = vst [vmem:[#allocation2 + $0x138] sm:$0xff] %v1684
  %1749 = vst [vmem:[#allocation2 + $0x140] sm:$0xff] %v1685
  %1750 = vst [vmem:[#allocation2 + $0x148] sm:$0xff] %v1686
  %1751 = vst [vmem:[#allocation2 + $0x150] sm:$0xff] %v1687
  %1752 = vst [vmem:[#allocation2 + $0x158] sm:$0xff] %v1688
  %1753 = vst [vmem:[#allocation2 + $0x160] sm:$0xff] %v1689
  %1754 = vst [vmem:[#allocation2 + $0x168] sm:$0xff] %v1690
  %1755 = vst [vmem:[#allocation2 + $0x170] sm:$0xff] %v1691
  %1756 = vst [vmem:[#allocation2 + $0x178] sm:$0xff] %v1692
  %1757 = vst [vmem:[#allocation2 + $0x180] sm:$0xff] %v1693
  %1758 = vst [vmem:[#allocation2 + $0x188] sm:$0xff] %v1694
  %1759 = vst [vmem:[#allocation2 + $0x190] sm:$0xff] %v1695
  %1760 = vst [vmem:[#allocation2 + $0x198] sm:$0xff] %v1696
  %1761 = vst [vmem:[#allocation2 + $0x1a0] sm:$0xff] %v1697
  %1762 = vst [vmem:[#allocation2 + $0x1a8] sm:$0xff] %v1698
  %1763 = vst [vmem:[#allocation2 + $0x1b0] sm:$0xff] %v1699
  %1764 = vst [vmem:[#allocation2 + $0x1b8] sm:$0xff] %v1700
  %1765 = vst [vmem:[#allocation2 + $0x1c0] sm:$0xff] %v1701
  %1766 = vst [vmem:[#allocation2 + $0x1c8] sm:$0xff] %v1702
  %1767 = vst [vmem:[#allocation2 + $0x1d0] sm:$0xff] %v1703
  %1768 = vst [vmem:[#allocation2 + $0x1d8] sm:$0xff] %v1704
  %1769 = vst [vmem:[#allocation2 + $0x1e0] sm:$0xff] %v1705
  %1770 = vst [vmem:[#allocation2 + $0x1e8] sm:$0xff] %v1706
  %1771 = vst [vmem:[#allocation2 + $0x1f0] sm:$0xff] %v1707
  %1772 = vst [vmem:[#allocation2 + $0x1f8] sm:$0xff] %v1708
  %v1773 = vld [vmem:[%s0 + $0x2] sm:$0xff]
  %v1774 = vld [vmem:[%s0 + $0xa] sm:$0xff]
  %v1775 = vld [vmem:[%s0 + $0x1a] sm:$0xff]
  %v1776 = vld [vmem:[%s0 + $0x22] sm:$0xff]
  %v1777 = vld [vmem:[%s0 + $0x32] sm:$0xff]
  %v1778 = vld [vmem:[%s0 + $0x3a] sm:$0xff]
  %v1779 = vld [vmem:[%s0 + $0x4a] sm:$0xff]
  %v1780 = vld [vmem:[%s0 + $0x52] sm:$0xff]
  %v1781 = vld [vmem:[%s0 + $0x62] sm:$0xff]
  %v1782 = vld [vmem:[%s0 + $0x6a] sm:$0xff]
  %v1783 = vld [vmem:[%s0 + $0x7a] sm:$0xff]
  %v1784 = vld [vmem:[%s0 + $0x82] sm:$0xff]
  %v1785 = vld [vmem:[%s0 + $0x92] sm:$0xff]
  %v1786 = vld [vmem:[%s0 + $0x9a] sm:$0xff]
  %v1787 = vld [vmem:[%s0 + $0xaa] sm:$0xff]
  %v1788 = vld [vmem:[%s0 + $0xb2] sm:$0xff]
  %v1789 = vld [vmem:[%s0 + $0xc2] sm:$0xff]
  %v1790 = vld [vmem:[%s0 + $0xca] sm:$0xff]
  %v1791 = vld [vmem:[%s0 + $0xda] sm:$0xff]
  %v1792 = vld [vmem:[%s0 + $0xe2] sm:$0xff]
  %v1793 = vld [vmem:[%s0 + $0xf2] sm:$0xff]
  %v1794 = vld [vmem:[%s0 + $0xfa] sm:$0xff]
  %v1795 = vld [vmem:[%s0 + $0x10a] sm:$0xff]
  %v1796 = vld [vmem:[%s0 + $0x112] sm:$0xff]
  %v1797 = vld [vmem:[%s0 + $0x122] sm:$0xff]
  %v1798 = vld [vmem:[%s0 + $0x12a] sm:$0xff]
  %v1799 = vld [vmem:[%s0 + $0x13a] sm:$0xff]
  %v1800 = vld [vmem:[%s0 + $0x142] sm:$0xff]
  %v1801 = vld [vmem:[%s0 + $0x152] sm:$0xff]
  %v1802 = vld [vmem:[%s0 + $0x15a] sm:$0xff]
  %v1803 = vld [vmem:[%s0 + $0x16a] sm:$0xff]
  %v1804 = vld [vmem:[%s0 + $0x172] sm:$0xff]
  %v1805 = vld [vmem:[%s0 + $0x1b2] sm:$0xff]
  %v1806 = vld [vmem:[%s0 + $0x1ba] sm:$0xff]
  %v1807 = vld [vmem:[%s0 + $0x1ca] sm:$0xff]
  %v1808 = vld [vmem:[%s0 + $0x1d2] sm:$0xff]
  %v1809 = vld [vmem:[%s0 + $0x1e2] sm:$0xff]
  %v1810 = vld [vmem:[%s0 + $0x1ea] sm:$0xff]
  %v1811 = vld [vmem:[%s0 + $0x1fa] sm:$0xff]
  %v1812 = vld [vmem:[%s0 + $0x202] sm:$0xff]
  %v1813 = vld [vmem:[%s0 + $0x212] sm:$0xff]
  %v1814 = vld [vmem:[%s0 + $0x21a] sm:$0xff]
  %v1815 = vld [vmem:[%s0 + $0x22a] sm:$0xff]
  %v1816 = vld [vmem:[%s0 + $0x232] sm:$0xff]
  %v1817 = vld [vmem:[%s0 + $0x242] sm:$0xff]
  %v1818 = vld [vmem:[%s0 + $0x24a] sm:$0xff]
  %v1819 = vld [vmem:[%s0 + $0x25a] sm:$0xff]
  %v1820 = vld [vmem:[%s0 + $0x262] sm:$0xff]
  %v1821 = vld [vmem:[%s0 + $0x272] sm:$0xff]
  %v1822 = vld [vmem:[%s0 + $0x27a] sm:$0xff]
  %v1823 = vld [vmem:[%s0 + $0x28a] sm:$0xff]
  %v1824 = vld [vmem:[%s0 + $0x292] sm:$0xff]
  %v1825 = vld [vmem:[%s0 + $0x2a2] sm:$0xff]
  %v1826 = vld [vmem:[%s0 + $0x2aa] sm:$0xff]
  %v1827 = vld [vmem:[%s0 + $0x2ba] sm:$0xff]
  %v1828 = vld [vmem:[%s0 + $0x2c2] sm:$0xff]
  %v1829 = vld [vmem:[%s0 + $0x2d2] sm:$0xff]
  %v1830 = vld [vmem:[%s0 + $0x2da] sm:$0xff]
  %v1831 = vld [vmem:[%s0 + $0x2ea] sm:$0xff]
  %v1832 = vld [vmem:[%s0 + $0x2f2] sm:$0xff]
  %v1833 = vld [vmem:[%s0 + $0x302] sm:$0xff]
  %v1834 = vld [vmem:[%s0 + $0x30a] sm:$0xff]
  %v1835 = vld [vmem:[%s0 + $0x31a] sm:$0xff]
  %v1836 = vld [vmem:[%s0 + $0x322] sm:$0xff]
  %v1837 = vld [vmem:[#allocation2] sm:$0xff]
  %v1838 = vld [vmem:[#allocation2 + $0x8] sm:$0xff]
  %v1839 = vld [vmem:[#allocation2 + $0x10] sm:$0xff]
  %v1840 = vld [vmem:[#allocation2 + $0x18] sm:$0xff]
  %v1841 = vld [vmem:[#allocation2 + $0x20] sm:$0xff]
  %v1842 = vld [vmem:[#allocation2 + $0x28] sm:$0xff]
  %v1843 = vld [vmem:[#allocation2 + $0x30] sm:$0xff]
  %v1844 = vld [vmem:[#allocation2 + $0x38] sm:$0xff]
  %v1845 = vld [vmem:[#allocation2 + $0x40] sm:$0xff]
  %v1846 = vld [vmem:[#allocation2 + $0x48] sm:$0xff]
  %v1847 = vld [vmem:[#allocation2 + $0x50] sm:$0xff]
  %v1848 = vld [vmem:[#allocation2 + $0x58] sm:$0xff]
  %v1849 = vld [vmem:[#allocation2 + $0x60] sm:$0xff]
  %v1850 = vld [vmem:[#allocation2 + $0x68] sm:$0xff]
  %v1851 = vld [vmem:[#allocation2 + $0x70] sm:$0xff]
  %v1852 = vld [vmem:[#allocation2 + $0x78] sm:$0xff]
  %v1853 = vld [vmem:[#allocation2 + $0x80] sm:$0xff]
  %v1854 = vld [vmem:[#allocation2 + $0x88] sm:$0xff]
  %v1855 = vld [vmem:[#allocation2 + $0x90] sm:$0xff]
  %v1856 = vld [vmem:[#allocation2 + $0x98] sm:$0xff]
  %v1857 = vld [vmem:[#allocation2 + $0xa0] sm:$0xff]
  %v1858 = vld [vmem:[#allocation2 + $0xa8] sm:$0xff]
  %v1859 = vld [vmem:[#allocation2 + $0xb0] sm:$0xff]
  %v1860 = vld [vmem:[#allocation2 + $0xb8] sm:$0xff]
  %v1861 = vld [vmem:[#allocation2 + $0xc0] sm:$0xff]
  %v1862 = vld [vmem:[#allocation2 + $0xc8] sm:$0xff]
  %v1863 = vld [vmem:[#allocation2 + $0xd0] sm:$0xff]
  %v1864 = vld [vmem:[#allocation2 + $0xd8] sm:$0xff]
  %v1865 = vld [vmem:[#allocation2 + $0xe0] sm:$0xff]
  %v1866 = vld [vmem:[#allocation2 + $0xe8] sm:$0xff]
  %v1867 = vld [vmem:[#allocation2 + $0xf0] sm:$0xff]
  %v1868 = vld [vmem:[#allocation2 + $0xf8] sm:$0xff]
  %v1869 = vld [vmem:[#allocation2 + $0x100] sm:$0xff]
  %v1870 = vld [vmem:[#allocation2 + $0x108] sm:$0xff]
  %v1871 = vld [vmem:[#allocation2 + $0x110] sm:$0xff]
  %v1872 = vld [vmem:[#allocation2 + $0x118] sm:$0xff]
  %v1873 = vld [vmem:[#allocation2 + $0x120] sm:$0xff]
  %v1874 = vld [vmem:[#allocation2 + $0x128] sm:$0xff]
  %v1875 = vld [vmem:[#allocation2 + $0x130] sm:$0xff]
  %v1876 = vld [vmem:[#allocation2 + $0x138] sm:$0xff]
  %v1877 = vld [vmem:[#allocation2 + $0x140] sm:$0xff]
  %v1878 = vld [vmem:[#allocation2 + $0x148] sm:$0xff]
  %v1879 = vld [vmem:[#allocation2 + $0x150] sm:$0xff]
  %v1880 = vld [vmem:[#allocation2 + $0x158] sm:$0xff]
  %v1881 = vld [vmem:[#allocation2 + $0x160] sm:$0xff]
  %v1882 = vld [vmem:[#allocation2 + $0x168] sm:$0xff]
  %v1883 = vld [vmem:[#allocation2 + $0x170] sm:$0xff]
  %v1884 = vld [vmem:[#allocation2 + $0x178] sm:$0xff]
  %v1885 = vld [vmem:[#allocation2 + $0x180] sm:$0xff]
  %v1886 = vld [vmem:[#allocation2 + $0x188] sm:$0xff]
  %v1887 = vld [vmem:[#allocation2 + $0x190] sm:$0xff]
  %v1888 = vld [vmem:[#allocation2 + $0x198] sm:$0xff]
  %v1889 = vld [vmem:[#allocation2 + $0x1a0] sm:$0xff]
  %v1890 = vld [vmem:[#allocation2 + $0x1a8] sm:$0xff]
  %v1891 = vld [vmem:[#allocation2 + $0x1b0] sm:$0xff]
  %v1892 = vld [vmem:[#allocation2 + $0x1b8] sm:$0xff]
  %v1893 = vld [vmem:[#allocation2 + $0x1c0] sm:$0xff]
  %v1894 = vld [vmem:[#allocation2 + $0x1c8] sm:$0xff]
  %v1895 = vld [vmem:[#allocation2 + $0x1d0] sm:$0xff]
  %v1896 = vld [vmem:[#allocation2 + $0x1d8] sm:$0xff]
  %v1897 = vld [vmem:[#allocation2 + $0x1e0] sm:$0xff]
  %v1898 = vld [vmem:[#allocation2 + $0x1e8] sm:$0xff]
  %v1899 = vld [vmem:[#allocation2 + $0x1f0] sm:$0xff]
  %v1900 = vld [vmem:[#allocation2 + $0x1f8] sm:$0xff]
  %s1901 = scalar_lea.vmem %s1, 8
  %v1902 = vld [vmem:[%s1901] sm:$0xf]
  %v1904 = vsel %vm225, %v1773, 0
  %v1907 = vsel %vm225, %v1774, 0
  %v1910 = vsel %vm225, %v1775, 0
  %v1913 = vsel %vm225, %v1776, 0
  %v1916 = vsel %vm225, %v1777, 0
  %v1919 = vsel %vm225, %v1778, 0
  %v1922 = vsel %vm225, %v1779, 0
  %v1925 = vsel %vm225, %v1780, 0
  %v1928 = vsel %vm225, %v1781, 0
  %v1931 = vsel %vm225, %v1782, 0
  %v1934 = vsel %vm225, %v1783, 0
  %v1937 = vsel %vm225, %v1784, 0
  %v1940 = vsel %vm225, %v1785, 0
  %v1943 = vsel %vm225, %v1786, 0
  %v1946 = vsel %vm225, %v1787, 0
  %v1949 = vsel %vm225, %v1788, 0
  %v1952 = vsel %vm225, %v1789, 0
  %v1955 = vsel %vm225, %v1790, 0
  %v1958 = vsel %vm225, %v1791, 0
  %v1961 = vsel %vm225, %v1792, 0
  %v1964 = vsel %vm225, %v1793, 0
  %v1967 = vsel %vm225, %v1794, 0
  %v1970 = vsel %vm225, %v1795, 0
  %v1973 = vsel %vm225, %v1796, 0
  %v1976 = vsel %vm225, %v1797, 0
  %v1979 = vsel %vm225, %v1798, 0
  %v1982 = vsel %vm225, %v1799, 0
  %v1985 = vsel %vm225, %v1800, 0
  %v1988 = vsel %vm225, %v1801, 0
  %v1991 = vsel %vm225, %v1802, 0
  %v1994 = vsel %vm225, %v1803, 0
  %v1997 = vsel %vm225, %v1804, 0
  %v2000 = vsel %vm225, %v1805, 0
  %v2003 = vsel %vm225, %v1806, 0
  %v2006 = vsel %vm225, %v1807, 0
  %v2009 = vsel %vm225, %v1808, 0
  %v2012 = vsel %vm225, %v1809, 0
  %v2015 = vsel %vm225, %v1810, 0
  %v2018 = vsel %vm225, %v1811, 0
  %v2021 = vsel %vm225, %v1812, 0
  %v2024 = vsel %vm225, %v1813, 0
  %v2027 = vsel %vm225, %v1814, 0
  %v2030 = vsel %vm225, %v1815, 0
  %v2033 = vsel %vm225, %v1816, 0
  %v2036 = vsel %vm225, %v1817, 0
  %v2039 = vsel %vm225, %v1818, 0
  %v2042 = vsel %vm225, %v1819, 0
  %v2045 = vsel %vm225, %v1820, 0
  %v2048 = vsel %vm225, %v1821, 0
  %v2051 = vsel %vm225, %v1822, 0
  %v2054 = vsel %vm225, %v1823, 0
  %v2057 = vsel %vm225, %v1824, 0
  %v2060 = vsel %vm225, %v1825, 0
  %v2063 = vsel %vm225, %v1826, 0
  %v2066 = vsel %vm225, %v1827, 0
  %v2069 = vsel %vm225, %v1828, 0
  %v2072 = vsel %vm225, %v1829, 0
  %v2075 = vsel %vm225, %v1830, 0
  %v2078 = vsel %vm225, %v1831, 0
  %v2081 = vsel %vm225, %v1832, 0
  %v2084 = vsel %vm225, %v1833, 0
  %v2087 = vsel %vm225, %v1834, 0
  %v2090 = vsel %vm225, %v1835, 0
  %v2093 = vsel %vm225, %v1836, 0
  %v2096 = vsel %vm418, %v1902, 0
  %2098 = vmatprep.subr.mxu0 0.0
  %2099 = vmatpush1.msra.mxu0 %v2096
  %2100 = vmatprep.subr.mxu0 0.0
  %2101 = vmatpush1.msra.mxu0 0.0
  %2102 = vmatprep.subr.mxu0 0.0
  %2103 = vmatpush1.msra.mxu0 0.0
  %2104 = vmatprep.subr.mxu0 0.0
  %2105 = vmatpush1.msra.mxu0 0.0
  %2106 = vmatprep.subr.mxu0 0.0
  %2107 = vmatpush1.msra.mxu0 0.0
  %2108 = vmatprep.subr.mxu0 0.0
  %2109 = vmatpush1.msra.mxu0 0.0
  %2110 = vmatprep.subr.mxu0 0.0
  %2111 = vmatpush1.msra.mxu0 0.0
  %2112 = vmatprep.subr.mxu0 0.0
  %2113 = vmatpush1.msra.mxu0 0.0
  %2114 = vmatprep.subr.mxu0 0.0
  %2115 = vmatpush1.msra.mxu0 0.0
  %2116 = vmatprep.subr.mxu0 0.0
  %2117 = vmatpush1.msra.mxu0 0.0
  %2118 = vmatprep.subr.mxu0 0.0
  %2119 = vmatpush1.msra.mxu0 0.0
  %2120 = vmatprep.subr.mxu0 0.0
  %2121 = vmatpush1.msra.mxu0 0.0
  %2122 = vmatprep.subr.mxu0 0.0
  %2123 = vmatpush1.msra.mxu0 0.0
  %2124 = vmatprep.subr.mxu0 0.0
  %2125 = vmatpush1.msra.mxu0 0.0
  %2126 = vmatprep.subr.mxu0 0.0
  %2127 = vmatpush1.msra.mxu0 0.0
  %2128 = vmatprep.subr.mxu0 0.0
  %2129 = vmatpush1.msra.mxu0 0.0
  %2130 = vmatprep.subr.mxu0 0.0
  %2131 = vmatpush1.msra.mxu0 0.0
  %2132 = vmatprep.subr.mxu0 0.0
  %2133 = vmatpush1.msra.mxu0 0.0
  %2134 = vmatprep.subr.mxu0 0.0
  %2135 = vmatpush1.msra.mxu0 0.0
  %2136 = vmatprep.subr.mxu0 0.0
  %2137 = vmatpush1.msra.mxu0 0.0
  %2138 = vmatprep.subr.mxu0 0.0
  %2139 = vmatpush1.msra.mxu0 0.0
  %2140 = vmatprep.subr.mxu0 0.0
  %2141 = vmatpush1.msra.mxu0 0.0
  %2142 = vmatprep.subr.mxu0 0.0
  %2143 = vmatpush1.msra.mxu0 0.0
  %2144 = vmatprep.subr.mxu0 0.0
  %2145 = vmatpush1.msra.mxu0 0.0
  %2146 = vmatprep.subr.mxu0 0.0
  %2147 = vmatpush1.msra.mxu0 0.0
  %2148 = vmatprep.subr.mxu0 0.0
  %2149 = vmatpush1.msra.mxu0 0.0
  %2150 = vmatprep.subr.mxu0 0.0
  %2151 = vmatpush1.msra.mxu0 0.0
  %2152 = vmatprep.subr.mxu0 0.0
  %2153 = vmatpush1.msra.mxu0 0.0
  %2154 = vmatprep.subr.mxu0 0.0
  %2155 = vmatpush1.msra.mxu0 0.0
  %2156 = vmatprep.subr.mxu0 0.0
  %2157 = vmatpush1.msra.mxu0 0.0
  %2158 = vmatprep.subr.mxu0 0.0
  %2159 = vmatpush1.msra.mxu0 0.0
  %2160 = vmatprep.subr.mxu0 0.0
  %2161 = vmatpush1.msra.mxu0 0.0
  %2162 = vmatprep.mubr.f32.mxu0 0.0
  %2163 = vmatmul.mubr.f32.gmra.mrb[0].mxu0 %v1904
  %v2164 = vpop.f32.mrb[0].mxu0
  %v2165 = vadd.f32 0.0, %v2164
  %v2166 = vpop.f32.mrb[0].mxu0
  %2167 = vmatprep.mubr.f32.mxu0 0.0
  %2168 = vmatmul.mubr.f32.gmra.mrb[0].mxu0 %v1907
  %v2169 = vpop.f32.mrb[0].mxu0
  %v2170 = vadd.f32 0.0, %v2169
  %v2171 = vpop.f32.mrb[0].mxu0
  %2172 = vmatprep.mubr.f32.mxu0 0.0
  %2173 = vmatmul.mubr.f32.gmra.mrb[0].mxu0 %v1910
  %v2174 = vpop.f32.mrb[0].mxu0
  %v2175 = vadd.f32 0.0, %v2174
  %v2176 = vpop.f32.mrb[0].mxu0
  %2177 = vmatprep.mubr.f32.mxu0 0.0
  %2178 = vmatmul.mubr.f32.gmra.mrb[0].mxu0 %v1913
  %v2179 = vpop.f32.mrb[0].mxu0
  %v2180 = vadd.f32 0.0, %v2179
  %v2181 = vpop.f32.mrb[0].mxu0
  %2182 = vmatprep.mubr.f32.mxu0 0.0
  %2183 = vmatmul.mubr.f32.gmra.mrb[0].mxu0 %v1916
  %v2184 = vpop.f32.mrb[0].mxu0
  %v2185 = vadd.f32 0.0, %v2184
  %v2186 = vpop.f32.mrb[0].mxu0
  %2187 = vmatprep.mubr.f32.mxu0 0.0
  %2188 = vmatmul.mubr.f32.gmra.mrb[0].mxu0 %v1919
  %v2189 = vpop.f32.mrb[0].mxu0
  %v2190 = vadd.f32 0.0, %v2189
  %v2191 = vpop.f32.mrb[0].mxu0
  %2192 = vmatprep.mubr.f32.mxu0 0.0
  %2193 = vmatmul.mubr.f32.gmra.mrb[0].mxu0 %v1922
  %v2194 = vpop.f32.mrb[0].mxu0
  %v2195 = vadd.f32 0.0, %v2194
  %v2196 = vpop.f32.mrb[0].mxu0
  %2197 = vmatprep.mubr.f32.mxu0 0.0
  %2198 = vmatmul.mubr.f32.gmra.mrb[0].mxu0 %v1925
  %v2199 = vpop.f32.mrb[0].mxu0
  %v2200 = vadd.f32 0.0, %v2199
  %v2201 = vpop.f32.mrb[0].mxu0
  %2202 = vmatprep.mubr.f32.mxu0 0.0
  %2203 = vmatmul.mubr.f32.gmra.mrb[0].mxu0 %v1928
  %v2204 = vpop.f32.mrb[0].mxu0
  %v2205 = vadd.f32 0.0, %v2204
  %v2206 = vpop.f32.mrb[0].mxu0
  %2207 = vmatprep.mubr.f32.mxu0 0.0
  %2208 = vmatmul.mubr.f32.gmra.mrb[0].mxu0 %v1931
  %v2209 = vpop.f32.mrb[0].mxu0
  %v2210 = vadd.f32 0.0, %v2209
  %v2211 = vpop.f32.mrb[0].mxu0
  %2212 = vmatprep.mubr.f32.mxu0 0.0
  %2213 = vmatmul.mubr.f32.gmra.mrb[0].mxu0 %v1934
  %v2214 = vpop.f32.mrb[0].mxu0
  %v2215 = vadd.f32 0.0, %v2214
  %v2216 = vpop.f32.mrb[0].mxu0
  %2217 = vmatprep.mubr.f32.mxu0 0.0
  %2218 = vmatmul.mubr.f32.gmra.mrb[0].mxu0 %v1937
  %v2219 = vpop.f32.mrb[0].mxu0
  %v2220 = vadd.f32 0.0, %v2219
  %v2221 = vpop.f32.mrb[0].mxu0
  %2222 = vmatprep.mubr.f32.mxu0 0.0
  %2223 = vmatmul.mubr.f32.gmra.mrb[0].mxu0 %v1940
  %v2224 = vpop.f32.mrb[0].mxu0
  %v2225 = vadd.f32 0.0, %v2224
  %v2226 = vpop.f32.mrb[0].mxu0
  %2227 = vmatprep.mubr.f32.mxu0 0.0
  %2228 = vmatmul.mubr.f32.gmra.mrb[0].mxu0 %v1943
  %v2229 = vpop.f32.mrb[0].mxu0
  %v2230 = vadd.f32 0.0, %v2229
  %v2231 = vpop.f32.mrb[0].mxu0
  %2232 = vmatprep.mubr.f32.mxu0 0.0
  %2233 = vmatmul.mubr.f32.gmra.mrb[0].mxu0 %v1946
  %v2234 = vpop.f32.mrb[0].mxu0
  %v2235 = vadd.f32 0.0, %v2234
  %v2236 = vpop.f32.mrb[0].mxu0
  %2237 = vmatprep.mubr.f32.mxu0 0.0
  %2238 = vmatmul.mubr.f32.gmra.mrb[0].mxu0 %v1949
  %v2239 = vpop.f32.mrb[0].mxu0
  %v2240 = vadd.f32 0.0, %v2239
  %v2241 = vpop.f32.mrb[0].mxu0
  %2242 = vmatprep.mubr.f32.mxu0 0.0
  %2243 = vmatmul.mubr.f32.gmra.mrb[0].mxu0 %v1952
  %v2244 = vpop.f32.mrb[0].mxu0
  %v2245 = vadd.f32 0.0, %v2244
  %v2246 = vpop.f32.mrb[0].mxu0
  %2247 = vmatprep.mubr.f32.mxu0 0.0
  %2248 = vmatmul.mubr.f32.gmra.mrb[0].mxu0 %v1955
  %v2249 = vpop.f32.mrb[0].mxu0
  %v2250 = vadd.f32 0.0, %v2249
  %v2251 = vpop.f32.mrb[0].mxu0
  %2252 = vmatprep.mubr.f32.mxu0 0.0
  %2253 = vmatmul.mubr.f32.gmra.mrb[0].mxu0 %v1958
  %v2254 = vpop.f32.mrb[0].mxu0
  %v2255 = vadd.f32 0.0, %v2254
  %v2256 = vpop.f32.mrb[0].mxu0
  %2257 = vmatprep.mubr.f32.mxu0 0.0
  %2258 = vmatmul.mubr.f32.gmra.mrb[0].mxu0 %v1961
  %v2259 = vpop.f32.mrb[0].mxu0
  %v2260 = vadd.f32 0.0, %v2259
  %v2261 = vpop.f32.mrb[0].mxu0
  %2262 = vmatprep.mubr.f32.mxu0 0.0
  %2263 = vmatmul.mubr.f32.gmra.mrb[0].mxu0 %v1964
  %v2264 = vpop.f32.mrb[0].mxu0
  %v2265 = vadd.f32 0.0, %v2264
  %v2266 = vpop.f32.mrb[0].mxu0
  %2267 = vmatprep.mubr.f32.mxu0 0.0
  %2268 = vmatmul.mubr.f32.gmra.mrb[0].mxu0 %v1967
  %v2269 = vpop.f32.mrb[0].mxu0
  %v2270 = vadd.f32 0.0, %v2269
  %v2271 = vpop.f32.mrb[0].mxu0
  %2272 = vmatprep.mubr.f32.mxu0 0.0
  %2273 = vmatmul.mubr.f32.gmra.mrb[0].mxu0 %v1970
  %v2274 = vpop.f32.mrb[0].mxu0
  %v2275 = vadd.f32 0.0, %v2274
  %v2276 = vpop.f32.mrb[0].mxu0
  %2277 = vmatprep.mubr.f32.mxu0 0.0
  %2278 = vmatmul.mubr.f32.gmra.mrb[0].mxu0 %v1973
  %v2279 = vpop.f32.mrb[0].mxu0
  %v2280 = vadd.f32 0.0, %v2279
  %v2281 = vpop.f32.mrb[0].mxu0
  %2282 = vmatprep.mubr.f32.mxu0 0.0
  %2283 = vmatmul.mubr.f32.gmra.mrb[0].mxu0 %v1976
  %v2284 = vpop.f32.mrb[0].mxu0
  %v2285 = vadd.f32 0.0, %v2284
  %v2286 = vpop.f32.mrb[0].mxu0
  %2287 = vmatprep.mubr.f32.mxu0 0.0
  %2288 = vmatmul.mubr.f32.gmra.mrb[0].mxu0 %v1979
  %v2289 = vpop.f32.mrb[0].mxu0
  %v2290 = vadd.f32 0.0, %v2289
  %v2291 = vpop.f32.mrb[0].mxu0
  %2292 = vmatprep.mubr.f32.mxu0 0.0
  %2293 = vmatmul.mubr.f32.gmra.mrb[0].mxu0 %v1982
  %v2294 = vpop.f32.mrb[0].mxu0
  %v2295 = vadd.f32 0.0, %v2294
  %v2296 = vpop.f32.mrb[0].mxu0
  %2297 = vmatprep.mubr.f32.mxu0 0.0
  %2298 = vmatmul.mubr.f32.gmra.mrb[0].mxu0 %v1985
  %v2299 = vpop.f32.mrb[0].mxu0
  %v2300 = vadd.f32 0.0, %v2299
  %v2301 = vpop.f32.mrb[0].mxu0
  %2302 = vmatprep.mubr.f32.mxu0 0.0
  %2303 = vmatmul.mubr.f32.gmra.mrb[0].mxu0 %v1988
  %v2304 = vpop.f32.mrb[0].mxu0
  %v2305 = vadd.f32 0.0, %v2304
  %v2306 = vpop.f32.mrb[0].mxu0
  %2307 = vmatprep.mubr.f32.mxu0 0.0
  %2308 = vmatmul.mubr.f32.gmra.mrb[0].mxu0 %v1991
  %v2309 = vpop.f32.mrb[0].mxu0
  %v2310 = vadd.f32 0.0, %v2309
  %v2311 = vpop.f32.mrb[0].mxu0
  %2312 = vmatprep.mubr.f32.mxu0 0.0
  %2313 = vmatmul.mubr.f32.gmra.mrb[0].mxu0 %v1994
  %v2314 = vpop.f32.mrb[0].mxu0
  %v2315 = vadd.f32 0.0, %v2314
  %v2316 = vpop.f32.mrb[0].mxu0
  %2317 = vmatprep.mubr.f32.mxu0 0.0
  %2318 = vmatmul.mubr.f32.gmra.mrb[0].mxu0 %v1997
  %v2319 = vpop.f32.mrb[0].mxu0
  %v2320 = vadd.f32 0.0, %v2319
  %v2321 = vpop.f32.mrb[0].mxu0
  %2322 = vmatprep.mubr.f32.mxu0 0.0
  %2323 = vmatmul.mubr.f32.gmra.mrb[0].mxu0 %v2000
  %v2324 = vpop.f32.mrb[0].mxu0
  %v2325 = vadd.f32 0.0, %v2324
  %v2326 = vpop.f32.mrb[0].mxu0
  %2327 = vmatprep.mubr.f32.mxu0 0.0
  %2328 = vmatmul.mubr.f32.gmra.mrb[0].mxu0 %v2003
  %v2329 = vpop.f32.mrb[0].mxu0
  %v2330 = vadd.f32 0.0, %v2329
  %v2331 = vpop.f32.mrb[0].mxu0
  %2332 = vmatprep.mubr.f32.mxu0 0.0
  %2333 = vmatmul.mubr.f32.gmra.mrb[0].mxu0 %v2006
  %v2334 = vpop.f32.mrb[0].mxu0
  %v2335 = vadd.f32 0.0, %v2334
  %v2336 = vpop.f32.mrb[0].mxu0
  %2337 = vmatprep.mubr.f32.mxu0 0.0
  %2338 = vmatmul.mubr.f32.gmra.mrb[0].mxu0 %v2009
  %v2339 = vpop.f32.mrb[0].mxu0
  %v2340 = vadd.f32 0.0, %v2339
  %v2341 = vpop.f32.mrb[0].mxu0
  %2342 = vmatprep.mubr.f32.mxu0 0.0
  %2343 = vmatmul.mubr.f32.gmra.mrb[0].mxu0 %v2012
  %v2344 = vpop.f32.mrb[0].mxu0
  %v2345 = vadd.f32 0.0, %v2344
  %v2346 = vpop.f32.mrb[0].mxu0
  %2347 = vmatprep.mubr.f32.mxu0 0.0
  %2348 = vmatmul.mubr.f32.gmra.mrb[0].mxu0 %v2015
  %v2349 = vpop.f32.mrb[0].mxu0
  %v2350 = vadd.f32 0.0, %v2349
  %v2351 = vpop.f32.mrb[0].mxu0
  %2352 = vmatprep.mubr.f32.mxu0 0.0
  %2353 = vmatmul.mubr.f32.gmra.mrb[0].mxu0 %v2018
  %v2354 = vpop.f32.mrb[0].mxu0
  %v2355 = vadd.f32 0.0, %v2354
  %v2356 = vpop.f32.mrb[0].mxu0
  %2357 = vmatprep.mubr.f32.mxu0 0.0
  %2358 = vmatmul.mubr.f32.gmra.mrb[0].mxu0 %v2021
  %v2359 = vpop.f32.mrb[0].mxu0
  %v2360 = vadd.f32 0.0, %v2359
  %v2361 = vpop.f32.mrb[0].mxu0
  %2362 = vmatprep.mubr.f32.mxu0 0.0
  %2363 = vmatmul.mubr.f32.gmra.mrb[0].mxu0 %v2024
  %v2364 = vpop.f32.mrb[0].mxu0
  %v2365 = vadd.f32 0.0, %v2364
  %v2366 = vpop.f32.mrb[0].mxu0
  %2367 = vmatprep.mubr.f32.mxu0 0.0
  %2368 = vmatmul.mubr.f32.gmra.mrb[0].mxu0 %v2027
  %v2369 = vpop.f32.mrb[0].mxu0
  %v2370 = vadd.f32 0.0, %v2369
  %v2371 = vpop.f32.mrb[0].mxu0
  %2372 = vmatprep.mubr.f32.mxu0 0.0
  %2373 = vmatmul.mubr.f32.gmra.mrb[0].mxu0 %v2030
  %v2374 = vpop.f32.mrb[0].mxu0
  %v2375 = vadd.f32 0.0, %v2374
  %v2376 = vpop.f32.mrb[0].mxu0
  %2377 = vmatprep.mubr.f32.mxu0 0.0
  %2378 = vmatmul.mubr.f32.gmra.mrb[0].mxu0 %v2033
  %v2379 = vpop.f32.mrb[0].mxu0
  %v2380 = vadd.f32 0.0, %v2379
  %v2381 = vpop.f32.mrb[0].mxu0
  %2382 = vmatprep.mubr.f32.mxu0 0.0
  %2383 = vmatmul.mubr.f32.gmra.mrb[0].mxu0 %v2036
  %v2384 = vpop.f32.mrb[0].mxu0
  %v2385 = vadd.f32 0.0, %v2384
  %v2386 = vpop.f32.mrb[0].mxu0
  %2387 = vmatprep.mubr.f32.mxu0 0.0
  %2388 = vmatmul.mubr.f32.gmra.mrb[0].mxu0 %v2039
  %v2389 = vpop.f32.mrb[0].mxu0
  %v2390 = vadd.f32 0.0, %v2389
  %v2391 = vpop.f32.mrb[0].mxu0
  %2392 = vmatprep.mubr.f32.mxu0 0.0
  %2393 = vmatmul.mubr.f32.gmra.mrb[0].mxu0 %v2042
  %v2394 = vpop.f32.mrb[0].mxu0
  %v2395 = vadd.f32 0.0, %v2394
  %v2396 = vpop.f32.mrb[0].mxu0
  %2397 = vmatprep.mubr.f32.mxu0 0.0
  %2398 = vmatmul.mubr.f32.gmra.mrb[0].mxu0 %v2045
  %v2399 = vpop.f32.mrb[0].mxu0
  %v2400 = vadd.f32 0.0, %v2399
  %v2401 = vpop.f32.mrb[0].mxu0
  %2402 = vmatprep.mubr.f32.mxu0 0.0
  %2403 = vmatmul.mubr.f32.gmra.mrb[0].mxu0 %v2048
  %v2404 = vpop.f32.mrb[0].mxu0
  %v2405 = vadd.f32 0.0, %v2404
  %v2406 = vpop.f32.mrb[0].mxu0
  %2407 = vmatprep.mubr.f32.mxu0 0.0
  %2408 = vmatmul.mubr.f32.gmra.mrb[0].mxu0 %v2051
  %v2409 = vpop.f32.mrb[0].mxu0
  %v2410 = vadd.f32 0.0, %v2409
  %v2411 = vpop.f32.mrb[0].mxu0
  %2412 = vmatprep.mubr.f32.mxu0 0.0
  %2413 = vmatmul.mubr.f32.gmra.mrb[0].mxu0 %v2054
  %v2414 = vpop.f32.mrb[0].mxu0
  %v2415 = vadd.f32 0.0, %v2414
  %v2416 = vpop.f32.mrb[0].mxu0
  %2417 = vmatprep.mubr.f32.mxu0 0.0
  %2418 = vmatmul.mubr.f32.gmra.mrb[0].mxu0 %v2057
  %v2419 = vpop.f32.mrb[0].mxu0
  %v2420 = vadd.f32 0.0, %v2419
  %v2421 = vpop.f32.mrb[0].mxu0
  %2422 = vmatprep.mubr.f32.mxu0 0.0
  %2423 = vmatmul.mubr.f32.gmra.mrb[0].mxu0 %v2060
  %v2424 = vpop.f32.mrb[0].mxu0
  %v2425 = vadd.f32 0.0, %v2424
  %v2426 = vpop.f32.mrb[0].mxu0
  %2427 = vmatprep.mubr.f32.mxu0 0.0
  %2428 = vmatmul.mubr.f32.gmra.mrb[0].mxu0 %v2063
  %v2429 = vpop.f32.mrb[0].mxu0
  %v2430 = vadd.f32 0.0, %v2429
  %v2431 = vpop.f32.mrb[0].mxu0
  %2432 = vmatprep.mubr.f32.mxu0 0.0
  %2433 = vmatmul.mubr.f32.gmra.mrb[0].mxu0 %v2066
  %v2434 = vpop.f32.mrb[0].mxu0
  %v2435 = vadd.f32 0.0, %v2434
  %v2436 = vpop.f32.mrb[0].mxu0
  %2437 = vmatprep.mubr.f32.mxu0 0.0
  %2438 = vmatmul.mubr.f32.gmra.mrb[0].mxu0 %v2069
  %v2439 = vpop.f32.mrb[0].mxu0
  %v2440 = vadd.f32 0.0, %v2439
  %v2441 = vpop.f32.mrb[0].mxu0
  %2442 = vmatprep.mubr.f32.mxu0 0.0
  %2443 = vmatmul.mubr.f32.gmra.mrb[0].mxu0 %v2072
  %v2444 = vpop.f32.mrb[0].mxu0
  %v2445 = vadd.f32 0.0, %v2444
  %v2446 = vpop.f32.mrb[0].mxu0
  %2447 = vmatprep.mubr.f32.mxu0 0.0
  %2448 = vmatmul.mubr.f32.gmra.mrb[0].mxu0 %v2075
  %v2449 = vpop.f32.mrb[0].mxu0
  %v2450 = vadd.f32 0.0, %v2449
  %v2451 = vpop.f32.mrb[0].mxu0
  %2452 = vmatprep.mubr.f32.mxu0 0.0
  %2453 = vmatmul.mubr.f32.gmra.mrb[0].mxu0 %v2078
  %v2454 = vpop.f32.mrb[0].mxu0
  %v2455 = vadd.f32 0.0, %v2454
  %v2456 = vpop.f32.mrb[0].mxu0
  %2457 = vmatprep.mubr.f32.mxu0 0.0
  %2458 = vmatmul.mubr.f32.gmra.mrb[0].mxu0 %v2081
  %v2459 = vpop.f32.mrb[0].mxu0
  %v2460 = vadd.f32 0.0, %v2459
  %v2461 = vpop.f32.mrb[0].mxu0
  %2462 = vmatprep.mubr.f32.mxu0 0.0
  %2463 = vmatmul.mubr.f32.gmra.mrb[0].mxu0 %v2084
  %v2464 = vpop.f32.mrb[0].mxu0
  %v2465 = vadd.f32 0.0, %v2464
  %v2466 = vpop.f32.mrb[0].mxu0
  %2467 = vmatprep.mubr.f32.mxu0 0.0
  %2468 = vmatmul.mubr.f32.gmra.mrb[0].mxu0 %v2087
  %v2469 = vpop.f32.mrb[0].mxu0
  %v2470 = vadd.f32 0.0, %v2469
  %v2471 = vpop.f32.mrb[0].mxu0
  %2472 = vmatprep.mubr.f32.mxu0 0.0
  %2473 = vmatmul.mubr.f32.gmra.mrb[0].mxu0 %v2090
  %v2474 = vpop.f32.mrb[0].mxu0
  %v2475 = vadd.f32 0.0, %v2474
  %v2476 = vpop.f32.mrb[0].mxu0
  %2477 = vmatprep.mubr.f32.mxu0 0.0
  %2478 = vmatmul.mubr.f32.gmra.mrb[0].mxu0 %v2093
  %v2479 = vpop.f32.mrb[0].mxu0
  %v2480 = vadd.f32 0.0, %v2479
  %v2481 = vpop.f32.mrb[0].mxu0
  %2482 = vdwg.mxu0
  %v2483 = vadd.f32 %v1837, %v2165
  %v2484 = vadd.f32 %v1838, %v2170
  %v2485 = vadd.f32 %v1839, %v2175
  %v2486 = vadd.f32 %v1840, %v2180
  %v2487 = vadd.f32 %v1841, %v2185
  %v2488 = vadd.f32 %v1842, %v2190
  %v2489 = vadd.f32 %v1843, %v2195
  %v2490 = vadd.f32 %v1844, %v2200
  %v2491 = vadd.f32 %v1845, %v2205
  %v2492 = vadd.f32 %v1846, %v2210
  %v2493 = vadd.f32 %v1847, %v2215
  %v2494 = vadd.f32 %v1848, %v2220
  %v2495 = vadd.f32 %v1849, %v2225
  %v2496 = vadd.f32 %v1850, %v2230
  %v2497 = vadd.f32 %v1851, %v2235
  %v2498 = vadd.f32 %v1852, %v2240
  %v2499 = vadd.f32 %v1853, %v2245
  %v2500 = vadd.f32 %v1854, %v2250
  %v2501 = vadd.f32 %v1855, %v2255
  %v2502 = vadd.f32 %v1856, %v2260
  %v2503 = vadd.f32 %v1857, %v2265
  %v2504 = vadd.f32 %v1858, %v2270
  %v2505 = vadd.f32 %v1859, %v2275
  %v2506 = vadd.f32 %v1860, %v2280
  %v2507 = vadd.f32 %v1861, %v2285
  %v2508 = vadd.f32 %v1862, %v2290
  %v2509 = vadd.f32 %v1863, %v2295
  %v2510 = vadd.f32 %v1864, %v2300
  %v2511 = vadd.f32 %v1865, %v2305
  %v2512 = vadd.f32 %v1866, %v2310
  %v2513 = vadd.f32 %v1867, %v2315
  %v2514 = vadd.f32 %v1868, %v2320
  %v2515 = vadd.f32 %v1869, %v2325
  %v2516 = vadd.f32 %v1870, %v2330
  %v2517 = vadd.f32 %v1871, %v2335
  %v2518 = vadd.f32 %v1872, %v2340
  %v2519 = vadd.f32 %v1873, %v2345
  %v2520 = vadd.f32 %v1874, %v2350
  %v2521 = vadd.f32 %v1875, %v2355
  %v2522 = vadd.f32 %v1876, %v2360
  %v2523 = vadd.f32 %v1877, %v2365
  %v2524 = vadd.f32 %v1878, %v2370
  %v2525 = vadd.f32 %v1879, %v2375
  %v2526 = vadd.f32 %v1880, %v2380
  %v2527 = vadd.f32 %v1881, %v2385
  %v2528 = vadd.f32 %v1882, %v2390
  %v2529 = vadd.f32 %v1883, %v2395
  %v2530 = vadd.f32 %v1884, %v2400
  %v2531 = vadd.f32 %v1885, %v2405
  %v2532 = vadd.f32 %v1886, %v2410
  %v2533 = vadd.f32 %v1887, %v2415
  %v2534 = vadd.f32 %v1888, %v2420
  %v2535 = vadd.f32 %v1889, %v2425
  %v2536 = vadd.f32 %v1890, %v2430
  %v2537 = vadd.f32 %v1891, %v2435
  %v2538 = vadd.f32 %v1892, %v2440
  %v2539 = vadd.f32 %v1893, %v2445
  %v2540 = vadd.f32 %v1894, %v2450
  %v2541 = vadd.f32 %v1895, %v2455
  %v2542 = vadd.f32 %v1896, %v2460
  %v2543 = vadd.f32 %v1897, %v2465
  %v2544 = vadd.f32 %v1898, %v2470
  %v2545 = vadd.f32 %v1899, %v2475
  %v2546 = vadd.f32 %v1900, %v2480
  %2547 = vst [vmem:[#allocation2] sm:$0xff] %v2483
  %2548 = vst [vmem:[#allocation2 + $0x8] sm:$0xff] %v2484
  %2549 = vst [vmem:[#allocation2 + $0x10] sm:$0xff] %v2485
  %2550 = vst [vmem:[#allocation2 + $0x18] sm:$0xff] %v2486
  %2551 = vst [vmem:[#allocation2 + $0x20] sm:$0xff] %v2487
  %2552 = vst [vmem:[#allocation2 + $0x28] sm:$0xff] %v2488
  %2553 = vst [vmem:[#allocation2 + $0x30] sm:$0xff] %v2489
  %2554 = vst [vmem:[#allocation2 + $0x38] sm:$0xff] %v2490
  %2555 = vst [vmem:[#allocation2 + $0x40] sm:$0xff] %v2491
  %2556 = vst [vmem:[#allocation2 + $0x48] sm:$0xff] %v2492
  %2557 = vst [vmem:[#allocation2 + $0x50] sm:$0xff] %v2493
  %2558 = vst [vmem:[#allocation2 + $0x58] sm:$0xff] %v2494
  %2559 = vst [vmem:[#allocation2 + $0x60] sm:$0xff] %v2495
  %2560 = vst [vmem:[#allocation2 + $0x68] sm:$0xff] %v2496
  %2561 = vst [vmem:[#allocation2 + $0x70] sm:$0xff] %v2497
  %2562 = vst [vmem:[#allocation2 + $0x78] sm:$0xff] %v2498
  %2563 = vst [vmem:[#allocation2 + $0x80] sm:$0xff] %v2499
  %2564 = vst [vmem:[#allocation2 + $0x88] sm:$0xff] %v2500
  %2565 = vst [vmem:[#allocation2 + $0x90] sm:$0xff] %v2501
  %2566 = vst [vmem:[#allocation2 + $0x98] sm:$0xff] %v2502
  %2567 = vst [vmem:[#allocation2 + $0xa0] sm:$0xff] %v2503
  %2568 = vst [vmem:[#allocation2 + $0xa8] sm:$0xff] %v2504
  %2569 = vst [vmem:[#allocation2 + $0xb0] sm:$0xff] %v2505
  %2570 = vst [vmem:[#allocation2 + $0xb8] sm:$0xff] %v2506
  %2571 = vst [vmem:[#allocation2 + $0xc0] sm:$0xff] %v2507
  %2572 = vst [vmem:[#allocation2 + $0xc8] sm:$0xff] %v2508
  %2573 = vst [vmem:[#allocation2 + $0xd0] sm:$0xff] %v2509
  %2574 = vst [vmem:[#allocation2 + $0xd8] sm:$0xff] %v2510
  %2575 = vst [vmem:[#allocation2 + $0xe0] sm:$0xff] %v2511
  %2576 = vst [vmem:[#allocation2 + $0xe8] sm:$0xff] %v2512
  %2577 = vst [vmem:[#allocation2 + $0xf0] sm:$0xff] %v2513
  %2578 = vst [vmem:[#allocation2 + $0xf8] sm:$0xff] %v2514
  %2579 = vst [vmem:[#allocation2 + $0x100] sm:$0xff] %v2515
  %2580 = vst [vmem:[#allocation2 + $0x108] sm:$0xff] %v2516
  %2581 = vst [vmem:[#allocation2 + $0x110] sm:$0xff] %v2517
  %2582 = vst [vmem:[#allocation2 + $0x118] sm:$0xff] %v2518
  %2583 = vst [vmem:[#allocation2 + $0x120] sm:$0xff] %v2519
  %2584 = vst [vmem:[#allocation2 + $0x128] sm:$0xff] %v2520
  %2585 = vst [vmem:[#allocation2 + $0x130] sm:$0xff] %v2521
  %2586 = vst [vmem:[#allocation2 + $0x138] sm:$0xff] %v2522
  %2587 = vst [vmem:[#allocation2 + $0x140] sm:$0xff] %v2523
  %2588 = vst [vmem:[#allocation2 + $0x148] sm:$0xff] %v2524
  %2589 = vst [vmem:[#allocation2 + $0x150] sm:$0xff] %v2525
  %2590 = vst [vmem:[#allocation2 + $0x158] sm:$0xff] %v2526
  %2591 = vst [vmem:[#allocation2 + $0x160] sm:$0xff] %v2527
  %2592 = vst [vmem:[#allocation2 + $0x168] sm:$0xff] %v2528
  %2593 = vst [vmem:[#allocation2 + $0x170] sm:$0xff] %v2529
  %2594 = vst [vmem:[#allocation2 + $0x178] sm:$0xff] %v2530
  %2595 = vst [vmem:[#allocation2 + $0x180] sm:$0xff] %v2531
  %2596 = vst [vmem:[#allocation2 + $0x188] sm:$0xff] %v2532
  %2597 = vst [vmem:[#allocation2 + $0x190] sm:$0xff] %v2533
  %2598 = vst [vmem:[#allocation2 + $0x198] sm:$0xff] %v2534
  %2599 = vst [vmem:[#allocation2 + $0x1a0] sm:$0xff] %v2535
  %2600 = vst [vmem:[#allocation2 + $0x1a8] sm:$0xff] %v2536
  %2601 = vst [vmem:[#allocation2 + $0x1b0] sm:$0xff] %v2537
  %2602 = vst [vmem:[#allocation2 + $0x1b8] sm:$0xff] %v2538
  %2603 = vst [vmem:[#allocation2 + $0x1c0] sm:$0xff] %v2539
  %2604 = vst [vmem:[#allocation2 + $0x1c8] sm:$0xff] %v2540
  %2605 = vst [vmem:[#allocation2 + $0x1d0] sm:$0xff] %v2541
  %2606 = vst [vmem:[#allocation2 + $0x1d8] sm:$0xff] %v2542
  %2607 = vst [vmem:[#allocation2 + $0x1e0] sm:$0xff] %v2543
  %2608 = vst [vmem:[#allocation2 + $0x1e8] sm:$0xff] %v2544
  %2609 = vst [vmem:[#allocation2 + $0x1f0] sm:$0xff] %v2545
  %2610 = vst [vmem:[#allocation2 + $0x1f8] sm:$0xff] %v2546
  %s2611 = scalar_lea.vmem %s0, 24
  %v2612 = vld [vmem:[%s2611] sm:$0xff]
  %v2613 = vld [vmem:[%s2611 + $0x8] sm:$0xff]
  %v2614 = vld [vmem:[%s2611 + $0x18] sm:$0xff]
  %v2615 = vld [vmem:[%s2611 + $0x20] sm:$0xff]
  %v2616 = vld [vmem:[%s2611 + $0x30] sm:$0xff]
  %v2617 = vld [vmem:[%s2611 + $0x38] sm:$0xff]
  %v2618 = vld [vmem:[%s2611 + $0x48] sm:$0xff]
  %v2619 = vld [vmem:[%s2611 + $0x50] sm:$0xff]
  %v2620 = vld [vmem:[%s2611 + $0x60] sm:$0xff]
  %v2621 = vld [vmem:[%s2611 + $0x68] sm:$0xff]
  %v2622 = vld [vmem:[%s2611 + $0x78] sm:$0xff]
  %v2623 = vld [vmem:[%s2611 + $0x80] sm:$0xff]
  %v2624 = vld [vmem:[%s2611 + $0x90] sm:$0xff]
  %v2625 = vld [vmem:[%s2611 + $0x98] sm:$0xff]
  %v2626 = vld [vmem:[%s2611 + $0xa8] sm:$0xff]
  %v2627 = vld [vmem:[%s2611 + $0xb0] sm:$0xff]
  %v2628 = vld [vmem:[%s2611 + $0xc0] sm:$0xff]
  %v2629 = vld [vmem:[%s2611 + $0xc8] sm:$0xff]
  %v2630 = vld [vmem:[%s2611 + $0xd8] sm:$0xff]
  %v2631 = vld [vmem:[%s2611 + $0xe0] sm:$0xff]
  %v2632 = vld [vmem:[%s2611 + $0xf0] sm:$0xff]
  %v2633 = vld [vmem:[%s2611 + $0xf8] sm:$0xff]
  %v2634 = vld [vmem:[%s2611 + $0x108] sm:$0xff]
  %v2635 = vld [vmem:[%s2611 + $0x110] sm:$0xff]
  %v2636 = vld [vmem:[%s2611 + $0x120] sm:$0xff]
  %v2637 = vld [vmem:[%s2611 + $0x128] sm:$0xff]
  %v2638 = vld [vmem:[%s2611 + $0x138] sm:$0xff]
  %v2639 = vld [vmem:[%s2611 + $0x140] sm:$0xff]
  %v2640 = vld [vmem:[%s2611 + $0x150] sm:$0xff]
  %v2641 = vld [vmem:[%s2611 + $0x158] sm:$0xff]
  %v2642 = vld [vmem:[%s2611 + $0x168] sm:$0xff]
  %v2643 = vld [vmem:[%s2611 + $0x170] sm:$0xff]
  %v2644 = vld [vmem:[%s2611 + $0x1b0] sm:$0xff]
  %v2645 = vld [vmem:[%s2611 + $0x1b8] sm:$0xff]
  %v2646 = vld [vmem:[%s2611 + $0x1c8] sm:$0xff]
  %v2647 = vld [vmem:[%s2611 + $0x1d0] sm:$0xff]
  %v2648 = vld [vmem:[%s2611 + $0x1e0] sm:$0xff]
  %v2649 = vld [vmem:[%s2611 + $0x1e8] sm:$0xff]
  %v2650 = vld [vmem:[%s2611 + $0x1f8] sm:$0xff]
  %v2651 = vld [vmem:[%s2611 + $0x200] sm:$0xff]
  %v2652 = vld [vmem:[%s2611 + $0x210] sm:$0xff]
  %v2653 = vld [vmem:[%s2611 + $0x218] sm:$0xff]
  %v2654 = vld [vmem:[%s2611 + $0x228] sm:$0xff]
  %v2655 = vld [vmem:[%s2611 + $0x230] sm:$0xff]
  %v2656 = vld [vmem:[%s2611 + $0x240] sm:$0xff]
  %v2657 = vld [vmem:[%s2611 + $0x248] sm:$0xff]
  %v2658 = vld [vmem:[%s2611 + $0x258] sm:$0xff]
  %v2659 = vld [vmem:[%s2611 + $0x260] sm:$0xff]
  %v2660 = vld [vmem:[%s2611 + $0x270] sm:$0xff]
  %v2661 = vld [vmem:[%s2611 + $0x278] sm:$0xff]
  %v2662 = vld [vmem:[%s2611 + $0x288] sm:$0xff]
  %v2663 = vld [vmem:[%s2611 + $0x290] sm:$0xff]
  %v2664 = vld [vmem:[%s2611 + $0x2a0] sm:$0xff]
  %v2665 = vld [vmem:[%s2611 + $0x2a8] sm:$0xff]
  %v2666 = vld [vmem:[%s2611 + $0x2b8] sm:$0xff]
  %v2667 = vld [vmem:[%s2611 + $0x2c0] sm:$0xff]
  %v2668 = vld [vmem:[%s2611 + $0x2d0] sm:$0xff]
  %v2669 = vld [vmem:[%s2611 + $0x2d8] sm:$0xff]
  %v2670 = vld [vmem:[%s2611 + $0x2e8] sm:$0xff]
  %v2671 = vld [vmem:[%s2611 + $0x2f0] sm:$0xff]
  %v2672 = vld [vmem:[%s2611 + $0x300] sm:$0xff]
  %v2673 = vld [vmem:[%s2611 + $0x308] sm:$0xff]
  %v2674 = vld [vmem:[%s2611 + $0x318] sm:$0xff]
  %v2675 = vld [vmem:[%s2611 + $0x320] sm:$0xff]
  %v2676 = vld [vmem:[#allocation2] sm:$0xff]
  %v2677 = vld [vmem:[#allocation2 + $0x8] sm:$0xff]
  %v2678 = vld [vmem:[#allocation2 + $0x10] sm:$0xff]
  %v2679 = vld [vmem:[#allocation2 + $0x18] sm:$0xff]
  %v2680 = vld [vmem:[#allocation2 + $0x20] sm:$0xff]
  %v2681 = vld [vmem:[#allocation2 + $0x28] sm:$0xff]
  %v2682 = vld [vmem:[#allocation2 + $0x30] sm:$0xff]
  %v2683 = vld [vmem:[#allocation2 + $0x38] sm:$0xff]
  %v2684 = vld [vmem:[#allocation2 + $0x40] sm:$0xff]
  %v2685 = vld [vmem:[#allocation2 + $0x48] sm:$0xff]
  %v2686 = vld [vmem:[#allocation2 + $0x50] sm:$0xff]
  %v2687 = vld [vmem:[#allocation2 + $0x58] sm:$0xff]
  %v2688 = vld [vmem:[#allocation2 + $0x60] sm:$0xff]
  %v2689 = vld [vmem:[#allocation2 + $0x68] sm:$0xff]
  %v2690 = vld [vmem:[#allocation2 + $0x70] sm:$0xff]
  %v2691 = vld [vmem:[#allocation2 + $0x78] sm:$0xff]
  %v2692 = vld [vmem:[#allocation2 + $0x80] sm:$0xff]
  %v2693 = vld [vmem:[#allocation2 + $0x88] sm:$0xff]
  %v2694 = vld [vmem:[#allocation2 + $0x90] sm:$0xff]
  %v2695 = vld [vmem:[#allocation2 + $0x98] sm:$0xff]
  %v2696 = vld [vmem:[#allocation2 + $0xa0] sm:$0xff]
  %v2697 = vld [vmem:[#allocation2 + $0xa8] sm:$0xff]
  %v2698 = vld [vmem:[#allocation2 + $0xb0] sm:$0xff]
  %v2699 = vld [vmem:[#allocation2 + $0xb8] sm:$0xff]
  %v2700 = vld [vmem:[#allocation2 + $0xc0] sm:$0xff]
  %v2701 = vld [vmem:[#allocation2 + $0xc8] sm:$0xff]
  %v2702 = vld [vmem:[#allocation2 + $0xd0] sm:$0xff]
  %v2703 = vld [vmem:[#allocation2 + $0xd8] sm:$0xff]
  %v2704 = vld [vmem:[#allocation2 + $0xe0] sm:$0xff]
  %v2705 = vld [vmem:[#allocation2 + $0xe8] sm:$0xff]
  %v2706 = vld [vmem:[#allocation2 + $0xf0] sm:$0xff]
  %v2707 = vld [vmem:[#allocation2 + $0xf8] sm:$0xff]
  %v2708 = vld [vmem:[#allocation2 + $0x100] sm:$0xff]
  %v2709 = vld [vmem:[#allocation2 + $0x108] sm:$0xff]
  %v2710 = vld [vmem:[#allocation2 + $0x110] sm:$0xff]
  %v2711 = vld [vmem:[#allocation2 + $0x118] sm:$0xff]
  %v2712 = vld [vmem:[#allocation2 + $0x120] sm:$0xff]
  %v2713 = vld [vmem:[#allocation2 + $0x128] sm:$0xff]
  %v2714 = vld [vmem:[#allocation2 + $0x130] sm:$0xff]
  %v2715 = vld [vmem:[#allocation2 + $0x138] sm:$0xff]
  %v2716 = vld [vmem:[#allocation2 + $0x140] sm:$0xff]
  %v2717 = vld [vmem:[#allocation2 + $0x148] sm:$0xff]
  %v2718 = vld [vmem:[#allocation2 + $0x150] sm:$0xff]
  %v2719 = vld [vmem:[#allocation2 + $0x158] sm:$0xff]
  %v2720 = vld [vmem:[#allocation2 + $0x160] sm:$0xff]
  %v2721 = vld [vmem:[#allocation2 + $0x168] sm:$0xff]
  %v2722 = vld [vmem:[#allocation2 + $0x170] sm:$0xff]
  %v2723 = vld [vmem:[#allocation2 + $0x178] sm:$0xff]
  %v2724 = vld [vmem:[#allocation2 + $0x180] sm:$0xff]
  %v2725 = vld [vmem:[#allocation2 + $0x188] sm:$0xff]
  %v2726 = vld [vmem:[#allocation2 + $0x190] sm:$0xff]
  %v2727 = vld [vmem:[#allocation2 + $0x198] sm:$0xff]
  %v2728 = vld [vmem:[#allocation2 + $0x1a0] sm:$0xff]
  %v2729 = vld [vmem:[#allocation2 + $0x1a8] sm:$0xff]
  %v2730 = vld [vmem:[#allocation2 + $0x1b0] sm:$0xff]
  %v2731 = vld [vmem:[#allocation2 + $0x1b8] sm:$0xff]
  %v2732 = vld [vmem:[#allocation2 + $0x1c0] sm:$0xff]
  %v2733 = vld [vmem:[#allocation2 + $0x1c8] sm:$0xff]
  %v2734 = vld [vmem:[#allocation2 + $0x1d0] sm:$0xff]
  %v2735 = vld [vmem:[#allocation2 + $0x1d8] sm:$0xff]
  %v2736 = vld [vmem:[#allocation2 + $0x1e0] sm:$0xff]
  %v2737 = vld [vmem:[#allocation2 + $0x1e8] sm:$0xff]
  %v2738 = vld [vmem:[#allocation2 + $0x1f0] sm:$0xff]
  %v2739 = vld [vmem:[#allocation2 + $0x1f8] sm:$0xff]
  %s2740 = scalar_lea.vmem %s1, 12
  %v2741 = vld [vmem:[%s2740] sm:$0xf]
  %v2743 = vsel %vm225, %v2612, 0
  %v2746 = vsel %vm225, %v2613, 0
  %v2749 = vsel %vm225, %v2614, 0
  %v2752 = vsel %vm225, %v2615, 0
  %v2755 = vsel %vm225, %v2616, 0
  %v2758 = vsel %vm225, %v2617, 0
  %v2761 = vsel %vm225, %v2618, 0
  %v2764 = vsel %vm225, %v2619, 0
  %v2767 = vsel %vm225, %v2620, 0
  %v2770 = vsel %vm225, %v2621, 0
  %v2773 = vsel %vm225, %v2622, 0
  %v2776 = vsel %vm225, %v2623, 0
  %v2779 = vsel %vm225, %v2624, 0
  %v2782 = vsel %vm225, %v2625, 0
  %v2785 = vsel %vm225, %v2626, 0
  %v2788 = vsel %vm225, %v2627, 0
  %v2791 = vsel %vm225, %v2628, 0
  %v2794 = vsel %vm225, %v2629, 0
  %v2797 = vsel %vm225, %v2630, 0
  %v2800 = vsel %vm225, %v2631, 0
  %v2803 = vsel %vm225, %v2632, 0
  %v2806 = vsel %vm225, %v2633, 0
  %v2809 = vsel %vm225, %v2634, 0
  %v2812 = vsel %vm225, %v2635, 0
  %v2815 = vsel %vm225, %v2636, 0
  %v2818 = vsel %vm225, %v2637, 0
  %v2821 = vsel %vm225, %v2638, 0
  %v2824 = vsel %vm225, %v2639, 0
  %v2827 = vsel %vm225, %v2640, 0
  %v2830 = vsel %vm225, %v2641, 0
  %v2833 = vsel %vm225, %v2642, 0
  %v2836 = vsel %vm225, %v2643, 0
  %v2839 = vsel %vm225, %v2644, 0
  %v2842 = vsel %vm225, %v2645, 0
  %v2845 = vsel %vm225, %v2646, 0
  %v2848 = vsel %vm225, %v2647, 0
  %v2851 = vsel %vm225, %v2648, 0
  %v2854 = vsel %vm225, %v2649, 0
  %v2857 = vsel %vm225, %v2650, 0
  %v2860 = vsel %vm225, %v2651, 0
  %v2863 = vsel %vm225, %v2652, 0
  %v2866 = vsel %vm225, %v2653, 0
  %v2869 = vsel %vm225, %v2654, 0
  %v2872 = vsel %vm225, %v2655, 0
  %v2875 = vsel %vm225, %v2656, 0
  %v2878 = vsel %vm225, %v2657, 0
  %v2881 = vsel %vm225, %v2658, 0
  %v2884 = vsel %vm225, %v2659, 0
  %v2887 = vsel %vm225, %v2660, 0
  %v2890 = vsel %vm225, %v2661, 0
  %v2893 = vsel %vm225, %v2662, 0
  %v2896 = vsel %vm225, %v2663, 0
  %v2899 = vsel %vm225, %v2664, 0
  %v2902 = vsel %vm225, %v2665, 0
  %v2905 = vsel %vm225, %v2666, 0
  %v2908 = vsel %vm225, %v2667, 0
  %v2911 = vsel %vm225, %v2668, 0
  %v2914 = vsel %vm225, %v2669, 0
  %v2917 = vsel %vm225, %v2670, 0
  %v2920 = vsel %vm225, %v2671, 0
  %v2923 = vsel %vm225, %v2672, 0
  %v2926 = vsel %vm225, %v2673, 0
  %v2929 = vsel %vm225, %v2674, 0
  %v2932 = vsel %vm225, %v2675, 0
  %v2935 = vsel %vm418, %v2741, 0
  %2937 = vmatprep.subr.mxu0 0.0
  %2938 = vmatpush1.msra.mxu0 %v2935
  %2939 = vmatprep.subr.mxu0 0.0
  %2940 = vmatpush1.msra.mxu0 0.0
  %2941 = vmatprep.subr.mxu0 0.0
  %2942 = vmatpush1.msra.mxu0 0.0
  %2943 = vmatprep.subr.mxu0 0.0
  %2944 = vmatpush1.msra.mxu0 0.0
  %2945 = vmatprep.subr.mxu0 0.0
  %2946 = vmatpush1.msra.mxu0 0.0
  %2947 = vmatprep.subr.mxu0 0.0
  %2948 = vmatpush1.msra.mxu0 0.0
  %2949 = vmatprep.subr.mxu0 0.0
  %2950 = vmatpush1.msra.mxu0 0.0
  %2951 = vmatprep.subr.mxu0 0.0
  %2952 = vmatpush1.msra.mxu0 0.0
  %2953 = vmatprep.subr.mxu0 0.0
  %2954 = vmatpush1.msra.mxu0 0.0
  %2955 = vmatprep.subr.mxu0 0.0
  %2956 = vmatpush1.msra.mxu0 0.0
  %2957 = vmatprep.subr.mxu0 0.0
  %2958 = vmatpush1.msra.mxu0 0.0
  %2959 = vmatprep.subr.mxu0 0.0
  %2960 = vmatpush1.msra.mxu0 0.0
  %2961 = vmatprep.subr.mxu0 0.0
  %2962 = vmatpush1.msra.mxu0 0.0
  %2963 = vmatprep.subr.mxu0 0.0
  %2964 = vmatpush1.msra.mxu0 0.0
  %2965 = vmatprep.subr.mxu0 0.0
  %2966 = vmatpush1.msra.mxu0 0.0
  %2967 = vmatprep.subr.mxu0 0.0
  %2968 = vmatpush1.msra.mxu0 0.0
  %2969 = vmatprep.subr.mxu0 0.0
  %2970 = vmatpush1.msra.mxu0 0.0
  %2971 = vmatprep.subr.mxu0 0.0
  %2972 = vmatpush1.msra.mxu0 0.0
  %2973 = vmatprep.subr.mxu0 0.0
  %2974 = vmatpush1.msra.mxu0 0.0
  %2975 = vmatprep.subr.mxu0 0.0
  %2976 = vmatpush1.msra.mxu0 0.0
  %2977 = vmatprep.subr.mxu0 0.0
  %2978 = vmatpush1.msra.mxu0 0.0
  %2979 = vmatprep.subr.mxu0 0.0
  %2980 = vmatpush1.msra.mxu0 0.0
  %2981 = vmatprep.subr.mxu0 0.0
  %2982 = vmatpush1.msra.mxu0 0.0
  %2983 = vmatprep.subr.mxu0 0.0
  %2984 = vmatpush1.msra.mxu0 0.0
  %2985 = vmatprep.subr.mxu0 0.0
  %2986 = vmatpush1.msra.mxu0 0.0
  %2987 = vmatprep.subr.mxu0 0.0
  %2988 = vmatpush1.msra.mxu0 0.0
  %2989 = vmatprep.subr.mxu0 0.0
  %2990 = vmatpush1.msra.mxu0 0.0
  %2991 = vmatprep.subr.mxu0 0.0
  %2992 = vmatpush1.msra.mxu0 0.0
  %2993 = vmatprep.subr.mxu0 0.0
  %2994 = vmatpush1.msra.mxu0 0.0
  %2995 = vmatprep.subr.mxu0 0.0
  %2996 = vmatpush1.msra.mxu0 0.0
  %2997 = vmatprep.subr.mxu0 0.0
  %2998 = vmatpush1.msra.mxu0 0.0
  %2999 = vmatprep.subr.mxu0 0.0
  %3000 = vmatpush1.msra.mxu0 0.0
  %3001 = vmatprep.mubr.f32.mxu0 0.0
  %3002 = vmatmul.mubr.f32.gmra.mrb[0].mxu0 %v2743
  %v3003 = vpop.f32.mrb[0].mxu0
  %v3004 = vadd.f32 0.0, %v3003
  %v3005 = vpop.f32.mrb[0].mxu0
  %3006 = vmatprep.mubr.f32.mxu0 0.0
  %3007 = vmatmul.mubr.f32.gmra.mrb[0].mxu0 %v2746
  %v3008 = vpop.f32.mrb[0].mxu0
  %v3009 = vadd.f32 0.0, %v3008
  %v3010 = vpop.f32.mrb[0].mxu0
  %3011 = vmatprep.mubr.f32.mxu0 0.0
  %3012 = vmatmul.mubr.f32.gmra.mrb[0].mxu0 %v2749
  %v3013 = vpop.f32.mrb[0].mxu0
  %v3014 = vadd.f32 0.0, %v3013
  %v3015 = vpop.f32.mrb[0].mxu0
  %3016 = vmatprep.mubr.f32.mxu0 0.0
  %3017 = vmatmul.mubr.f32.gmra.mrb[0].mxu0 %v2752
  %v3018 = vpop.f32.mrb[0].mxu0
  %v3019 = vadd.f32 0.0, %v3018
  %v3020 = vpop.f32.mrb[0].mxu0
  %3021 = vmatprep.mubr.f32.mxu0 0.0
  %3022 = vmatmul.mubr.f32.gmra.mrb[0].mxu0 %v2755
  %v3023 = vpop.f32.mrb[0].mxu0
  %v3024 = vadd.f32 0.0, %v3023
  %v3025 = vpop.f32.mrb[0].mxu0
  %3026 = vmatprep.mubr.f32.mxu0 0.0
  %3027 = vmatmul.mubr.f32.gmra.mrb[0].mxu0 %v2758
  %v3028 = vpop.f32.mrb[0].mxu0
  %v3029 = vadd.f32 0.0, %v3028
  %v3030 = vpop.f32.mrb[0].mxu0
  %3031 = vmatprep.mubr.f32.mxu0 0.0
  %3032 = vmatmul.mubr.f32.gmra.mrb[0].mxu0 %v2761
  %v3033 = vpop.f32.mrb[0].mxu0
  %v3034 = vadd.f32 0.0, %v3033
  %v3035 = vpop.f32.mrb[0].mxu0
  %3036 = vmatprep.mubr.f32.mxu0 0.0
  %3037 = vmatmul.mubr.f32.gmra.mrb[0].mxu0 %v2764
  %v3038 = vpop.f32.mrb[0].mxu0
  %v3039 = vadd.f32 0.0, %v3038
  %v3040 = vpop.f32.mrb[0].mxu0
  %3041 = vmatprep.mubr.f32.mxu0 0.0
  %3042 = vmatmul.mubr.f32.gmra.mrb[0].mxu0 %v2767
  %v3043 = vpop.f32.mrb[0].mxu0
  %v3044 = vadd.f32 0.0, %v3043
  %v3045 = vpop.f32.mrb[0].mxu0
  %3046 = vmatprep.mubr.f32.mxu0 0.0
  %3047 = vmatmul.mubr.f32.gmra.mrb[0].mxu0 %v2770
  %v3048 = vpop.f32.mrb[0].mxu0
  %v3049 = vadd.f32 0.0, %v3048
  %v3050 = vpop.f32.mrb[0].mxu0
  %3051 = vmatprep.mubr.f32.mxu0 0.0
  %3052 = vmatmul.mubr.f32.gmra.mrb[0].mxu0 %v2773
  %v3053 = vpop.f32.mrb[0].mxu0
  %v3054 = vadd.f32 0.0, %v3053
  %v3055 = vpop.f32.mrb[0].mxu0
  %3056 = vmatprep.mubr.f32.mxu0 0.0
  %3057 = vmatmul.mubr.f32.gmra.mrb[0].mxu0 %v2776
  %v3058 = vpop.f32.mrb[0].mxu0
  %v3059 = vadd.f32 0.0, %v3058
  %v3060 = vpop.f32.mrb[0].mxu0
  %3061 = vmatprep.mubr.f32.mxu0 0.0
  %3062 = vmatmul.mubr.f32.gmra.mrb[0].mxu0 %v2779
  %v3063 = vpop.f32.mrb[0].mxu0
  %v3064 = vadd.f32 0.0, %v3063
  %v3065 = vpop.f32.mrb[0].mxu0
  %3066 = vmatprep.mubr.f32.mxu0 0.0
  %3067 = vmatmul.mubr.f32.gmra.mrb[0].mxu0 %v2782
  %v3068 = vpop.f32.mrb[0].mxu0
  %v3069 = vadd.f32 0.0, %v3068
  %v3070 = vpop.f32.mrb[0].mxu0
  %3071 = vmatprep.mubr.f32.mxu0 0.0
  %3072 = vmatmul.mubr.f32.gmra.mrb[0].mxu0 %v2785
  %v3073 = vpop.f32.mrb[0].mxu0
  %v3074 = vadd.f32 0.0, %v3073
  %v3075 = vpop.f32.mrb[0].mxu0
  %3076 = vmatprep.mubr.f32.mxu0 0.0
  %3077 = vmatmul.mubr.f32.gmra.mrb[0].mxu0 %v2788
  %v3078 = vpop.f32.mrb[0].mxu0
  %v3079 = vadd.f32 0.0, %v3078
  %v3080 = vpop.f32.mrb[0].mxu0
  %3081 = vmatprep.mubr.f32.mxu0 0.0
  %3082 = vmatmul.mubr.f32.gmra.mrb[0].mxu0 %v2791
  %v3083 = vpop.f32.mrb[0].mxu0
  %v3084 = vadd.f32 0.0, %v3083
  %v3085 = vpop.f32.mrb[0].mxu0
  %3086 = vmatprep.mubr.f32.mxu0 0.0
  %3087 = vmatmul.mubr.f32.gmra.mrb[0].mxu0 %v2794
  %v3088 = vpop.f32.mrb[0].mxu0
  %v3089 = vadd.f32 0.0, %v3088
  %v3090 = vpop.f32.mrb[0].mxu0
  %3091 = vmatprep.mubr.f32.mxu0 0.0
  %3092 = vmatmul.mubr.f32.gmra.mrb[0].mxu0 %v2797
  %v3093 = vpop.f32.mrb[0].mxu0
  %v3094 = vadd.f32 0.0, %v3093
  %v3095 = vpop.f32.mrb[0].mxu0
  %3096 = vmatprep.mubr.f32.mxu0 0.0
  %3097 = vmatmul.mubr.f32.gmra.mrb[0].mxu0 %v2800
  %v3098 = vpop.f32.mrb[0].mxu0
  %v3099 = vadd.f32 0.0, %v3098
  %v3100 = vpop.f32.mrb[0].mxu0
  %3101 = vmatprep.mubr.f32.mxu0 0.0
  %3102 = vmatmul.mubr.f32.gmra.mrb[0].mxu0 %v2803
  %v3103 = vpop.f32.mrb[0].mxu0
  %v3104 = vadd.f32 0.0, %v3103
  %v3105 = vpop.f32.mrb[0].mxu0
  %3106 = vmatprep.mubr.f32.mxu0 0.0
  %3107 = vmatmul.mubr.f32.gmra.mrb[0].mxu0 %v2806
  %v3108 = vpop.f32.mrb[0].mxu0
  %v3109 = vadd.f32 0.0, %v3108
  %v3110 = vpop.f32.mrb[0].mxu0
  %3111 = vmatprep.mubr.f32.mxu0 0.0
  %3112 = vmatmul.mubr.f32.gmra.mrb[0].mxu0 %v2809
  %v3113 = vpop.f32.mrb[0].mxu0
  %v3114 = vadd.f32 0.0, %v3113
  %v3115 = vpop.f32.mrb[0].mxu0
  %3116 = vmatprep.mubr.f32.mxu0 0.0
  %3117 = vmatmul.mubr.f32.gmra.mrb[0].mxu0 %v2812
  %v3118 = vpop.f32.mrb[0].mxu0
  %v3119 = vadd.f32 0.0, %v3118
  %v3120 = vpop.f32.mrb[0].mxu0
  %3121 = vmatprep.mubr.f32.mxu0 0.0
  %3122 = vmatmul.mubr.f32.gmra.mrb[0].mxu0 %v2815
  %v3123 = vpop.f32.mrb[0].mxu0
  %v3124 = vadd.f32 0.0, %v3123
  %v3125 = vpop.f32.mrb[0].mxu0
  %3126 = vmatprep.mubr.f32.mxu0 0.0
  %3127 = vmatmul.mubr.f32.gmra.mrb[0].mxu0 %v2818
  %v3128 = vpop.f32.mrb[0].mxu0
  %v3129 = vadd.f32 0.0, %v3128
  %v3130 = vpop.f32.mrb[0].mxu0
  %3131 = vmatprep.mubr.f32.mxu0 0.0
  %3132 = vmatmul.mubr.f32.gmra.mrb[0].mxu0 %v2821
  %v3133 = vpop.f32.mrb[0].mxu0
  %v3134 = vadd.f32 0.0, %v3133
  %v3135 = vpop.f32.mrb[0].mxu0
  %3136 = vmatprep.mubr.f32.mxu0 0.0
  %3137 = vmatmul.mubr.f32.gmra.mrb[0].mxu0 %v2824
  %v3138 = vpop.f32.mrb[0].mxu0
  %v3139 = vadd.f32 0.0, %v3138
  %v3140 = vpop.f32.mrb[0].mxu0
  %3141 = vmatprep.mubr.f32.mxu0 0.0
  %3142 = vmatmul.mubr.f32.gmra.mrb[0].mxu0 %v2827
  %v3143 = vpop.f32.mrb[0].mxu0
  %v3144 = vadd.f32 0.0, %v3143
  %v3145 = vpop.f32.mrb[0].mxu0
  %3146 = vmatprep.mubr.f32.mxu0 0.0
  %3147 = vmatmul.mubr.f32.gmra.mrb[0].mxu0 %v2830
  %v3148 = vpop.f32.mrb[0].mxu0
  %v3149 = vadd.f32 0.0, %v3148
  %v3150 = vpop.f32.mrb[0].mxu0
  %3151 = vmatprep.mubr.f32.mxu0 0.0
  %3152 = vmatmul.mubr.f32.gmra.mrb[0].mxu0 %v2833
  %v3153 = vpop.f32.mrb[0].mxu0
  %v3154 = vadd.f32 0.0, %v3153
  %v3155 = vpop.f32.mrb[0].mxu0
  %3156 = vmatprep.mubr.f32.mxu0 0.0
  %3157 = vmatmul.mubr.f32.gmra.mrb[0].mxu0 %v2836
  %v3158 = vpop.f32.mrb[0].mxu0
  %v3159 = vadd.f32 0.0, %v3158
  %v3160 = vpop.f32.mrb[0].mxu0
  %3161 = vmatprep.mubr.f32.mxu0 0.0
  %3162 = vmatmul.mubr.f32.gmra.mrb[0].mxu0 %v2839
  %v3163 = vpop.f32.mrb[0].mxu0
  %v3164 = vadd.f32 0.0, %v3163
  %v3165 = vpop.f32.mrb[0].mxu0
  %3166 = vmatprep.mubr.f32.mxu0 0.0
  %3167 = vmatmul.mubr.f32.gmra.mrb[0].mxu0 %v2842
  %v3168 = vpop.f32.mrb[0].mxu0
  %v3169 = vadd.f32 0.0, %v3168
  %v3170 = vpop.f32.mrb[0].mxu0
  %3171 = vmatprep.mubr.f32.mxu0 0.0
  %3172 = vmatmul.mubr.f32.gmra.mrb[0].mxu0 %v2845
  %v3173 = vpop.f32.mrb[0].mxu0
  %v3174 = vadd.f32 0.0, %v3173
  %v3175 = vpop.f32.mrb[0].mxu0
  %3176 = vmatprep.mubr.f32.mxu0 0.0
  %3177 = vmatmul.mubr.f32.gmra.mrb[0].mxu0 %v2848
  %v3178 = vpop.f32.mrb[0].mxu0
  %v3179 = vadd.f32 0.0, %v3178
  %v3180 = vpop.f32.mrb[0].mxu0
  %3181 = vmatprep.mubr.f32.mxu0 0.0
  %3182 = vmatmul.mubr.f32.gmra.mrb[0].mxu0 %v2851
  %v3183 = vpop.f32.mrb[0].mxu0
  %v3184 = vadd.f32 0.0, %v3183
  %v3185 = vpop.f32.mrb[0].mxu0
  %3186 = vmatprep.mubr.f32.mxu0 0.0
  %3187 = vmatmul.mubr.f32.gmra.mrb[0].mxu0 %v2854
  %v3188 = vpop.f32.mrb[0].mxu0
  %v3189 = vadd.f32 0.0, %v3188
  %v3190 = vpop.f32.mrb[0].mxu0
  %3191 = vmatprep.mubr.f32.mxu0 0.0
  %3192 = vmatmul.mubr.f32.gmra.mrb[0].mxu0 %v2857
  %v3193 = vpop.f32.mrb[0].mxu0
  %v3194 = vadd.f32 0.0, %v3193
  %v3195 = vpop.f32.mrb[0].mxu0
  %3196 = vmatprep.mubr.f32.mxu0 0.0
  %3197 = vmatmul.mubr.f32.gmra.mrb[0].mxu0 %v2860
  %v3198 = vpop.f32.mrb[0].mxu0
  %v3199 = vadd.f32 0.0, %v3198
  %v3200 = vpop.f32.mrb[0].mxu0
  %3201 = vmatprep.mubr.f32.mxu0 0.0
  %3202 = vmatmul.mubr.f32.gmra.mrb[0].mxu0 %v2863
  %v3203 = vpop.f32.mrb[0].mxu0
  %v3204 = vadd.f32 0.0, %v3203
  %v3205 = vpop.f32.mrb[0].mxu0
  %3206 = vmatprep.mubr.f32.mxu0 0.0
  %3207 = vmatmul.mubr.f32.gmra.mrb[0].mxu0 %v2866
  %v3208 = vpop.f32.mrb[0].mxu0
  %v3209 = vadd.f32 0.0, %v3208
  %v3210 = vpop.f32.mrb[0].mxu0
  %3211 = vmatprep.mubr.f32.mxu0 0.0
  %3212 = vmatmul.mubr.f32.gmra.mrb[0].mxu0 %v2869
  %v3213 = vpop.f32.mrb[0].mxu0
  %v3214 = vadd.f32 0.0, %v3213
  %v3215 = vpop.f32.mrb[0].mxu0
  %3216 = vmatprep.mubr.f32.mxu0 0.0
  %3217 = vmatmul.mubr.f32.gmra.mrb[0].mxu0 %v2872
  %v3218 = vpop.f32.mrb[0].mxu0
  %v3219 = vadd.f32 0.0, %v3218
  %v3220 = vpop.f32.mrb[0].mxu0
  %3221 = vmatprep.mubr.f32.mxu0 0.0
  %3222 = vmatmul.mubr.f32.gmra.mrb[0].mxu0 %v2875
  %v3223 = vpop.f32.mrb[0].mxu0
  %v3224 = vadd.f32 0.0, %v3223
  %v3225 = vpop.f32.mrb[0].mxu0
  %3226 = vmatprep.mubr.f32.mxu0 0.0
  %3227 = vmatmul.mubr.f32.gmra.mrb[0].mxu0 %v2878
  %v3228 = vpop.f32.mrb[0].mxu0
  %v3229 = vadd.f32 0.0, %v3228
  %v3230 = vpop.f32.mrb[0].mxu0
  %3231 = vmatprep.mubr.f32.mxu0 0.0
  %3232 = vmatmul.mubr.f32.gmra.mrb[0].mxu0 %v2881
  %v3233 = vpop.f32.mrb[0].mxu0
  %v3234 = vadd.f32 0.0, %v3233
  %v3235 = vpop.f32.mrb[0].mxu0
  %3236 = vmatprep.mubr.f32.mxu0 0.0
  %3237 = vmatmul.mubr.f32.gmra.mrb[0].mxu0 %v2884
  %v3238 = vpop.f32.mrb[0].mxu0
  %v3239 = vadd.f32 0.0, %v3238
  %v3240 = vpop.f32.mrb[0].mxu0
  %3241 = vmatprep.mubr.f32.mxu0 0.0
  %3242 = vmatmul.mubr.f32.gmra.mrb[0].mxu0 %v2887
  %v3243 = vpop.f32.mrb[0].mxu0
  %v3244 = vadd.f32 0.0, %v3243
  %v3245 = vpop.f32.mrb[0].mxu0
  %3246 = vmatprep.mubr.f32.mxu0 0.0
  %3247 = vmatmul.mubr.f32.gmra.mrb[0].mxu0 %v2890
  %v3248 = vpop.f32.mrb[0].mxu0
  %v3249 = vadd.f32 0.0, %v3248
  %v3250 = vpop.f32.mrb[0].mxu0
  %3251 = vmatprep.mubr.f32.mxu0 0.0
  %3252 = vmatmul.mubr.f32.gmra.mrb[0].mxu0 %v2893
  %v3253 = vpop.f32.mrb[0].mxu0
  %v3254 = vadd.f32 0.0, %v3253
  %v3255 = vpop.f32.mrb[0].mxu0
  %3256 = vmatprep.mubr.f32.mxu0 0.0
  %3257 = vmatmul.mubr.f32.gmra.mrb[0].mxu0 %v2896
  %v3258 = vpop.f32.mrb[0].mxu0
  %v3259 = vadd.f32 0.0, %v3258
  %v3260 = vpop.f32.mrb[0].mxu0
  %3261 = vmatprep.mubr.f32.mxu0 0.0
  %3262 = vmatmul.mubr.f32.gmra.mrb[0].mxu0 %v2899
  %v3263 = vpop.f32.mrb[0].mxu0
  %v3264 = vadd.f32 0.0, %v3263
  %v3265 = vpop.f32.mrb[0].mxu0
  %3266 = vmatprep.mubr.f32.mxu0 0.0
  %3267 = vmatmul.mubr.f32.gmra.mrb[0].mxu0 %v2902
  %v3268 = vpop.f32.mrb[0].mxu0
  %v3269 = vadd.f32 0.0, %v3268
  %v3270 = vpop.f32.mrb[0].mxu0
  %3271 = vmatprep.mubr.f32.mxu0 0.0
  %3272 = vmatmul.mubr.f32.gmra.mrb[0].mxu0 %v2905
  %v3273 = vpop.f32.mrb[0].mxu0
  %v3274 = vadd.f32 0.0, %v3273
  %v3275 = vpop.f32.mrb[0].mxu0
  %3276 = vmatprep.mubr.f32.mxu0 0.0
  %3277 = vmatmul.mubr.f32.gmra.mrb[0].mxu0 %v2908
  %v3278 = vpop.f32.mrb[0].mxu0
  %v3279 = vadd.f32 0.0, %v3278
  %v3280 = vpop.f32.mrb[0].mxu0
  %3281 = vmatprep.mubr.f32.mxu0 0.0
  %3282 = vmatmul.mubr.f32.gmra.mrb[0].mxu0 %v2911
  %v3283 = vpop.f32.mrb[0].mxu0
  %v3284 = vadd.f32 0.0, %v3283
  %v3285 = vpop.f32.mrb[0].mxu0
  %3286 = vmatprep.mubr.f32.mxu0 0.0
  %3287 = vmatmul.mubr.f32.gmra.mrb[0].mxu0 %v2914
  %v3288 = vpop.f32.mrb[0].mxu0
  %v3289 = vadd.f32 0.0, %v3288
  %v3290 = vpop.f32.mrb[0].mxu0
  %3291 = vmatprep.mubr.f32.mxu0 0.0
  %3292 = vmatmul.mubr.f32.gmra.mrb[0].mxu0 %v2917
  %v3293 = vpop.f32.mrb[0].mxu0
  %v3294 = vadd.f32 0.0, %v3293
  %v3295 = vpop.f32.mrb[0].mxu0
  %3296 = vmatprep.mubr.f32.mxu0 0.0
  %3297 = vmatmul.mubr.f32.gmra.mrb[0].mxu0 %v2920
  %v3298 = vpop.f32.mrb[0].mxu0
  %v3299 = vadd.f32 0.0, %v3298
  %v3300 = vpop.f32.mrb[0].mxu0
  %3301 = vmatprep.mubr.f32.mxu0 0.0
  %3302 = vmatmul.mubr.f32.gmra.mrb[0].mxu0 %v2923
  %v3303 = vpop.f32.mrb[0].mxu0
  %v3304 = vadd.f32 0.0, %v3303
  %v3305 = vpop.f32.mrb[0].mxu0
  %3306 = vmatprep.mubr.f32.mxu0 0.0
  %3307 = vmatmul.mubr.f32.gmra.mrb[0].mxu0 %v2926
  %v3308 = vpop.f32.mrb[0].mxu0
  %v3309 = vadd.f32 0.0, %v3308
  %v3310 = vpop.f32.mrb[0].mxu0
  %3311 = vmatprep.mubr.f32.mxu0 0.0
  %3312 = vmatmul.mubr.f32.gmra.mrb[0].mxu0 %v2929
  %v3313 = vpop.f32.mrb[0].mxu0
  %v3314 = vadd.f32 0.0, %v3313
  %v3315 = vpop.f32.mrb[0].mxu0
  %3316 = vmatprep.mubr.f32.mxu0 0.0
  %3317 = vmatmul.mubr.f32.gmra.mrb[0].mxu0 %v2932
  %v3318 = vpop.f32.mrb[0].mxu0
  %v3319 = vadd.f32 0.0, %v3318
  %v3320 = vpop.f32.mrb[0].mxu0
  %3321 = vdwg.mxu0
  %v3322 = vadd.f32 %v2676, %v3004
  %v3323 = vadd.f32 %v2677, %v3009
  %v3324 = vadd.f32 %v2678, %v3014
  %v3325 = vadd.f32 %v2679, %v3019
  %v3326 = vadd.f32 %v2680, %v3024
  %v3327 = vadd.f32 %v2681, %v3029
  %v3328 = vadd.f32 %v2682, %v3034
  %v3329 = vadd.f32 %v2683, %v3039
  %v3330 = vadd.f32 %v2684, %v3044
  %v3331 = vadd.f32 %v2685, %v3049
  %v3332 = vadd.f32 %v2686, %v3054
  %v3333 = vadd.f32 %v2687, %v3059
  %v3334 = vadd.f32 %v2688, %v3064
  %v3335 = vadd.f32 %v2689, %v3069
  %v3336 = vadd.f32 %v2690, %v3074
  %v3337 = vadd.f32 %v2691, %v3079
  %v3338 = vadd.f32 %v2692, %v3084
  %v3339 = vadd.f32 %v2693, %v3089
  %v3340 = vadd.f32 %v2694, %v3094
  %v3341 = vadd.f32 %v2695, %v3099
  %v3342 = vadd.f32 %v2696, %v3104
  %v3343 = vadd.f32 %v2697, %v3109
  %v3344 = vadd.f32 %v2698, %v3114
  %v3345 = vadd.f32 %v2699, %v3119
  %v3346 = vadd.f32 %v2700, %v3124
  %v3347 = vadd.f32 %v2701, %v3129
  %v3348 = vadd.f32 %v2702, %v3134
  %v3349 = vadd.f32 %v2703, %v3139
  %v3350 = vadd.f32 %v2704, %v3144
  %v3351 = vadd.f32 %v2705, %v3149
  %v3352 = vadd.f32 %v2706, %v3154
  %v3353 = vadd.f32 %v2707, %v3159
  %v3354 = vadd.f32 %v2708, %v3164
  %v3355 = vadd.f32 %v2709, %v3169
  %v3356 = vadd.f32 %v2710, %v3174
  %v3357 = vadd.f32 %v2711, %v3179
  %v3358 = vadd.f32 %v2712, %v3184
  %v3359 = vadd.f32 %v2713, %v3189
  %v3360 = vadd.f32 %v2714, %v3194
  %v3361 = vadd.f32 %v2715, %v3199
  %v3362 = vadd.f32 %v2716, %v3204
  %v3363 = vadd.f32 %v2717, %v3209
  %v3364 = vadd.f32 %v2718, %v3214
  %v3365 = vadd.f32 %v2719, %v3219
  %v3366 = vadd.f32 %v2720, %v3224
  %v3367 = vadd.f32 %v2721, %v3229
  %v3368 = vadd.f32 %v2722, %v3234
  %v3369 = vadd.f32 %v2723, %v3239
  %v3370 = vadd.f32 %v2724, %v3244
  %v3371 = vadd.f32 %v2725, %v3249
  %v3372 = vadd.f32 %v2726, %v3254
  %v3373 = vadd.f32 %v2727, %v3259
  %v3374 = vadd.f32 %v2728, %v3264
  %v3375 = vadd.f32 %v2729, %v3269
  %v3376 = vadd.f32 %v2730, %v3274
  %v3377 = vadd.f32 %v2731, %v3279
  %v3378 = vadd.f32 %v2732, %v3284
  %v3379 = vadd.f32 %v2733, %v3289
  %v3380 = vadd.f32 %v2734, %v3294
  %v3381 = vadd.f32 %v2735, %v3299
  %v3382 = vadd.f32 %v2736, %v3304
  %v3383 = vadd.f32 %v2737, %v3309
  %v3384 = vadd.f32 %v2738, %v3314
  %v3385 = vadd.f32 %v2739, %v3319
  %3386 = vst [vmem:[#allocation2] sm:$0xff] %v3322
  %3387 = vst [vmem:[#allocation2 + $0x8] sm:$0xff] %v3323
  %3388 = vst [vmem:[#allocation2 + $0x10] sm:$0xff] %v3324
  %3389 = vst [vmem:[#allocation2 + $0x18] sm:$0xff] %v3325
  %3390 = vst [vmem:[#allocation2 + $0x20] sm:$0xff] %v3326
  %3391 = vst [vmem:[#allocation2 + $0x28] sm:$0xff] %v3327
  %3392 = vst [vmem:[#allocation2 + $0x30] sm:$0xff] %v3328
  %3393 = vst [vmem:[#allocation2 + $0x38] sm:$0xff] %v3329
  %3394 = vst [vmem:[#allocation2 + $0x40] sm:$0xff] %v3330
  %3395 = vst [vmem:[#allocation2 + $0x48] sm:$0xff] %v3331
  %3396 = vst [vmem:[#allocation2 + $0x50] sm:$0xff] %v3332
  %3397 = vst [vmem:[#allocation2 + $0x58] sm:$0xff] %v3333
  %3398 = vst [vmem:[#allocation2 + $0x60] sm:$0xff] %v3334
  %3399 = vst [vmem:[#allocation2 + $0x68] sm:$0xff] %v3335
  %3400 = vst [vmem:[#allocation2 + $0x70] sm:$0xff] %v3336
  %3401 = vst [vmem:[#allocation2 + $0x78] sm:$0xff] %v3337
  %3402 = vst [vmem:[#allocation2 + $0x80] sm:$0xff] %v3338
  %3403 = vst [vmem:[#allocation2 + $0x88] sm:$0xff] %v3339
  %3404 = vst [vmem:[#allocation2 + $0x90] sm:$0xff] %v3340
  %3405 = vst [vmem:[#allocation2 + $0x98] sm:$0xff] %v3341
  %3406 = vst [vmem:[#allocation2 + $0xa0] sm:$0xff] %v3342
  %3407 = vst [vmem:[#allocation2 + $0xa8] sm:$0xff] %v3343
  %3408 = vst [vmem:[#allocation2 + $0xb0] sm:$0xff] %v3344
  %3409 = vst [vmem:[#allocation2 + $0xb8] sm:$0xff] %v3345
  %3410 = vst [vmem:[#allocation2 + $0xc0] sm:$0xff] %v3346
  %3411 = vst [vmem:[#allocation2 + $0xc8] sm:$0xff] %v3347
  %3412 = vst [vmem:[#allocation2 + $0xd0] sm:$0xff] %v3348
  %3413 = vst [vmem:[#allocation2 + $0xd8] sm:$0xff] %v3349
  %3414 = vst [vmem:[#allocation2 + $0xe0] sm:$0xff] %v3350
  %3415 = vst [vmem:[#allocation2 + $0xe8] sm:$0xff] %v3351
  %3416 = vst [vmem:[#allocation2 + $0xf0] sm:$0xff] %v3352
  %3417 = vst [vmem:[#allocation2 + $0xf8] sm:$0xff] %v3353
  %3418 = vst [vmem:[#allocation2 + $0x100] sm:$0xff] %v3354
  %3419 = vst [vmem:[#allocation2 + $0x108] sm:$0xff] %v3355
  %3420 = vst [vmem:[#allocation2 + $0x110] sm:$0xff] %v3356
  %3421 = vst [vmem:[#allocation2 + $0x118] sm:$0xff] %v3357
  %3422 = vst [vmem:[#allocation2 + $0x120] sm:$0xff] %v3358
  %3423 = vst [vmem:[#allocation2 + $0x128] sm:$0xff] %v3359
  %3424 = vst [vmem:[#allocation2 + $0x130] sm:$0xff] %v3360
  %3425 = vst [vmem:[#allocation2 + $0x138] sm:$0xff] %v3361
  %3426 = vst [vmem:[#allocation2 + $0x140] sm:$0xff] %v3362
  %3427 = vst [vmem:[#allocation2 + $0x148] sm:$0xff] %v3363
  %3428 = vst [vmem:[#allocation2 + $0x150] sm:$0xff] %v3364
  %3429 = vst [vmem:[#allocation2 + $0x158] sm:$0xff] %v3365
  %3430 = vst [vmem:[#allocation2 + $0x160] sm:$0xff] %v3366
  %3431 = vst [vmem:[#allocation2 + $0x168] sm:$0xff] %v3367
  %3432 = vst [vmem:[#allocation2 + $0x170] sm:$0xff] %v3368
  %3433 = vst [vmem:[#allocation2 + $0x178] sm:$0xff] %v3369
  %3434 = vst [vmem:[#allocation2 + $0x180] sm:$0xff] %v3370
  %3435 = vst [vmem:[#allocation2 + $0x188] sm:$0xff] %v3371
  %3436 = vst [vmem:[#allocation2 + $0x190] sm:$0xff] %v3372
  %3437 = vst [vmem:[#allocation2 + $0x198] sm:$0xff] %v3373
  %3438 = vst [vmem:[#allocation2 + $0x1a0] sm:$0xff] %v3374
  %3439 = vst [vmem:[#allocation2 + $0x1a8] sm:$0xff] %v3375
  %3440 = vst [vmem:[#allocation2 + $0x1b0] sm:$0xff] %v3376
  %3441 = vst [vmem:[#allocation2 + $0x1b8] sm:$0xff] %v3377
  %3442 = vst [vmem:[#allocation2 + $0x1c0] sm:$0xff] %v3378
  %3443 = vst [vmem:[#allocation2 + $0x1c8] sm:$0xff] %v3379
  %3444 = vst [vmem:[#allocation2 + $0x1d0] sm:$0xff] %v3380
  %3445 = vst [vmem:[#allocation2 + $0x1d8] sm:$0xff] %v3381
  %3446 = vst [vmem:[#allocation2 + $0x1e0] sm:$0xff] %v3382
  %3447 = vst [vmem:[#allocation2 + $0x1e8] sm:$0xff] %v3383
  %3448 = vst [vmem:[#allocation2 + $0x1f0] sm:$0xff] %v3384
  %3449 = vst [vmem:[#allocation2 + $0x1f8] sm:$0xff] %v3385
  %v3450 = vld [vmem:[%s2611 + $0x1] sm:$0xff]
  %v3451 = vld [vmem:[%s2611 + $0x9] sm:$0xff]
  %v3452 = vld [vmem:[%s2611 + $0x19] sm:$0xff]
  %v3453 = vld [vmem:[%s2611 + $0x21] sm:$0xff]
  %v3454 = vld [vmem:[%s2611 + $0x31] sm:$0xff]
  %v3455 = vld [vmem:[%s2611 + $0x39] sm:$0xff]
  %v3456 = vld [vmem:[%s2611 + $0x49] sm:$0xff]
  %v3457 = vld [vmem:[%s2611 + $0x51] sm:$0xff]
  %v3458 = vld [vmem:[%s2611 + $0x61] sm:$0xff]
  %v3459 = vld [vmem:[%s2611 + $0x69] sm:$0xff]
  %v3460 = vld [vmem:[%s2611 + $0x79] sm:$0xff]
  %v3461 = vld [vmem:[%s2611 + $0x81] sm:$0xff]
  %v3462 = vld [vmem:[%s2611 + $0x91] sm:$0xff]
  %v3463 = vld [vmem:[%s2611 + $0x99] sm:$0xff]
  %v3464 = vld [vmem:[%s2611 + $0xa9] sm:$0xff]
  %v3465 = vld [vmem:[%s2611 + $0xb1] sm:$0xff]
  %v3466 = vld [vmem:[%s2611 + $0xc1] sm:$0xff]
  %v3467 = vld [vmem:[%s2611 + $0xc9] sm:$0xff]
  %v3468 = vld [vmem:[%s2611 + $0xd9] sm:$0xff]
  %v3469 = vld [vmem:[%s2611 + $0xe1] sm:$0xff]
  %v3470 = vld [vmem:[%s2611 + $0xf1] sm:$0xff]
  %v3471 = vld [vmem:[%s2611 + $0xf9] sm:$0xff]
  %v3472 = vld [vmem:[%s2611 + $0x109] sm:$0xff]
  %v3473 = vld [vmem:[%s2611 + $0x111] sm:$0xff]
  %v3474 = vld [vmem:[%s2611 + $0x121] sm:$0xff]
  %v3475 = vld [vmem:[%s2611 + $0x129] sm:$0xff]
  %v3476 = vld [vmem:[%s2611 + $0x139] sm:$0xff]
  %v3477 = vld [vmem:[%s2611 + $0x141] sm:$0xff]
  %v3478 = vld [vmem:[%s2611 + $0x151] sm:$0xff]
  %v3479 = vld [vmem:[%s2611 + $0x159] sm:$0xff]
  %v3480 = vld [vmem:[%s2611 + $0x169] sm:$0xff]
  %v3481 = vld [vmem:[%s2611 + $0x171] sm:$0xff]
  %v3482 = vld [vmem:[%s2611 + $0x1b1] sm:$0xff]
  %v3483 = vld [vmem:[%s2611 + $0x1b9] sm:$0xff]
  %v3484 = vld [vmem:[%s2611 + $0x1c9] sm:$0xff]
  %v3485 = vld [vmem:[%s2611 + $0x1d1] sm:$0xff]
  %v3486 = vld [vmem:[%s2611 + $0x1e1] sm:$0xff]
  %v3487 = vld [vmem:[%s2611 + $0x1e9] sm:$0xff]
  %v3488 = vld [vmem:[%s2611 + $0x1f9] sm:$0xff]
  %v3489 = vld [vmem:[%s2611 + $0x201] sm:$0xff]
  %v3490 = vld [vmem:[%s2611 + $0x211] sm:$0xff]
  %v3491 = vld [vmem:[%s2611 + $0x219] sm:$0xff]
  %v3492 = vld [vmem:[%s2611 + $0x229] sm:$0xff]
  %v3493 = vld [vmem:[%s2611 + $0x231] sm:$0xff]
  %v3494 = vld [vmem:[%s2611 + $0x241] sm:$0xff]
  %v3495 = vld [vmem:[%s2611 + $0x249] sm:$0xff]
  %v3496 = vld [vmem:[%s2611 + $0x259] sm:$0xff]
  %v3497 = vld [vmem:[%s2611 + $0x261] sm:$0xff]
  %v3498 = vld [vmem:[%s2611 + $0x271] sm:$0xff]
  %v3499 = vld [vmem:[%s2611 + $0x279] sm:$0xff]
  %v3500 = vld [vmem:[%s2611 + $0x289] sm:$0xff]
  %v3501 = vld [vmem:[%s2611 + $0x291] sm:$0xff]
  %v3502 = vld [vmem:[%s2611 + $0x2a1] sm:$0xff]
  %v3503 = vld [vmem:[%s2611 + $0x2a9] sm:$0xff]
  %v3504 = vld [vmem:[%s2611 + $0x2b9] sm:$0xff]
  %v3505 = vld [vmem:[%s2611 + $0x2c1] sm:$0xff]
  %v3506 = vld [vmem:[%s2611 + $0x2d1] sm:$0xff]
  %v3507 = vld [vmem:[%s2611 + $0x2d9] sm:$0xff]
  %v3508 = vld [vmem:[%s2611 + $0x2e9] sm:$0xff]
  %v3509 = vld [vmem:[%s2611 + $0x2f1] sm:$0xff]
  %v3510 = vld [vmem:[%s2611 + $0x301] sm:$0xff]
  %v3511 = vld [vmem:[%s2611 + $0x309] sm:$0xff]
  %v3512 = vld [vmem:[%s2611 + $0x319] sm:$0xff]
  %v3513 = vld [vmem:[%s2611 + $0x321] sm:$0xff]
  %v3514 = vld [vmem:[#allocation2] sm:$0xff]
  %v3515 = vld [vmem:[#allocation2 + $0x8] sm:$0xff]
  %v3516 = vld [vmem:[#allocation2 + $0x10] sm:$0xff]
  %v3517 = vld [vmem:[#allocation2 + $0x18] sm:$0xff]
  %v3518 = vld [vmem:[#allocation2 + $0x20] sm:$0xff]
  %v3519 = vld [vmem:[#allocation2 + $0x28] sm:$0xff]
  %v3520 = vld [vmem:[#allocation2 + $0x30] sm:$0xff]
  %v3521 = vld [vmem:[#allocation2 + $0x38] sm:$0xff]
  %v3522 = vld [vmem:[#allocation2 + $0x40] sm:$0xff]
  %v3523 = vld [vmem:[#allocation2 + $0x48] sm:$0xff]
  %v3524 = vld [vmem:[#allocation2 + $0x50] sm:$0xff]
  %v3525 = vld [vmem:[#allocation2 + $0x58] sm:$0xff]
  %v3526 = vld [vmem:[#allocation2 + $0x60] sm:$0xff]
  %v3527 = vld [vmem:[#allocation2 + $0x68] sm:$0xff]
  %v3528 = vld [vmem:[#allocation2 + $0x70] sm:$0xff]
  %v3529 = vld [vmem:[#allocation2 + $0x78] sm:$0xff]
  %v3530 = vld [vmem:[#allocation2 + $0x80] sm:$0xff]
  %v3531 = vld [vmem:[#allocation2 + $0x88] sm:$0xff]
  %v3532 = vld [vmem:[#allocation2 + $0x90] sm:$0xff]
  %v3533 = vld [vmem:[#allocation2 + $0x98] sm:$0xff]
  %v3534 = vld [vmem:[#allocation2 + $0xa0] sm:$0xff]
  %v3535 = vld [vmem:[#allocation2 + $0xa8] sm:$0xff]
  %v3536 = vld [vmem:[#allocation2 + $0xb0] sm:$0xff]
  %v3537 = vld [vmem:[#allocation2 + $0xb8] sm:$0xff]
  %v3538 = vld [vmem:[#allocation2 + $0xc0] sm:$0xff]
  %v3539 = vld [vmem:[#allocation2 + $0xc8] sm:$0xff]
  %v3540 = vld [vmem:[#allocation2 + $0xd0] sm:$0xff]
  %v3541 = vld [vmem:[#allocation2 + $0xd8] sm:$0xff]
  %v3542 = vld [vmem:[#allocation2 + $0xe0] sm:$0xff]
  %v3543 = vld [vmem:[#allocation2 + $0xe8] sm:$0xff]
  %v3544 = vld [vmem:[#allocation2 + $0xf0] sm:$0xff]
  %v3545 = vld [vmem:[#allocation2 + $0xf8] sm:$0xff]
  %v3546 = vld [vmem:[#allocation2 + $0x100] sm:$0xff]
  %v3547 = vld [vmem:[#allocation2 + $0x108] sm:$0xff]
  %v3548 = vld [vmem:[#allocation2 + $0x110] sm:$0xff]
  %v3549 = vld [vmem:[#allocation2 + $0x118] sm:$0xff]
  %v3550 = vld [vmem:[#allocation2 + $0x120] sm:$0xff]
  %v3551 = vld [vmem:[#allocation2 + $0x128] sm:$0xff]
  %v3552 = vld [vmem:[#allocation2 + $0x130] sm:$0xff]
  %v3553 = vld [vmem:[#allocation2 + $0x138] sm:$0xff]
  %v3554 = vld [vmem:[#allocation2 + $0x140] sm:$0xff]
  %v3555 = vld [vmem:[#allocation2 + $0x148] sm:$0xff]
  %v3556 = vld [vmem:[#allocation2 + $0x150] sm:$0xff]
  %v3557 = vld [vmem:[#allocation2 + $0x158] sm:$0xff]
  %v3558 = vld [vmem:[#allocation2 + $0x160] sm:$0xff]
  %v3559 = vld [vmem:[#allocation2 + $0x168] sm:$0xff]
  %v3560 = vld [vmem:[#allocation2 + $0x170] sm:$0xff]
  %v3561 = vld [vmem:[#allocation2 + $0x178] sm:$0xff]
  %v3562 = vld [vmem:[#allocation2 + $0x180] sm:$0xff]
  %v3563 = vld [vmem:[#allocation2 + $0x188] sm:$0xff]
  %v3564 = vld [vmem:[#allocation2 + $0x190] sm:$0xff]
  %v3565 = vld [vmem:[#allocation2 + $0x198] sm:$0xff]
  %v3566 = vld [vmem:[#allocation2 + $0x1a0] sm:$0xff]
  %v3567 = vld [vmem:[#allocation2 + $0x1a8] sm:$0xff]
  %v3568 = vld [vmem:[#allocation2 + $0x1b0] sm:$0xff]
  %v3569 = vld [vmem:[#allocation2 + $0x1b8] sm:$0xff]
  %v3570 = vld [vmem:[#allocation2 + $0x1c0] sm:$0xff]
  %v3571 = vld [vmem:[#allocation2 + $0x1c8] sm:$0xff]
  %v3572 = vld [vmem:[#allocation2 + $0x1d0] sm:$0xff]
  %v3573 = vld [vmem:[#allocation2 + $0x1d8] sm:$0xff]
  %v3574 = vld [vmem:[#allocation2 + $0x1e0] sm:$0xff]
  %v3575 = vld [vmem:[#allocation2 + $0x1e8] sm:$0xff]
  %v3576 = vld [vmem:[#allocation2 + $0x1f0] sm:$0xff]
  %v3577 = vld [vmem:[#allocation2 + $0x1f8] sm:$0xff]
  %s3578 = scalar_lea.vmem %s1, 16
  %v3579 = vld [vmem:[%s3578] sm:$0xf]
  %v3581 = vsel %vm225, %v3450, 0
  %v3584 = vsel %vm225, %v3451, 0
  %v3587 = vsel %vm225, %v3452, 0
  %v3590 = vsel %vm225, %v3453, 0
  %v3593 = vsel %vm225, %v3454, 0
  %v3596 = vsel %vm225, %v3455, 0
  %v3599 = vsel %vm225, %v3456, 0
  %v3602 = vsel %vm225, %v3457, 0
  %v3605 = vsel %vm225, %v3458, 0
  %v3608 = vsel %vm225, %v3459, 0
  %v3611 = vsel %vm225, %v3460, 0
  %v3614 = vsel %vm225, %v3461, 0
  %v3617 = vsel %vm225, %v3462, 0
  %v3620 = vsel %vm225, %v3463, 0
  %v3623 = vsel %vm225, %v3464, 0
  %v3626 = vsel %vm225, %v3465, 0
  %v3629 = vsel %vm225, %v3466, 0
  %v3632 = vsel %vm225, %v3467, 0
  %v3635 = vsel %vm225, %v3468, 0
  %v3638 = vsel %vm225, %v3469, 0
  %v3641 = vsel %vm225, %v3470, 0
  %v3644 = vsel %vm225, %v3471, 0
  %v3647 = vsel %vm225, %v3472, 0
  %v3650 = vsel %vm225, %v3473, 0
  %v3653 = vsel %vm225, %v3474, 0
  %v3656 = vsel %vm225, %v3475, 0
  %v3659 = vsel %vm225, %v3476, 0
  %v3662 = vsel %vm225, %v3477, 0
  %v3665 = vsel %vm225, %v3478, 0
  %v3668 = vsel %vm225, %v3479, 0
  %v3671 = vsel %vm225, %v3480, 0
  %v3674 = vsel %vm225, %v3481, 0
  %v3677 = vsel %vm225, %v3482, 0
  %v3680 = vsel %vm225, %v3483, 0
  %v3683 = vsel %vm225, %v3484, 0
  %v3686 = vsel %vm225, %v3485, 0
  %v3689 = vsel %vm225, %v3486, 0
  %v3692 = vsel %vm225, %v3487, 0
  %v3695 = vsel %vm225, %v3488, 0
  %v3698 = vsel %vm225, %v3489, 0
  %v3701 = vsel %vm225, %v3490, 0
  %v3704 = vsel %vm225, %v3491, 0
  %v3707 = vsel %vm225, %v3492, 0
  %v3710 = vsel %vm225, %v3493, 0
  %v3713 = vsel %vm225, %v3494, 0
  %v3716 = vsel %vm225, %v3495, 0
  %v3719 = vsel %vm225, %v3496, 0
  %v3722 = vsel %vm225, %v3497, 0
  %v3725 = vsel %vm225, %v3498, 0
  %v3728 = vsel %vm225, %v3499, 0
  %v3731 = vsel %vm225, %v3500, 0
  %v3734 = vsel %vm225, %v3501, 0
  %v3737 = vsel %vm225, %v3502, 0
  %v3740 = vsel %vm225, %v3503, 0
  %v3743 = vsel %vm225, %v3504, 0
  %v3746 = vsel %vm225, %v3505, 0
  %v3749 = vsel %vm225, %v3506, 0
  %v3752 = vsel %vm225, %v3507, 0
  %v3755 = vsel %vm225, %v3508, 0
  %v3758 = vsel %vm225, %v3509, 0
  %v3761 = vsel %vm225, %v3510, 0
  %v3764 = vsel %vm225, %v3511, 0
  %v3767 = vsel %vm225, %v3512, 0
  %v3770 = vsel %vm225, %v3513, 0
  %v3773 = vsel %vm418, %v3579, 0
  %3775 = vmatprep.subr.mxu0 0.0
  %3776 = vmatpush1.msra.mxu0 %v3773
  %3777 = vmatprep.subr.mxu0 0.0
  %3778 = vmatpush1.msra.mxu0 0.0
  %3779 = vmatprep.subr.mxu0 0.0
  %3780 = vmatpush1.msra.mxu0 0.0
  %3781 = vmatprep.subr.mxu0 0.0
  %3782 = vmatpush1.msra.mxu0 0.0
  %3783 = vmatprep.subr.mxu0 0.0
  %3784 = vmatpush1.msra.mxu0 0.0
  %3785 = vmatprep.subr.mxu0 0.0
  %3786 = vmatpush1.msra.mxu0 0.0
  %3787 = vmatprep.subr.mxu0 0.0
  %3788 = vmatpush1.msra.mxu0 0.0
  %3789 = vmatprep.subr.mxu0 0.0
  %3790 = vmatpush1.msra.mxu0 0.0
  %3791 = vmatprep.subr.mxu0 0.0
  %3792 = vmatpush1.msra.mxu0 0.0
  %3793 = vmatprep.subr.mxu0 0.0
  %3794 = vmatpush1.msra.mxu0 0.0
  %3795 = vmatprep.subr.mxu0 0.0
  %3796 = vmatpush1.msra.mxu0 0.0
  %3797 = vmatprep.subr.mxu0 0.0
  %3798 = vmatpush1.msra.mxu0 0.0
  %3799 = vmatprep.subr.mxu0 0.0
  %3800 = vmatpush1.msra.mxu0 0.0
  %3801 = vmatprep.subr.mxu0 0.0
  %3802 = vmatpush1.msra.mxu0 0.0
  %3803 = vmatprep.subr.mxu0 0.0
  %3804 = vmatpush1.msra.mxu0 0.0
  %3805 = vmatprep.subr.mxu0 0.0
  %3806 = vmatpush1.msra.mxu0 0.0
  %3807 = vmatprep.subr.mxu0 0.0
  %3808 = vmatpush1.msra.mxu0 0.0
  %3809 = vmatprep.subr.mxu0 0.0
  %3810 = vmatpush1.msra.mxu0 0.0
  %3811 = vmatprep.subr.mxu0 0.0
  %3812 = vmatpush1.msra.mxu0 0.0
  %3813 = vmatprep.subr.mxu0 0.0
  %3814 = vmatpush1.msra.mxu0 0.0
  %3815 = vmatprep.subr.mxu0 0.0
  %3816 = vmatpush1.msra.mxu0 0.0
  %3817 = vmatprep.subr.mxu0 0.0
  %3818 = vmatpush1.msra.mxu0 0.0
  %3819 = vmatprep.subr.mxu0 0.0
  %3820 = vmatpush1.msra.mxu0 0.0
  %3821 = vmatprep.subr.mxu0 0.0
  %3822 = vmatpush1.msra.mxu0 0.0
  %3823 = vmatprep.subr.mxu0 0.0
  %3824 = vmatpush1.msra.mxu0 0.0
  %3825 = vmatprep.subr.mxu0 0.0
  %3826 = vmatpush1.msra.mxu0 0.0
  %3827 = vmatprep.subr.mxu0 0.0
  %3828 = vmatpush1.msra.mxu0 0.0
  %3829 = vmatprep.subr.mxu0 0.0
  %3830 = vmatpush1.msra.mxu0 0.0
  %3831 = vmatprep.subr.mxu0 0.0
  %3832 = vmatpush1.msra.mxu0 0.0
  %3833 = vmatprep.subr.mxu0 0.0
  %3834 = vmatpush1.msra.mxu0 0.0
  %3835 = vmatprep.subr.mxu0 0.0
  %3836 = vmatpush1.msra.mxu0 0.0
  %3837 = vmatprep.subr.mxu0 0.0
  %3838 = vmatpush1.msra.mxu0 0.0
  %3839 = vmatprep.mubr.f32.mxu0 0.0
  %3840 = vmatmul.mubr.f32.gmra.mrb[0].mxu0 %v3581
  %v3841 = vpop.f32.mrb[0].mxu0
  %v3842 = vadd.f32 0.0, %v3841
  %v3843 = vpop.f32.mrb[0].mxu0
  %3844 = vmatprep.mubr.f32.mxu0 0.0
  %3845 = vmatmul.mubr.f32.gmra.mrb[0].mxu0 %v3584
  %v3846 = vpop.f32.mrb[0].mxu0
  %v3847 = vadd.f32 0.0, %v3846
  %v3848 = vpop.f32.mrb[0].mxu0
  %3849 = vmatprep.mubr.f32.mxu0 0.0
  %3850 = vmatmul.mubr.f32.gmra.mrb[0].mxu0 %v3587
  %v3851 = vpop.f32.mrb[0].mxu0
  %v3852 = vadd.f32 0.0, %v3851
  %v3853 = vpop.f32.mrb[0].mxu0
  %3854 = vmatprep.mubr.f32.mxu0 0.0
  %3855 = vmatmul.mubr.f32.gmra.mrb[0].mxu0 %v3590
  %v3856 = vpop.f32.mrb[0].mxu0
  %v3857 = vadd.f32 0.0, %v3856
  %v3858 = vpop.f32.mrb[0].mxu0
  %3859 = vmatprep.mubr.f32.mxu0 0.0
  %3860 = vmatmul.mubr.f32.gmra.mrb[0].mxu0 %v3593
  %v3861 = vpop.f32.mrb[0].mxu0
  %v3862 = vadd.f32 0.0, %v3861
  %v3863 = vpop.f32.mrb[0].mxu0
  %3864 = vmatprep.mubr.f32.mxu0 0.0
  %3865 = vmatmul.mubr.f32.gmra.mrb[0].mxu0 %v3596
  %v3866 = vpop.f32.mrb[0].mxu0
  %v3867 = vadd.f32 0.0, %v3866
  %v3868 = vpop.f32.mrb[0].mxu0
  %3869 = vmatprep.mubr.f32.mxu0 0.0
  %3870 = vmatmul.mubr.f32.gmra.mrb[0].mxu0 %v3599
  %v3871 = vpop.f32.mrb[0].mxu0
  %v3872 = vadd.f32 0.0, %v3871
  %v3873 = vpop.f32.mrb[0].mxu0
  %3874 = vmatprep.mubr.f32.mxu0 0.0
  %3875 = vmatmul.mubr.f32.gmra.mrb[0].mxu0 %v3602
  %v3876 = vpop.f32.mrb[0].mxu0
  %v3877 = vadd.f32 0.0, %v3876
  %v3878 = vpop.f32.mrb[0].mxu0
  %3879 = vmatprep.mubr.f32.mxu0 0.0
  %3880 = vmatmul.mubr.f32.gmra.mrb[0].mxu0 %v3605
  %v3881 = vpop.f32.mrb[0].mxu0
  %v3882 = vadd.f32 0.0, %v3881
  %v3883 = vpop.f32.mrb[0].mxu0
  %3884 = vmatprep.mubr.f32.mxu0 0.0
  %3885 = vmatmul.mubr.f32.gmra.mrb[0].mxu0 %v3608
  %v3886 = vpop.f32.mrb[0].mxu0
  %v3887 = vadd.f32 0.0, %v3886
  %v3888 = vpop.f32.mrb[0].mxu0
  %3889 = vmatprep.mubr.f32.mxu0 0.0
  %3890 = vmatmul.mubr.f32.gmra.mrb[0].mxu0 %v3611
  %v3891 = vpop.f32.mrb[0].mxu0
  %v3892 = vadd.f32 0.0, %v3891
  %v3893 = vpop.f32.mrb[0].mxu0
  %3894 = vmatprep.mubr.f32.mxu0 0.0
  %3895 = vmatmul.mubr.f32.gmra.mrb[0].mxu0 %v3614
  %v3896 = vpop.f32.mrb[0].mxu0
  %v3897 = vadd.f32 0.0, %v3896
  %v3898 = vpop.f32.mrb[0].mxu0
  %3899 = vmatprep.mubr.f32.mxu0 0.0
  %3900 = vmatmul.mubr.f32.gmra.mrb[0].mxu0 %v3617
  %v3901 = vpop.f32.mrb[0].mxu0
  %v3902 = vadd.f32 0.0, %v3901
  %v3903 = vpop.f32.mrb[0].mxu0
  %3904 = vmatprep.mubr.f32.mxu0 0.0
  %3905 = vmatmul.mubr.f32.gmra.mrb[0].mxu0 %v3620
  %v3906 = vpop.f32.mrb[0].mxu0
  %v3907 = vadd.f32 0.0, %v3906
  %v3908 = vpop.f32.mrb[0].mxu0
  %3909 = vmatprep.mubr.f32.mxu0 0.0
  %3910 = vmatmul.mubr.f32.gmra.mrb[0].mxu0 %v3623
  %v3911 = vpop.f32.mrb[0].mxu0
  %v3912 = vadd.f32 0.0, %v3911
  %v3913 = vpop.f32.mrb[0].mxu0
  %3914 = vmatprep.mubr.f32.mxu0 0.0
  %3915 = vmatmul.mubr.f32.gmra.mrb[0].mxu0 %v3626
  %v3916 = vpop.f32.mrb[0].mxu0
  %v3917 = vadd.f32 0.0, %v3916
  %v3918 = vpop.f32.mrb[0].mxu0
  %3919 = vmatprep.mubr.f32.mxu0 0.0
  %3920 = vmatmul.mubr.f32.gmra.mrb[0].mxu0 %v3629
  %v3921 = vpop.f32.mrb[0].mxu0
  %v3922 = vadd.f32 0.0, %v3921
  %v3923 = vpop.f32.mrb[0].mxu0
  %3924 = vmatprep.mubr.f32.mxu0 0.0
  %3925 = vmatmul.mubr.f32.gmra.mrb[0].mxu0 %v3632
  %v3926 = vpop.f32.mrb[0].mxu0
  %v3927 = vadd.f32 0.0, %v3926
  %v3928 = vpop.f32.mrb[0].mxu0
  %3929 = vmatprep.mubr.f32.mxu0 0.0
  %3930 = vmatmul.mubr.f32.gmra.mrb[0].mxu0 %v3635
  %v3931 = vpop.f32.mrb[0].mxu0
  %v3932 = vadd.f32 0.0, %v3931
  %v3933 = vpop.f32.mrb[0].mxu0
  %3934 = vmatprep.mubr.f32.mxu0 0.0
  %3935 = vmatmul.mubr.f32.gmra.mrb[0].mxu0 %v3638
  %v3936 = vpop.f32.mrb[0].mxu0
  %v3937 = vadd.f32 0.0, %v3936
  %v3938 = vpop.f32.mrb[0].mxu0
  %3939 = vmatprep.mubr.f32.mxu0 0.0
  %3940 = vmatmul.mubr.f32.gmra.mrb[0].mxu0 %v3641
  %v3941 = vpop.f32.mrb[0].mxu0
  %v3942 = vadd.f32 0.0, %v3941
  %v3943 = vpop.f32.mrb[0].mxu0
  %3944 = vmatprep.mubr.f32.mxu0 0.0
  %3945 = vmatmul.mubr.f32.gmra.mrb[0].mxu0 %v3644
  %v3946 = vpop.f32.mrb[0].mxu0
  %v3947 = vadd.f32 0.0, %v3946
  %v3948 = vpop.f32.mrb[0].mxu0
  %3949 = vmatprep.mubr.f32.mxu0 0.0
  %3950 = vmatmul.mubr.f32.gmra.mrb[0].mxu0 %v3647
  %v3951 = vpop.f32.mrb[0].mxu0
  %v3952 = vadd.f32 0.0, %v3951
  %v3953 = vpop.f32.mrb[0].mxu0
  %3954 = vmatprep.mubr.f32.mxu0 0.0
  %3955 = vmatmul.mubr.f32.gmra.mrb[0].mxu0 %v3650
  %v3956 = vpop.f32.mrb[0].mxu0
  %v3957 = vadd.f32 0.0, %v3956
  %v3958 = vpop.f32.mrb[0].mxu0
  %3959 = vmatprep.mubr.f32.mxu0 0.0
  %3960 = vmatmul.mubr.f32.gmra.mrb[0].mxu0 %v3653
  %v3961 = vpop.f32.mrb[0].mxu0
  %v3962 = vadd.f32 0.0, %v3961
  %v3963 = vpop.f32.mrb[0].mxu0
  %3964 = vmatprep.mubr.f32.mxu0 0.0
  %3965 = vmatmul.mubr.f32.gmra.mrb[0].mxu0 %v3656
  %v3966 = vpop.f32.mrb[0].mxu0
  %v3967 = vadd.f32 0.0, %v3966
  %v3968 = vpop.f32.mrb[0].mxu0
  %3969 = vmatprep.mubr.f32.mxu0 0.0
  %3970 = vmatmul.mubr.f32.gmra.mrb[0].mxu0 %v3659
  %v3971 = vpop.f32.mrb[0].mxu0
  %v3972 = vadd.f32 0.0, %v3971
  %v3973 = vpop.f32.mrb[0].mxu0
  %3974 = vmatprep.mubr.f32.mxu0 0.0
  %3975 = vmatmul.mubr.f32.gmra.mrb[0].mxu0 %v3662
  %v3976 = vpop.f32.mrb[0].mxu0
  %v3977 = vadd.f32 0.0, %v3976
  %v3978 = vpop.f32.mrb[0].mxu0
  %3979 = vmatprep.mubr.f32.mxu0 0.0
  %3980 = vmatmul.mubr.f32.gmra.mrb[0].mxu0 %v3665
  %v3981 = vpop.f32.mrb[0].mxu0
  %v3982 = vadd.f32 0.0, %v3981
  %v3983 = vpop.f32.mrb[0].mxu0
  %3984 = vmatprep.mubr.f32.mxu0 0.0
  %3985 = vmatmul.mubr.f32.gmra.mrb[0].mxu0 %v3668
  %v3986 = vpop.f32.mrb[0].mxu0
  %v3987 = vadd.f32 0.0, %v3986
  %v3988 = vpop.f32.mrb[0].mxu0
  %3989 = vmatprep.mubr.f32.mxu0 0.0
  %3990 = vmatmul.mubr.f32.gmra.mrb[0].mxu0 %v3671
  %v3991 = vpop.f32.mrb[0].mxu0
  %v3992 = vadd.f32 0.0, %v3991
  %v3993 = vpop.f32.mrb[0].mxu0
  %3994 = vmatprep.mubr.f32.mxu0 0.0
  %3995 = vmatmul.mubr.f32.gmra.mrb[0].mxu0 %v3674
  %v3996 = vpop.f32.mrb[0].mxu0
  %v3997 = vadd.f32 0.0, %v3996
  %v3998 = vpop.f32.mrb[0].mxu0
  %3999 = vmatprep.mubr.f32.mxu0 0.0
  %4000 = vmatmul.mubr.f32.gmra.mrb[0].mxu0 %v3677
  %v4001 = vpop.f32.mrb[0].mxu0
  %v4002 = vadd.f32 0.0, %v4001
  %v4003 = vpop.f32.mrb[0].mxu0
  %4004 = vmatprep.mubr.f32.mxu0 0.0
  %4005 = vmatmul.mubr.f32.gmra.mrb[0].mxu0 %v3680
  %v4006 = vpop.f32.mrb[0].mxu0
  %v4007 = vadd.f32 0.0, %v4006
  %v4008 = vpop.f32.mrb[0].mxu0
  %4009 = vmatprep.mubr.f32.mxu0 0.0
  %4010 = vmatmul.mubr.f32.gmra.mrb[0].mxu0 %v3683
  %v4011 = vpop.f32.mrb[0].mxu0
  %v4012 = vadd.f32 0.0, %v4011
  %v4013 = vpop.f32.mrb[0].mxu0
  %4014 = vmatprep.mubr.f32.mxu0 0.0
  %4015 = vmatmul.mubr.f32.gmra.mrb[0].mxu0 %v3686
  %v4016 = vpop.f32.mrb[0].mxu0
  %v4017 = vadd.f32 0.0, %v4016
  %v4018 = vpop.f32.mrb[0].mxu0
  %4019 = vmatprep.mubr.f32.mxu0 0.0
  %4020 = vmatmul.mubr.f32.gmra.mrb[0].mxu0 %v3689
  %v4021 = vpop.f32.mrb[0].mxu0
  %v4022 = vadd.f32 0.0, %v4021
  %v4023 = vpop.f32.mrb[0].mxu0
  %4024 = vmatprep.mubr.f32.mxu0 0.0
  %4025 = vmatmul.mubr.f32.gmra.mrb[0].mxu0 %v3692
  %v4026 = vpop.f32.mrb[0].mxu0
  %v4027 = vadd.f32 0.0, %v4026
  %v4028 = vpop.f32.mrb[0].mxu0
  %4029 = vmatprep.mubr.f32.mxu0 0.0
  %4030 = vmatmul.mubr.f32.gmra.mrb[0].mxu0 %v3695
  %v4031 = vpop.f32.mrb[0].mxu0
  %v4032 = vadd.f32 0.0, %v4031
  %v4033 = vpop.f32.mrb[0].mxu0
  %4034 = vmatprep.mubr.f32.mxu0 0.0
  %4035 = vmatmul.mubr.f32.gmra.mrb[0].mxu0 %v3698
  %v4036 = vpop.f32.mrb[0].mxu0
  %v4037 = vadd.f32 0.0, %v4036
  %v4038 = vpop.f32.mrb[0].mxu0
  %4039 = vmatprep.mubr.f32.mxu0 0.0
  %4040 = vmatmul.mubr.f32.gmra.mrb[0].mxu0 %v3701
  %v4041 = vpop.f32.mrb[0].mxu0
  %v4042 = vadd.f32 0.0, %v4041
  %v4043 = vpop.f32.mrb[0].mxu0
  %4044 = vmatprep.mubr.f32.mxu0 0.0
  %4045 = vmatmul.mubr.f32.gmra.mrb[0].mxu0 %v3704
  %v4046 = vpop.f32.mrb[0].mxu0
  %v4047 = vadd.f32 0.0, %v4046
  %v4048 = vpop.f32.mrb[0].mxu0
  %4049 = vmatprep.mubr.f32.mxu0 0.0
  %4050 = vmatmul.mubr.f32.gmra.mrb[0].mxu0 %v3707
  %v4051 = vpop.f32.mrb[0].mxu0
  %v4052 = vadd.f32 0.0, %v4051
  %v4053 = vpop.f32.mrb[0].mxu0
  %4054 = vmatprep.mubr.f32.mxu0 0.0
  %4055 = vmatmul.mubr.f32.gmra.mrb[0].mxu0 %v3710
  %v4056 = vpop.f32.mrb[0].mxu0
  %v4057 = vadd.f32 0.0, %v4056
  %v4058 = vpop.f32.mrb[0].mxu0
  %4059 = vmatprep.mubr.f32.mxu0 0.0
  %4060 = vmatmul.mubr.f32.gmra.mrb[0].mxu0 %v3713
  %v4061 = vpop.f32.mrb[0].mxu0
  %v4062 = vadd.f32 0.0, %v4061
  %v4063 = vpop.f32.mrb[0].mxu0
  %4064 = vmatprep.mubr.f32.mxu0 0.0
  %4065 = vmatmul.mubr.f32.gmra.mrb[0].mxu0 %v3716
  %v4066 = vpop.f32.mrb[0].mxu0
  %v4067 = vadd.f32 0.0, %v4066
  %v4068 = vpop.f32.mrb[0].mxu0
  %4069 = vmatprep.mubr.f32.mxu0 0.0
  %4070 = vmatmul.mubr.f32.gmra.mrb[0].mxu0 %v3719
  %v4071 = vpop.f32.mrb[0].mxu0
  %v4072 = vadd.f32 0.0, %v4071
  %v4073 = vpop.f32.mrb[0].mxu0
  %4074 = vmatprep.mubr.f32.mxu0 0.0
  %4075 = vmatmul.mubr.f32.gmra.mrb[0].mxu0 %v3722
  %v4076 = vpop.f32.mrb[0].mxu0
  %v4077 = vadd.f32 0.0, %v4076
  %v4078 = vpop.f32.mrb[0].mxu0
  %4079 = vmatprep.mubr.f32.mxu0 0.0
  %4080 = vmatmul.mubr.f32.gmra.mrb[0].mxu0 %v3725
  %v4081 = vpop.f32.mrb[0].mxu0
  %v4082 = vadd.f32 0.0, %v4081
  %v4083 = vpop.f32.mrb[0].mxu0
  %4084 = vmatprep.mubr.f32.mxu0 0.0
  %4085 = vmatmul.mubr.f32.gmra.mrb[0].mxu0 %v3728
  %v4086 = vpop.f32.mrb[0].mxu0
  %v4087 = vadd.f32 0.0, %v4086
  %v4088 = vpop.f32.mrb[0].mxu0
  %4089 = vmatprep.mubr.f32.mxu0 0.0
  %4090 = vmatmul.mubr.f32.gmra.mrb[0].mxu0 %v3731
  %v4091 = vpop.f32.mrb[0].mxu0
  %v4092 = vadd.f32 0.0, %v4091
  %v4093 = vpop.f32.mrb[0].mxu0
  %4094 = vmatprep.mubr.f32.mxu0 0.0
  %4095 = vmatmul.mubr.f32.gmra.mrb[0].mxu0 %v3734
  %v4096 = vpop.f32.mrb[0].mxu0
  %v4097 = vadd.f32 0.0, %v4096
  %v4098 = vpop.f32.mrb[0].mxu0
  %4099 = vmatprep.mubr.f32.mxu0 0.0
  %4100 = vmatmul.mubr.f32.gmra.mrb[0].mxu0 %v3737
  %v4101 = vpop.f32.mrb[0].mxu0
  %v4102 = vadd.f32 0.0, %v4101
  %v4103 = vpop.f32.mrb[0].mxu0
  %4104 = vmatprep.mubr.f32.mxu0 0.0
  %4105 = vmatmul.mubr.f32.gmra.mrb[0].mxu0 %v3740
  %v4106 = vpop.f32.mrb[0].mxu0
  %v4107 = vadd.f32 0.0, %v4106
  %v4108 = vpop.f32.mrb[0].mxu0
  %4109 = vmatprep.mubr.f32.mxu0 0.0
  %4110 = vmatmul.mubr.f32.gmra.mrb[0].mxu0 %v3743
  %v4111 = vpop.f32.mrb[0].mxu0
  %v4112 = vadd.f32 0.0, %v4111
  %v4113 = vpop.f32.mrb[0].mxu0
  %4114 = vmatprep.mubr.f32.mxu0 0.0
  %4115 = vmatmul.mubr.f32.gmra.mrb[0].mxu0 %v3746
  %v4116 = vpop.f32.mrb[0].mxu0
  %v4117 = vadd.f32 0.0, %v4116
  %v4118 = vpop.f32.mrb[0].mxu0
  %4119 = vmatprep.mubr.f32.mxu0 0.0
  %4120 = vmatmul.mubr.f32.gmra.mrb[0].mxu0 %v3749
  %v4121 = vpop.f32.mrb[0].mxu0
  %v4122 = vadd.f32 0.0, %v4121
  %v4123 = vpop.f32.mrb[0].mxu0
  %4124 = vmatprep.mubr.f32.mxu0 0.0
  %4125 = vmatmul.mubr.f32.gmra.mrb[0].mxu0 %v3752
  %v4126 = vpop.f32.mrb[0].mxu0
  %v4127 = vadd.f32 0.0, %v4126
  %v4128 = vpop.f32.mrb[0].mxu0
  %4129 = vmatprep.mubr.f32.mxu0 0.0
  %4130 = vmatmul.mubr.f32.gmra.mrb[0].mxu0 %v3755
  %v4131 = vpop.f32.mrb[0].mxu0
  %v4132 = vadd.f32 0.0, %v4131
  %v4133 = vpop.f32.mrb[0].mxu0
  %4134 = vmatprep.mubr.f32.mxu0 0.0
  %4135 = vmatmul.mubr.f32.gmra.mrb[0].mxu0 %v3758
  %v4136 = vpop.f32.mrb[0].mxu0
  %v4137 = vadd.f32 0.0, %v4136
  %v4138 = vpop.f32.mrb[0].mxu0
  %4139 = vmatprep.mubr.f32.mxu0 0.0
  %4140 = vmatmul.mubr.f32.gmra.mrb[0].mxu0 %v3761
  %v4141 = vpop.f32.mrb[0].mxu0
  %v4142 = vadd.f32 0.0, %v4141
  %v4143 = vpop.f32.mrb[0].mxu0
  %4144 = vmatprep.mubr.f32.mxu0 0.0
  %4145 = vmatmul.mubr.f32.gmra.mrb[0].mxu0 %v3764
  %v4146 = vpop.f32.mrb[0].mxu0
  %v4147 = vadd.f32 0.0, %v4146
  %v4148 = vpop.f32.mrb[0].mxu0
  %4149 = vmatprep.mubr.f32.mxu0 0.0
  %4150 = vmatmul.mubr.f32.gmra.mrb[0].mxu0 %v3767
  %v4151 = vpop.f32.mrb[0].mxu0
  %v4152 = vadd.f32 0.0, %v4151
  %v4153 = vpop.f32.mrb[0].mxu0
  %4154 = vmatprep.mubr.f32.mxu0 0.0
  %4155 = vmatmul.mubr.f32.gmra.mrb[0].mxu0 %v3770
  %v4156 = vpop.f32.mrb[0].mxu0
  %v4157 = vadd.f32 0.0, %v4156
  %v4158 = vpop.f32.mrb[0].mxu0
  %4159 = vdwg.mxu0
  %v4160 = vadd.f32 %v3514, %v3842
  %v4161 = vadd.f32 %v3515, %v3847
  %v4162 = vadd.f32 %v3516, %v3852
  %v4163 = vadd.f32 %v3517, %v3857
  %v4164 = vadd.f32 %v3518, %v3862
  %v4165 = vadd.f32 %v3519, %v3867
  %v4166 = vadd.f32 %v3520, %v3872
  %v4167 = vadd.f32 %v3521, %v3877
  %v4168 = vadd.f32 %v3522, %v3882
  %v4169 = vadd.f32 %v3523, %v3887
  %v4170 = vadd.f32 %v3524, %v3892
  %v4171 = vadd.f32 %v3525, %v3897
  %v4172 = vadd.f32 %v3526, %v3902
  %v4173 = vadd.f32 %v3527, %v3907
  %v4174 = vadd.f32 %v3528, %v3912
  %v4175 = vadd.f32 %v3529, %v3917
  %v4176 = vadd.f32 %v3530, %v3922
  %v4177 = vadd.f32 %v3531, %v3927
  %v4178 = vadd.f32 %v3532, %v3932
  %v4179 = vadd.f32 %v3533, %v3937
  %v4180 = vadd.f32 %v3534, %v3942
  %v4181 = vadd.f32 %v3535, %v3947
  %v4182 = vadd.f32 %v3536, %v3952
  %v4183 = vadd.f32 %v3537, %v3957
  %v4184 = vadd.f32 %v3538, %v3962
  %v4185 = vadd.f32 %v3539, %v3967
  %v4186 = vadd.f32 %v3540, %v3972
  %v4187 = vadd.f32 %v3541, %v3977
  %v4188 = vadd.f32 %v3542, %v3982
  %v4189 = vadd.f32 %v3543, %v3987
  %v4190 = vadd.f32 %v3544, %v3992
  %v4191 = vadd.f32 %v3545, %v3997
  %v4192 = vadd.f32 %v3546, %v4002
  %v4193 = vadd.f32 %v3547, %v4007
  %v4194 = vadd.f32 %v3548, %v4012
  %v4195 = vadd.f32 %v3549, %v4017
  %v4196 = vadd.f32 %v3550, %v4022
  %v4197 = vadd.f32 %v3551, %v4027
  %v4198 = vadd.f32 %v3552, %v4032
  %v4199 = vadd.f32 %v3553, %v4037
  %v4200 = vadd.f32 %v3554, %v4042
  %v4201 = vadd.f32 %v3555, %v4047
  %v4202 = vadd.f32 %v3556, %v4052
  %v4203 = vadd.f32 %v3557, %v4057
  %v4204 = vadd.f32 %v3558, %v4062
  %v4205 = vadd.f32 %v3559, %v4067
  %v4206 = vadd.f32 %v3560, %v4072
  %v4207 = vadd.f32 %v3561, %v4077
  %v4208 = vadd.f32 %v3562, %v4082
  %v4209 = vadd.f32 %v3563, %v4087
  %v4210 = vadd.f32 %v3564, %v4092
  %v4211 = vadd.f32 %v3565, %v4097
  %v4212 = vadd.f32 %v3566, %v4102
  %v4213 = vadd.f32 %v3567, %v4107
  %v4214 = vadd.f32 %v3568, %v4112
  %v4215 = vadd.f32 %v3569, %v4117
  %v4216 = vadd.f32 %v3570, %v4122
  %v4217 = vadd.f32 %v3571, %v4127
  %v4218 = vadd.f32 %v3572, %v4132
  %v4219 = vadd.f32 %v3573, %v4137
  %v4220 = vadd.f32 %v3574, %v4142
  %v4221 = vadd.f32 %v3575, %v4147
  %v4222 = vadd.f32 %v3576, %v4152
  %v4223 = vadd.f32 %v3577, %v4157
  %4224 = vst [vmem:[#allocation2] sm:$0xff] %v4160
  %4225 = vst [vmem:[#allocation2 + $0x8] sm:$0xff] %v4161
  %4226 = vst [vmem:[#allocation2 + $0x10] sm:$0xff] %v4162
  %4227 = vst [vmem:[#allocation2 + $0x18] sm:$0xff] %v4163
  %4228 = vst [vmem:[#allocation2 + $0x20] sm:$0xff] %v4164
  %4229 = vst [vmem:[#allocation2 + $0x28] sm:$0xff] %v4165
  %4230 = vst [vmem:[#allocation2 + $0x30] sm:$0xff] %v4166
  %4231 = vst [vmem:[#allocation2 + $0x38] sm:$0xff] %v4167
  %4232 = vst [vmem:[#allocation2 + $0x40] sm:$0xff] %v4168
  %4233 = vst [vmem:[#allocation2 + $0x48] sm:$0xff] %v4169
  %4234 = vst [vmem:[#allocation2 + $0x50] sm:$0xff] %v4170
  %4235 = vst [vmem:[#allocation2 + $0x58] sm:$0xff] %v4171
  %4236 = vst [vmem:[#allocation2 + $0x60] sm:$0xff] %v4172
  %4237 = vst [vmem:[#allocation2 + $0x68] sm:$0xff] %v4173
  %4238 = vst [vmem:[#allocation2 + $0x70] sm:$0xff] %v4174
  %4239 = vst [vmem:[#allocation2 + $0x78] sm:$0xff] %v4175
  %4240 = vst [vmem:[#allocation2 + $0x80] sm:$0xff] %v4176
  %4241 = vst [vmem:[#allocation2 + $0x88] sm:$0xff] %v4177
  %4242 = vst [vmem:[#allocation2 + $0x90] sm:$0xff] %v4178
  %4243 = vst [vmem:[#allocation2 + $0x98] sm:$0xff] %v4179
  %4244 = vst [vmem:[#allocation2 + $0xa0] sm:$0xff] %v4180
  %4245 = vst [vmem:[#allocation2 + $0xa8] sm:$0xff] %v4181
  %4246 = vst [vmem:[#allocation2 + $0xb0] sm:$0xff] %v4182
  %4247 = vst [vmem:[#allocation2 + $0xb8] sm:$0xff] %v4183
  %4248 = vst [vmem:[#allocation2 + $0xc0] sm:$0xff] %v4184
  %4249 = vst [vmem:[#allocation2 + $0xc8] sm:$0xff] %v4185
  %4250 = vst [vmem:[#allocation2 + $0xd0] sm:$0xff] %v4186
  %4251 = vst [vmem:[#allocation2 + $0xd8] sm:$0xff] %v4187
  %4252 = vst [vmem:[#allocation2 + $0xe0] sm:$0xff] %v4188
  %4253 = vst [vmem:[#allocation2 + $0xe8] sm:$0xff] %v4189
  %4254 = vst [vmem:[#allocation2 + $0xf0] sm:$0xff] %v4190
  %4255 = vst [vmem:[#allocation2 + $0xf8] sm:$0xff] %v4191
  %4256 = vst [vmem:[#allocation2 + $0x100] sm:$0xff] %v4192
  %4257 = vst [vmem:[#allocation2 + $0x108] sm:$0xff] %v4193
  %4258 = vst [vmem:[#allocation2 + $0x110] sm:$0xff] %v4194
  %4259 = vst [vmem:[#allocation2 + $0x118] sm:$0xff] %v4195
  %4260 = vst [vmem:[#allocation2 + $0x120] sm:$0xff] %v4196
  %4261 = vst [vmem:[#allocation2 + $0x128] sm:$0xff] %v4197
  %4262 = vst [vmem:[#allocation2 + $0x130] sm:$0xff] %v4198
  %4263 = vst [vmem:[#allocation2 + $0x138] sm:$0xff] %v4199
  %4264 = vst [vmem:[#allocation2 + $0x140] sm:$0xff] %v4200
  %4265 = vst [vmem:[#allocation2 + $0x148] sm:$0xff] %v4201
  %4266 = vst [vmem:[#allocation2 + $0x150] sm:$0xff] %v4202
  %4267 = vst [vmem:[#allocation2 + $0x158] sm:$0xff] %v4203
  %4268 = vst [vmem:[#allocation2 + $0x160] sm:$0xff] %v4204
  %4269 = vst [vmem:[#allocation2 + $0x168] sm:$0xff] %v4205
  %4270 = vst [vmem:[#allocation2 + $0x170] sm:$0xff] %v4206
  %4271 = vst [vmem:[#allocation2 + $0x178] sm:$0xff] %v4207
  %4272 = vst [vmem:[#allocation2 + $0x180] sm:$0xff] %v4208
  %4273 = vst [vmem:[#allocation2 + $0x188] sm:$0xff] %v4209
  %4274 = vst [vmem:[#allocation2 + $0x190] sm:$0xff] %v4210
  %4275 = vst [vmem:[#allocation2 + $0x198] sm:$0xff] %v4211
  %4276 = vst [vmem:[#allocation2 + $0x1a0] sm:$0xff] %v4212
  %4277 = vst [vmem:[#allocation2 + $0x1a8] sm:$0xff] %v4213
  %4278 = vst [vmem:[#allocation2 + $0x1b0] sm:$0xff] %v4214
  %4279 = vst [vmem:[#allocation2 + $0x1b8] sm:$0xff] %v4215
  %4280 = vst [vmem:[#allocation2 + $0x1c0] sm:$0xff] %v4216
  %4281 = vst [vmem:[#allocation2 + $0x1c8] sm:$0xff] %v4217
  %4282 = vst [vmem:[#allocation2 + $0x1d0] sm:$0xff] %v4218
  %4283 = vst [vmem:[#allocation2 + $0x1d8] sm:$0xff] %v4219
  %4284 = vst [vmem:[#allocation2 + $0x1e0] sm:$0xff] %v4220
  %4285 = vst [vmem:[#allocation2 + $0x1e8] sm:$0xff] %v4221
  %4286 = vst [vmem:[#allocation2 + $0x1f0] sm:$0xff] %v4222
  %4287 = vst [vmem:[#allocation2 + $0x1f8] sm:$0xff] %v4223
  %v4288 = vld [vmem:[%s2611 + $0x2] sm:$0xff]
  %v4289 = vld [vmem:[%s2611 + $0xa] sm:$0xff]
  %v4290 = vld [vmem:[%s2611 + $0x1a] sm:$0xff]
  %v4291 = vld [vmem:[%s2611 + $0x22] sm:$0xff]
  %v4292 = vld [vmem:[%s2611 + $0x32] sm:$0xff]
  %v4293 = vld [vmem:[%s2611 + $0x3a] sm:$0xff]
  %v4294 = vld [vmem:[%s2611 + $0x4a] sm:$0xff]
  %v4295 = vld [vmem:[%s2611 + $0x52] sm:$0xff]
  %v4296 = vld [vmem:[%s2611 + $0x62] sm:$0xff]
  %v4297 = vld [vmem:[%s2611 + $0x6a] sm:$0xff]
  %v4298 = vld [vmem:[%s2611 + $0x7a] sm:$0xff]
  %v4299 = vld [vmem:[%s2611 + $0x82] sm:$0xff]
  %v4300 = vld [vmem:[%s2611 + $0x92] sm:$0xff]
  %v4301 = vld [vmem:[%s2611 + $0x9a] sm:$0xff]
  %v4302 = vld [vmem:[%s2611 + $0xaa] sm:$0xff]
  %v4303 = vld [vmem:[%s2611 + $0xb2] sm:$0xff]
  %v4304 = vld [vmem:[%s2611 + $0xc2] sm:$0xff]
  %v4305 = vld [vmem:[%s2611 + $0xca] sm:$0xff]
  %v4306 = vld [vmem:[%s2611 + $0xda] sm:$0xff]
  %v4307 = vld [vmem:[%s2611 + $0xe2] sm:$0xff]
  %v4308 = vld [vmem:[%s2611 + $0xf2] sm:$0xff]
  %v4309 = vld [vmem:[%s2611 + $0xfa] sm:$0xff]
  %v4310 = vld [vmem:[%s2611 + $0x10a] sm:$0xff]
  %v4311 = vld [vmem:[%s2611 + $0x112] sm:$0xff]
  %v4312 = vld [vmem:[%s2611 + $0x122] sm:$0xff]
  %v4313 = vld [vmem:[%s2611 + $0x12a] sm:$0xff]
  %v4314 = vld [vmem:[%s2611 + $0x13a] sm:$0xff]
  %v4315 = vld [vmem:[%s2611 + $0x142] sm:$0xff]
  %v4316 = vld [vmem:[%s2611 + $0x152] sm:$0xff]
  %v4317 = vld [vmem:[%s2611 + $0x15a] sm:$0xff]
  %v4318 = vld [vmem:[%s2611 + $0x16a] sm:$0xff]
  %v4319 = vld [vmem:[%s2611 + $0x172] sm:$0xff]
  %v4320 = vld [vmem:[%s2611 + $0x1b2] sm:$0xff]
  %v4321 = vld [vmem:[%s2611 + $0x1ba] sm:$0xff]
  %v4322 = vld [vmem:[%s2611 + $0x1ca] sm:$0xff]
  %v4323 = vld [vmem:[%s2611 + $0x1d2] sm:$0xff]
  %v4324 = vld [vmem:[%s2611 + $0x1e2] sm:$0xff]
  %v4325 = vld [vmem:[%s2611 + $0x1ea] sm:$0xff]
  %v4326 = vld [vmem:[%s2611 + $0x1fa] sm:$0xff]
  %v4327 = vld [vmem:[%s2611 + $0x202] sm:$0xff]
  %v4328 = vld [vmem:[%s2611 + $0x212] sm:$0xff]
  %v4329 = vld [vmem:[%s2611 + $0x21a] sm:$0xff]
  %v4330 = vld [vmem:[%s2611 + $0x22a] sm:$0xff]
  %v4331 = vld [vmem:[%s2611 + $0x232] sm:$0xff]
  %v4332 = vld [vmem:[%s2611 + $0x242] sm:$0xff]
  %v4333 = vld [vmem:[%s2611 + $0x24a] sm:$0xff]
  %v4334 = vld [vmem:[%s2611 + $0x25a] sm:$0xff]
  %v4335 = vld [vmem:[%s2611 + $0x262] sm:$0xff]
  %v4336 = vld [vmem:[%s2611 + $0x272] sm:$0xff]
  %v4337 = vld [vmem:[%s2611 + $0x27a] sm:$0xff]
  %v4338 = vld [vmem:[%s2611 + $0x28a] sm:$0xff]
  %v4339 = vld [vmem:[%s2611 + $0x292] sm:$0xff]
  %v4340 = vld [vmem:[%s2611 + $0x2a2] sm:$0xff]
  %v4341 = vld [vmem:[%s2611 + $0x2aa] sm:$0xff]
  %v4342 = vld [vmem:[%s2611 + $0x2ba] sm:$0xff]
  %v4343 = vld [vmem:[%s2611 + $0x2c2] sm:$0xff]
  %v4344 = vld [vmem:[%s2611 + $0x2d2] sm:$0xff]
  %v4345 = vld [vmem:[%s2611 + $0x2da] sm:$0xff]
  %v4346 = vld [vmem:[%s2611 + $0x2ea] sm:$0xff]
  %v4347 = vld [vmem:[%s2611 + $0x2f2] sm:$0xff]
  %v4348 = vld [vmem:[%s2611 + $0x302] sm:$0xff]
  %v4349 = vld [vmem:[%s2611 + $0x30a] sm:$0xff]
  %v4350 = vld [vmem:[%s2611 + $0x31a] sm:$0xff]
  %v4351 = vld [vmem:[%s2611 + $0x322] sm:$0xff]
  %v4352 = vld [vmem:[#allocation2] sm:$0xff]
  %v4353 = vld [vmem:[#allocation2 + $0x8] sm:$0xff]
  %v4354 = vld [vmem:[#allocation2 + $0x10] sm:$0xff]
  %v4355 = vld [vmem:[#allocation2 + $0x18] sm:$0xff]
  %v4356 = vld [vmem:[#allocation2 + $0x20] sm:$0xff]
  %v4357 = vld [vmem:[#allocation2 + $0x28] sm:$0xff]
  %v4358 = vld [vmem:[#allocation2 + $0x30] sm:$0xff]
  %v4359 = vld [vmem:[#allocation2 + $0x38] sm:$0xff]
  %v4360 = vld [vmem:[#allocation2 + $0x40] sm:$0xff]
  %v4361 = vld [vmem:[#allocation2 + $0x48] sm:$0xff]
  %v4362 = vld [vmem:[#allocation2 + $0x50] sm:$0xff]
  %v4363 = vld [vmem:[#allocation2 + $0x58] sm:$0xff]
  %v4364 = vld [vmem:[#allocation2 + $0x60] sm:$0xff]
  %v4365 = vld [vmem:[#allocation2 + $0x68] sm:$0xff]
  %v4366 = vld [vmem:[#allocation2 + $0x70] sm:$0xff]
  %v4367 = vld [vmem:[#allocation2 + $0x78] sm:$0xff]
  %v4368 = vld [vmem:[#allocation2 + $0x80] sm:$0xff]
  %v4369 = vld [vmem:[#allocation2 + $0x88] sm:$0xff]
  %v4370 = vld [vmem:[#allocation2 + $0x90] sm:$0xff]
  %v4371 = vld [vmem:[#allocation2 + $0x98] sm:$0xff]
  %v4372 = vld [vmem:[#allocation2 + $0xa0] sm:$0xff]
  %v4373 = vld [vmem:[#allocation2 + $0xa8] sm:$0xff]
  %v4374 = vld [vmem:[#allocation2 + $0xb0] sm:$0xff]
  %v4375 = vld [vmem:[#allocation2 + $0xb8] sm:$0xff]
  %v4376 = vld [vmem:[#allocation2 + $0xc0] sm:$0xff]
  %v4377 = vld [vmem:[#allocation2 + $0xc8] sm:$0xff]
  %v4378 = vld [vmem:[#allocation2 + $0xd0] sm:$0xff]
  %v4379 = vld [vmem:[#allocation2 + $0xd8] sm:$0xff]
  %v4380 = vld [vmem:[#allocation2 + $0xe0] sm:$0xff]
  %v4381 = vld [vmem:[#allocation2 + $0xe8] sm:$0xff]
  %v4382 = vld [vmem:[#allocation2 + $0xf0] sm:$0xff]
  %v4383 = vld [vmem:[#allocation2 + $0xf8] sm:$0xff]
  %v4384 = vld [vmem:[#allocation2 + $0x100] sm:$0xff]
  %v4385 = vld [vmem:[#allocation2 + $0x108] sm:$0xff]
  %v4386 = vld [vmem:[#allocation2 + $0x110] sm:$0xff]
  %v4387 = vld [vmem:[#allocation2 + $0x118] sm:$0xff]
  %v4388 = vld [vmem:[#allocation2 + $0x120] sm:$0xff]
  %v4389 = vld [vmem:[#allocation2 + $0x128] sm:$0xff]
  %v4390 = vld [vmem:[#allocation2 + $0x130] sm:$0xff]
  %v4391 = vld [vmem:[#allocation2 + $0x138] sm:$0xff]
  %v4392 = vld [vmem:[#allocation2 + $0x140] sm:$0xff]
  %v4393 = vld [vmem:[#allocation2 + $0x148] sm:$0xff]
  %v4394 = vld [vmem:[#allocation2 + $0x150] sm:$0xff]
  %v4395 = vld [vmem:[#allocation2 + $0x158] sm:$0xff]
  %v4396 = vld [vmem:[#allocation2 + $0x160] sm:$0xff]
  %v4397 = vld [vmem:[#allocation2 + $0x168] sm:$0xff]
  %v4398 = vld [vmem:[#allocation2 + $0x170] sm:$0xff]
  %v4399 = vld [vmem:[#allocation2 + $0x178] sm:$0xff]
  %v4400 = vld [vmem:[#allocation2 + $0x180] sm:$0xff]
  %v4401 = vld [vmem:[#allocation2 + $0x188] sm:$0xff]
  %v4402 = vld [vmem:[#allocation2 + $0x190] sm:$0xff]
  %v4403 = vld [vmem:[#allocation2 + $0x198] sm:$0xff]
  %v4404 = vld [vmem:[#allocation2 + $0x1a0] sm:$0xff]
  %v4405 = vld [vmem:[#allocation2 + $0x1a8] sm:$0xff]
  %v4406 = vld [vmem:[#allocation2 + $0x1b0] sm:$0xff]
  %v4407 = vld [vmem:[#allocation2 + $0x1b8] sm:$0xff]
  %v4408 = vld [vmem:[#allocation2 + $0x1c0] sm:$0xff]
  %v4409 = vld [vmem:[#allocation2 + $0x1c8] sm:$0xff]
  %v4410 = vld [vmem:[#allocation2 + $0x1d0] sm:$0xff]
  %v4411 = vld [vmem:[#allocation2 + $0x1d8] sm:$0xff]
  %v4412 = vld [vmem:[#allocation2 + $0x1e0] sm:$0xff]
  %v4413 = vld [vmem:[#allocation2 + $0x1e8] sm:$0xff]
  %v4414 = vld [vmem:[#allocation2 + $0x1f0] sm:$0xff]
  %v4415 = vld [vmem:[#allocation2 + $0x1f8] sm:$0xff]
  %s4416 = scalar_lea.vmem %s1, 20
  %v4417 = vld [vmem:[%s4416] sm:$0xf]
  %v4419 = vsel %vm225, %v4288, 0
  %v4422 = vsel %vm225, %v4289, 0
  %v4425 = vsel %vm225, %v4290, 0
  %v4428 = vsel %vm225, %v4291, 0
  %v4431 = vsel %vm225, %v4292, 0
  %v4434 = vsel %vm225, %v4293, 0
  %v4437 = vsel %vm225, %v4294, 0
  %v4440 = vsel %vm225, %v4295, 0
  %v4443 = vsel %vm225, %v4296, 0
  %v4446 = vsel %vm225, %v4297, 0
  %v4449 = vsel %vm225, %v4298, 0
  %v4452 = vsel %vm225, %v4299, 0
  %v4455 = vsel %vm225, %v4300, 0
  %v4458 = vsel %vm225, %v4301, 0
  %v4461 = vsel %vm225, %v4302, 0
  %v4464 = vsel %vm225, %v4303, 0
  %v4467 = vsel %vm225, %v4304, 0
  %v4470 = vsel %vm225, %v4305, 0
  %v4473 = vsel %vm225, %v4306, 0
  %v4476 = vsel %vm225, %v4307, 0
  %v4479 = vsel %vm225, %v4308, 0
  %v4482 = vsel %vm225, %v4309, 0
  %v4485 = vsel %vm225, %v4310, 0
  %v4488 = vsel %vm225, %v4311, 0
  %v4491 = vsel %vm225, %v4312, 0
  %v4494 = vsel %vm225, %v4313, 0
  %v4497 = vsel %vm225, %v4314, 0
  %v4500 = vsel %vm225, %v4315, 0
  %v4503 = vsel %vm225, %v4316, 0
  %v4506 = vsel %vm225, %v4317, 0
  %v4509 = vsel %vm225, %v4318, 0
  %v4512 = vsel %vm225, %v4319, 0
  %v4515 = vsel %vm225, %v4320, 0
  %v4518 = vsel %vm225, %v4321, 0
  %v4521 = vsel %vm225, %v4322, 0
  %v4524 = vsel %vm225, %v4323, 0
  %v4527 = vsel %vm225, %v4324, 0
  %v4530 = vsel %vm225, %v4325, 0
  %v4533 = vsel %vm225, %v4326, 0
  %v4536 = vsel %vm225, %v4327, 0
  %v4539 = vsel %vm225, %v4328, 0
  %v4542 = vsel %vm225, %v4329, 0
  %v4545 = vsel %vm225, %v4330, 0
  %v4548 = vsel %vm225, %v4331, 0
  %v4551 = vsel %vm225, %v4332, 0
  %v4554 = vsel %vm225, %v4333, 0
  %v4557 = vsel %vm225, %v4334, 0
  %v4560 = vsel %vm225, %v4335, 0
  %v4563 = vsel %vm225, %v4336, 0
  %v4566 = vsel %vm225, %v4337, 0
  %v4569 = vsel %vm225, %v4338, 0
  %v4572 = vsel %vm225, %v4339, 0
  %v4575 = vsel %vm225, %v4340, 0
  %v4578 = vsel %vm225, %v4341, 0
  %v4581 = vsel %vm225, %v4342, 0
  %v4584 = vsel %vm225, %v4343, 0
  %v4587 = vsel %vm225, %v4344, 0
  %v4590 = vsel %vm225, %v4345, 0
  %v4593 = vsel %vm225, %v4346, 0
  %v4596 = vsel %vm225, %v4347, 0
  %v4599 = vsel %vm225, %v4348, 0
  %v4602 = vsel %vm225, %v4349, 0
  %v4605 = vsel %vm225, %v4350, 0
  %v4608 = vsel %vm225, %v4351, 0
  %v4611 = vsel %vm418, %v4417, 0
  %4613 = vmatprep.subr.mxu0 0.0
  %4614 = vmatpush1.msra.mxu0 %v4611
  %4615 = vmatprep.subr.mxu0 0.0
  %4616 = vmatpush1.msra.mxu0 0.0
  %4617 = vmatprep.subr.mxu0 0.0
  %4618 = vmatpush1.msra.mxu0 0.0
  %4619 = vmatprep.subr.mxu0 0.0
  %4620 = vmatpush1.msra.mxu0 0.0
  %4621 = vmatprep.subr.mxu0 0.0
  %4622 = vmatpush1.msra.mxu0 0.0
  %4623 = vmatprep.subr.mxu0 0.0
  %4624 = vmatpush1.msra.mxu0 0.0
  %4625 = vmatprep.subr.mxu0 0.0
  %4626 = vmatpush1.msra.mxu0 0.0
  %4627 = vmatprep.subr.mxu0 0.0
  %4628 = vmatpush1.msra.mxu0 0.0
  %4629 = vmatprep.subr.mxu0 0.0
  %4630 = vmatpush1.msra.mxu0 0.0
  %4631 = vmatprep.subr.mxu0 0.0
  %4632 = vmatpush1.msra.mxu0 0.0
  %4633 = vmatprep.subr.mxu0 0.0
  %4634 = vmatpush1.msra.mxu0 0.0
  %4635 = vmatprep.subr.mxu0 0.0
  %4636 = vmatpush1.msra.mxu0 0.0
  %4637 = vmatprep.subr.mxu0 0.0
  %4638 = vmatpush1.msra.mxu0 0.0
  %4639 = vmatprep.subr.mxu0 0.0
  %4640 = vmatpush1.msra.mxu0 0.0
  %4641 = vmatprep.subr.mxu0 0.0
  %4642 = vmatpush1.msra.mxu0 0.0
  %4643 = vmatprep.subr.mxu0 0.0
  %4644 = vmatpush1.msra.mxu0 0.0
  %4645 = vmatprep.subr.mxu0 0.0
  %4646 = vmatpush1.msra.mxu0 0.0
  %4647 = vmatprep.subr.mxu0 0.0
  %4648 = vmatpush1.msra.mxu0 0.0
  %4649 = vmatprep.subr.mxu0 0.0
  %4650 = vmatpush1.msra.mxu0 0.0
  %4651 = vmatprep.subr.mxu0 0.0
  %4652 = vmatpush1.msra.mxu0 0.0
  %4653 = vmatprep.subr.mxu0 0.0
  %4654 = vmatpush1.msra.mxu0 0.0
  %4655 = vmatprep.subr.mxu0 0.0
  %4656 = vmatpush1.msra.mxu0 0.0
  %4657 = vmatprep.subr.mxu0 0.0
  %4658 = vmatpush1.msra.mxu0 0.0
  %4659 = vmatprep.subr.mxu0 0.0
  %4660 = vmatpush1.msra.mxu0 0.0
  %4661 = vmatprep.subr.mxu0 0.0
  %4662 = vmatpush1.msra.mxu0 0.0
  %4663 = vmatprep.subr.mxu0 0.0
  %4664 = vmatpush1.msra.mxu0 0.0
  %4665 = vmatprep.subr.mxu0 0.0
  %4666 = vmatpush1.msra.mxu0 0.0
  %4667 = vmatprep.subr.mxu0 0.0
  %4668 = vmatpush1.msra.mxu0 0.0
  %4669 = vmatprep.subr.mxu0 0.0
  %4670 = vmatpush1.msra.mxu0 0.0
  %4671 = vmatprep.subr.mxu0 0.0
  %4672 = vmatpush1.msra.mxu0 0.0
  %4673 = vmatprep.subr.mxu0 0.0
  %4674 = vmatpush1.msra.mxu0 0.0
  %4675 = vmatprep.subr.mxu0 0.0
  %4676 = vmatpush1.msra.mxu0 0.0
  %4677 = vmatprep.mubr.f32.mxu0 0.0
  %4678 = vmatmul.mubr.f32.gmra.mrb[0].mxu0 %v4419
  %v4679 = vpop.f32.mrb[0].mxu0
  %v4680 = vadd.f32 0.0, %v4679
  %v4681 = vpop.f32.mrb[0].mxu0
  %4682 = vmatprep.mubr.f32.mxu0 0.0
  %4683 = vmatmul.mubr.f32.gmra.mrb[0].mxu0 %v4422
  %v4684 = vpop.f32.mrb[0].mxu0
  %v4685 = vadd.f32 0.0, %v4684
  %v4686 = vpop.f32.mrb[0].mxu0
  %4687 = vmatprep.mubr.f32.mxu0 0.0
  %4688 = vmatmul.mubr.f32.gmra.mrb[0].mxu0 %v4425
  %v4689 = vpop.f32.mrb[0].mxu0
  %v4690 = vadd.f32 0.0, %v4689
  %v4691 = vpop.f32.mrb[0].mxu0
  %4692 = vmatprep.mubr.f32.mxu0 0.0
  %4693 = vmatmul.mubr.f32.gmra.mrb[0].mxu0 %v4428
  %v4694 = vpop.f32.mrb[0].mxu0
  %v4695 = vadd.f32 0.0, %v4694
  %v4696 = vpop.f32.mrb[0].mxu0
  %4697 = vmatprep.mubr.f32.mxu0 0.0
  %4698 = vmatmul.mubr.f32.gmra.mrb[0].mxu0 %v4431
  %v4699 = vpop.f32.mrb[0].mxu0
  %v4700 = vadd.f32 0.0, %v4699
  %v4701 = vpop.f32.mrb[0].mxu0
  %4702 = vmatprep.mubr.f32.mxu0 0.0
  %4703 = vmatmul.mubr.f32.gmra.mrb[0].mxu0 %v4434
  %v4704 = vpop.f32.mrb[0].mxu0
  %v4705 = vadd.f32 0.0, %v4704
  %v4706 = vpop.f32.mrb[0].mxu0
  %4707 = vmatprep.mubr.f32.mxu0 0.0
  %4708 = vmatmul.mubr.f32.gmra.mrb[0].mxu0 %v4437
  %v4709 = vpop.f32.mrb[0].mxu0
  %v4710 = vadd.f32 0.0, %v4709
  %v4711 = vpop.f32.mrb[0].mxu0
  %4712 = vmatprep.mubr.f32.mxu0 0.0
  %4713 = vmatmul.mubr.f32.gmra.mrb[0].mxu0 %v4440
  %v4714 = vpop.f32.mrb[0].mxu0
  %v4715 = vadd.f32 0.0, %v4714
  %v4716 = vpop.f32.mrb[0].mxu0
  %4717 = vmatprep.mubr.f32.mxu0 0.0
  %4718 = vmatmul.mubr.f32.gmra.mrb[0].mxu0 %v4443
  %v4719 = vpop.f32.mrb[0].mxu0
  %v4720 = vadd.f32 0.0, %v4719
  %v4721 = vpop.f32.mrb[0].mxu0
  %4722 = vmatprep.mubr.f32.mxu0 0.0
  %4723 = vmatmul.mubr.f32.gmra.mrb[0].mxu0 %v4446
  %v4724 = vpop.f32.mrb[0].mxu0
  %v4725 = vadd.f32 0.0, %v4724
  %v4726 = vpop.f32.mrb[0].mxu0
  %4727 = vmatprep.mubr.f32.mxu0 0.0
  %4728 = vmatmul.mubr.f32.gmra.mrb[0].mxu0 %v4449
  %v4729 = vpop.f32.mrb[0].mxu0
  %v4730 = vadd.f32 0.0, %v4729
  %v4731 = vpop.f32.mrb[0].mxu0
  %4732 = vmatprep.mubr.f32.mxu0 0.0
  %4733 = vmatmul.mubr.f32.gmra.mrb[0].mxu0 %v4452
  %v4734 = vpop.f32.mrb[0].mxu0
  %v4735 = vadd.f32 0.0, %v4734
  %v4736 = vpop.f32.mrb[0].mxu0
  %4737 = vmatprep.mubr.f32.mxu0 0.0
  %4738 = vmatmul.mubr.f32.gmra.mrb[0].mxu0 %v4455
  %v4739 = vpop.f32.mrb[0].mxu0
  %v4740 = vadd.f32 0.0, %v4739
  %v4741 = vpop.f32.mrb[0].mxu0
  %4742 = vmatprep.mubr.f32.mxu0 0.0
  %4743 = vmatmul.mubr.f32.gmra.mrb[0].mxu0 %v4458
  %v4744 = vpop.f32.mrb[0].mxu0
  %v4745 = vadd.f32 0.0, %v4744
  %v4746 = vpop.f32.mrb[0].mxu0
  %4747 = vmatprep.mubr.f32.mxu0 0.0
  %4748 = vmatmul.mubr.f32.gmra.mrb[0].mxu0 %v4461
  %v4749 = vpop.f32.mrb[0].mxu0
  %v4750 = vadd.f32 0.0, %v4749
  %v4751 = vpop.f32.mrb[0].mxu0
  %4752 = vmatprep.mubr.f32.mxu0 0.0
  %4753 = vmatmul.mubr.f32.gmra.mrb[0].mxu0 %v4464
  %v4754 = vpop.f32.mrb[0].mxu0
  %v4755 = vadd.f32 0.0, %v4754
  %v4756 = vpop.f32.mrb[0].mxu0
  %4757 = vmatprep.mubr.f32.mxu0 0.0
  %4758 = vmatmul.mubr.f32.gmra.mrb[0].mxu0 %v4467
  %v4759 = vpop.f32.mrb[0].mxu0
  %v4760 = vadd.f32 0.0, %v4759
  %v4761 = vpop.f32.mrb[0].mxu0
  %4762 = vmatprep.mubr.f32.mxu0 0.0
  %4763 = vmatmul.mubr.f32.gmra.mrb[0].mxu0 %v4470
  %v4764 = vpop.f32.mrb[0].mxu0
  %v4765 = vadd.f32 0.0, %v4764
  %v4766 = vpop.f32.mrb[0].mxu0
  %4767 = vmatprep.mubr.f32.mxu0 0.0
  %4768 = vmatmul.mubr.f32.gmra.mrb[0].mxu0 %v4473
  %v4769 = vpop.f32.mrb[0].mxu0
  %v4770 = vadd.f32 0.0, %v4769
  %v4771 = vpop.f32.mrb[0].mxu0
  %4772 = vmatprep.mubr.f32.mxu0 0.0
  %4773 = vmatmul.mubr.f32.gmra.mrb[0].mxu0 %v4476
  %v4774 = vpop.f32.mrb[0].mxu0
  %v4775 = vadd.f32 0.0, %v4774
  %v4776 = vpop.f32.mrb[0].mxu0
  %4777 = vmatprep.mubr.f32.mxu0 0.0
  %4778 = vmatmul.mubr.f32.gmra.mrb[0].mxu0 %v4479
  %v4779 = vpop.f32.mrb[0].mxu0
  %v4780 = vadd.f32 0.0, %v4779
  %v4781 = vpop.f32.mrb[0].mxu0
  %4782 = vmatprep.mubr.f32.mxu0 0.0
  %4783 = vmatmul.mubr.f32.gmra.mrb[0].mxu0 %v4482
  %v4784 = vpop.f32.mrb[0].mxu0
  %v4785 = vadd.f32 0.0, %v4784
  %v4786 = vpop.f32.mrb[0].mxu0
  %4787 = vmatprep.mubr.f32.mxu0 0.0
  %4788 = vmatmul.mubr.f32.gmra.mrb[0].mxu0 %v4485
  %v4789 = vpop.f32.mrb[0].mxu0
  %v4790 = vadd.f32 0.0, %v4789
  %v4791 = vpop.f32.mrb[0].mxu0
  %4792 = vmatprep.mubr.f32.mxu0 0.0
  %4793 = vmatmul.mubr.f32.gmra.mrb[0].mxu0 %v4488
  %v4794 = vpop.f32.mrb[0].mxu0
  %v4795 = vadd.f32 0.0, %v4794
  %v4796 = vpop.f32.mrb[0].mxu0
  %4797 = vmatprep.mubr.f32.mxu0 0.0
  %4798 = vmatmul.mubr.f32.gmra.mrb[0].mxu0 %v4491
  %v4799 = vpop.f32.mrb[0].mxu0
  %v4800 = vadd.f32 0.0, %v4799
  %v4801 = vpop.f32.mrb[0].mxu0
  %4802 = vmatprep.mubr.f32.mxu0 0.0
  %4803 = vmatmul.mubr.f32.gmra.mrb[0].mxu0 %v4494
  %v4804 = vpop.f32.mrb[0].mxu0
  %v4805 = vadd.f32 0.0, %v4804
  %v4806 = vpop.f32.mrb[0].mxu0
  %4807 = vmatprep.mubr.f32.mxu0 0.0
  %4808 = vmatmul.mubr.f32.gmra.mrb[0].mxu0 %v4497
  %v4809 = vpop.f32.mrb[0].mxu0
  %v4810 = vadd.f32 0.0, %v4809
  %v4811 = vpop.f32.mrb[0].mxu0
  %4812 = vmatprep.mubr.f32.mxu0 0.0
  %4813 = vmatmul.mubr.f32.gmra.mrb[0].mxu0 %v4500
  %v4814 = vpop.f32.mrb[0].mxu0
  %v4815 = vadd.f32 0.0, %v4814
  %v4816 = vpop.f32.mrb[0].mxu0
  %4817 = vmatprep.mubr.f32.mxu0 0.0
  %4818 = vmatmul.mubr.f32.gmra.mrb[0].mxu0 %v4503
  %v4819 = vpop.f32.mrb[0].mxu0
  %v4820 = vadd.f32 0.0, %v4819
  %v4821 = vpop.f32.mrb[0].mxu0
  %4822 = vmatprep.mubr.f32.mxu0 0.0
  %4823 = vmatmul.mubr.f32.gmra.mrb[0].mxu0 %v4506
  %v4824 = vpop.f32.mrb[0].mxu0
  %v4825 = vadd.f32 0.0, %v4824
  %v4826 = vpop.f32.mrb[0].mxu0
  %4827 = vmatprep.mubr.f32.mxu0 0.0
  %4828 = vmatmul.mubr.f32.gmra.mrb[0].mxu0 %v4509
  %v4829 = vpop.f32.mrb[0].mxu0
  %v4830 = vadd.f32 0.0, %v4829
  %v4831 = vpop.f32.mrb[0].mxu0
  %4832 = vmatprep.mubr.f32.mxu0 0.0
  %4833 = vmatmul.mubr.f32.gmra.mrb[0].mxu0 %v4512
  %v4834 = vpop.f32.mrb[0].mxu0
  %v4835 = vadd.f32 0.0, %v4834
  %v4836 = vpop.f32.mrb[0].mxu0
  %4837 = vmatprep.mubr.f32.mxu0 0.0
  %4838 = vmatmul.mubr.f32.gmra.mrb[0].mxu0 %v4515
  %v4839 = vpop.f32.mrb[0].mxu0
  %v4840 = vadd.f32 0.0, %v4839
  %v4841 = vpop.f32.mrb[0].mxu0
  %4842 = vmatprep.mubr.f32.mxu0 0.0
  %4843 = vmatmul.mubr.f32.gmra.mrb[0].mxu0 %v4518
  %v4844 = vpop.f32.mrb[0].mxu0
  %v4845 = vadd.f32 0.0, %v4844
  %v4846 = vpop.f32.mrb[0].mxu0
  %4847 = vmatprep.mubr.f32.mxu0 0.0
  %4848 = vmatmul.mubr.f32.gmra.mrb[0].mxu0 %v4521
  %v4849 = vpop.f32.mrb[0].mxu0
  %v4850 = vadd.f32 0.0, %v4849
  %v4851 = vpop.f32.mrb[0].mxu0
  %4852 = vmatprep.mubr.f32.mxu0 0.0
  %4853 = vmatmul.mubr.f32.gmra.mrb[0].mxu0 %v4524
  %v4854 = vpop.f32.mrb[0].mxu0
  %v4855 = vadd.f32 0.0, %v4854
  %v4856 = vpop.f32.mrb[0].mxu0
  %4857 = vmatprep.mubr.f32.mxu0 0.0
  %4858 = vmatmul.mubr.f32.gmra.mrb[0].mxu0 %v4527
  %v4859 = vpop.f32.mrb[0].mxu0
  %v4860 = vadd.f32 0.0, %v4859
  %v4861 = vpop.f32.mrb[0].mxu0
  %4862 = vmatprep.mubr.f32.mxu0 0.0
  %4863 = vmatmul.mubr.f32.gmra.mrb[0].mxu0 %v4530
  %v4864 = vpop.f32.mrb[0].mxu0
  %v4865 = vadd.f32 0.0, %v4864
  %v4866 = vpop.f32.mrb[0].mxu0
  %4867 = vmatprep.mubr.f32.mxu0 0.0
  %4868 = vmatmul.mubr.f32.gmra.mrb[0].mxu0 %v4533
  %v4869 = vpop.f32.mrb[0].mxu0
  %v4870 = vadd.f32 0.0, %v4869
  %v4871 = vpop.f32.mrb[0].mxu0
  %4872 = vmatprep.mubr.f32.mxu0 0.0
  %4873 = vmatmul.mubr.f32.gmra.mrb[0].mxu0 %v4536
  %v4874 = vpop.f32.mrb[0].mxu0
  %v4875 = vadd.f32 0.0, %v4874
  %v4876 = vpop.f32.mrb[0].mxu0
  %4877 = vmatprep.mubr.f32.mxu0 0.0
  %4878 = vmatmul.mubr.f32.gmra.mrb[0].mxu0 %v4539
  %v4879 = vpop.f32.mrb[0].mxu0
  %v4880 = vadd.f32 0.0, %v4879
  %v4881 = vpop.f32.mrb[0].mxu0
  %4882 = vmatprep.mubr.f32.mxu0 0.0
  %4883 = vmatmul.mubr.f32.gmra.mrb[0].mxu0 %v4542
  %v4884 = vpop.f32.mrb[0].mxu0
  %v4885 = vadd.f32 0.0, %v4884
  %v4886 = vpop.f32.mrb[0].mxu0
  %4887 = vmatprep.mubr.f32.mxu0 0.0
  %4888 = vmatmul.mubr.f32.gmra.mrb[0].mxu0 %v4545
  %v4889 = vpop.f32.mrb[0].mxu0
  %v4890 = vadd.f32 0.0, %v4889
  %v4891 = vpop.f32.mrb[0].mxu0
  %4892 = vmatprep.mubr.f32.mxu0 0.0
  %4893 = vmatmul.mubr.f32.gmra.mrb[0].mxu0 %v4548
  %v4894 = vpop.f32.mrb[0].mxu0
  %v4895 = vadd.f32 0.0, %v4894
  %v4896 = vpop.f32.mrb[0].mxu0
  %4897 = vmatprep.mubr.f32.mxu0 0.0
  %4898 = vmatmul.mubr.f32.gmra.mrb[0].mxu0 %v4551
  %v4899 = vpop.f32.mrb[0].mxu0
  %v4900 = vadd.f32 0.0, %v4899
  %v4901 = vpop.f32.mrb[0].mxu0
  %4902 = vmatprep.mubr.f32.mxu0 0.0
  %4903 = vmatmul.mubr.f32.gmra.mrb[0].mxu0 %v4554
  %v4904 = vpop.f32.mrb[0].mxu0
  %v4905 = vadd.f32 0.0, %v4904
  %v4906 = vpop.f32.mrb[0].mxu0
  %4907 = vmatprep.mubr.f32.mxu0 0.0
  %4908 = vmatmul.mubr.f32.gmra.mrb[0].mxu0 %v4557
  %v4909 = vpop.f32.mrb[0].mxu0
  %v4910 = vadd.f32 0.0, %v4909
  %v4911 = vpop.f32.mrb[0].mxu0
  %4912 = vmatprep.mubr.f32.mxu0 0.0
  %4913 = vmatmul.mubr.f32.gmra.mrb[0].mxu0 %v4560
  %v4914 = vpop.f32.mrb[0].mxu0
  %v4915 = vadd.f32 0.0, %v4914
  %v4916 = vpop.f32.mrb[0].mxu0
  %4917 = vmatprep.mubr.f32.mxu0 0.0
  %4918 = vmatmul.mubr.f32.gmra.mrb[0].mxu0 %v4563
  %v4919 = vpop.f32.mrb[0].mxu0
  %v4920 = vadd.f32 0.0, %v4919
  %v4921 = vpop.f32.mrb[0].mxu0
  %4922 = vmatprep.mubr.f32.mxu0 0.0
  %4923 = vmatmul.mubr.f32.gmra.mrb[0].mxu0 %v4566
  %v4924 = vpop.f32.mrb[0].mxu0
  %v4925 = vadd.f32 0.0, %v4924
  %v4926 = vpop.f32.mrb[0].mxu0
  %4927 = vmatprep.mubr.f32.mxu0 0.0
  %4928 = vmatmul.mubr.f32.gmra.mrb[0].mxu0 %v4569
  %v4929 = vpop.f32.mrb[0].mxu0
  %v4930 = vadd.f32 0.0, %v4929
  %v4931 = vpop.f32.mrb[0].mxu0
  %4932 = vmatprep.mubr.f32.mxu0 0.0
  %4933 = vmatmul.mubr.f32.gmra.mrb[0].mxu0 %v4572
  %v4934 = vpop.f32.mrb[0].mxu0
  %v4935 = vadd.f32 0.0, %v4934
  %v4936 = vpop.f32.mrb[0].mxu0
  %4937 = vmatprep.mubr.f32.mxu0 0.0
  %4938 = vmatmul.mubr.f32.gmra.mrb[0].mxu0 %v4575
  %v4939 = vpop.f32.mrb[0].mxu0
  %v4940 = vadd.f32 0.0, %v4939
  %v4941 = vpop.f32.mrb[0].mxu0
  %4942 = vmatprep.mubr.f32.mxu0 0.0
  %4943 = vmatmul.mubr.f32.gmra.mrb[0].mxu0 %v4578
  %v4944 = vpop.f32.mrb[0].mxu0
  %v4945 = vadd.f32 0.0, %v4944
  %v4946 = vpop.f32.mrb[0].mxu0
  %4947 = vmatprep.mubr.f32.mxu0 0.0
  %4948 = vmatmul.mubr.f32.gmra.mrb[0].mxu0 %v4581
  %v4949 = vpop.f32.mrb[0].mxu0
  %v4950 = vadd.f32 0.0, %v4949
  %v4951 = vpop.f32.mrb[0].mxu0
  %4952 = vmatprep.mubr.f32.mxu0 0.0
  %4953 = vmatmul.mubr.f32.gmra.mrb[0].mxu0 %v4584
  %v4954 = vpop.f32.mrb[0].mxu0
  %v4955 = vadd.f32 0.0, %v4954
  %v4956 = vpop.f32.mrb[0].mxu0
  %4957 = vmatprep.mubr.f32.mxu0 0.0
  %4958 = vmatmul.mubr.f32.gmra.mrb[0].mxu0 %v4587
  %v4959 = vpop.f32.mrb[0].mxu0
  %v4960 = vadd.f32 0.0, %v4959
  %v4961 = vpop.f32.mrb[0].mxu0
  %4962 = vmatprep.mubr.f32.mxu0 0.0
  %4963 = vmatmul.mubr.f32.gmra.mrb[0].mxu0 %v4590
  %v4964 = vpop.f32.mrb[0].mxu0
  %v4965 = vadd.f32 0.0, %v4964
  %v4966 = vpop.f32.mrb[0].mxu0
  %4967 = vmatprep.mubr.f32.mxu0 0.0
  %4968 = vmatmul.mubr.f32.gmra.mrb[0].mxu0 %v4593
  %v4969 = vpop.f32.mrb[0].mxu0
  %v4970 = vadd.f32 0.0, %v4969
  %v4971 = vpop.f32.mrb[0].mxu0
  %4972 = vmatprep.mubr.f32.mxu0 0.0
  %4973 = vmatmul.mubr.f32.gmra.mrb[0].mxu0 %v4596
  %v4974 = vpop.f32.mrb[0].mxu0
  %v4975 = vadd.f32 0.0, %v4974
  %v4976 = vpop.f32.mrb[0].mxu0
  %4977 = vmatprep.mubr.f32.mxu0 0.0
  %4978 = vmatmul.mubr.f32.gmra.mrb[0].mxu0 %v4599
  %v4979 = vpop.f32.mrb[0].mxu0
  %v4980 = vadd.f32 0.0, %v4979
  %v4981 = vpop.f32.mrb[0].mxu0
  %4982 = vmatprep.mubr.f32.mxu0 0.0
  %4983 = vmatmul.mubr.f32.gmra.mrb[0].mxu0 %v4602
  %v4984 = vpop.f32.mrb[0].mxu0
  %v4985 = vadd.f32 0.0, %v4984
  %v4986 = vpop.f32.mrb[0].mxu0
  %4987 = vmatprep.mubr.f32.mxu0 0.0
  %4988 = vmatmul.mubr.f32.gmra.mrb[0].mxu0 %v4605
  %v4989 = vpop.f32.mrb[0].mxu0
  %v4990 = vadd.f32 0.0, %v4989
  %v4991 = vpop.f32.mrb[0].mxu0
  %4992 = vmatprep.mubr.f32.mxu0 0.0
  %4993 = vmatmul.mubr.f32.gmra.mrb[0].mxu0 %v4608
  %v4994 = vpop.f32.mrb[0].mxu0
  %v4995 = vadd.f32 0.0, %v4994
  %v4996 = vpop.f32.mrb[0].mxu0
  %4997 = vdwg.mxu0
  %v4998 = vadd.f32 %v4352, %v4680
  %v4999 = vadd.f32 %v4353, %v4685
  %v5000 = vadd.f32 %v4354, %v4690
  %v5001 = vadd.f32 %v4355, %v4695
  %v5002 = vadd.f32 %v4356, %v4700
  %v5003 = vadd.f32 %v4357, %v4705
  %v5004 = vadd.f32 %v4358, %v4710
  %v5005 = vadd.f32 %v4359, %v4715
  %v5006 = vadd.f32 %v4360, %v4720
  %v5007 = vadd.f32 %v4361, %v4725
  %v5008 = vadd.f32 %v4362, %v4730
  %v5009 = vadd.f32 %v4363, %v4735
  %v5010 = vadd.f32 %v4364, %v4740
  %v5011 = vadd.f32 %v4365, %v4745
  %v5012 = vadd.f32 %v4366, %v4750
  %v5013 = vadd.f32 %v4367, %v4755
  %v5014 = vadd.f32 %v4368, %v4760
  %v5015 = vadd.f32 %v4369, %v4765
  %v5016 = vadd.f32 %v4370, %v4770
  %v5017 = vadd.f32 %v4371, %v4775
  %v5018 = vadd.f32 %v4372, %v4780
  %v5019 = vadd.f32 %v4373, %v4785
  %v5020 = vadd.f32 %v4374, %v4790
  %v5021 = vadd.f32 %v4375, %v4795
  %v5022 = vadd.f32 %v4376, %v4800
  %v5023 = vadd.f32 %v4377, %v4805
  %v5024 = vadd.f32 %v4378, %v4810
  %v5025 = vadd.f32 %v4379, %v4815
  %v5026 = vadd.f32 %v4380, %v4820
  %v5027 = vadd.f32 %v4381, %v4825
  %v5028 = vadd.f32 %v4382, %v4830
  %v5029 = vadd.f32 %v4383, %v4835
  %v5030 = vadd.f32 %v4384, %v4840
  %v5031 = vadd.f32 %v4385, %v4845
  %v5032 = vadd.f32 %v4386, %v4850
  %v5033 = vadd.f32 %v4387, %v4855
  %v5034 = vadd.f32 %v4388, %v4860
  %v5035 = vadd.f32 %v4389, %v4865
  %v5036 = vadd.f32 %v4390, %v4870
  %v5037 = vadd.f32 %v4391, %v4875
  %v5038 = vadd.f32 %v4392, %v4880
  %v5039 = vadd.f32 %v4393, %v4885
  %v5040 = vadd.f32 %v4394, %v4890
  %v5041 = vadd.f32 %v4395, %v4895
  %v5042 = vadd.f32 %v4396, %v4900
  %v5043 = vadd.f32 %v4397, %v4905
  %v5044 = vadd.f32 %v4398, %v4910
  %v5045 = vadd.f32 %v4399, %v4915
  %v5046 = vadd.f32 %v4400, %v4920
  %v5047 = vadd.f32 %v4401, %v4925
  %v5048 = vadd.f32 %v4402, %v4930
  %v5049 = vadd.f32 %v4403, %v4935
  %v5050 = vadd.f32 %v4404, %v4940
  %v5051 = vadd.f32 %v4405, %v4945
  %v5052 = vadd.f32 %v4406, %v4950
  %v5053 = vadd.f32 %v4407, %v4955
  %v5054 = vadd.f32 %v4408, %v4960
  %v5055 = vadd.f32 %v4409, %v4965
  %v5056 = vadd.f32 %v4410, %v4970
  %v5057 = vadd.f32 %v4411, %v4975
  %v5058 = vadd.f32 %v4412, %v4980
  %v5059 = vadd.f32 %v4413, %v4985
  %v5060 = vadd.f32 %v4414, %v4990
  %v5061 = vadd.f32 %v4415, %v4995
  %5062 = vst [vmem:[#allocation2] sm:$0xff] %v4998
  %5063 = vst [vmem:[#allocation2 + $0x8] sm:$0xff] %v4999
  %5064 = vst [vmem:[#allocation2 + $0x10] sm:$0xff] %v5000
  %5065 = vst [vmem:[#allocation2 + $0x18] sm:$0xff] %v5001
  %5066 = vst [vmem:[#allocation2 + $0x20] sm:$0xff] %v5002
  %5067 = vst [vmem:[#allocation2 + $0x28] sm:$0xff] %v5003
  %5068 = vst [vmem:[#allocation2 + $0x30] sm:$0xff] %v5004
  %5069 = vst [vmem:[#allocation2 + $0x38] sm:$0xff] %v5005
  %5070 = vst [vmem:[#allocation2 + $0x40] sm:$0xff] %v5006
  %5071 = vst [vmem:[#allocation2 + $0x48] sm:$0xff] %v5007
  %5072 = vst [vmem:[#allocation2 + $0x50] sm:$0xff] %v5008
  %5073 = vst [vmem:[#allocation2 + $0x58] sm:$0xff] %v5009
  %5074 = vst [vmem:[#allocation2 + $0x60] sm:$0xff] %v5010
  %5075 = vst [vmem:[#allocation2 + $0x68] sm:$0xff] %v5011
  %5076 = vst [vmem:[#allocation2 + $0x70] sm:$0xff] %v5012
  %5077 = vst [vmem:[#allocation2 + $0x78] sm:$0xff] %v5013
  %5078 = vst [vmem:[#allocation2 + $0x80] sm:$0xff] %v5014
  %5079 = vst [vmem:[#allocation2 + $0x88] sm:$0xff] %v5015
  %5080 = vst [vmem:[#allocation2 + $0x90] sm:$0xff] %v5016
  %5081 = vst [vmem:[#allocation2 + $0x98] sm:$0xff] %v5017
  %5082 = vst [vmem:[#allocation2 + $0xa0] sm:$0xff] %v5018
  %5083 = vst [vmem:[#allocation2 + $0xa8] sm:$0xff] %v5019
  %5084 = vst [vmem:[#allocation2 + $0xb0] sm:$0xff] %v5020
  %5085 = vst [vmem:[#allocation2 + $0xb8] sm:$0xff] %v5021
  %5086 = vst [vmem:[#allocation2 + $0xc0] sm:$0xff] %v5022
  %5087 = vst [vmem:[#allocation2 + $0xc8] sm:$0xff] %v5023
  %5088 = vst [vmem:[#allocation2 + $0xd0] sm:$0xff] %v5024
  %5089 = vst [vmem:[#allocation2 + $0xd8] sm:$0xff] %v5025
  %5090 = vst [vmem:[#allocation2 + $0xe0] sm:$0xff] %v5026
  %5091 = vst [vmem:[#allocation2 + $0xe8] sm:$0xff] %v5027
  %5092 = vst [vmem:[#allocation2 + $0xf0] sm:$0xff] %v5028
  %5093 = vst [vmem:[#allocation2 + $0xf8] sm:$0xff] %v5029
  %5094 = vst [vmem:[#allocation2 + $0x100] sm:$0xff] %v5030
  %5095 = vst [vmem:[#allocation2 + $0x108] sm:$0xff] %v5031
  %5096 = vst [vmem:[#allocation2 + $0x110] sm:$0xff] %v5032
  %5097 = vst [vmem:[#allocation2 + $0x118] sm:$0xff] %v5033
  %5098 = vst [vmem:[#allocation2 + $0x120] sm:$0xff] %v5034
  %5099 = vst [vmem:[#allocation2 + $0x128] sm:$0xff] %v5035
  %5100 = vst [vmem:[#allocation2 + $0x130] sm:$0xff] %v5036
  %5101 = vst [vmem:[#allocation2 + $0x138] sm:$0xff] %v5037
  %5102 = vst [vmem:[#allocation2 + $0x140] sm:$0xff] %v5038
  %5103 = vst [vmem:[#allocation2 + $0x148] sm:$0xff] %v5039
  %5104 = vst [vmem:[#allocation2 + $0x150] sm:$0xff] %v5040
  %5105 = vst [vmem:[#allocation2 + $0x158] sm:$0xff] %v5041
  %5106 = vst [vmem:[#allocation2 + $0x160] sm:$0xff] %v5042
  %5107 = vst [vmem:[#allocation2 + $0x168] sm:$0xff] %v5043
  %5108 = vst [vmem:[#allocation2 + $0x170] sm:$0xff] %v5044
  %5109 = vst [vmem:[#allocation2 + $0x178] sm:$0xff] %v5045
  %5110 = vst [vmem:[#allocation2 + $0x180] sm:$0xff] %v5046
  %5111 = vst [vmem:[#allocation2 + $0x188] sm:$0xff] %v5047
  %5112 = vst [vmem:[#allocation2 + $0x190] sm:$0xff] %v5048
  %5113 = vst [vmem:[#allocation2 + $0x198] sm:$0xff] %v5049
  %5114 = vst [vmem:[#allocation2 + $0x1a0] sm:$0xff] %v5050
  %5115 = vst [vmem:[#allocation2 + $0x1a8] sm:$0xff] %v5051
  %5116 = vst [vmem:[#allocation2 + $0x1b0] sm:$0xff] %v5052
  %5117 = vst [vmem:[#allocation2 + $0x1b8] sm:$0xff] %v5053
  %5118 = vst [vmem:[#allocation2 + $0x1c0] sm:$0xff] %v5054
  %5119 = vst [vmem:[#allocation2 + $0x1c8] sm:$0xff] %v5055
  %5120 = vst [vmem:[#allocation2 + $0x1d0] sm:$0xff] %v5056
  %5121 = vst [vmem:[#allocation2 + $0x1d8] sm:$0xff] %v5057
  %5122 = vst [vmem:[#allocation2 + $0x1e0] sm:$0xff] %v5058
  %5123 = vst [vmem:[#allocation2 + $0x1e8] sm:$0xff] %v5059
  %5124 = vst [vmem:[#allocation2 + $0x1f0] sm:$0xff] %v5060
  %5125 = vst [vmem:[#allocation2 + $0x1f8] sm:$0xff] %v5061
  %s5126 = scalar_lea.vmem %s0, 48
  %v5127 = vld [vmem:[%s5126] sm:$0xff]
  %v5128 = vld [vmem:[%s5126 + $0x8] sm:$0xff]
  %v5129 = vld [vmem:[%s5126 + $0x18] sm:$0xff]
  %v5130 = vld [vmem:[%s5126 + $0x20] sm:$0xff]
  %v5131 = vld [vmem:[%s5126 + $0x30] sm:$0xff]
  %v5132 = vld [vmem:[%s5126 + $0x38] sm:$0xff]
  %v5133 = vld [vmem:[%s5126 + $0x48] sm:$0xff]
  %v5134 = vld [vmem:[%s5126 + $0x50] sm:$0xff]
  %v5135 = vld [vmem:[%s5126 + $0x60] sm:$0xff]
  %v5136 = vld [vmem:[%s5126 + $0x68] sm:$0xff]
  %v5137 = vld [vmem:[%s5126 + $0x78] sm:$0xff]
  %v5138 = vld [vmem:[%s5126 + $0x80] sm:$0xff]
  %v5139 = vld [vmem:[%s5126 + $0x90] sm:$0xff]
  %v5140 = vld [vmem:[%s5126 + $0x98] sm:$0xff]
  %v5141 = vld [vmem:[%s5126 + $0xa8] sm:$0xff]
  %v5142 = vld [vmem:[%s5126 + $0xb0] sm:$0xff]
  %v5143 = vld [vmem:[%s5126 + $0xc0] sm:$0xff]
  %v5144 = vld [vmem:[%s5126 + $0xc8] sm:$0xff]
  %v5145 = vld [vmem:[%s5126 + $0xd8] sm:$0xff]
  %v5146 = vld [vmem:[%s5126 + $0xe0] sm:$0xff]
  %v5147 = vld [vmem:[%s5126 + $0xf0] sm:$0xff]
  %v5148 = vld [vmem:[%s5126 + $0xf8] sm:$0xff]
  %v5149 = vld [vmem:[%s5126 + $0x108] sm:$0xff]
  %v5150 = vld [vmem:[%s5126 + $0x110] sm:$0xff]
  %v5151 = vld [vmem:[%s5126 + $0x120] sm:$0xff]
  %v5152 = vld [vmem:[%s5126 + $0x128] sm:$0xff]
  %v5153 = vld [vmem:[%s5126 + $0x138] sm:$0xff]
  %v5154 = vld [vmem:[%s5126 + $0x140] sm:$0xff]
  %v5155 = vld [vmem:[%s5126 + $0x150] sm:$0xff]
  %v5156 = vld [vmem:[%s5126 + $0x158] sm:$0xff]
  %v5157 = vld [vmem:[%s5126 + $0x168] sm:$0xff]
  %v5158 = vld [vmem:[%s5126 + $0x170] sm:$0xff]
  %v5159 = vld [vmem:[%s5126 + $0x1b0] sm:$0xff]
  %v5160 = vld [vmem:[%s5126 + $0x1b8] sm:$0xff]
  %v5161 = vld [vmem:[%s5126 + $0x1c8] sm:$0xff]
  %v5162 = vld [vmem:[%s5126 + $0x1d0] sm:$0xff]
  %v5163 = vld [vmem:[%s5126 + $0x1e0] sm:$0xff]
  %v5164 = vld [vmem:[%s5126 + $0x1e8] sm:$0xff]
  %v5165 = vld [vmem:[%s5126 + $0x1f8] sm:$0xff]
  %v5166 = vld [vmem:[%s5126 + $0x200] sm:$0xff]
  %v5167 = vld [vmem:[%s5126 + $0x210] sm:$0xff]
  %v5168 = vld [vmem:[%s5126 + $0x218] sm:$0xff]
  %v5169 = vld [vmem:[%s5126 + $0x228] sm:$0xff]
  %v5170 = vld [vmem:[%s5126 + $0x230] sm:$0xff]
  %v5171 = vld [vmem:[%s5126 + $0x240] sm:$0xff]
  %v5172 = vld [vmem:[%s5126 + $0x248] sm:$0xff]
  %v5173 = vld [vmem:[%s5126 + $0x258] sm:$0xff]
  %v5174 = vld [vmem:[%s5126 + $0x260] sm:$0xff]
  %v5175 = vld [vmem:[%s5126 + $0x270] sm:$0xff]
  %v5176 = vld [vmem:[%s5126 + $0x278] sm:$0xff]
  %v5177 = vld [vmem:[%s5126 + $0x288] sm:$0xff]
  %v5178 = vld [vmem:[%s5126 + $0x290] sm:$0xff]
  %v5179 = vld [vmem:[%s5126 + $0x2a0] sm:$0xff]
  %v5180 = vld [vmem:[%s5126 + $0x2a8] sm:$0xff]
  %v5181 = vld [vmem:[%s5126 + $0x2b8] sm:$0xff]
  %v5182 = vld [vmem:[%s5126 + $0x2c0] sm:$0xff]
  %v5183 = vld [vmem:[%s5126 + $0x2d0] sm:$0xff]
  %v5184 = vld [vmem:[%s5126 + $0x2d8] sm:$0xff]
  %v5185 = vld [vmem:[%s5126 + $0x2e8] sm:$0xff]
  %v5186 = vld [vmem:[%s5126 + $0x2f0] sm:$0xff]
  %v5187 = vld [vmem:[%s5126 + $0x300] sm:$0xff]
  %v5188 = vld [vmem:[%s5126 + $0x308] sm:$0xff]
  %v5189 = vld [vmem:[%s5126 + $0x318] sm:$0xff]
  %v5190 = vld [vmem:[%s5126 + $0x320] sm:$0xff]
  %v5191 = vld [vmem:[#allocation2] sm:$0xff]
  %v5192 = vld [vmem:[#allocation2 + $0x8] sm:$0xff]
  %v5193 = vld [vmem:[#allocation2 + $0x10] sm:$0xff]
  %v5194 = vld [vmem:[#allocation2 + $0x18] sm:$0xff]
  %v5195 = vld [vmem:[#allocation2 + $0x20] sm:$0xff]
  %v5196 = vld [vmem:[#allocation2 + $0x28] sm:$0xff]
  %v5197 = vld [vmem:[#allocation2 + $0x30] sm:$0xff]
  %v5198 = vld [vmem:[#allocation2 + $0x38] sm:$0xff]
  %v5199 = vld [vmem:[#allocation2 + $0x40] sm:$0xff]
  %v5200 = vld [vmem:[#allocation2 + $0x48] sm:$0xff]
  %v5201 = vld [vmem:[#allocation2 + $0x50] sm:$0xff]
  %v5202 = vld [vmem:[#allocation2 + $0x58] sm:$0xff]
  %v5203 = vld [vmem:[#allocation2 + $0x60] sm:$0xff]
  %v5204 = vld [vmem:[#allocation2 + $0x68] sm:$0xff]
  %v5205 = vld [vmem:[#allocation2 + $0x70] sm:$0xff]
  %v5206 = vld [vmem:[#allocation2 + $0x78] sm:$0xff]
  %v5207 = vld [vmem:[#allocation2 + $0x80] sm:$0xff]
  %v5208 = vld [vmem:[#allocation2 + $0x88] sm:$0xff]
  %v5209 = vld [vmem:[#allocation2 + $0x90] sm:$0xff]
  %v5210 = vld [vmem:[#allocation2 + $0x98] sm:$0xff]
  %v5211 = vld [vmem:[#allocation2 + $0xa0] sm:$0xff]
  %v5212 = vld [vmem:[#allocation2 + $0xa8] sm:$0xff]
  %v5213 = vld [vmem:[#allocation2 + $0xb0] sm:$0xff]
  %v5214 = vld [vmem:[#allocation2 + $0xb8] sm:$0xff]
  %v5215 = vld [vmem:[#allocation2 + $0xc0] sm:$0xff]
  %v5216 = vld [vmem:[#allocation2 + $0xc8] sm:$0xff]
  %v5217 = vld [vmem:[#allocation2 + $0xd0] sm:$0xff]
  %v5218 = vld [vmem:[#allocation2 + $0xd8] sm:$0xff]
  %v5219 = vld [vmem:[#allocation2 + $0xe0] sm:$0xff]
  %v5220 = vld [vmem:[#allocation2 + $0xe8] sm:$0xff]
  %v5221 = vld [vmem:[#allocation2 + $0xf0] sm:$0xff]
  %v5222 = vld [vmem:[#allocation2 + $0xf8] sm:$0xff]
  %v5223 = vld [vmem:[#allocation2 + $0x100] sm:$0xff]
  %v5224 = vld [vmem:[#allocation2 + $0x108] sm:$0xff]
  %v5225 = vld [vmem:[#allocation2 + $0x110] sm:$0xff]
  %v5226 = vld [vmem:[#allocation2 + $0x118] sm:$0xff]
  %v5227 = vld [vmem:[#allocation2 + $0x120] sm:$0xff]
  %v5228 = vld [vmem:[#allocation2 + $0x128] sm:$0xff]
  %v5229 = vld [vmem:[#allocation2 + $0x130] sm:$0xff]
  %v5230 = vld [vmem:[#allocation2 + $0x138] sm:$0xff]
  %v5231 = vld [vmem:[#allocation2 + $0x140] sm:$0xff]
  %v5232 = vld [vmem:[#allocation2 + $0x148] sm:$0xff]
  %v5233 = vld [vmem:[#allocation2 + $0x150] sm:$0xff]
  %v5234 = vld [vmem:[#allocation2 + $0x158] sm:$0xff]
  %v5235 = vld [vmem:[#allocation2 + $0x160] sm:$0xff]
  %v5236 = vld [vmem:[#allocation2 + $0x168] sm:$0xff]
  %v5237 = vld [vmem:[#allocation2 + $0x170] sm:$0xff]
  %v5238 = vld [vmem:[#allocation2 + $0x178] sm:$0xff]
  %v5239 = vld [vmem:[#allocation2 + $0x180] sm:$0xff]
  %v5240 = vld [vmem:[#allocation2 + $0x188] sm:$0xff]
  %v5241 = vld [vmem:[#allocation2 + $0x190] sm:$0xff]
  %v5242 = vld [vmem:[#allocation2 + $0x198] sm:$0xff]
  %v5243 = vld [vmem:[#allocation2 + $0x1a0] sm:$0xff]
  %v5244 = vld [vmem:[#allocation2 + $0x1a8] sm:$0xff]
  %v5245 = vld [vmem:[#allocation2 + $0x1b0] sm:$0xff]
  %v5246 = vld [vmem:[#allocation2 + $0x1b8] sm:$0xff]
  %v5247 = vld [vmem:[#allocation2 + $0x1c0] sm:$0xff]
  %v5248 = vld [vmem:[#allocation2 + $0x1c8] sm:$0xff]
  %v5249 = vld [vmem:[#allocation2 + $0x1d0] sm:$0xff]
  %v5250 = vld [vmem:[#allocation2 + $0x1d8] sm:$0xff]
  %v5251 = vld [vmem:[#allocation2 + $0x1e0] sm:$0xff]
  %v5252 = vld [vmem:[#allocation2 + $0x1e8] sm:$0xff]
  %v5253 = vld [vmem:[#allocation2 + $0x1f0] sm:$0xff]
  %v5254 = vld [vmem:[#allocation2 + $0x1f8] sm:$0xff]
  %s5255 = scalar_lea.vmem %s1, 24
  %v5256 = vld [vmem:[%s5255] sm:$0xf]
  %v5258 = vsel %vm225, %v5127, 0
  %v5261 = vsel %vm225, %v5128, 0
  %v5264 = vsel %vm225, %v5129, 0
  %v5267 = vsel %vm225, %v5130, 0
  %v5270 = vsel %vm225, %v5131, 0
  %v5273 = vsel %vm225, %v5132, 0
  %v5276 = vsel %vm225, %v5133, 0
  %v5279 = vsel %vm225, %v5134, 0
  %v5282 = vsel %vm225, %v5135, 0
  %v5285 = vsel %vm225, %v5136, 0
  %v5288 = vsel %vm225, %v5137, 0
  %v5291 = vsel %vm225, %v5138, 0
  %v5294 = vsel %vm225, %v5139, 0
  %v5297 = vsel %vm225, %v5140, 0
  %v5300 = vsel %vm225, %v5141, 0
  %v5303 = vsel %vm225, %v5142, 0
  %v5306 = vsel %vm225, %v5143, 0
  %v5309 = vsel %vm225, %v5144, 0
  %v5312 = vsel %vm225, %v5145, 0
  %v5315 = vsel %vm225, %v5146, 0
  %v5318 = vsel %vm225, %v5147, 0
  %v5321 = vsel %vm225, %v5148, 0
  %v5324 = vsel %vm225, %v5149, 0
  %v5327 = vsel %vm225, %v5150, 0
  %v5330 = vsel %vm225, %v5151, 0
  %v5333 = vsel %vm225, %v5152, 0
  %v5336 = vsel %vm225, %v5153, 0
  %v5339 = vsel %vm225, %v5154, 0
  %v5342 = vsel %vm225, %v5155, 0
  %v5345 = vsel %vm225, %v5156, 0
  %v5348 = vsel %vm225, %v5157, 0
  %v5351 = vsel %vm225, %v5158, 0
  %v5354 = vsel %vm225, %v5159, 0
  %v5357 = vsel %vm225, %v5160, 0
  %v5360 = vsel %vm225, %v5161, 0
  %v5363 = vsel %vm225, %v5162, 0
  %v5366 = vsel %vm225, %v5163, 0
  %v5369 = vsel %vm225, %v5164, 0
  %v5372 = vsel %vm225, %v5165, 0
  %v5375 = vsel %vm225, %v5166, 0
  %v5378 = vsel %vm225, %v5167, 0
  %v5381 = vsel %vm225, %v5168, 0
  %v5384 = vsel %vm225, %v5169, 0
  %v5387 = vsel %vm225, %v5170, 0
  %v5390 = vsel %vm225, %v5171, 0
  %v5393 = vsel %vm225, %v5172, 0
  %v5396 = vsel %vm225, %v5173, 0
  %v5399 = vsel %vm225, %v5174, 0
  %v5402 = vsel %vm225, %v5175, 0
  %v5405 = vsel %vm225, %v5176, 0
  %v5408 = vsel %vm225, %v5177, 0
  %v5411 = vsel %vm225, %v5178, 0
  %v5414 = vsel %vm225, %v5179, 0
  %v5417 = vsel %vm225, %v5180, 0
  %v5420 = vsel %vm225, %v5181, 0
  %v5423 = vsel %vm225, %v5182, 0
  %v5426 = vsel %vm225, %v5183, 0
  %v5429 = vsel %vm225, %v5184, 0
  %v5432 = vsel %vm225, %v5185, 0
  %v5435 = vsel %vm225, %v5186, 0
  %v5438 = vsel %vm225, %v5187, 0
  %v5441 = vsel %vm225, %v5188, 0
  %v5444 = vsel %vm225, %v5189, 0
  %v5447 = vsel %vm225, %v5190, 0
  %v5450 = vsel %vm418, %v5256, 0
  %5452 = vmatprep.subr.mxu0 0.0
  %5453 = vmatpush1.msra.mxu0 %v5450
  %5454 = vmatprep.subr.mxu0 0.0
  %5455 = vmatpush1.msra.mxu0 0.0
  %5456 = vmatprep.subr.mxu0 0.0
  %5457 = vmatpush1.msra.mxu0 0.0
  %5458 = vmatprep.subr.mxu0 0.0
  %5459 = vmatpush1.msra.mxu0 0.0
  %5460 = vmatprep.subr.mxu0 0.0
  %5461 = vmatpush1.msra.mxu0 0.0
  %5462 = vmatprep.subr.mxu0 0.0
  %5463 = vmatpush1.msra.mxu0 0.0
  %5464 = vmatprep.subr.mxu0 0.0
  %5465 = vmatpush1.msra.mxu0 0.0
  %5466 = vmatprep.subr.mxu0 0.0
  %5467 = vmatpush1.msra.mxu0 0.0
  %5468 = vmatprep.subr.mxu0 0.0
  %5469 = vmatpush1.msra.mxu0 0.0
  %5470 = vmatprep.subr.mxu0 0.0
  %5471 = vmatpush1.msra.mxu0 0.0
  %5472 = vmatprep.subr.mxu0 0.0
  %5473 = vmatpush1.msra.mxu0 0.0
  %5474 = vmatprep.subr.mxu0 0.0
  %5475 = vmatpush1.msra.mxu0 0.0
  %5476 = vmatprep.subr.mxu0 0.0
  %5477 = vmatpush1.msra.mxu0 0.0
  %5478 = vmatprep.subr.mxu0 0.0
  %5479 = vmatpush1.msra.mxu0 0.0
  %5480 = vmatprep.subr.mxu0 0.0
  %5481 = vmatpush1.msra.mxu0 0.0
  %5482 = vmatprep.subr.mxu0 0.0
  %5483 = vmatpush1.msra.mxu0 0.0
  %5484 = vmatprep.subr.mxu0 0.0
  %5485 = vmatpush1.msra.mxu0 0.0
  %5486 = vmatprep.subr.mxu0 0.0
  %5487 = vmatpush1.msra.mxu0 0.0
  %5488 = vmatprep.subr.mxu0 0.0
  %5489 = vmatpush1.msra.mxu0 0.0
  %5490 = vmatprep.subr.mxu0 0.0
  %5491 = vmatpush1.msra.mxu0 0.0
  %5492 = vmatprep.subr.mxu0 0.0
  %5493 = vmatpush1.msra.mxu0 0.0
  %5494 = vmatprep.subr.mxu0 0.0
  %5495 = vmatpush1.msra.mxu0 0.0
  %5496 = vmatprep.subr.mxu0 0.0
  %5497 = vmatpush1.msra.mxu0 0.0
  %5498 = vmatprep.subr.mxu0 0.0
  %5499 = vmatpush1.msra.mxu0 0.0
  %5500 = vmatprep.subr.mxu0 0.0
  %5501 = vmatpush1.msra.mxu0 0.0
  %5502 = vmatprep.subr.mxu0 0.0
  %5503 = vmatpush1.msra.mxu0 0.0
  %5504 = vmatprep.subr.mxu0 0.0
  %5505 = vmatpush1.msra.mxu0 0.0
  %5506 = vmatprep.subr.mxu0 0.0
  %5507 = vmatpush1.msra.mxu0 0.0
  %5508 = vmatprep.subr.mxu0 0.0
  %5509 = vmatpush1.msra.mxu0 0.0
  %5510 = vmatprep.subr.mxu0 0.0
  %5511 = vmatpush1.msra.mxu0 0.0
  %5512 = vmatprep.subr.mxu0 0.0
  %5513 = vmatpush1.msra.mxu0 0.0
  %5514 = vmatprep.subr.mxu0 0.0
  %5515 = vmatpush1.msra.mxu0 0.0
  %5516 = vmatprep.mubr.f32.mxu0 0.0
  %5517 = vmatmul.mubr.f32.gmra.mrb[0].mxu0 %v5258
  %v5518 = vpop.f32.mrb[0].mxu0
  %v5519 = vadd.f32 0.0, %v5518
  %v5520 = vpop.f32.mrb[0].mxu0
  %5521 = vmatprep.mubr.f32.mxu0 0.0
  %5522 = vmatmul.mubr.f32.gmra.mrb[0].mxu0 %v5261
  %v5523 = vpop.f32.mrb[0].mxu0
  %v5524 = vadd.f32 0.0, %v5523
  %v5525 = vpop.f32.mrb[0].mxu0
  %5526 = vmatprep.mubr.f32.mxu0 0.0
  %5527 = vmatmul.mubr.f32.gmra.mrb[0].mxu0 %v5264
  %v5528 = vpop.f32.mrb[0].mxu0
  %v5529 = vadd.f32 0.0, %v5528
  %v5530 = vpop.f32.mrb[0].mxu0
  %5531 = vmatprep.mubr.f32.mxu0 0.0
  %5532 = vmatmul.mubr.f32.gmra.mrb[0].mxu0 %v5267
  %v5533 = vpop.f32.mrb[0].mxu0
  %v5534 = vadd.f32 0.0, %v5533
  %v5535 = vpop.f32.mrb[0].mxu0
  %5536 = vmatprep.mubr.f32.mxu0 0.0
  %5537 = vmatmul.mubr.f32.gmra.mrb[0].mxu0 %v5270
  %v5538 = vpop.f32.mrb[0].mxu0
  %v5539 = vadd.f32 0.0, %v5538
  %v5540 = vpop.f32.mrb[0].mxu0
  %5541 = vmatprep.mubr.f32.mxu0 0.0
  %5542 = vmatmul.mubr.f32.gmra.mrb[0].mxu0 %v5273
  %v5543 = vpop.f32.mrb[0].mxu0
  %v5544 = vadd.f32 0.0, %v5543
  %v5545 = vpop.f32.mrb[0].mxu0
  %5546 = vmatprep.mubr.f32.mxu0 0.0
  %5547 = vmatmul.mubr.f32.gmra.mrb[0].mxu0 %v5276
  %v5548 = vpop.f32.mrb[0].mxu0
  %v5549 = vadd.f32 0.0, %v5548
  %v5550 = vpop.f32.mrb[0].mxu0
  %5551 = vmatprep.mubr.f32.mxu0 0.0
  %5552 = vmatmul.mubr.f32.gmra.mrb[0].mxu0 %v5279
  %v5553 = vpop.f32.mrb[0].mxu0
  %v5554 = vadd.f32 0.0, %v5553
  %v5555 = vpop.f32.mrb[0].mxu0
  %5556 = vmatprep.mubr.f32.mxu0 0.0
  %5557 = vmatmul.mubr.f32.gmra.mrb[0].mxu0 %v5282
  %v5558 = vpop.f32.mrb[0].mxu0
  %v5559 = vadd.f32 0.0, %v5558
  %v5560 = vpop.f32.mrb[0].mxu0
  %5561 = vmatprep.mubr.f32.mxu0 0.0
  %5562 = vmatmul.mubr.f32.gmra.mrb[0].mxu0 %v5285
  %v5563 = vpop.f32.mrb[0].mxu0
  %v5564 = vadd.f32 0.0, %v5563
  %v5565 = vpop.f32.mrb[0].mxu0
  %5566 = vmatprep.mubr.f32.mxu0 0.0
  %5567 = vmatmul.mubr.f32.gmra.mrb[0].mxu0 %v5288
  %v5568 = vpop.f32.mrb[0].mxu0
  %v5569 = vadd.f32 0.0, %v5568
  %v5570 = vpop.f32.mrb[0].mxu0
  %5571 = vmatprep.mubr.f32.mxu0 0.0
  %5572 = vmatmul.mubr.f32.gmra.mrb[0].mxu0 %v5291
  %v5573 = vpop.f32.mrb[0].mxu0
  %v5574 = vadd.f32 0.0, %v5573
  %v5575 = vpop.f32.mrb[0].mxu0
  %5576 = vmatprep.mubr.f32.mxu0 0.0
  %5577 = vmatmul.mubr.f32.gmra.mrb[0].mxu0 %v5294
  %v5578 = vpop.f32.mrb[0].mxu0
  %v5579 = vadd.f32 0.0, %v5578
  %v5580 = vpop.f32.mrb[0].mxu0
  %5581 = vmatprep.mubr.f32.mxu0 0.0
  %5582 = vmatmul.mubr.f32.gmra.mrb[0].mxu0 %v5297
  %v5583 = vpop.f32.mrb[0].mxu0
  %v5584 = vadd.f32 0.0, %v5583
  %v5585 = vpop.f32.mrb[0].mxu0
  %5586 = vmatprep.mubr.f32.mxu0 0.0
  %5587 = vmatmul.mubr.f32.gmra.mrb[0].mxu0 %v5300
  %v5588 = vpop.f32.mrb[0].mxu0
  %v5589 = vadd.f32 0.0, %v5588
  %v5590 = vpop.f32.mrb[0].mxu0
  %5591 = vmatprep.mubr.f32.mxu0 0.0
  %5592 = vmatmul.mubr.f32.gmra.mrb[0].mxu0 %v5303
  %v5593 = vpop.f32.mrb[0].mxu0
  %v5594 = vadd.f32 0.0, %v5593
  %v5595 = vpop.f32.mrb[0].mxu0
  %5596 = vmatprep.mubr.f32.mxu0 0.0
  %5597 = vmatmul.mubr.f32.gmra.mrb[0].mxu0 %v5306
  %v5598 = vpop.f32.mrb[0].mxu0
  %v5599 = vadd.f32 0.0, %v5598
  %v5600 = vpop.f32.mrb[0].mxu0
  %5601 = vmatprep.mubr.f32.mxu0 0.0
  %5602 = vmatmul.mubr.f32.gmra.mrb[0].mxu0 %v5309
  %v5603 = vpop.f32.mrb[0].mxu0
  %v5604 = vadd.f32 0.0, %v5603
  %v5605 = vpop.f32.mrb[0].mxu0
  %5606 = vmatprep.mubr.f32.mxu0 0.0
  %5607 = vmatmul.mubr.f32.gmra.mrb[0].mxu0 %v5312
  %v5608 = vpop.f32.mrb[0].mxu0
  %v5609 = vadd.f32 0.0, %v5608
  %v5610 = vpop.f32.mrb[0].mxu0
  %5611 = vmatprep.mubr.f32.mxu0 0.0
  %5612 = vmatmul.mubr.f32.gmra.mrb[0].mxu0 %v5315
  %v5613 = vpop.f32.mrb[0].mxu0
  %v5614 = vadd.f32 0.0, %v5613
  %v5615 = vpop.f32.mrb[0].mxu0
  %5616 = vmatprep.mubr.f32.mxu0 0.0
  %5617 = vmatmul.mubr.f32.gmra.mrb[0].mxu0 %v5318
  %v5618 = vpop.f32.mrb[0].mxu0
  %v5619 = vadd.f32 0.0, %v5618
  %v5620 = vpop.f32.mrb[0].mxu0
  %5621 = vmatprep.mubr.f32.mxu0 0.0
  %5622 = vmatmul.mubr.f32.gmra.mrb[0].mxu0 %v5321
  %v5623 = vpop.f32.mrb[0].mxu0
  %v5624 = vadd.f32 0.0, %v5623
  %v5625 = vpop.f32.mrb[0].mxu0
  %5626 = vmatprep.mubr.f32.mxu0 0.0
  %5627 = vmatmul.mubr.f32.gmra.mrb[0].mxu0 %v5324
  %v5628 = vpop.f32.mrb[0].mxu0
  %v5629 = vadd.f32 0.0, %v5628
  %v5630 = vpop.f32.mrb[0].mxu0
  %5631 = vmatprep.mubr.f32.mxu0 0.0
  %5632 = vmatmul.mubr.f32.gmra.mrb[0].mxu0 %v5327
  %v5633 = vpop.f32.mrb[0].mxu0
  %v5634 = vadd.f32 0.0, %v5633
  %v5635 = vpop.f32.mrb[0].mxu0
  %5636 = vmatprep.mubr.f32.mxu0 0.0
  %5637 = vmatmul.mubr.f32.gmra.mrb[0].mxu0 %v5330
  %v5638 = vpop.f32.mrb[0].mxu0
  %v5639 = vadd.f32 0.0, %v5638
  %v5640 = vpop.f32.mrb[0].mxu0
  %5641 = vmatprep.mubr.f32.mxu0 0.0
  %5642 = vmatmul.mubr.f32.gmra.mrb[0].mxu0 %v5333
  %v5643 = vpop.f32.mrb[0].mxu0
  %v5644 = vadd.f32 0.0, %v5643
  %v5645 = vpop.f32.mrb[0].mxu0
  %5646 = vmatprep.mubr.f32.mxu0 0.0
  %5647 = vmatmul.mubr.f32.gmra.mrb[0].mxu0 %v5336
  %v5648 = vpop.f32.mrb[0].mxu0
  %v5649 = vadd.f32 0.0, %v5648
  %v5650 = vpop.f32.mrb[0].mxu0
  %5651 = vmatprep.mubr.f32.mxu0 0.0
  %5652 = vmatmul.mubr.f32.gmra.mrb[0].mxu0 %v5339
  %v5653 = vpop.f32.mrb[0].mxu0
  %v5654 = vadd.f32 0.0, %v5653
  %v5655 = vpop.f32.mrb[0].mxu0
  %5656 = vmatprep.mubr.f32.mxu0 0.0
  %5657 = vmatmul.mubr.f32.gmra.mrb[0].mxu0 %v5342
  %v5658 = vpop.f32.mrb[0].mxu0
  %v5659 = vadd.f32 0.0, %v5658
  %v5660 = vpop.f32.mrb[0].mxu0
  %5661 = vmatprep.mubr.f32.mxu0 0.0
  %5662 = vmatmul.mubr.f32.gmra.mrb[0].mxu0 %v5345
  %v5663 = vpop.f32.mrb[0].mxu0
  %v5664 = vadd.f32 0.0, %v5663
  %v5665 = vpop.f32.mrb[0].mxu0
  %5666 = vmatprep.mubr.f32.mxu0 0.0
  %5667 = vmatmul.mubr.f32.gmra.mrb[0].mxu0 %v5348
  %v5668 = vpop.f32.mrb[0].mxu0
  %v5669 = vadd.f32 0.0, %v5668
  %v5670 = vpop.f32.mrb[0].mxu0
  %5671 = vmatprep.mubr.f32.mxu0 0.0
  %5672 = vmatmul.mubr.f32.gmra.mrb[0].mxu0 %v5351
  %v5673 = vpop.f32.mrb[0].mxu0
  %v5674 = vadd.f32 0.0, %v5673
  %v5675 = vpop.f32.mrb[0].mxu0
  %5676 = vmatprep.mubr.f32.mxu0 0.0
  %5677 = vmatmul.mubr.f32.gmra.mrb[0].mxu0 %v5354
  %v5678 = vpop.f32.mrb[0].mxu0
  %v5679 = vadd.f32 0.0, %v5678
  %v5680 = vpop.f32.mrb[0].mxu0
  %5681 = vmatprep.mubr.f32.mxu0 0.0
  %5682 = vmatmul.mubr.f32.gmra.mrb[0].mxu0 %v5357
  %v5683 = vpop.f32.mrb[0].mxu0
  %v5684 = vadd.f32 0.0, %v5683
  %v5685 = vpop.f32.mrb[0].mxu0
  %5686 = vmatprep.mubr.f32.mxu0 0.0
  %5687 = vmatmul.mubr.f32.gmra.mrb[0].mxu0 %v5360
  %v5688 = vpop.f32.mrb[0].mxu0
  %v5689 = vadd.f32 0.0, %v5688
  %v5690 = vpop.f32.mrb[0].mxu0
  %5691 = vmatprep.mubr.f32.mxu0 0.0
  %5692 = vmatmul.mubr.f32.gmra.mrb[0].mxu0 %v5363
  %v5693 = vpop.f32.mrb[0].mxu0
  %v5694 = vadd.f32 0.0, %v5693
  %v5695 = vpop.f32.mrb[0].mxu0
  %5696 = vmatprep.mubr.f32.mxu0 0.0
  %5697 = vmatmul.mubr.f32.gmra.mrb[0].mxu0 %v5366
  %v5698 = vpop.f32.mrb[0].mxu0
  %v5699 = vadd.f32 0.0, %v5698
  %v5700 = vpop.f32.mrb[0].mxu0
  %5701 = vmatprep.mubr.f32.mxu0 0.0
  %5702 = vmatmul.mubr.f32.gmra.mrb[0].mxu0 %v5369
  %v5703 = vpop.f32.mrb[0].mxu0
  %v5704 = vadd.f32 0.0, %v5703
  %v5705 = vpop.f32.mrb[0].mxu0
  %5706 = vmatprep.mubr.f32.mxu0 0.0
  %5707 = vmatmul.mubr.f32.gmra.mrb[0].mxu0 %v5372
  %v5708 = vpop.f32.mrb[0].mxu0
  %v5709 = vadd.f32 0.0, %v5708
  %v5710 = vpop.f32.mrb[0].mxu0
  %5711 = vmatprep.mubr.f32.mxu0 0.0
  %5712 = vmatmul.mubr.f32.gmra.mrb[0].mxu0 %v5375
  %v5713 = vpop.f32.mrb[0].mxu0
  %v5714 = vadd.f32 0.0, %v5713
  %v5715 = vpop.f32.mrb[0].mxu0
  %5716 = vmatprep.mubr.f32.mxu0 0.0
  %5717 = vmatmul.mubr.f32.gmra.mrb[0].mxu0 %v5378
  %v5718 = vpop.f32.mrb[0].mxu0
  %v5719 = vadd.f32 0.0, %v5718
  %v5720 = vpop.f32.mrb[0].mxu0
  %5721 = vmatprep.mubr.f32.mxu0 0.0
  %5722 = vmatmul.mubr.f32.gmra.mrb[0].mxu0 %v5381
  %v5723 = vpop.f32.mrb[0].mxu0
  %v5724 = vadd.f32 0.0, %v5723
  %v5725 = vpop.f32.mrb[0].mxu0
  %5726 = vmatprep.mubr.f32.mxu0 0.0
  %5727 = vmatmul.mubr.f32.gmra.mrb[0].mxu0 %v5384
  %v5728 = vpop.f32.mrb[0].mxu0
  %v5729 = vadd.f32 0.0, %v5728
  %v5730 = vpop.f32.mrb[0].mxu0
  %5731 = vmatprep.mubr.f32.mxu0 0.0
  %5732 = vmatmul.mubr.f32.gmra.mrb[0].mxu0 %v5387
  %v5733 = vpop.f32.mrb[0].mxu0
  %v5734 = vadd.f32 0.0, %v5733
  %v5735 = vpop.f32.mrb[0].mxu0
  %5736 = vmatprep.mubr.f32.mxu0 0.0
  %5737 = vmatmul.mubr.f32.gmra.mrb[0].mxu0 %v5390
  %v5738 = vpop.f32.mrb[0].mxu0
  %v5739 = vadd.f32 0.0, %v5738
  %v5740 = vpop.f32.mrb[0].mxu0
  %5741 = vmatprep.mubr.f32.mxu0 0.0
  %5742 = vmatmul.mubr.f32.gmra.mrb[0].mxu0 %v5393
  %v5743 = vpop.f32.mrb[0].mxu0
  %v5744 = vadd.f32 0.0, %v5743
  %v5745 = vpop.f32.mrb[0].mxu0
  %5746 = vmatprep.mubr.f32.mxu0 0.0
  %5747 = vmatmul.mubr.f32.gmra.mrb[0].mxu0 %v5396
  %v5748 = vpop.f32.mrb[0].mxu0
  %v5749 = vadd.f32 0.0, %v5748
  %v5750 = vpop.f32.mrb[0].mxu0
  %5751 = vmatprep.mubr.f32.mxu0 0.0
  %5752 = vmatmul.mubr.f32.gmra.mrb[0].mxu0 %v5399
  %v5753 = vpop.f32.mrb[0].mxu0
  %v5754 = vadd.f32 0.0, %v5753
  %v5755 = vpop.f32.mrb[0].mxu0
  %5756 = vmatprep.mubr.f32.mxu0 0.0
  %5757 = vmatmul.mubr.f32.gmra.mrb[0].mxu0 %v5402
  %v5758 = vpop.f32.mrb[0].mxu0
  %v5759 = vadd.f32 0.0, %v5758
  %v5760 = vpop.f32.mrb[0].mxu0
  %5761 = vmatprep.mubr.f32.mxu0 0.0
  %5762 = vmatmul.mubr.f32.gmra.mrb[0].mxu0 %v5405
  %v5763 = vpop.f32.mrb[0].mxu0
  %v5764 = vadd.f32 0.0, %v5763
  %v5765 = vpop.f32.mrb[0].mxu0
  %5766 = vmatprep.mubr.f32.mxu0 0.0
  %5767 = vmatmul.mubr.f32.gmra.mrb[0].mxu0 %v5408
  %v5768 = vpop.f32.mrb[0].mxu0
  %v5769 = vadd.f32 0.0, %v5768
  %v5770 = vpop.f32.mrb[0].mxu0
  %5771 = vmatprep.mubr.f32.mxu0 0.0
  %5772 = vmatmul.mubr.f32.gmra.mrb[0].mxu0 %v5411
  %v5773 = vpop.f32.mrb[0].mxu0
  %v5774 = vadd.f32 0.0, %v5773
  %v5775 = vpop.f32.mrb[0].mxu0
  %5776 = vmatprep.mubr.f32.mxu0 0.0
  %5777 = vmatmul.mubr.f32.gmra.mrb[0].mxu0 %v5414
  %v5778 = vpop.f32.mrb[0].mxu0
  %v5779 = vadd.f32 0.0, %v5778
  %v5780 = vpop.f32.mrb[0].mxu0
  %5781 = vmatprep.mubr.f32.mxu0 0.0
  %5782 = vmatmul.mubr.f32.gmra.mrb[0].mxu0 %v5417
  %v5783 = vpop.f32.mrb[0].mxu0
  %v5784 = vadd.f32 0.0, %v5783
  %v5785 = vpop.f32.mrb[0].mxu0
  %5786 = vmatprep.mubr.f32.mxu0 0.0
  %5787 = vmatmul.mubr.f32.gmra.mrb[0].mxu0 %v5420
  %v5788 = vpop.f32.mrb[0].mxu0
  %v5789 = vadd.f32 0.0, %v5788
  %v5790 = vpop.f32.mrb[0].mxu0
  %5791 = vmatprep.mubr.f32.mxu0 0.0
  %5792 = vmatmul.mubr.f32.gmra.mrb[0].mxu0 %v5423
  %v5793 = vpop.f32.mrb[0].mxu0
  %v5794 = vadd.f32 0.0, %v5793
  %v5795 = vpop.f32.mrb[0].mxu0
  %5796 = vmatprep.mubr.f32.mxu0 0.0
  %5797 = vmatmul.mubr.f32.gmra.mrb[0].mxu0 %v5426
  %v5798 = vpop.f32.mrb[0].mxu0
  %v5799 = vadd.f32 0.0, %v5798
  %v5800 = vpop.f32.mrb[0].mxu0
  %5801 = vmatprep.mubr.f32.mxu0 0.0
  %5802 = vmatmul.mubr.f32.gmra.mrb[0].mxu0 %v5429
  %v5803 = vpop.f32.mrb[0].mxu0
  %v5804 = vadd.f32 0.0, %v5803
  %v5805 = vpop.f32.mrb[0].mxu0
  %5806 = vmatprep.mubr.f32.mxu0 0.0
  %5807 = vmatmul.mubr.f32.gmra.mrb[0].mxu0 %v5432
  %v5808 = vpop.f32.mrb[0].mxu0
  %v5809 = vadd.f32 0.0, %v5808
  %v5810 = vpop.f32.mrb[0].mxu0
  %5811 = vmatprep.mubr.f32.mxu0 0.0
  %5812 = vmatmul.mubr.f32.gmra.mrb[0].mxu0 %v5435
  %v5813 = vpop.f32.mrb[0].mxu0
  %v5814 = vadd.f32 0.0, %v5813
  %v5815 = vpop.f32.mrb[0].mxu0
  %5816 = vmatprep.mubr.f32.mxu0 0.0
  %5817 = vmatmul.mubr.f32.gmra.mrb[0].mxu0 %v5438
  %v5818 = vpop.f32.mrb[0].mxu0
  %v5819 = vadd.f32 0.0, %v5818
  %v5820 = vpop.f32.mrb[0].mxu0
  %5821 = vmatprep.mubr.f32.mxu0 0.0
  %5822 = vmatmul.mubr.f32.gmra.mrb[0].mxu0 %v5441
  %v5823 = vpop.f32.mrb[0].mxu0
  %v5824 = vadd.f32 0.0, %v5823
  %v5825 = vpop.f32.mrb[0].mxu0
  %5826 = vmatprep.mubr.f32.mxu0 0.0
  %5827 = vmatmul.mubr.f32.gmra.mrb[0].mxu0 %v5444
  %v5828 = vpop.f32.mrb[0].mxu0
  %v5829 = vadd.f32 0.0, %v5828
  %v5830 = vpop.f32.mrb[0].mxu0
  %5831 = vmatprep.mubr.f32.mxu0 0.0
  %5832 = vmatmul.mubr.f32.gmra.mrb[0].mxu0 %v5447
  %v5833 = vpop.f32.mrb[0].mxu0
  %v5834 = vadd.f32 0.0, %v5833
  %v5835 = vpop.f32.mrb[0].mxu0
  %5836 = vdwg.mxu0
  %v5837 = vadd.f32 %v5191, %v5519
  %v5838 = vadd.f32 %v5192, %v5524
  %v5839 = vadd.f32 %v5193, %v5529
  %v5840 = vadd.f32 %v5194, %v5534
  %v5841 = vadd.f32 %v5195, %v5539
  %v5842 = vadd.f32 %v5196, %v5544
  %v5843 = vadd.f32 %v5197, %v5549
  %v5844 = vadd.f32 %v5198, %v5554
  %v5845 = vadd.f32 %v5199, %v5559
  %v5846 = vadd.f32 %v5200, %v5564
  %v5847 = vadd.f32 %v5201, %v5569
  %v5848 = vadd.f32 %v5202, %v5574
  %v5849 = vadd.f32 %v5203, %v5579
  %v5850 = vadd.f32 %v5204, %v5584
  %v5851 = vadd.f32 %v5205, %v5589
  %v5852 = vadd.f32 %v5206, %v5594
  %v5853 = vadd.f32 %v5207, %v5599
  %v5854 = vadd.f32 %v5208, %v5604
  %v5855 = vadd.f32 %v5209, %v5609
  %v5856 = vadd.f32 %v5210, %v5614
  %v5857 = vadd.f32 %v5211, %v5619
  %v5858 = vadd.f32 %v5212, %v5624
  %v5859 = vadd.f32 %v5213, %v5629
  %v5860 = vadd.f32 %v5214, %v5634
  %v5861 = vadd.f32 %v5215, %v5639
  %v5862 = vadd.f32 %v5216, %v5644
  %v5863 = vadd.f32 %v5217, %v5649
  %v5864 = vadd.f32 %v5218, %v5654
  %v5865 = vadd.f32 %v5219, %v5659
  %v5866 = vadd.f32 %v5220, %v5664
  %v5867 = vadd.f32 %v5221, %v5669
  %v5868 = vadd.f32 %v5222, %v5674
  %v5869 = vadd.f32 %v5223, %v5679
  %v5870 = vadd.f32 %v5224, %v5684
  %v5871 = vadd.f32 %v5225, %v5689
  %v5872 = vadd.f32 %v5226, %v5694
  %v5873 = vadd.f32 %v5227, %v5699
  %v5874 = vadd.f32 %v5228, %v5704
  %v5875 = vadd.f32 %v5229, %v5709
  %v5876 = vadd.f32 %v5230, %v5714
  %v5877 = vadd.f32 %v5231, %v5719
  %v5878 = vadd.f32 %v5232, %v5724
  %v5879 = vadd.f32 %v5233, %v5729
  %v5880 = vadd.f32 %v5234, %v5734
  %v5881 = vadd.f32 %v5235, %v5739
  %v5882 = vadd.f32 %v5236, %v5744
  %v5883 = vadd.f32 %v5237, %v5749
  %v5884 = vadd.f32 %v5238, %v5754
  %v5885 = vadd.f32 %v5239, %v5759
  %v5886 = vadd.f32 %v5240, %v5764
  %v5887 = vadd.f32 %v5241, %v5769
  %v5888 = vadd.f32 %v5242, %v5774
  %v5889 = vadd.f32 %v5243, %v5779
  %v5890 = vadd.f32 %v5244, %v5784
  %v5891 = vadd.f32 %v5245, %v5789
  %v5892 = vadd.f32 %v5246, %v5794
  %v5893 = vadd.f32 %v5247, %v5799
  %v5894 = vadd.f32 %v5248, %v5804
  %v5895 = vadd.f32 %v5249, %v5809
  %v5896 = vadd.f32 %v5250, %v5814
  %v5897 = vadd.f32 %v5251, %v5819
  %v5898 = vadd.f32 %v5252, %v5824
  %v5899 = vadd.f32 %v5253, %v5829
  %v5900 = vadd.f32 %v5254, %v5834
  %5901 = vst [vmem:[#allocation2] sm:$0xff] %v5837
  %5902 = vst [vmem:[#allocation2 + $0x8] sm:$0xff] %v5838
  %5903 = vst [vmem:[#allocation2 + $0x10] sm:$0xff] %v5839
  %5904 = vst [vmem:[#allocation2 + $0x18] sm:$0xff] %v5840
  %5905 = vst [vmem:[#allocation2 + $0x20] sm:$0xff] %v5841
  %5906 = vst [vmem:[#allocation2 + $0x28] sm:$0xff] %v5842
  %5907 = vst [vmem:[#allocation2 + $0x30] sm:$0xff] %v5843
  %5908 = vst [vmem:[#allocation2 + $0x38] sm:$0xff] %v5844
  %5909 = vst [vmem:[#allocation2 + $0x40] sm:$0xff] %v5845
  %5910 = vst [vmem:[#allocation2 + $0x48] sm:$0xff] %v5846
  %5911 = vst [vmem:[#allocation2 + $0x50] sm:$0xff] %v5847
  %5912 = vst [vmem:[#allocation2 + $0x58] sm:$0xff] %v5848
  %5913 = vst [vmem:[#allocation2 + $0x60] sm:$0xff] %v5849
  %5914 = vst [vmem:[#allocation2 + $0x68] sm:$0xff] %v5850
  %5915 = vst [vmem:[#allocation2 + $0x70] sm:$0xff] %v5851
  %5916 = vst [vmem:[#allocation2 + $0x78] sm:$0xff] %v5852
  %5917 = vst [vmem:[#allocation2 + $0x80] sm:$0xff] %v5853
  %5918 = vst [vmem:[#allocation2 + $0x88] sm:$0xff] %v5854
  %5919 = vst [vmem:[#allocation2 + $0x90] sm:$0xff] %v5855
  %5920 = vst [vmem:[#allocation2 + $0x98] sm:$0xff] %v5856
  %5921 = vst [vmem:[#allocation2 + $0xa0] sm:$0xff] %v5857
  %5922 = vst [vmem:[#allocation2 + $0xa8] sm:$0xff] %v5858
  %5923 = vst [vmem:[#allocation2 + $0xb0] sm:$0xff] %v5859
  %5924 = vst [vmem:[#allocation2 + $0xb8] sm:$0xff] %v5860
  %5925 = vst [vmem:[#allocation2 + $0xc0] sm:$0xff] %v5861
  %5926 = vst [vmem:[#allocation2 + $0xc8] sm:$0xff] %v5862
  %5927 = vst [vmem:[#allocation2 + $0xd0] sm:$0xff] %v5863
  %5928 = vst [vmem:[#allocation2 + $0xd8] sm:$0xff] %v5864
  %5929 = vst [vmem:[#allocation2 + $0xe0] sm:$0xff] %v5865
  %5930 = vst [vmem:[#allocation2 + $0xe8] sm:$0xff] %v5866
  %5931 = vst [vmem:[#allocation2 + $0xf0] sm:$0xff] %v5867
  %5932 = vst [vmem:[#allocation2 + $0xf8] sm:$0xff] %v5868
  %5933 = vst [vmem:[#allocation2 + $0x100] sm:$0xff] %v5869
  %5934 = vst [vmem:[#allocation2 + $0x108] sm:$0xff] %v5870
  %5935 = vst [vmem:[#allocation2 + $0x110] sm:$0xff] %v5871
  %5936 = vst [vmem:[#allocation2 + $0x118] sm:$0xff] %v5872
  %5937 = vst [vmem:[#allocation2 + $0x120] sm:$0xff] %v5873
  %5938 = vst [vmem:[#allocation2 + $0x128] sm:$0xff] %v5874
  %5939 = vst [vmem:[#allocation2 + $0x130] sm:$0xff] %v5875
  %5940 = vst [vmem:[#allocation2 + $0x138] sm:$0xff] %v5876
  %5941 = vst [vmem:[#allocation2 + $0x140] sm:$0xff] %v5877
  %5942 = vst [vmem:[#allocation2 + $0x148] sm:$0xff] %v5878
  %5943 = vst [vmem:[#allocation2 + $0x150] sm:$0xff] %v5879
  %5944 = vst [vmem:[#allocation2 + $0x158] sm:$0xff] %v5880
  %5945 = vst [vmem:[#allocation2 + $0x160] sm:$0xff] %v5881
  %5946 = vst [vmem:[#allocation2 + $0x168] sm:$0xff] %v5882
  %5947 = vst [vmem:[#allocation2 + $0x170] sm:$0xff] %v5883
  %5948 = vst [vmem:[#allocation2 + $0x178] sm:$0xff] %v5884
  %5949 = vst [vmem:[#allocation2 + $0x180] sm:$0xff] %v5885
  %5950 = vst [vmem:[#allocation2 + $0x188] sm:$0xff] %v5886
  %5951 = vst [vmem:[#allocation2 + $0x190] sm:$0xff] %v5887
  %5952 = vst [vmem:[#allocation2 + $0x198] sm:$0xff] %v5888
  %5953 = vst [vmem:[#allocation2 + $0x1a0] sm:$0xff] %v5889
  %5954 = vst [vmem:[#allocation2 + $0x1a8] sm:$0xff] %v5890
  %5955 = vst [vmem:[#allocation2 + $0x1b0] sm:$0xff] %v5891
  %5956 = vst [vmem:[#allocation2 + $0x1b8] sm:$0xff] %v5892
  %5957 = vst [vmem:[#allocation2 + $0x1c0] sm:$0xff] %v5893
  %5958 = vst [vmem:[#allocation2 + $0x1c8] sm:$0xff] %v5894
  %5959 = vst [vmem:[#allocation2 + $0x1d0] sm:$0xff] %v5895
  %5960 = vst [vmem:[#allocation2 + $0x1d8] sm:$0xff] %v5896
  %5961 = vst [vmem:[#allocation2 + $0x1e0] sm:$0xff] %v5897
  %5962 = vst [vmem:[#allocation2 + $0x1e8] sm:$0xff] %v5898
  %5963 = vst [vmem:[#allocation2 + $0x1f0] sm:$0xff] %v5899
  %5964 = vst [vmem:[#allocation2 + $0x1f8] sm:$0xff] %v5900
  %v5965 = vld [vmem:[%s5126 + $0x1] sm:$0xff]
  %v5966 = vld [vmem:[%s5126 + $0x9] sm:$0xff]
  %v5967 = vld [vmem:[%s5126 + $0x19] sm:$0xff]
  %v5968 = vld [vmem:[%s5126 + $0x21] sm:$0xff]
  %v5969 = vld [vmem:[%s5126 + $0x31] sm:$0xff]
  %v5970 = vld [vmem:[%s5126 + $0x39] sm:$0xff]
  %v5971 = vld [vmem:[%s5126 + $0x49] sm:$0xff]
  %v5972 = vld [vmem:[%s5126 + $0x51] sm:$0xff]
  %v5973 = vld [vmem:[%s5126 + $0x61] sm:$0xff]
  %v5974 = vld [vmem:[%s5126 + $0x69] sm:$0xff]
  %v5975 = vld [vmem:[%s5126 + $0x79] sm:$0xff]
  %v5976 = vld [vmem:[%s5126 + $0x81] sm:$0xff]
  %v5977 = vld [vmem:[%s5126 + $0x91] sm:$0xff]
  %v5978 = vld [vmem:[%s5126 + $0x99] sm:$0xff]
  %v5979 = vld [vmem:[%s5126 + $0xa9] sm:$0xff]
  %v5980 = vld [vmem:[%s5126 + $0xb1] sm:$0xff]
  %v5981 = vld [vmem:[%s5126 + $0xc1] sm:$0xff]
  %v5982 = vld [vmem:[%s5126 + $0xc9] sm:$0xff]
  %v5983 = vld [vmem:[%s5126 + $0xd9] sm:$0xff]
  %v5984 = vld [vmem:[%s5126 + $0xe1] sm:$0xff]
  %v5985 = vld [vmem:[%s5126 + $0xf1] sm:$0xff]
  %v5986 = vld [vmem:[%s5126 + $0xf9] sm:$0xff]
  %v5987 = vld [vmem:[%s5126 + $0x109] sm:$0xff]
  %v5988 = vld [vmem:[%s5126 + $0x111] sm:$0xff]
  %v5989 = vld [vmem:[%s5126 + $0x121] sm:$0xff]
  %v5990 = vld [vmem:[%s5126 + $0x129] sm:$0xff]
  %v5991 = vld [vmem:[%s5126 + $0x139] sm:$0xff]
  %v5992 = vld [vmem:[%s5126 + $0x141] sm:$0xff]
  %v5993 = vld [vmem:[%s5126 + $0x151] sm:$0xff]
  %v5994 = vld [vmem:[%s5126 + $0x159] sm:$0xff]
  %v5995 = vld [vmem:[%s5126 + $0x169] sm:$0xff]
  %v5996 = vld [vmem:[%s5126 + $0x171] sm:$0xff]
  %v5997 = vld [vmem:[%s5126 + $0x1b1] sm:$0xff]
  %v5998 = vld [vmem:[%s5126 + $0x1b9] sm:$0xff]
  %v5999 = vld [vmem:[%s5126 + $0x1c9] sm:$0xff]
  %v6000 = vld [vmem:[%s5126 + $0x1d1] sm:$0xff]
  %v6001 = vld [vmem:[%s5126 + $0x1e1] sm:$0xff]
  %v6002 = vld [vmem:[%s5126 + $0x1e9] sm:$0xff]
  %v6003 = vld [vmem:[%s5126 + $0x1f9] sm:$0xff]
  %v6004 = vld [vmem:[%s5126 + $0x201] sm:$0xff]
  %v6005 = vld [vmem:[%s5126 + $0x211] sm:$0xff]
  %v6006 = vld [vmem:[%s5126 + $0x219] sm:$0xff]
  %v6007 = vld [vmem:[%s5126 + $0x229] sm:$0xff]
  %v6008 = vld [vmem:[%s5126 + $0x231] sm:$0xff]
  %v6009 = vld [vmem:[%s5126 + $0x241] sm:$0xff]
  %v6010 = vld [vmem:[%s5126 + $0x249] sm:$0xff]
  %v6011 = vld [vmem:[%s5126 + $0x259] sm:$0xff]
  %v6012 = vld [vmem:[%s5126 + $0x261] sm:$0xff]
  %v6013 = vld [vmem:[%s5126 + $0x271] sm:$0xff]
  %v6014 = vld [vmem:[%s5126 + $0x279] sm:$0xff]
  %v6015 = vld [vmem:[%s5126 + $0x289] sm:$0xff]
  %v6016 = vld [vmem:[%s5126 + $0x291] sm:$0xff]
  %v6017 = vld [vmem:[%s5126 + $0x2a1] sm:$0xff]
  %v6018 = vld [vmem:[%s5126 + $0x2a9] sm:$0xff]
  %v6019 = vld [vmem:[%s5126 + $0x2b9] sm:$0xff]
  %v6020 = vld [vmem:[%s5126 + $0x2c1] sm:$0xff]
  %v6021 = vld [vmem:[%s5126 + $0x2d1] sm:$0xff]
  %v6022 = vld [vmem:[%s5126 + $0x2d9] sm:$0xff]
  %v6023 = vld [vmem:[%s5126 + $0x2e9] sm:$0xff]
  %v6024 = vld [vmem:[%s5126 + $0x2f1] sm:$0xff]
  %v6025 = vld [vmem:[%s5126 + $0x301] sm:$0xff]
  %v6026 = vld [vmem:[%s5126 + $0x309] sm:$0xff]
  %v6027 = vld [vmem:[%s5126 + $0x319] sm:$0xff]
  %v6028 = vld [vmem:[%s5126 + $0x321] sm:$0xff]
  %v6029 = vld [vmem:[#allocation2] sm:$0xff]
  %v6030 = vld [vmem:[#allocation2 + $0x8] sm:$0xff]
  %v6031 = vld [vmem:[#allocation2 + $0x10] sm:$0xff]
  %v6032 = vld [vmem:[#allocation2 + $0x18] sm:$0xff]
  %v6033 = vld [vmem:[#allocation2 + $0x20] sm:$0xff]
  %v6034 = vld [vmem:[#allocation2 + $0x28] sm:$0xff]
  %v6035 = vld [vmem:[#allocation2 + $0x30] sm:$0xff]
  %v6036 = vld [vmem:[#allocation2 + $0x38] sm:$0xff]
  %v6037 = vld [vmem:[#allocation2 + $0x40] sm:$0xff]
  %v6038 = vld [vmem:[#allocation2 + $0x48] sm:$0xff]
  %v6039 = vld [vmem:[#allocation2 + $0x50] sm:$0xff]
  %v6040 = vld [vmem:[#allocation2 + $0x58] sm:$0xff]
  %v6041 = vld [vmem:[#allocation2 + $0x60] sm:$0xff]
  %v6042 = vld [vmem:[#allocation2 + $0x68] sm:$0xff]
  %v6043 = vld [vmem:[#allocation2 + $0x70] sm:$0xff]
  %v6044 = vld [vmem:[#allocation2 + $0x78] sm:$0xff]
  %v6045 = vld [vmem:[#allocation2 + $0x80] sm:$0xff]
  %v6046 = vld [vmem:[#allocation2 + $0x88] sm:$0xff]
  %v6047 = vld [vmem:[#allocation2 + $0x90] sm:$0xff]
  %v6048 = vld [vmem:[#allocation2 + $0x98] sm:$0xff]
  %v6049 = vld [vmem:[#allocation2 + $0xa0] sm:$0xff]
  %v6050 = vld [vmem:[#allocation2 + $0xa8] sm:$0xff]
  %v6051 = vld [vmem:[#allocation2 + $0xb0] sm:$0xff]
  %v6052 = vld [vmem:[#allocation2 + $0xb8] sm:$0xff]
  %v6053 = vld [vmem:[#allocation2 + $0xc0] sm:$0xff]
  %v6054 = vld [vmem:[#allocation2 + $0xc8] sm:$0xff]
  %v6055 = vld [vmem:[#allocation2 + $0xd0] sm:$0xff]
  %v6056 = vld [vmem:[#allocation2 + $0xd8] sm:$0xff]
  %v6057 = vld [vmem:[#allocation2 + $0xe0] sm:$0xff]
  %v6058 = vld [vmem:[#allocation2 + $0xe8] sm:$0xff]
  %v6059 = vld [vmem:[#allocation2 + $0xf0] sm:$0xff]
  %v6060 = vld [vmem:[#allocation2 + $0xf8] sm:$0xff]
  %v6061 = vld [vmem:[#allocation2 + $0x100] sm:$0xff]
  %v6062 = vld [vmem:[#allocation2 + $0x108] sm:$0xff]
  %v6063 = vld [vmem:[#allocation2 + $0x110] sm:$0xff]
  %v6064 = vld [vmem:[#allocation2 + $0x118] sm:$0xff]
  %v6065 = vld [vmem:[#allocation2 + $0x120] sm:$0xff]
  %v6066 = vld [vmem:[#allocation2 + $0x128] sm:$0xff]
  %v6067 = vld [vmem:[#allocation2 + $0x130] sm:$0xff]
  %v6068 = vld [vmem:[#allocation2 + $0x138] sm:$0xff]
  %v6069 = vld [vmem:[#allocation2 + $0x140] sm:$0xff]
  %v6070 = vld [vmem:[#allocation2 + $0x148] sm:$0xff]
  %v6071 = vld [vmem:[#allocation2 + $0x150] sm:$0xff]
  %v6072 = vld [vmem:[#allocation2 + $0x158] sm:$0xff]
  %v6073 = vld [vmem:[#allocation2 + $0x160] sm:$0xff]
  %v6074 = vld [vmem:[#allocation2 + $0x168] sm:$0xff]
  %v6075 = vld [vmem:[#allocation2 + $0x170] sm:$0xff]
  %v6076 = vld [vmem:[#allocation2 + $0x178] sm:$0xff]
  %v6077 = vld [vmem:[#allocation2 + $0x180] sm:$0xff]
  %v6078 = vld [vmem:[#allocation2 + $0x188] sm:$0xff]
  %v6079 = vld [vmem:[#allocation2 + $0x190] sm:$0xff]
  %v6080 = vld [vmem:[#allocation2 + $0x198] sm:$0xff]
  %v6081 = vld [vmem:[#allocation2 + $0x1a0] sm:$0xff]
  %v6082 = vld [vmem:[#allocation2 + $0x1a8] sm:$0xff]
  %v6083 = vld [vmem:[#allocation2 + $0x1b0] sm:$0xff]
  %v6084 = vld [vmem:[#allocation2 + $0x1b8] sm:$0xff]
  %v6085 = vld [vmem:[#allocation2 + $0x1c0] sm:$0xff]
  %v6086 = vld [vmem:[#allocation2 + $0x1c8] sm:$0xff]
  %v6087 = vld [vmem:[#allocation2 + $0x1d0] sm:$0xff]
  %v6088 = vld [vmem:[#allocation2 + $0x1d8] sm:$0xff]
  %v6089 = vld [vmem:[#allocation2 + $0x1e0] sm:$0xff]
  %v6090 = vld [vmem:[#allocation2 + $0x1e8] sm:$0xff]
  %v6091 = vld [vmem:[#allocation2 + $0x1f0] sm:$0xff]
  %v6092 = vld [vmem:[#allocation2 + $0x1f8] sm:$0xff]
  %s6093 = scalar_lea.vmem %s1, 28
  %v6094 = vld [vmem:[%s6093] sm:$0xf]
  %v6096 = vsel %vm225, %v5965, 0
  %v6099 = vsel %vm225, %v5966, 0
  %v6102 = vsel %vm225, %v5967, 0
  %v6105 = vsel %vm225, %v5968, 0
  %v6108 = vsel %vm225, %v5969, 0
  %v6111 = vsel %vm225, %v5970, 0
  %v6114 = vsel %vm225, %v5971, 0
  %v6117 = vsel %vm225, %v5972, 0
  %v6120 = vsel %vm225, %v5973, 0
  %v6123 = vsel %vm225, %v5974, 0
  %v6126 = vsel %vm225, %v5975, 0
  %v6129 = vsel %vm225, %v5976, 0
  %v6132 = vsel %vm225, %v5977, 0
  %v6135 = vsel %vm225, %v5978, 0
  %v6138 = vsel %vm225, %v5979, 0
  %v6141 = vsel %vm225, %v5980, 0
  %v6144 = vsel %vm225, %v5981, 0
  %v6147 = vsel %vm225, %v5982, 0
  %v6150 = vsel %vm225, %v5983, 0
  %v6153 = vsel %vm225, %v5984, 0
  %v6156 = vsel %vm225, %v5985, 0
  %v6159 = vsel %vm225, %v5986, 0
  %v6162 = vsel %vm225, %v5987, 0
  %v6165 = vsel %vm225, %v5988, 0
  %v6168 = vsel %vm225, %v5989, 0
  %v6171 = vsel %vm225, %v5990, 0
  %v6174 = vsel %vm225, %v5991, 0
  %v6177 = vsel %vm225, %v5992, 0
  %v6180 = vsel %vm225, %v5993, 0
  %v6183 = vsel %vm225, %v5994, 0
  %v6186 = vsel %vm225, %v5995, 0
  %v6189 = vsel %vm225, %v5996, 0
  %v6192 = vsel %vm225, %v5997, 0
  %v6195 = vsel %vm225, %v5998, 0
  %v6198 = vsel %vm225, %v5999, 0
  %v6201 = vsel %vm225, %v6000, 0
  %v6204 = vsel %vm225, %v6001, 0
  %v6207 = vsel %vm225, %v6002, 0
  %v6210 = vsel %vm225, %v6003, 0
  %v6213 = vsel %vm225, %v6004, 0
  %v6216 = vsel %vm225, %v6005, 0
  %v6219 = vsel %vm225, %v6006, 0
  %v6222 = vsel %vm225, %v6007, 0
  %v6225 = vsel %vm225, %v6008, 0
  %v6228 = vsel %vm225, %v6009, 0
  %v6231 = vsel %vm225, %v6010, 0
  %v6234 = vsel %vm225, %v6011, 0
  %v6237 = vsel %vm225, %v6012, 0
  %v6240 = vsel %vm225, %v6013, 0
  %v6243 = vsel %vm225, %v6014, 0
  %v6246 = vsel %vm225, %v6015, 0
  %v6249 = vsel %vm225, %v6016, 0
  %v6252 = vsel %vm225, %v6017, 0
  %v6255 = vsel %vm225, %v6018, 0
  %v6258 = vsel %vm225, %v6019, 0
  %v6261 = vsel %vm225, %v6020, 0
  %v6264 = vsel %vm225, %v6021, 0
  %v6267 = vsel %vm225, %v6022, 0
  %v6270 = vsel %vm225, %v6023, 0
  %v6273 = vsel %vm225, %v6024, 0
  %v6276 = vsel %vm225, %v6025, 0
  %v6279 = vsel %vm225, %v6026, 0
  %v6282 = vsel %vm225, %v6027, 0
  %v6285 = vsel %vm225, %v6028, 0
  %v6288 = vsel %vm418, %v6094, 0
  %6290 = vmatprep.subr.mxu0 0.0
  %6291 = vmatpush1.msra.mxu0 %v6288
  %6292 = vmatprep.subr.mxu0 0.0
  %6293 = vmatpush1.msra.mxu0 0.0
  %6294 = vmatprep.subr.mxu0 0.0
  %6295 = vmatpush1.msra.mxu0 0.0
  %6296 = vmatprep.subr.mxu0 0.0
  %6297 = vmatpush1.msra.mxu0 0.0
  %6298 = vmatprep.subr.mxu0 0.0
  %6299 = vmatpush1.msra.mxu0 0.0
  %6300 = vmatprep.subr.mxu0 0.0
  %6301 = vmatpush1.msra.mxu0 0.0
  %6302 = vmatprep.subr.mxu0 0.0
  %6303 = vmatpush1.msra.mxu0 0.0
  %6304 = vmatprep.subr.mxu0 0.0
  %6305 = vmatpush1.msra.mxu0 0.0
  %6306 = vmatprep.subr.mxu0 0.0
  %6307 = vmatpush1.msra.mxu0 0.0
  %6308 = vmatprep.subr.mxu0 0.0
  %6309 = vmatpush1.msra.mxu0 0.0
  %6310 = vmatprep.subr.mxu0 0.0
  %6311 = vmatpush1.msra.mxu0 0.0
  %6312 = vmatprep.subr.mxu0 0.0
  %6313 = vmatpush1.msra.mxu0 0.0
  %6314 = vmatprep.subr.mxu0 0.0
  %6315 = vmatpush1.msra.mxu0 0.0
  %6316 = vmatprep.subr.mxu0 0.0
  %6317 = vmatpush1.msra.mxu0 0.0
  %6318 = vmatprep.subr.mxu0 0.0
  %6319 = vmatpush1.msra.mxu0 0.0
  %6320 = vmatprep.subr.mxu0 0.0
  %6321 = vmatpush1.msra.mxu0 0.0
  %6322 = vmatprep.subr.mxu0 0.0
  %6323 = vmatpush1.msra.mxu0 0.0
  %6324 = vmatprep.subr.mxu0 0.0
  %6325 = vmatpush1.msra.mxu0 0.0
  %6326 = vmatprep.subr.mxu0 0.0
  %6327 = vmatpush1.msra.mxu0 0.0
  %6328 = vmatprep.subr.mxu0 0.0
  %6329 = vmatpush1.msra.mxu0 0.0
  %6330 = vmatprep.subr.mxu0 0.0
  %6331 = vmatpush1.msra.mxu0 0.0
  %6332 = vmatprep.subr.mxu0 0.0
  %6333 = vmatpush1.msra.mxu0 0.0
  %6334 = vmatprep.subr.mxu0 0.0
  %6335 = vmatpush1.msra.mxu0 0.0
  %6336 = vmatprep.subr.mxu0 0.0
  %6337 = vmatpush1.msra.mxu0 0.0
  %6338 = vmatprep.subr.mxu0 0.0
  %6339 = vmatpush1.msra.mxu0 0.0
  %6340 = vmatprep.subr.mxu0 0.0
  %6341 = vmatpush1.msra.mxu0 0.0
  %6342 = vmatprep.subr.mxu0 0.0
  %6343 = vmatpush1.msra.mxu0 0.0
  %6344 = vmatprep.subr.mxu0 0.0
  %6345 = vmatpush1.msra.mxu0 0.0
  %6346 = vmatprep.subr.mxu0 0.0
  %6347 = vmatpush1.msra.mxu0 0.0
  %6348 = vmatprep.subr.mxu0 0.0
  %6349 = vmatpush1.msra.mxu0 0.0
  %6350 = vmatprep.subr.mxu0 0.0
  %6351 = vmatpush1.msra.mxu0 0.0
  %6352 = vmatprep.subr.mxu0 0.0
  %6353 = vmatpush1.msra.mxu0 0.0
  %6354 = vmatprep.mubr.f32.mxu0 0.0
  %6355 = vmatmul.mubr.f32.gmra.mrb[0].mxu0 %v6096
  %v6356 = vpop.f32.mrb[0].mxu0
  %v6357 = vadd.f32 0.0, %v6356
  %v6358 = vpop.f32.mrb[0].mxu0
  %6359 = vmatprep.mubr.f32.mxu0 0.0
  %6360 = vmatmul.mubr.f32.gmra.mrb[0].mxu0 %v6099
  %v6361 = vpop.f32.mrb[0].mxu0
  %v6362 = vadd.f32 0.0, %v6361
  %v6363 = vpop.f32.mrb[0].mxu0
  %6364 = vmatprep.mubr.f32.mxu0 0.0
  %6365 = vmatmul.mubr.f32.gmra.mrb[0].mxu0 %v6102
  %v6366 = vpop.f32.mrb[0].mxu0
  %v6367 = vadd.f32 0.0, %v6366
  %v6368 = vpop.f32.mrb[0].mxu0
  %6369 = vmatprep.mubr.f32.mxu0 0.0
  %6370 = vmatmul.mubr.f32.gmra.mrb[0].mxu0 %v6105
  %v6371 = vpop.f32.mrb[0].mxu0
  %v6372 = vadd.f32 0.0, %v6371
  %v6373 = vpop.f32.mrb[0].mxu0
  %6374 = vmatprep.mubr.f32.mxu0 0.0
  %6375 = vmatmul.mubr.f32.gmra.mrb[0].mxu0 %v6108
  %v6376 = vpop.f32.mrb[0].mxu0
  %v6377 = vadd.f32 0.0, %v6376
  %v6378 = vpop.f32.mrb[0].mxu0
  %6379 = vmatprep.mubr.f32.mxu0 0.0
  %6380 = vmatmul.mubr.f32.gmra.mrb[0].mxu0 %v6111
  %v6381 = vpop.f32.mrb[0].mxu0
  %v6382 = vadd.f32 0.0, %v6381
  %v6383 = vpop.f32.mrb[0].mxu0
  %6384 = vmatprep.mubr.f32.mxu0 0.0
  %6385 = vmatmul.mubr.f32.gmra.mrb[0].mxu0 %v6114
  %v6386 = vpop.f32.mrb[0].mxu0
  %v6387 = vadd.f32 0.0, %v6386
  %v6388 = vpop.f32.mrb[0].mxu0
  %6389 = vmatprep.mubr.f32.mxu0 0.0
  %6390 = vmatmul.mubr.f32.gmra.mrb[0].mxu0 %v6117
  %v6391 = vpop.f32.mrb[0].mxu0
  %v6392 = vadd.f32 0.0, %v6391
  %v6393 = vpop.f32.mrb[0].mxu0
  %6394 = vmatprep.mubr.f32.mxu0 0.0
  %6395 = vmatmul.mubr.f32.gmra.mrb[0].mxu0 %v6120
  %v6396 = vpop.f32.mrb[0].mxu0
  %v6397 = vadd.f32 0.0, %v6396
  %v6398 = vpop.f32.mrb[0].mxu0
  %6399 = vmatprep.mubr.f32.mxu0 0.0
  %6400 = vmatmul.mubr.f32.gmra.mrb[0].mxu0 %v6123
  %v6401 = vpop.f32.mrb[0].mxu0
  %v6402 = vadd.f32 0.0, %v6401
  %v6403 = vpop.f32.mrb[0].mxu0
  %6404 = vmatprep.mubr.f32.mxu0 0.0
  %6405 = vmatmul.mubr.f32.gmra.mrb[0].mxu0 %v6126
  %v6406 = vpop.f32.mrb[0].mxu0
  %v6407 = vadd.f32 0.0, %v6406
  %v6408 = vpop.f32.mrb[0].mxu0
  %6409 = vmatprep.mubr.f32.mxu0 0.0
  %6410 = vmatmul.mubr.f32.gmra.mrb[0].mxu0 %v6129
  %v6411 = vpop.f32.mrb[0].mxu0
  %v6412 = vadd.f32 0.0, %v6411
  %v6413 = vpop.f32.mrb[0].mxu0
  %6414 = vmatprep.mubr.f32.mxu0 0.0
  %6415 = vmatmul.mubr.f32.gmra.mrb[0].mxu0 %v6132
  %v6416 = vpop.f32.mrb[0].mxu0
  %v6417 = vadd.f32 0.0, %v6416
  %v6418 = vpop.f32.mrb[0].mxu0
  %6419 = vmatprep.mubr.f32.mxu0 0.0
  %6420 = vmatmul.mubr.f32.gmra.mrb[0].mxu0 %v6135
  %v6421 = vpop.f32.mrb[0].mxu0
  %v6422 = vadd.f32 0.0, %v6421
  %v6423 = vpop.f32.mrb[0].mxu0
  %6424 = vmatprep.mubr.f32.mxu0 0.0
  %6425 = vmatmul.mubr.f32.gmra.mrb[0].mxu0 %v6138
  %v6426 = vpop.f32.mrb[0].mxu0
  %v6427 = vadd.f32 0.0, %v6426
  %v6428 = vpop.f32.mrb[0].mxu0
  %6429 = vmatprep.mubr.f32.mxu0 0.0
  %6430 = vmatmul.mubr.f32.gmra.mrb[0].mxu0 %v6141
  %v6431 = vpop.f32.mrb[0].mxu0
  %v6432 = vadd.f32 0.0, %v6431
  %v6433 = vpop.f32.mrb[0].mxu0
  %6434 = vmatprep.mubr.f32.mxu0 0.0
  %6435 = vmatmul.mubr.f32.gmra.mrb[0].mxu0 %v6144
  %v6436 = vpop.f32.mrb[0].mxu0
  %v6437 = vadd.f32 0.0, %v6436
  %v6438 = vpop.f32.mrb[0].mxu0
  %6439 = vmatprep.mubr.f32.mxu0 0.0
  %6440 = vmatmul.mubr.f32.gmra.mrb[0].mxu0 %v6147
  %v6441 = vpop.f32.mrb[0].mxu0
  %v6442 = vadd.f32 0.0, %v6441
  %v6443 = vpop.f32.mrb[0].mxu0
  %6444 = vmatprep.mubr.f32.mxu0 0.0
  %6445 = vmatmul.mubr.f32.gmra.mrb[0].mxu0 %v6150
  %v6446 = vpop.f32.mrb[0].mxu0
  %v6447 = vadd.f32 0.0, %v6446
  %v6448 = vpop.f32.mrb[0].mxu0
  %6449 = vmatprep.mubr.f32.mxu0 0.0
  %6450 = vmatmul.mubr.f32.gmra.mrb[0].mxu0 %v6153
  %v6451 = vpop.f32.mrb[0].mxu0
  %v6452 = vadd.f32 0.0, %v6451
  %v6453 = vpop.f32.mrb[0].mxu0
  %6454 = vmatprep.mubr.f32.mxu0 0.0
  %6455 = vmatmul.mubr.f32.gmra.mrb[0].mxu0 %v6156
  %v6456 = vpop.f32.mrb[0].mxu0
  %v6457 = vadd.f32 0.0, %v6456
  %v6458 = vpop.f32.mrb[0].mxu0
  %6459 = vmatprep.mubr.f32.mxu0 0.0
  %6460 = vmatmul.mubr.f32.gmra.mrb[0].mxu0 %v6159
  %v6461 = vpop.f32.mrb[0].mxu0
  %v6462 = vadd.f32 0.0, %v6461
  %v6463 = vpop.f32.mrb[0].mxu0
  %6464 = vmatprep.mubr.f32.mxu0 0.0
  %6465 = vmatmul.mubr.f32.gmra.mrb[0].mxu0 %v6162
  %v6466 = vpop.f32.mrb[0].mxu0
  %v6467 = vadd.f32 0.0, %v6466
  %v6468 = vpop.f32.mrb[0].mxu0
  %6469 = vmatprep.mubr.f32.mxu0 0.0
  %6470 = vmatmul.mubr.f32.gmra.mrb[0].mxu0 %v6165
  %v6471 = vpop.f32.mrb[0].mxu0
  %v6472 = vadd.f32 0.0, %v6471
  %v6473 = vpop.f32.mrb[0].mxu0
  %6474 = vmatprep.mubr.f32.mxu0 0.0
  %6475 = vmatmul.mubr.f32.gmra.mrb[0].mxu0 %v6168
  %v6476 = vpop.f32.mrb[0].mxu0
  %v6477 = vadd.f32 0.0, %v6476
  %v6478 = vpop.f32.mrb[0].mxu0
  %6479 = vmatprep.mubr.f32.mxu0 0.0
  %6480 = vmatmul.mubr.f32.gmra.mrb[0].mxu0 %v6171
  %v6481 = vpop.f32.mrb[0].mxu0
  %v6482 = vadd.f32 0.0, %v6481
  %v6483 = vpop.f32.mrb[0].mxu0
  %6484 = vmatprep.mubr.f32.mxu0 0.0
  %6485 = vmatmul.mubr.f32.gmra.mrb[0].mxu0 %v6174
  %v6486 = vpop.f32.mrb[0].mxu0
  %v6487 = vadd.f32 0.0, %v6486
  %v6488 = vpop.f32.mrb[0].mxu0
  %6489 = vmatprep.mubr.f32.mxu0 0.0
  %6490 = vmatmul.mubr.f32.gmra.mrb[0].mxu0 %v6177
  %v6491 = vpop.f32.mrb[0].mxu0
  %v6492 = vadd.f32 0.0, %v6491
  %v6493 = vpop.f32.mrb[0].mxu0
  %6494 = vmatprep.mubr.f32.mxu0 0.0
  %6495 = vmatmul.mubr.f32.gmra.mrb[0].mxu0 %v6180
  %v6496 = vpop.f32.mrb[0].mxu0
  %v6497 = vadd.f32 0.0, %v6496
  %v6498 = vpop.f32.mrb[0].mxu0
  %6499 = vmatprep.mubr.f32.mxu0 0.0
  %6500 = vmatmul.mubr.f32.gmra.mrb[0].mxu0 %v6183
  %v6501 = vpop.f32.mrb[0].mxu0
  %v6502 = vadd.f32 0.0, %v6501
  %v6503 = vpop.f32.mrb[0].mxu0
  %6504 = vmatprep.mubr.f32.mxu0 0.0
  %6505 = vmatmul.mubr.f32.gmra.mrb[0].mxu0 %v6186
  %v6506 = vpop.f32.mrb[0].mxu0
  %v6507 = vadd.f32 0.0, %v6506
  %v6508 = vpop.f32.mrb[0].mxu0
  %6509 = vmatprep.mubr.f32.mxu0 0.0
  %6510 = vmatmul.mubr.f32.gmra.mrb[0].mxu0 %v6189
  %v6511 = vpop.f32.mrb[0].mxu0
  %v6512 = vadd.f32 0.0, %v6511
  %v6513 = vpop.f32.mrb[0].mxu0
  %6514 = vmatprep.mubr.f32.mxu0 0.0
  %6515 = vmatmul.mubr.f32.gmra.mrb[0].mxu0 %v6192
  %v6516 = vpop.f32.mrb[0].mxu0
  %v6517 = vadd.f32 0.0, %v6516
  %v6518 = vpop.f32.mrb[0].mxu0
  %6519 = vmatprep.mubr.f32.mxu0 0.0
  %6520 = vmatmul.mubr.f32.gmra.mrb[0].mxu0 %v6195
  %v6521 = vpop.f32.mrb[0].mxu0
  %v6522 = vadd.f32 0.0, %v6521
  %v6523 = vpop.f32.mrb[0].mxu0
  %6524 = vmatprep.mubr.f32.mxu0 0.0
  %6525 = vmatmul.mubr.f32.gmra.mrb[0].mxu0 %v6198
  %v6526 = vpop.f32.mrb[0].mxu0
  %v6527 = vadd.f32 0.0, %v6526
  %v6528 = vpop.f32.mrb[0].mxu0
  %6529 = vmatprep.mubr.f32.mxu0 0.0
  %6530 = vmatmul.mubr.f32.gmra.mrb[0].mxu0 %v6201
  %v6531 = vpop.f32.mrb[0].mxu0
  %v6532 = vadd.f32 0.0, %v6531
  %v6533 = vpop.f32.mrb[0].mxu0
  %6534 = vmatprep.mubr.f32.mxu0 0.0
  %6535 = vmatmul.mubr.f32.gmra.mrb[0].mxu0 %v6204
  %v6536 = vpop.f32.mrb[0].mxu0
  %v6537 = vadd.f32 0.0, %v6536
  %v6538 = vpop.f32.mrb[0].mxu0
  %6539 = vmatprep.mubr.f32.mxu0 0.0
  %6540 = vmatmul.mubr.f32.gmra.mrb[0].mxu0 %v6207
  %v6541 = vpop.f32.mrb[0].mxu0
  %v6542 = vadd.f32 0.0, %v6541
  %v6543 = vpop.f32.mrb[0].mxu0
  %6544 = vmatprep.mubr.f32.mxu0 0.0
  %6545 = vmatmul.mubr.f32.gmra.mrb[0].mxu0 %v6210
  %v6546 = vpop.f32.mrb[0].mxu0
  %v6547 = vadd.f32 0.0, %v6546
  %v6548 = vpop.f32.mrb[0].mxu0
  %6549 = vmatprep.mubr.f32.mxu0 0.0
  %6550 = vmatmul.mubr.f32.gmra.mrb[0].mxu0 %v6213
  %v6551 = vpop.f32.mrb[0].mxu0
  %v6552 = vadd.f32 0.0, %v6551
  %v6553 = vpop.f32.mrb[0].mxu0
  %6554 = vmatprep.mubr.f32.mxu0 0.0
  %6555 = vmatmul.mubr.f32.gmra.mrb[0].mxu0 %v6216
  %v6556 = vpop.f32.mrb[0].mxu0
  %v6557 = vadd.f32 0.0, %v6556
  %v6558 = vpop.f32.mrb[0].mxu0
  %6559 = vmatprep.mubr.f32.mxu0 0.0
  %6560 = vmatmul.mubr.f32.gmra.mrb[0].mxu0 %v6219
  %v6561 = vpop.f32.mrb[0].mxu0
  %v6562 = vadd.f32 0.0, %v6561
  %v6563 = vpop.f32.mrb[0].mxu0
  %6564 = vmatprep.mubr.f32.mxu0 0.0
  %6565 = vmatmul.mubr.f32.gmra.mrb[0].mxu0 %v6222
  %v6566 = vpop.f32.mrb[0].mxu0
  %v6567 = vadd.f32 0.0, %v6566
  %v6568 = vpop.f32.mrb[0].mxu0
  %6569 = vmatprep.mubr.f32.mxu0 0.0
  %6570 = vmatmul.mubr.f32.gmra.mrb[0].mxu0 %v6225
  %v6571 = vpop.f32.mrb[0].mxu0
  %v6572 = vadd.f32 0.0, %v6571
  %v6573 = vpop.f32.mrb[0].mxu0
  %6574 = vmatprep.mubr.f32.mxu0 0.0
  %6575 = vmatmul.mubr.f32.gmra.mrb[0].mxu0 %v6228
  %v6576 = vpop.f32.mrb[0].mxu0
  %v6577 = vadd.f32 0.0, %v6576
  %v6578 = vpop.f32.mrb[0].mxu0
  %6579 = vmatprep.mubr.f32.mxu0 0.0
  %6580 = vmatmul.mubr.f32.gmra.mrb[0].mxu0 %v6231
  %v6581 = vpop.f32.mrb[0].mxu0
  %v6582 = vadd.f32 0.0, %v6581
  %v6583 = vpop.f32.mrb[0].mxu0
  %6584 = vmatprep.mubr.f32.mxu0 0.0
  %6585 = vmatmul.mubr.f32.gmra.mrb[0].mxu0 %v6234
  %v6586 = vpop.f32.mrb[0].mxu0
  %v6587 = vadd.f32 0.0, %v6586
  %v6588 = vpop.f32.mrb[0].mxu0
  %6589 = vmatprep.mubr.f32.mxu0 0.0
  %6590 = vmatmul.mubr.f32.gmra.mrb[0].mxu0 %v6237
  %v6591 = vpop.f32.mrb[0].mxu0
  %v6592 = vadd.f32 0.0, %v6591
  %v6593 = vpop.f32.mrb[0].mxu0
  %6594 = vmatprep.mubr.f32.mxu0 0.0
  %6595 = vmatmul.mubr.f32.gmra.mrb[0].mxu0 %v6240
  %v6596 = vpop.f32.mrb[0].mxu0
  %v6597 = vadd.f32 0.0, %v6596
  %v6598 = vpop.f32.mrb[0].mxu0
  %6599 = vmatprep.mubr.f32.mxu0 0.0
  %6600 = vmatmul.mubr.f32.gmra.mrb[0].mxu0 %v6243
  %v6601 = vpop.f32.mrb[0].mxu0
  %v6602 = vadd.f32 0.0, %v6601
  %v6603 = vpop.f32.mrb[0].mxu0
  %6604 = vmatprep.mubr.f32.mxu0 0.0
  %6605 = vmatmul.mubr.f32.gmra.mrb[0].mxu0 %v6246
  %v6606 = vpop.f32.mrb[0].mxu0
  %v6607 = vadd.f32 0.0, %v6606
  %v6608 = vpop.f32.mrb[0].mxu0
  %6609 = vmatprep.mubr.f32.mxu0 0.0
  %6610 = vmatmul.mubr.f32.gmra.mrb[0].mxu0 %v6249
  %v6611 = vpop.f32.mrb[0].mxu0
  %v6612 = vadd.f32 0.0, %v6611
  %v6613 = vpop.f32.mrb[0].mxu0
  %6614 = vmatprep.mubr.f32.mxu0 0.0
  %6615 = vmatmul.mubr.f32.gmra.mrb[0].mxu0 %v6252
  %v6616 = vpop.f32.mrb[0].mxu0
  %v6617 = vadd.f32 0.0, %v6616
  %v6618 = vpop.f32.mrb[0].mxu0
  %6619 = vmatprep.mubr.f32.mxu0 0.0
  %6620 = vmatmul.mubr.f32.gmra.mrb[0].mxu0 %v6255
  %v6621 = vpop.f32.mrb[0].mxu0
  %v6622 = vadd.f32 0.0, %v6621
  %v6623 = vpop.f32.mrb[0].mxu0
  %6624 = vmatprep.mubr.f32.mxu0 0.0
  %6625 = vmatmul.mubr.f32.gmra.mrb[0].mxu0 %v6258
  %v6626 = vpop.f32.mrb[0].mxu0
  %v6627 = vadd.f32 0.0, %v6626
  %v6628 = vpop.f32.mrb[0].mxu0
  %6629 = vmatprep.mubr.f32.mxu0 0.0
  %6630 = vmatmul.mubr.f32.gmra.mrb[0].mxu0 %v6261
  %v6631 = vpop.f32.mrb[0].mxu0
  %v6632 = vadd.f32 0.0, %v6631
  %v6633 = vpop.f32.mrb[0].mxu0
  %6634 = vmatprep.mubr.f32.mxu0 0.0
  %6635 = vmatmul.mubr.f32.gmra.mrb[0].mxu0 %v6264
  %v6636 = vpop.f32.mrb[0].mxu0
  %v6637 = vadd.f32 0.0, %v6636
  %v6638 = vpop.f32.mrb[0].mxu0
  %6639 = vmatprep.mubr.f32.mxu0 0.0
  %6640 = vmatmul.mubr.f32.gmra.mrb[0].mxu0 %v6267
  %v6641 = vpop.f32.mrb[0].mxu0
  %v6642 = vadd.f32 0.0, %v6641
  %v6643 = vpop.f32.mrb[0].mxu0
  %6644 = vmatprep.mubr.f32.mxu0 0.0
  %6645 = vmatmul.mubr.f32.gmra.mrb[0].mxu0 %v6270
  %v6646 = vpop.f32.mrb[0].mxu0
  %v6647 = vadd.f32 0.0, %v6646
  %v6648 = vpop.f32.mrb[0].mxu0
  %6649 = vmatprep.mubr.f32.mxu0 0.0
  %6650 = vmatmul.mubr.f32.gmra.mrb[0].mxu0 %v6273
  %v6651 = vpop.f32.mrb[0].mxu0
  %v6652 = vadd.f32 0.0, %v6651
  %v6653 = vpop.f32.mrb[0].mxu0
  %6654 = vmatprep.mubr.f32.mxu0 0.0
  %6655 = vmatmul.mubr.f32.gmra.mrb[0].mxu0 %v6276
  %v6656 = vpop.f32.mrb[0].mxu0
  %v6657 = vadd.f32 0.0, %v6656
  %v6658 = vpop.f32.mrb[0].mxu0
  %6659 = vmatprep.mubr.f32.mxu0 0.0
  %6660 = vmatmul.mubr.f32.gmra.mrb[0].mxu0 %v6279
  %v6661 = vpop.f32.mrb[0].mxu0
  %v6662 = vadd.f32 0.0, %v6661
  %v6663 = vpop.f32.mrb[0].mxu0
  %6664 = vmatprep.mubr.f32.mxu0 0.0
  %6665 = vmatmul.mubr.f32.gmra.mrb[0].mxu0 %v6282
  %v6666 = vpop.f32.mrb[0].mxu0
  %v6667 = vadd.f32 0.0, %v6666
  %v6668 = vpop.f32.mrb[0].mxu0
  %6669 = vmatprep.mubr.f32.mxu0 0.0
  %6670 = vmatmul.mubr.f32.gmra.mrb[0].mxu0 %v6285
  %v6671 = vpop.f32.mrb[0].mxu0
  %v6672 = vadd.f32 0.0, %v6671
  %v6673 = vpop.f32.mrb[0].mxu0
  %6674 = vdwg.mxu0
  %v6675 = vadd.f32 %v6029, %v6357
  %v6676 = vadd.f32 %v6030, %v6362
  %v6677 = vadd.f32 %v6031, %v6367
  %v6678 = vadd.f32 %v6032, %v6372
  %v6679 = vadd.f32 %v6033, %v6377
  %v6680 = vadd.f32 %v6034, %v6382
  %v6681 = vadd.f32 %v6035, %v6387
  %v6682 = vadd.f32 %v6036, %v6392
  %v6683 = vadd.f32 %v6037, %v6397
  %v6684 = vadd.f32 %v6038, %v6402
  %v6685 = vadd.f32 %v6039, %v6407
  %v6686 = vadd.f32 %v6040, %v6412
  %v6687 = vadd.f32 %v6041, %v6417
  %v6688 = vadd.f32 %v6042, %v6422
  %v6689 = vadd.f32 %v6043, %v6427
  %v6690 = vadd.f32 %v6044, %v6432
  %v6691 = vadd.f32 %v6045, %v6437
  %v6692 = vadd.f32 %v6046, %v6442
  %v6693 = vadd.f32 %v6047, %v6447
  %v6694 = vadd.f32 %v6048, %v6452
  %v6695 = vadd.f32 %v6049, %v6457
  %v6696 = vadd.f32 %v6050, %v6462
  %v6697 = vadd.f32 %v6051, %v6467
  %v6698 = vadd.f32 %v6052, %v6472
  %v6699 = vadd.f32 %v6053, %v6477
  %v6700 = vadd.f32 %v6054, %v6482
  %v6701 = vadd.f32 %v6055, %v6487
  %v6702 = vadd.f32 %v6056, %v6492
  %v6703 = vadd.f32 %v6057, %v6497
  %v6704 = vadd.f32 %v6058, %v6502
  %v6705 = vadd.f32 %v6059, %v6507
  %v6706 = vadd.f32 %v6060, %v6512
  %v6707 = vadd.f32 %v6061, %v6517
  %v6708 = vadd.f32 %v6062, %v6522
  %v6709 = vadd.f32 %v6063, %v6527
  %v6710 = vadd.f32 %v6064, %v6532
  %v6711 = vadd.f32 %v6065, %v6537
  %v6712 = vadd.f32 %v6066, %v6542
  %v6713 = vadd.f32 %v6067, %v6547
  %v6714 = vadd.f32 %v6068, %v6552
  %v6715 = vadd.f32 %v6069, %v6557
  %v6716 = vadd.f32 %v6070, %v6562
  %v6717 = vadd.f32 %v6071, %v6567
  %v6718 = vadd.f32 %v6072, %v6572
  %v6719 = vadd.f32 %v6073, %v6577
  %v6720 = vadd.f32 %v6074, %v6582
  %v6721 = vadd.f32 %v6075, %v6587
  %v6722 = vadd.f32 %v6076, %v6592
  %v6723 = vadd.f32 %v6077, %v6597
  %v6724 = vadd.f32 %v6078, %v6602
  %v6725 = vadd.f32 %v6079, %v6607
  %v6726 = vadd.f32 %v6080, %v6612
  %v6727 = vadd.f32 %v6081, %v6617
  %v6728 = vadd.f32 %v6082, %v6622
  %v6729 = vadd.f32 %v6083, %v6627
  %v6730 = vadd.f32 %v6084, %v6632
  %v6731 = vadd.f32 %v6085, %v6637
  %v6732 = vadd.f32 %v6086, %v6642
  %v6733 = vadd.f32 %v6087, %v6647
  %v6734 = vadd.f32 %v6088, %v6652
  %v6735 = vadd.f32 %v6089, %v6657
  %v6736 = vadd.f32 %v6090, %v6662
  %v6737 = vadd.f32 %v6091, %v6667
  %v6738 = vadd.f32 %v6092, %v6672
  %6739 = vst [vmem:[#allocation2] sm:$0xff] %v6675
  %6740 = vst [vmem:[#allocation2 + $0x8] sm:$0xff] %v6676
  %6741 = vst [vmem:[#allocation2 + $0x10] sm:$0xff] %v6677
  %6742 = vst [vmem:[#allocation2 + $0x18] sm:$0xff] %v6678
  %6743 = vst [vmem:[#allocation2 + $0x20] sm:$0xff] %v6679
  %6744 = vst [vmem:[#allocation2 + $0x28] sm:$0xff] %v6680
  %6745 = vst [vmem:[#allocation2 + $0x30] sm:$0xff] %v6681
  %6746 = vst [vmem:[#allocation2 + $0x38] sm:$0xff] %v6682
  %6747 = vst [vmem:[#allocation2 + $0x40] sm:$0xff] %v6683
  %6748 = vst [vmem:[#allocation2 + $0x48] sm:$0xff] %v6684
  %6749 = vst [vmem:[#allocation2 + $0x50] sm:$0xff] %v6685
  %6750 = vst [vmem:[#allocation2 + $0x58] sm:$0xff] %v6686
  %6751 = vst [vmem:[#allocation2 + $0x60] sm:$0xff] %v6687
  %6752 = vst [vmem:[#allocation2 + $0x68] sm:$0xff] %v6688
  %6753 = vst [vmem:[#allocation2 + $0x70] sm:$0xff] %v6689
  %6754 = vst [vmem:[#allocation2 + $0x78] sm:$0xff] %v6690
  %6755 = vst [vmem:[#allocation2 + $0x80] sm:$0xff] %v6691
  %6756 = vst [vmem:[#allocation2 + $0x88] sm:$0xff] %v6692
  %6757 = vst [vmem:[#allocation2 + $0x90] sm:$0xff] %v6693
  %6758 = vst [vmem:[#allocation2 + $0x98] sm:$0xff] %v6694
  %6759 = vst [vmem:[#allocation2 + $0xa0] sm:$0xff] %v6695
  %6760 = vst [vmem:[#allocation2 + $0xa8] sm:$0xff] %v6696
  %6761 = vst [vmem:[#allocation2 + $0xb0] sm:$0xff] %v6697
  %6762 = vst [vmem:[#allocation2 + $0xb8] sm:$0xff] %v6698
  %6763 = vst [vmem:[#allocation2 + $0xc0] sm:$0xff] %v6699
  %6764 = vst [vmem:[#allocation2 + $0xc8] sm:$0xff] %v6700
  %6765 = vst [vmem:[#allocation2 + $0xd0] sm:$0xff] %v6701
  %6766 = vst [vmem:[#allocation2 + $0xd8] sm:$0xff] %v6702
  %6767 = vst [vmem:[#allocation2 + $0xe0] sm:$0xff] %v6703
  %6768 = vst [vmem:[#allocation2 + $0xe8] sm:$0xff] %v6704
  %6769 = vst [vmem:[#allocation2 + $0xf0] sm:$0xff] %v6705
  %6770 = vst [vmem:[#allocation2 + $0xf8] sm:$0xff] %v6706
  %6771 = vst [vmem:[#allocation2 + $0x100] sm:$0xff] %v6707
  %6772 = vst [vmem:[#allocation2 + $0x108] sm:$0xff] %v6708
  %6773 = vst [vmem:[#allocation2 + $0x110] sm:$0xff] %v6709
  %6774 = vst [vmem:[#allocation2 + $0x118] sm:$0xff] %v6710
  %6775 = vst [vmem:[#allocation2 + $0x120] sm:$0xff] %v6711
  %6776 = vst [vmem:[#allocation2 + $0x128] sm:$0xff] %v6712
  %6777 = vst [vmem:[#allocation2 + $0x130] sm:$0xff] %v6713
  %6778 = vst [vmem:[#allocation2 + $0x138] sm:$0xff] %v6714
  %6779 = vst [vmem:[#allocation2 + $0x140] sm:$0xff] %v6715
  %6780 = vst [vmem:[#allocation2 + $0x148] sm:$0xff] %v6716
  %6781 = vst [vmem:[#allocation2 + $0x150] sm:$0xff] %v6717
  %6782 = vst [vmem:[#allocation2 + $0x158] sm:$0xff] %v6718
  %6783 = vst [vmem:[#allocation2 + $0x160] sm:$0xff] %v6719
  %6784 = vst [vmem:[#allocation2 + $0x168] sm:$0xff] %v6720
  %6785 = vst [vmem:[#allocation2 + $0x170] sm:$0xff] %v6721
  %6786 = vst [vmem:[#allocation2 + $0x178] sm:$0xff] %v6722
  %6787 = vst [vmem:[#allocation2 + $0x180] sm:$0xff] %v6723
  %6788 = vst [vmem:[#allocation2 + $0x188] sm:$0xff] %v6724
  %6789 = vst [vmem:[#allocation2 + $0x190] sm:$0xff] %v6725
  %6790 = vst [vmem:[#allocation2 + $0x198] sm:$0xff] %v6726
  %6791 = vst [vmem:[#allocation2 + $0x1a0] sm:$0xff] %v6727
  %6792 = vst [vmem:[#allocation2 + $0x1a8] sm:$0xff] %v6728
  %6793 = vst [vmem:[#allocation2 + $0x1b0] sm:$0xff] %v6729
  %6794 = vst [vmem:[#allocation2 + $0x1b8] sm:$0xff] %v6730
  %6795 = vst [vmem:[#allocation2 + $0x1c0] sm:$0xff] %v6731
  %6796 = vst [vmem:[#allocation2 + $0x1c8] sm:$0xff] %v6732
  %6797 = vst [vmem:[#allocation2 + $0x1d0] sm:$0xff] %v6733
  %6798 = vst [vmem:[#allocation2 + $0x1d8] sm:$0xff] %v6734
  %6799 = vst [vmem:[#allocation2 + $0x1e0] sm:$0xff] %v6735
  %6800 = vst [vmem:[#allocation2 + $0x1e8] sm:$0xff] %v6736
  %6801 = vst [vmem:[#allocation2 + $0x1f0] sm:$0xff] %v6737
  %6802 = vst [vmem:[#allocation2 + $0x1f8] sm:$0xff] %v6738
  %v6803 = vld [vmem:[%s5126 + $0x2] sm:$0xff]
  %v6804 = vld [vmem:[%s5126 + $0xa] sm:$0xff]
  %v6805 = vld [vmem:[%s5126 + $0x1a] sm:$0xff]
  %v6806 = vld [vmem:[%s5126 + $0x22] sm:$0xff]
  %v6807 = vld [vmem:[%s5126 + $0x32] sm:$0xff]
  %v6808 = vld [vmem:[%s5126 + $0x3a] sm:$0xff]
  %v6809 = vld [vmem:[%s5126 + $0x4a] sm:$0xff]
  %v6810 = vld [vmem:[%s5126 + $0x52] sm:$0xff]
  %v6811 = vld [vmem:[%s5126 + $0x62] sm:$0xff]
  %v6812 = vld [vmem:[%s5126 + $0x6a] sm:$0xff]
  %v6813 = vld [vmem:[%s5126 + $0x7a] sm:$0xff]
  %v6814 = vld [vmem:[%s5126 + $0x82] sm:$0xff]
  %v6815 = vld [vmem:[%s5126 + $0x92] sm:$0xff]
  %v6816 = vld [vmem:[%s5126 + $0x9a] sm:$0xff]
  %v6817 = vld [vmem:[%s5126 + $0xaa] sm:$0xff]
  %v6818 = vld [vmem:[%s5126 + $0xb2] sm:$0xff]
  %v6819 = vld [vmem:[%s5126 + $0xc2] sm:$0xff]
  %v6820 = vld [vmem:[%s5126 + $0xca] sm:$0xff]
  %v6821 = vld [vmem:[%s5126 + $0xda] sm:$0xff]
  %v6822 = vld [vmem:[%s5126 + $0xe2] sm:$0xff]
  %v6823 = vld [vmem:[%s5126 + $0xf2] sm:$0xff]
  %v6824 = vld [vmem:[%s5126 + $0xfa] sm:$0xff]
  %v6825 = vld [vmem:[%s5126 + $0x10a] sm:$0xff]
  %v6826 = vld [vmem:[%s5126 + $0x112] sm:$0xff]
  %v6827 = vld [vmem:[%s5126 + $0x122] sm:$0xff]
  %v6828 = vld [vmem:[%s5126 + $0x12a] sm:$0xff]
  %v6829 = vld [vmem:[%s5126 + $0x13a] sm:$0xff]
  %v6830 = vld [vmem:[%s5126 + $0x142] sm:$0xff]
  %v6831 = vld [vmem:[%s5126 + $0x152] sm:$0xff]
  %v6832 = vld [vmem:[%s5126 + $0x15a] sm:$0xff]
  %v6833 = vld [vmem:[%s5126 + $0x16a] sm:$0xff]
  %v6834 = vld [vmem:[%s5126 + $0x172] sm:$0xff]
  %v6835 = vld [vmem:[%s5126 + $0x1b2] sm:$0xff]
  %v6836 = vld [vmem:[%s5126 + $0x1ba] sm:$0xff]
  %v6837 = vld [vmem:[%s5126 + $0x1ca] sm:$0xff]
  %v6838 = vld [vmem:[%s5126 + $0x1d2] sm:$0xff]
  %v6839 = vld [vmem:[%s5126 + $0x1e2] sm:$0xff]
  %v6840 = vld [vmem:[%s5126 + $0x1ea] sm:$0xff]
  %v6841 = vld [vmem:[%s5126 + $0x1fa] sm:$0xff]
  %v6842 = vld [vmem:[%s5126 + $0x202] sm:$0xff]
  %v6843 = vld [vmem:[%s5126 + $0x212] sm:$0xff]
  %v6844 = vld [vmem:[%s5126 + $0x21a] sm:$0xff]
  %v6845 = vld [vmem:[%s5126 + $0x22a] sm:$0xff]
  %v6846 = vld [vmem:[%s5126 + $0x232] sm:$0xff]
  %v6847 = vld [vmem:[%s5126 + $0x242] sm:$0xff]
  %v6848 = vld [vmem:[%s5126 + $0x24a] sm:$0xff]
  %v6849 = vld [vmem:[%s5126 + $0x25a] sm:$0xff]
  %v6850 = vld [vmem:[%s5126 + $0x262] sm:$0xff]
  %v6851 = vld [vmem:[%s5126 + $0x272] sm:$0xff]
  %v6852 = vld [vmem:[%s5126 + $0x27a] sm:$0xff]
  %v6853 = vld [vmem:[%s5126 + $0x28a] sm:$0xff]
  %v6854 = vld [vmem:[%s5126 + $0x292] sm:$0xff]
  %v6855 = vld [vmem:[%s5126 + $0x2a2] sm:$0xff]
  %v6856 = vld [vmem:[%s5126 + $0x2aa] sm:$0xff]
  %v6857 = vld [vmem:[%s5126 + $0x2ba] sm:$0xff]
  %v6858 = vld [vmem:[%s5126 + $0x2c2] sm:$0xff]
  %v6859 = vld [vmem:[%s5126 + $0x2d2] sm:$0xff]
  %v6860 = vld [vmem:[%s5126 + $0x2da] sm:$0xff]
  %v6861 = vld [vmem:[%s5126 + $0x2ea] sm:$0xff]
  %v6862 = vld [vmem:[%s5126 + $0x2f2] sm:$0xff]
  %v6863 = vld [vmem:[%s5126 + $0x302] sm:$0xff]
  %v6864 = vld [vmem:[%s5126 + $0x30a] sm:$0xff]
  %v6865 = vld [vmem:[%s5126 + $0x31a] sm:$0xff]
  %v6866 = vld [vmem:[%s5126 + $0x322] sm:$0xff]
  %v6867 = vld [vmem:[#allocation2] sm:$0xff]
  %v6868 = vld [vmem:[#allocation2 + $0x8] sm:$0xff]
  %v6869 = vld [vmem:[#allocation2 + $0x10] sm:$0xff]
  %v6870 = vld [vmem:[#allocation2 + $0x18] sm:$0xff]
  %v6871 = vld [vmem:[#allocation2 + $0x20] sm:$0xff]
  %v6872 = vld [vmem:[#allocation2 + $0x28] sm:$0xff]
  %v6873 = vld [vmem:[#allocation2 + $0x30] sm:$0xff]
  %v6874 = vld [vmem:[#allocation2 + $0x38] sm:$0xff]
  %v6875 = vld [vmem:[#allocation2 + $0x40] sm:$0xff]
  %v6876 = vld [vmem:[#allocation2 + $0x48] sm:$0xff]
  %v6877 = vld [vmem:[#allocation2 + $0x50] sm:$0xff]
  %v6878 = vld [vmem:[#allocation2 + $0x58] sm:$0xff]
  %v6879 = vld [vmem:[#allocation2 + $0x60] sm:$0xff]
  %v6880 = vld [vmem:[#allocation2 + $0x68] sm:$0xff]
  %v6881 = vld [vmem:[#allocation2 + $0x70] sm:$0xff]
  %v6882 = vld [vmem:[#allocation2 + $0x78] sm:$0xff]
  %v6883 = vld [vmem:[#allocation2 + $0x80] sm:$0xff]
  %v6884 = vld [vmem:[#allocation2 + $0x88] sm:$0xff]
  %v6885 = vld [vmem:[#allocation2 + $0x90] sm:$0xff]
  %v6886 = vld [vmem:[#allocation2 + $0x98] sm:$0xff]
  %v6887 = vld [vmem:[#allocation2 + $0xa0] sm:$0xff]
  %v6888 = vld [vmem:[#allocation2 + $0xa8] sm:$0xff]
  %v6889 = vld [vmem:[#allocation2 + $0xb0] sm:$0xff]
  %v6890 = vld [vmem:[#allocation2 + $0xb8] sm:$0xff]
  %v6891 = vld [vmem:[#allocation2 + $0xc0] sm:$0xff]
  %v6892 = vld [vmem:[#allocation2 + $0xc8] sm:$0xff]
  %v6893 = vld [vmem:[#allocation2 + $0xd0] sm:$0xff]
  %v6894 = vld [vmem:[#allocation2 + $0xd8] sm:$0xff]
  %v6895 = vld [vmem:[#allocation2 + $0xe0] sm:$0xff]
  %v6896 = vld [vmem:[#allocation2 + $0xe8] sm:$0xff]
  %v6897 = vld [vmem:[#allocation2 + $0xf0] sm:$0xff]
  %v6898 = vld [vmem:[#allocation2 + $0xf8] sm:$0xff]
  %v6899 = vld [vmem:[#allocation2 + $0x100] sm:$0xff]
  %v6900 = vld [vmem:[#allocation2 + $0x108] sm:$0xff]
  %v6901 = vld [vmem:[#allocation2 + $0x110] sm:$0xff]
  %v6902 = vld [vmem:[#allocation2 + $0x118] sm:$0xff]
  %v6903 = vld [vmem:[#allocation2 + $0x120] sm:$0xff]
  %v6904 = vld [vmem:[#allocation2 + $0x128] sm:$0xff]
  %v6905 = vld [vmem:[#allocation2 + $0x130] sm:$0xff]
  %v6906 = vld [vmem:[#allocation2 + $0x138] sm:$0xff]
  %v6907 = vld [vmem:[#allocation2 + $0x140] sm:$0xff]
  %v6908 = vld [vmem:[#allocation2 + $0x148] sm:$0xff]
  %v6909 = vld [vmem:[#allocation2 + $0x150] sm:$0xff]
  %v6910 = vld [vmem:[#allocation2 + $0x158] sm:$0xff]
  %v6911 = vld [vmem:[#allocation2 + $0x160] sm:$0xff]
  %v6912 = vld [vmem:[#allocation2 + $0x168] sm:$0xff]
  %v6913 = vld [vmem:[#allocation2 + $0x170] sm:$0xff]
  %v6914 = vld [vmem:[#allocation2 + $0x178] sm:$0xff]
  %v6915 = vld [vmem:[#allocation2 + $0x180] sm:$0xff]
  %v6916 = vld [vmem:[#allocation2 + $0x188] sm:$0xff]
  %v6917 = vld [vmem:[#allocation2 + $0x190] sm:$0xff]
  %v6918 = vld [vmem:[#allocation2 + $0x198] sm:$0xff]
  %v6919 = vld [vmem:[#allocation2 + $0x1a0] sm:$0xff]
  %v6920 = vld [vmem:[#allocation2 + $0x1a8] sm:$0xff]
  %v6921 = vld [vmem:[#allocation2 + $0x1b0] sm:$0xff]
  %v6922 = vld [vmem:[#allocation2 + $0x1b8] sm:$0xff]
  %v6923 = vld [vmem:[#allocation2 + $0x1c0] sm:$0xff]
  %v6924 = vld [vmem:[#allocation2 + $0x1c8] sm:$0xff]
  %v6925 = vld [vmem:[#allocation2 + $0x1d0] sm:$0xff]
  %v6926 = vld [vmem:[#allocation2 + $0x1d8] sm:$0xff]
  %v6927 = vld [vmem:[#allocation2 + $0x1e0] sm:$0xff]
  %v6928 = vld [vmem:[#allocation2 + $0x1e8] sm:$0xff]
  %v6929 = vld [vmem:[#allocation2 + $0x1f0] sm:$0xff]
  %v6930 = vld [vmem:[#allocation2 + $0x1f8] sm:$0xff]
  %s6931 = scalar_lea.vmem %s1, 32
  %v6932 = vld [vmem:[%s6931] sm:$0xf]
  %v6934 = vsel %vm225, %v6803, 0
  %v6937 = vsel %vm225, %v6804, 0
  %v6940 = vsel %vm225, %v6805, 0
  %v6943 = vsel %vm225, %v6806, 0
  %v6946 = vsel %vm225, %v6807, 0
  %v6949 = vsel %vm225, %v6808, 0
  %v6952 = vsel %vm225, %v6809, 0
  %v6955 = vsel %vm225, %v6810, 0
  %v6958 = vsel %vm225, %v6811, 0
  %v6961 = vsel %vm225, %v6812, 0
  %v6964 = vsel %vm225, %v6813, 0
  %v6967 = vsel %vm225, %v6814, 0
  %v6970 = vsel %vm225, %v6815, 0
  %v6973 = vsel %vm225, %v6816, 0
  %v6976 = vsel %vm225, %v6817, 0
  %v6979 = vsel %vm225, %v6818, 0
  %v6982 = vsel %vm225, %v6819, 0
  %v6985 = vsel %vm225, %v6820, 0
  %v6988 = vsel %vm225, %v6821, 0
  %v6991 = vsel %vm225, %v6822, 0
  %v6994 = vsel %vm225, %v6823, 0
  %v6997 = vsel %vm225, %v6824, 0
  %v7000 = vsel %vm225, %v6825, 0
  %v7003 = vsel %vm225, %v6826, 0
  %v7006 = vsel %vm225, %v6827, 0
  %v7009 = vsel %vm225, %v6828, 0
  %v7012 = vsel %vm225, %v6829, 0
  %v7015 = vsel %vm225, %v6830, 0
  %v7018 = vsel %vm225, %v6831, 0
  %v7021 = vsel %vm225, %v6832, 0
  %v7024 = vsel %vm225, %v6833, 0
  %v7027 = vsel %vm225, %v6834, 0
  %v7030 = vsel %vm225, %v6835, 0
  %v7033 = vsel %vm225, %v6836, 0
  %v7036 = vsel %vm225, %v6837, 0
  %v7039 = vsel %vm225, %v6838, 0
  %v7042 = vsel %vm225, %v6839, 0
  %v7045 = vsel %vm225, %v6840, 0
  %v7048 = vsel %vm225, %v6841, 0
  %v7051 = vsel %vm225, %v6842, 0
  %v7054 = vsel %vm225, %v6843, 0
  %v7057 = vsel %vm225, %v6844, 0
  %v7060 = vsel %vm225, %v6845, 0
  %v7063 = vsel %vm225, %v6846, 0
  %v7066 = vsel %vm225, %v6847, 0
  %v7069 = vsel %vm225, %v6848, 0
  %v7072 = vsel %vm225, %v6849, 0
  %v7075 = vsel %vm225, %v6850, 0
  %v7078 = vsel %vm225, %v6851, 0
  %v7081 = vsel %vm225, %v6852, 0
  %v7084 = vsel %vm225, %v6853, 0
  %v7087 = vsel %vm225, %v6854, 0
  %v7090 = vsel %vm225, %v6855, 0
  %v7093 = vsel %vm225, %v6856, 0
  %v7096 = vsel %vm225, %v6857, 0
  %v7099 = vsel %vm225, %v6858, 0
  %v7102 = vsel %vm225, %v6859, 0
  %v7105 = vsel %vm225, %v6860, 0
  %v7108 = vsel %vm225, %v6861, 0
  %v7111 = vsel %vm225, %v6862, 0
  %v7114 = vsel %vm225, %v6863, 0
  %v7117 = vsel %vm225, %v6864, 0
  %v7120 = vsel %vm225, %v6865, 0
  %v7123 = vsel %vm225, %v6866, 0
  %v7126 = vsel %vm418, %v6932, 0
  %7128 = vmatprep.subr.mxu0 0.0
  %7129 = vmatpush1.msra.mxu0 %v7126
  %7130 = vmatprep.subr.mxu0 0.0
  %7131 = vmatpush1.msra.mxu0 0.0
  %7132 = vmatprep.subr.mxu0 0.0
  %7133 = vmatpush1.msra.mxu0 0.0
  %7134 = vmatprep.subr.mxu0 0.0
  %7135 = vmatpush1.msra.mxu0 0.0
  %7136 = vmatprep.subr.mxu0 0.0
  %7137 = vmatpush1.msra.mxu0 0.0
  %7138 = vmatprep.subr.mxu0 0.0
  %7139 = vmatpush1.msra.mxu0 0.0
  %7140 = vmatprep.subr.mxu0 0.0
  %7141 = vmatpush1.msra.mxu0 0.0
  %7142 = vmatprep.subr.mxu0 0.0
  %7143 = vmatpush1.msra.mxu0 0.0
  %7144 = vmatprep.subr.mxu0 0.0
  %7145 = vmatpush1.msra.mxu0 0.0
  %7146 = vmatprep.subr.mxu0 0.0
  %7147 = vmatpush1.msra.mxu0 0.0
  %7148 = vmatprep.subr.mxu0 0.0
  %7149 = vmatpush1.msra.mxu0 0.0
  %7150 = vmatprep.subr.mxu0 0.0
  %7151 = vmatpush1.msra.mxu0 0.0
  %7152 = vmatprep.subr.mxu0 0.0
  %7153 = vmatpush1.msra.mxu0 0.0
  %7154 = vmatprep.subr.mxu0 0.0
  %7155 = vmatpush1.msra.mxu0 0.0
  %7156 = vmatprep.subr.mxu0 0.0
  %7157 = vmatpush1.msra.mxu0 0.0
  %7158 = vmatprep.subr.mxu0 0.0
  %7159 = vmatpush1.msra.mxu0 0.0
  %7160 = vmatprep.subr.mxu0 0.0
  %7161 = vmatpush1.msra.mxu0 0.0
  %7162 = vmatprep.subr.mxu0 0.0
  %7163 = vmatpush1.msra.mxu0 0.0
  %7164 = vmatprep.subr.mxu0 0.0
  %7165 = vmatpush1.msra.mxu0 0.0
  %7166 = vmatprep.subr.mxu0 0.0
  %7167 = vmatpush1.msra.mxu0 0.0
  %7168 = vmatprep.subr.mxu0 0.0
  %7169 = vmatpush1.msra.mxu0 0.0
  %7170 = vmatprep.subr.mxu0 0.0
  %7171 = vmatpush1.msra.mxu0 0.0
  %7172 = vmatprep.subr.mxu0 0.0
  %7173 = vmatpush1.msra.mxu0 0.0
  %7174 = vmatprep.subr.mxu0 0.0
  %7175 = vmatpush1.msra.mxu0 0.0
  %7176 = vmatprep.subr.mxu0 0.0
  %7177 = vmatpush1.msra.mxu0 0.0
  %7178 = vmatprep.subr.mxu0 0.0
  %7179 = vmatpush1.msra.mxu0 0.0
  %7180 = vmatprep.subr.mxu0 0.0
  %7181 = vmatpush1.msra.mxu0 0.0
  %7182 = vmatprep.subr.mxu0 0.0
  %7183 = vmatpush1.msra.mxu0 0.0
  %7184 = vmatprep.subr.mxu0 0.0
  %7185 = vmatpush1.msra.mxu0 0.0
  %7186 = vmatprep.subr.mxu0 0.0
  %7187 = vmatpush1.msra.mxu0 0.0
  %7188 = vmatprep.subr.mxu0 0.0
  %7189 = vmatpush1.msra.mxu0 0.0
  %7190 = vmatprep.subr.mxu0 0.0
  %7191 = vmatpush1.msra.mxu0 0.0
  %7192 = vmatprep.mubr.f32.mxu0 0.0
  %7193 = vmatmul.mubr.f32.gmra.mrb[0].mxu0 %v6934
  %v7194 = vpop.f32.mrb[0].mxu0
  %v7195 = vadd.f32 0.0, %v7194
  %v7196 = vpop.f32.mrb[0].mxu0
  %7197 = vmatprep.mubr.f32.mxu0 0.0
  %7198 = vmatmul.mubr.f32.gmra.mrb[0].mxu0 %v6937
  %v7199 = vpop.f32.mrb[0].mxu0
  %v7200 = vadd.f32 0.0, %v7199
  %v7201 = vpop.f32.mrb[0].mxu0
  %7202 = vmatprep.mubr.f32.mxu0 0.0
  %7203 = vmatmul.mubr.f32.gmra.mrb[0].mxu0 %v6940
  %v7204 = vpop.f32.mrb[0].mxu0
  %v7205 = vadd.f32 0.0, %v7204
  %v7206 = vpop.f32.mrb[0].mxu0
  %7207 = vmatprep.mubr.f32.mxu0 0.0
  %7208 = vmatmul.mubr.f32.gmra.mrb[0].mxu0 %v6943
  %v7209 = vpop.f32.mrb[0].mxu0
  %v7210 = vadd.f32 0.0, %v7209
  %v7211 = vpop.f32.mrb[0].mxu0
  %7212 = vmatprep.mubr.f32.mxu0 0.0
  %7213 = vmatmul.mubr.f32.gmra.mrb[0].mxu0 %v6946
  %v7214 = vpop.f32.mrb[0].mxu0
  %v7215 = vadd.f32 0.0, %v7214
  %v7216 = vpop.f32.mrb[0].mxu0
  %7217 = vmatprep.mubr.f32.mxu0 0.0
  %7218 = vmatmul.mubr.f32.gmra.mrb[0].mxu0 %v6949
  %v7219 = vpop.f32.mrb[0].mxu0
  %v7220 = vadd.f32 0.0, %v7219
  %v7221 = vpop.f32.mrb[0].mxu0
  %7222 = vmatprep.mubr.f32.mxu0 0.0
  %7223 = vmatmul.mubr.f32.gmra.mrb[0].mxu0 %v6952
  %v7224 = vpop.f32.mrb[0].mxu0
  %v7225 = vadd.f32 0.0, %v7224
  %v7226 = vpop.f32.mrb[0].mxu0
  %7227 = vmatprep.mubr.f32.mxu0 0.0
  %7228 = vmatmul.mubr.f32.gmra.mrb[0].mxu0 %v6955
  %v7229 = vpop.f32.mrb[0].mxu0
  %v7230 = vadd.f32 0.0, %v7229
  %v7231 = vpop.f32.mrb[0].mxu0
  %7232 = vmatprep.mubr.f32.mxu0 0.0
  %7233 = vmatmul.mubr.f32.gmra.mrb[0].mxu0 %v6958
  %v7234 = vpop.f32.mrb[0].mxu0
  %v7235 = vadd.f32 0.0, %v7234
  %v7236 = vpop.f32.mrb[0].mxu0
  %7237 = vmatprep.mubr.f32.mxu0 0.0
  %7238 = vmatmul.mubr.f32.gmra.mrb[0].mxu0 %v6961
  %v7239 = vpop.f32.mrb[0].mxu0
  %v7240 = vadd.f32 0.0, %v7239
  %v7241 = vpop.f32.mrb[0].mxu0
  %7242 = vmatprep.mubr.f32.mxu0 0.0
  %7243 = vmatmul.mubr.f32.gmra.mrb[0].mxu0 %v6964
  %v7244 = vpop.f32.mrb[0].mxu0
  %v7245 = vadd.f32 0.0, %v7244
  %v7246 = vpop.f32.mrb[0].mxu0
  %7247 = vmatprep.mubr.f32.mxu0 0.0
  %7248 = vmatmul.mubr.f32.gmra.mrb[0].mxu0 %v6967
  %v7249 = vpop.f32.mrb[0].mxu0
  %v7250 = vadd.f32 0.0, %v7249
  %v7251 = vpop.f32.mrb[0].mxu0
  %7252 = vmatprep.mubr.f32.mxu0 0.0
  %7253 = vmatmul.mubr.f32.gmra.mrb[0].mxu0 %v6970
  %v7254 = vpop.f32.mrb[0].mxu0
  %v7255 = vadd.f32 0.0, %v7254
  %v7256 = vpop.f32.mrb[0].mxu0
  %7257 = vmatprep.mubr.f32.mxu0 0.0
  %7258 = vmatmul.mubr.f32.gmra.mrb[0].mxu0 %v6973
  %v7259 = vpop.f32.mrb[0].mxu0
  %v7260 = vadd.f32 0.0, %v7259
  %v7261 = vpop.f32.mrb[0].mxu0
  %7262 = vmatprep.mubr.f32.mxu0 0.0
  %7263 = vmatmul.mubr.f32.gmra.mrb[0].mxu0 %v6976
  %v7264 = vpop.f32.mrb[0].mxu0
  %v7265 = vadd.f32 0.0, %v7264
  %v7266 = vpop.f32.mrb[0].mxu0
  %7267 = vmatprep.mubr.f32.mxu0 0.0
  %7268 = vmatmul.mubr.f32.gmra.mrb[0].mxu0 %v6979
  %v7269 = vpop.f32.mrb[0].mxu0
  %v7270 = vadd.f32 0.0, %v7269
  %v7271 = vpop.f32.mrb[0].mxu0
  %7272 = vmatprep.mubr.f32.mxu0 0.0
  %7273 = vmatmul.mubr.f32.gmra.mrb[0].mxu0 %v6982
  %v7274 = vpop.f32.mrb[0].mxu0
  %v7275 = vadd.f32 0.0, %v7274
  %v7276 = vpop.f32.mrb[0].mxu0
  %7277 = vmatprep.mubr.f32.mxu0 0.0
  %7278 = vmatmul.mubr.f32.gmra.mrb[0].mxu0 %v6985
  %v7279 = vpop.f32.mrb[0].mxu0
  %v7280 = vadd.f32 0.0, %v7279
  %v7281 = vpop.f32.mrb[0].mxu0
  %7282 = vmatprep.mubr.f32.mxu0 0.0
  %7283 = vmatmul.mubr.f32.gmra.mrb[0].mxu0 %v6988
  %v7284 = vpop.f32.mrb[0].mxu0
  %v7285 = vadd.f32 0.0, %v7284
  %v7286 = vpop.f32.mrb[0].mxu0
  %7287 = vmatprep.mubr.f32.mxu0 0.0
  %7288 = vmatmul.mubr.f32.gmra.mrb[0].mxu0 %v6991
  %v7289 = vpop.f32.mrb[0].mxu0
  %v7290 = vadd.f32 0.0, %v7289
  %v7291 = vpop.f32.mrb[0].mxu0
  %7292 = vmatprep.mubr.f32.mxu0 0.0
  %7293 = vmatmul.mubr.f32.gmra.mrb[0].mxu0 %v6994
  %v7294 = vpop.f32.mrb[0].mxu0
  %v7295 = vadd.f32 0.0, %v7294
  %v7296 = vpop.f32.mrb[0].mxu0
  %7297 = vmatprep.mubr.f32.mxu0 0.0
  %7298 = vmatmul.mubr.f32.gmra.mrb[0].mxu0 %v6997
  %v7299 = vpop.f32.mrb[0].mxu0
  %v7300 = vadd.f32 0.0, %v7299
  %v7301 = vpop.f32.mrb[0].mxu0
  %7302 = vmatprep.mubr.f32.mxu0 0.0
  %7303 = vmatmul.mubr.f32.gmra.mrb[0].mxu0 %v7000
  %v7304 = vpop.f32.mrb[0].mxu0
  %v7305 = vadd.f32 0.0, %v7304
  %v7306 = vpop.f32.mrb[0].mxu0
  %7307 = vmatprep.mubr.f32.mxu0 0.0
  %7308 = vmatmul.mubr.f32.gmra.mrb[0].mxu0 %v7003
  %v7309 = vpop.f32.mrb[0].mxu0
  %v7310 = vadd.f32 0.0, %v7309
  %v7311 = vpop.f32.mrb[0].mxu0
  %7312 = vmatprep.mubr.f32.mxu0 0.0
  %7313 = vmatmul.mubr.f32.gmra.mrb[0].mxu0 %v7006
  %v7314 = vpop.f32.mrb[0].mxu0
  %v7315 = vadd.f32 0.0, %v7314
  %v7316 = vpop.f32.mrb[0].mxu0
  %7317 = vmatprep.mubr.f32.mxu0 0.0
  %7318 = vmatmul.mubr.f32.gmra.mrb[0].mxu0 %v7009
  %v7319 = vpop.f32.mrb[0].mxu0
  %v7320 = vadd.f32 0.0, %v7319
  %v7321 = vpop.f32.mrb[0].mxu0
  %7322 = vmatprep.mubr.f32.mxu0 0.0
  %7323 = vmatmul.mubr.f32.gmra.mrb[0].mxu0 %v7012
  %v7324 = vpop.f32.mrb[0].mxu0
  %v7325 = vadd.f32 0.0, %v7324
  %v7326 = vpop.f32.mrb[0].mxu0
  %7327 = vmatprep.mubr.f32.mxu0 0.0
  %7328 = vmatmul.mubr.f32.gmra.mrb[0].mxu0 %v7015
  %v7329 = vpop.f32.mrb[0].mxu0
  %v7330 = vadd.f32 0.0, %v7329
  %v7331 = vpop.f32.mrb[0].mxu0
  %7332 = vmatprep.mubr.f32.mxu0 0.0
  %7333 = vmatmul.mubr.f32.gmra.mrb[0].mxu0 %v7018
  %v7334 = vpop.f32.mrb[0].mxu0
  %v7335 = vadd.f32 0.0, %v7334
  %v7336 = vpop.f32.mrb[0].mxu0
  %7337 = vmatprep.mubr.f32.mxu0 0.0
  %7338 = vmatmul.mubr.f32.gmra.mrb[0].mxu0 %v7021
  %v7339 = vpop.f32.mrb[0].mxu0
  %v7340 = vadd.f32 0.0, %v7339
  %v7341 = vpop.f32.mrb[0].mxu0
  %7342 = vmatprep.mubr.f32.mxu0 0.0
  %7343 = vmatmul.mubr.f32.gmra.mrb[0].mxu0 %v7024
  %v7344 = vpop.f32.mrb[0].mxu0
  %v7345 = vadd.f32 0.0, %v7344
  %v7346 = vpop.f32.mrb[0].mxu0
  %7347 = vmatprep.mubr.f32.mxu0 0.0
  %7348 = vmatmul.mubr.f32.gmra.mrb[0].mxu0 %v7027
  %v7349 = vpop.f32.mrb[0].mxu0
  %v7350 = vadd.f32 0.0, %v7349
  %v7351 = vpop.f32.mrb[0].mxu0
  %7352 = vmatprep.mubr.f32.mxu0 0.0
  %7353 = vmatmul.mubr.f32.gmra.mrb[0].mxu0 %v7030
  %v7354 = vpop.f32.mrb[0].mxu0
  %v7355 = vadd.f32 0.0, %v7354
  %v7356 = vpop.f32.mrb[0].mxu0
  %7357 = vmatprep.mubr.f32.mxu0 0.0
  %7358 = vmatmul.mubr.f32.gmra.mrb[0].mxu0 %v7033
  %v7359 = vpop.f32.mrb[0].mxu0
  %v7360 = vadd.f32 0.0, %v7359
  %v7361 = vpop.f32.mrb[0].mxu0
  %7362 = vmatprep.mubr.f32.mxu0 0.0
  %7363 = vmatmul.mubr.f32.gmra.mrb[0].mxu0 %v7036
  %v7364 = vpop.f32.mrb[0].mxu0
  %v7365 = vadd.f32 0.0, %v7364
  %v7366 = vpop.f32.mrb[0].mxu0
  %7367 = vmatprep.mubr.f32.mxu0 0.0
  %7368 = vmatmul.mubr.f32.gmra.mrb[0].mxu0 %v7039
  %v7369 = vpop.f32.mrb[0].mxu0
  %v7370 = vadd.f32 0.0, %v7369
  %v7371 = vpop.f32.mrb[0].mxu0
  %7372 = vmatprep.mubr.f32.mxu0 0.0
  %7373 = vmatmul.mubr.f32.gmra.mrb[0].mxu0 %v7042
  %v7374 = vpop.f32.mrb[0].mxu0
  %v7375 = vadd.f32 0.0, %v7374
  %v7376 = vpop.f32.mrb[0].mxu0
  %7377 = vmatprep.mubr.f32.mxu0 0.0
  %7378 = vmatmul.mubr.f32.gmra.mrb[0].mxu0 %v7045
  %v7379 = vpop.f32.mrb[0].mxu0
  %v7380 = vadd.f32 0.0, %v7379
  %v7381 = vpop.f32.mrb[0].mxu0
  %7382 = vmatprep.mubr.f32.mxu0 0.0
  %7383 = vmatmul.mubr.f32.gmra.mrb[0].mxu0 %v7048
  %v7384 = vpop.f32.mrb[0].mxu0
  %v7385 = vadd.f32 0.0, %v7384
  %v7386 = vpop.f32.mrb[0].mxu0
  %7387 = vmatprep.mubr.f32.mxu0 0.0
  %7388 = vmatmul.mubr.f32.gmra.mrb[0].mxu0 %v7051
  %v7389 = vpop.f32.mrb[0].mxu0
  %v7390 = vadd.f32 0.0, %v7389
  %v7391 = vpop.f32.mrb[0].mxu0
  %7392 = vmatprep.mubr.f32.mxu0 0.0
  %7393 = vmatmul.mubr.f32.gmra.mrb[0].mxu0 %v7054
  %v7394 = vpop.f32.mrb[0].mxu0
  %v7395 = vadd.f32 0.0, %v7394
  %v7396 = vpop.f32.mrb[0].mxu0
  %7397 = vmatprep.mubr.f32.mxu0 0.0
  %7398 = vmatmul.mubr.f32.gmra.mrb[0].mxu0 %v7057
  %v7399 = vpop.f32.mrb[0].mxu0
  %v7400 = vadd.f32 0.0, %v7399
  %v7401 = vpop.f32.mrb[0].mxu0
  %7402 = vmatprep.mubr.f32.mxu0 0.0
  %7403 = vmatmul.mubr.f32.gmra.mrb[0].mxu0 %v7060
  %v7404 = vpop.f32.mrb[0].mxu0
  %v7405 = vadd.f32 0.0, %v7404
  %v7406 = vpop.f32.mrb[0].mxu0
  %7407 = vmatprep.mubr.f32.mxu0 0.0
  %7408 = vmatmul.mubr.f32.gmra.mrb[0].mxu0 %v7063
  %v7409 = vpop.f32.mrb[0].mxu0
  %v7410 = vadd.f32 0.0, %v7409
  %v7411 = vpop.f32.mrb[0].mxu0
  %7412 = vmatprep.mubr.f32.mxu0 0.0
  %7413 = vmatmul.mubr.f32.gmra.mrb[0].mxu0 %v7066
  %v7414 = vpop.f32.mrb[0].mxu0
  %v7415 = vadd.f32 0.0, %v7414
  %v7416 = vpop.f32.mrb[0].mxu0
  %7417 = vmatprep.mubr.f32.mxu0 0.0
  %7418 = vmatmul.mubr.f32.gmra.mrb[0].mxu0 %v7069
  %v7419 = vpop.f32.mrb[0].mxu0
  %v7420 = vadd.f32 0.0, %v7419
  %v7421 = vpop.f32.mrb[0].mxu0
  %7422 = vmatprep.mubr.f32.mxu0 0.0
  %7423 = vmatmul.mubr.f32.gmra.mrb[0].mxu0 %v7072
  %v7424 = vpop.f32.mrb[0].mxu0
  %v7425 = vadd.f32 0.0, %v7424
  %v7426 = vpop.f32.mrb[0].mxu0
  %7427 = vmatprep.mubr.f32.mxu0 0.0
  %7428 = vmatmul.mubr.f32.gmra.mrb[0].mxu0 %v7075
  %v7429 = vpop.f32.mrb[0].mxu0
  %v7430 = vadd.f32 0.0, %v7429
  %v7431 = vpop.f32.mrb[0].mxu0
  %7432 = vmatprep.mubr.f32.mxu0 0.0
  %7433 = vmatmul.mubr.f32.gmra.mrb[0].mxu0 %v7078
  %v7434 = vpop.f32.mrb[0].mxu0
  %v7435 = vadd.f32 0.0, %v7434
  %v7436 = vpop.f32.mrb[0].mxu0
  %7437 = vmatprep.mubr.f32.mxu0 0.0
  %7438 = vmatmul.mubr.f32.gmra.mrb[0].mxu0 %v7081
  %v7439 = vpop.f32.mrb[0].mxu0
  %v7440 = vadd.f32 0.0, %v7439
  %v7441 = vpop.f32.mrb[0].mxu0
  %7442 = vmatprep.mubr.f32.mxu0 0.0
  %7443 = vmatmul.mubr.f32.gmra.mrb[0].mxu0 %v7084
  %v7444 = vpop.f32.mrb[0].mxu0
  %v7445 = vadd.f32 0.0, %v7444
  %v7446 = vpop.f32.mrb[0].mxu0
  %7447 = vmatprep.mubr.f32.mxu0 0.0
  %7448 = vmatmul.mubr.f32.gmra.mrb[0].mxu0 %v7087
  %v7449 = vpop.f32.mrb[0].mxu0
  %v7450 = vadd.f32 0.0, %v7449
  %v7451 = vpop.f32.mrb[0].mxu0
  %7452 = vmatprep.mubr.f32.mxu0 0.0
  %7453 = vmatmul.mubr.f32.gmra.mrb[0].mxu0 %v7090
  %v7454 = vpop.f32.mrb[0].mxu0
  %v7455 = vadd.f32 0.0, %v7454
  %v7456 = vpop.f32.mrb[0].mxu0
  %7457 = vmatprep.mubr.f32.mxu0 0.0
  %7458 = vmatmul.mubr.f32.gmra.mrb[0].mxu0 %v7093
  %v7459 = vpop.f32.mrb[0].mxu0
  %v7460 = vadd.f32 0.0, %v7459
  %v7461 = vpop.f32.mrb[0].mxu0
  %7462 = vmatprep.mubr.f32.mxu0 0.0
  %7463 = vmatmul.mubr.f32.gmra.mrb[0].mxu0 %v7096
  %v7464 = vpop.f32.mrb[0].mxu0
  %v7465 = vadd.f32 0.0, %v7464
  %v7466 = vpop.f32.mrb[0].mxu0
  %7467 = vmatprep.mubr.f32.mxu0 0.0
  %7468 = vmatmul.mubr.f32.gmra.mrb[0].mxu0 %v7099
  %v7469 = vpop.f32.mrb[0].mxu0
  %v7470 = vadd.f32 0.0, %v7469
  %v7471 = vpop.f32.mrb[0].mxu0
  %7472 = vmatprep.mubr.f32.mxu0 0.0
  %7473 = vmatmul.mubr.f32.gmra.mrb[0].mxu0 %v7102
  %v7474 = vpop.f32.mrb[0].mxu0
  %v7475 = vadd.f32 0.0, %v7474
  %v7476 = vpop.f32.mrb[0].mxu0
  %7477 = vmatprep.mubr.f32.mxu0 0.0
  %7478 = vmatmul.mubr.f32.gmra.mrb[0].mxu0 %v7105
  %v7479 = vpop.f32.mrb[0].mxu0
  %v7480 = vadd.f32 0.0, %v7479
  %v7481 = vpop.f32.mrb[0].mxu0
  %7482 = vmatprep.mubr.f32.mxu0 0.0
  %7483 = vmatmul.mubr.f32.gmra.mrb[0].mxu0 %v7108
  %v7484 = vpop.f32.mrb[0].mxu0
  %v7485 = vadd.f32 0.0, %v7484
  %v7486 = vpop.f32.mrb[0].mxu0
  %7487 = vmatprep.mubr.f32.mxu0 0.0
  %7488 = vmatmul.mubr.f32.gmra.mrb[0].mxu0 %v7111
  %v7489 = vpop.f32.mrb[0].mxu0
  %v7490 = vadd.f32 0.0, %v7489
  %v7491 = vpop.f32.mrb[0].mxu0
  %7492 = vmatprep.mubr.f32.mxu0 0.0
  %7493 = vmatmul.mubr.f32.gmra.mrb[0].mxu0 %v7114
  %v7494 = vpop.f32.mrb[0].mxu0
  %v7495 = vadd.f32 0.0, %v7494
  %v7496 = vpop.f32.mrb[0].mxu0
  %7497 = vmatprep.mubr.f32.mxu0 0.0
  %7498 = vmatmul.mubr.f32.gmra.mrb[0].mxu0 %v7117
  %v7499 = vpop.f32.mrb[0].mxu0
  %v7500 = vadd.f32 0.0, %v7499
  %v7501 = vpop.f32.mrb[0].mxu0
  %7502 = vmatprep.mubr.f32.mxu0 0.0
  %7503 = vmatmul.mubr.f32.gmra.mrb[0].mxu0 %v7120
  %v7504 = vpop.f32.mrb[0].mxu0
  %v7505 = vadd.f32 0.0, %v7504
  %v7506 = vpop.f32.mrb[0].mxu0
  %7507 = vmatprep.mubr.f32.mxu0 0.0
  %7508 = vmatmul.mubr.f32.gmra.mrb[0].mxu0 %v7123
  %v7509 = vpop.f32.mrb[0].mxu0
  %v7510 = vadd.f32 0.0, %v7509
  %v7511 = vpop.f32.mrb[0].mxu0
  %7512 = vdwg.mxu0
  %v7513 = vadd.f32 %v6867, %v7195
  %v7514 = vadd.f32 %v6868, %v7200
  %v7515 = vadd.f32 %v6869, %v7205
  %v7516 = vadd.f32 %v6870, %v7210
  %v7517 = vadd.f32 %v6871, %v7215
  %v7518 = vadd.f32 %v6872, %v7220
  %v7519 = vadd.f32 %v6873, %v7225
  %v7520 = vadd.f32 %v6874, %v7230
  %v7521 = vadd.f32 %v6875, %v7235
  %v7522 = vadd.f32 %v6876, %v7240
  %v7523 = vadd.f32 %v6877, %v7245
  %v7524 = vadd.f32 %v6878, %v7250
  %v7525 = vadd.f32 %v6879, %v7255
  %v7526 = vadd.f32 %v6880, %v7260
  %v7527 = vadd.f32 %v6881, %v7265
  %v7528 = vadd.f32 %v6882, %v7270
  %v7529 = vadd.f32 %v6883, %v7275
  %v7530 = vadd.f32 %v6884, %v7280
  %v7531 = vadd.f32 %v6885, %v7285
  %v7532 = vadd.f32 %v6886, %v7290
  %v7533 = vadd.f32 %v6887, %v7295
  %v7534 = vadd.f32 %v6888, %v7300
  %v7535 = vadd.f32 %v6889, %v7305
  %v7536 = vadd.f32 %v6890, %v7310
  %v7537 = vadd.f32 %v6891, %v7315
  %v7538 = vadd.f32 %v6892, %v7320
  %v7539 = vadd.f32 %v6893, %v7325
  %v7540 = vadd.f32 %v6894, %v7330
  %v7541 = vadd.f32 %v6895, %v7335
  %v7542 = vadd.f32 %v6896, %v7340
  %v7543 = vadd.f32 %v6897, %v7345
  %v7544 = vadd.f32 %v6898, %v7350
  %v7545 = vadd.f32 %v6899, %v7355
  %v7546 = vadd.f32 %v6900, %v7360
  %v7547 = vadd.f32 %v6901, %v7365
  %v7548 = vadd.f32 %v6902, %v7370
  %v7549 = vadd.f32 %v6903, %v7375
  %v7550 = vadd.f32 %v6904, %v7380
  %v7551 = vadd.f32 %v6905, %v7385
  %v7552 = vadd.f32 %v6906, %v7390
  %v7553 = vadd.f32 %v6907, %v7395
  %v7554 = vadd.f32 %v6908, %v7400
  %v7555 = vadd.f32 %v6909, %v7405
  %v7556 = vadd.f32 %v6910, %v7410
  %v7557 = vadd.f32 %v6911, %v7415
  %v7558 = vadd.f32 %v6912, %v7420
  %v7559 = vadd.f32 %v6913, %v7425
  %v7560 = vadd.f32 %v6914, %v7430
  %v7561 = vadd.f32 %v6915, %v7435
  %v7562 = vadd.f32 %v6916, %v7440
  %v7563 = vadd.f32 %v6917, %v7445
  %v7564 = vadd.f32 %v6918, %v7450
  %v7565 = vadd.f32 %v6919, %v7455
  %v7566 = vadd.f32 %v6920, %v7460
  %v7567 = vadd.f32 %v6921, %v7465
  %v7568 = vadd.f32 %v6922, %v7470
  %v7569 = vadd.f32 %v6923, %v7475
  %v7570 = vadd.f32 %v6924, %v7480
  %v7571 = vadd.f32 %v6925, %v7485
  %v7572 = vadd.f32 %v6926, %v7490
  %v7573 = vadd.f32 %v6927, %v7495
  %v7574 = vadd.f32 %v6928, %v7500
  %v7575 = vadd.f32 %v6929, %v7505
  %v7576 = vadd.f32 %v6930, %v7510
  %7577 = vst [vmem:[#allocation2] sm:$0xff] %v7513
  %7578 = vst [vmem:[#allocation2 + $0x8] sm:$0xff] %v7514
  %7579 = vst [vmem:[#allocation2 + $0x10] sm:$0xff] %v7515
  %7580 = vst [vmem:[#allocation2 + $0x18] sm:$0xff] %v7516
  %7581 = vst [vmem:[#allocation2 + $0x20] sm:$0xff] %v7517
  %7582 = vst [vmem:[#allocation2 + $0x28] sm:$0xff] %v7518
  %7583 = vst [vmem:[#allocation2 + $0x30] sm:$0xff] %v7519
  %7584 = vst [vmem:[#allocation2 + $0x38] sm:$0xff] %v7520
  %7585 = vst [vmem:[#allocation2 + $0x40] sm:$0xff] %v7521
  %7586 = vst [vmem:[#allocation2 + $0x48] sm:$0xff] %v7522
  %7587 = vst [vmem:[#allocation2 + $0x50] sm:$0xff] %v7523
  %7588 = vst [vmem:[#allocation2 + $0x58] sm:$0xff] %v7524
  %7589 = vst [vmem:[#allocation2 + $0x60] sm:$0xff] %v7525
  %7590 = vst [vmem:[#allocation2 + $0x68] sm:$0xff] %v7526
  %7591 = vst [vmem:[#allocation2 + $0x70] sm:$0xff] %v7527
  %7592 = vst [vmem:[#allocation2 + $0x78] sm:$0xff] %v7528
  %7593 = vst [vmem:[#allocation2 + $0x80] sm:$0xff] %v7529
  %7594 = vst [vmem:[#allocation2 + $0x88] sm:$0xff] %v7530
  %7595 = vst [vmem:[#allocation2 + $0x90] sm:$0xff] %v7531
  %7596 = vst [vmem:[#allocation2 + $0x98] sm:$0xff] %v7532
  %7597 = vst [vmem:[#allocation2 + $0xa0] sm:$0xff] %v7533
  %7598 = vst [vmem:[#allocation2 + $0xa8] sm:$0xff] %v7534
  %7599 = vst [vmem:[#allocation2 + $0xb0] sm:$0xff] %v7535
  %7600 = vst [vmem:[#allocation2 + $0xb8] sm:$0xff] %v7536
  %7601 = vst [vmem:[#allocation2 + $0xc0] sm:$0xff] %v7537
  %7602 = vst [vmem:[#allocation2 + $0xc8] sm:$0xff] %v7538
  %7603 = vst [vmem:[#allocation2 + $0xd0] sm:$0xff] %v7539
  %7604 = vst [vmem:[#allocation2 + $0xd8] sm:$0xff] %v7540
  %7605 = vst [vmem:[#allocation2 + $0xe0] sm:$0xff] %v7541
  %7606 = vst [vmem:[#allocation2 + $0xe8] sm:$0xff] %v7542
  %7607 = vst [vmem:[#allocation2 + $0xf0] sm:$0xff] %v7543
  %7608 = vst [vmem:[#allocation2 + $0xf8] sm:$0xff] %v7544
  %7609 = vst [vmem:[#allocation2 + $0x100] sm:$0xff] %v7545
  %7610 = vst [vmem:[#allocation2 + $0x108] sm:$0xff] %v7546
  %7611 = vst [vmem:[#allocation2 + $0x110] sm:$0xff] %v7547
  %7612 = vst [vmem:[#allocation2 + $0x118] sm:$0xff] %v7548
  %7613 = vst [vmem:[#allocation2 + $0x120] sm:$0xff] %v7549
  %7614 = vst [vmem:[#allocation2 + $0x128] sm:$0xff] %v7550
  %7615 = vst [vmem:[#allocation2 + $0x130] sm:$0xff] %v7551
  %7616 = vst [vmem:[#allocation2 + $0x138] sm:$0xff] %v7552
  %7617 = vst [vmem:[#allocation2 + $0x140] sm:$0xff] %v7553
  %7618 = vst [vmem:[#allocation2 + $0x148] sm:$0xff] %v7554
  %7619 = vst [vmem:[#allocation2 + $0x150] sm:$0xff] %v7555
  %7620 = vst [vmem:[#allocation2 + $0x158] sm:$0xff] %v7556
  %7621 = vst [vmem:[#allocation2 + $0x160] sm:$0xff] %v7557
  %7622 = vst [vmem:[#allocation2 + $0x168] sm:$0xff] %v7558
  %7623 = vst [vmem:[#allocation2 + $0x170] sm:$0xff] %v7559
  %7624 = vst [vmem:[#allocation2 + $0x178] sm:$0xff] %v7560
  %7625 = vst [vmem:[#allocation2 + $0x180] sm:$0xff] %v7561
  %7626 = vst [vmem:[#allocation2 + $0x188] sm:$0xff] %v7562
  %7627 = vst [vmem:[#allocation2 + $0x190] sm:$0xff] %v7563
  %7628 = vst [vmem:[#allocation2 + $0x198] sm:$0xff] %v7564
  %7629 = vst [vmem:[#allocation2 + $0x1a0] sm:$0xff] %v7565
  %7630 = vst [vmem:[#allocation2 + $0x1a8] sm:$0xff] %v7566
  %7631 = vst [vmem:[#allocation2 + $0x1b0] sm:$0xff] %v7567
  %7632 = vst [vmem:[#allocation2 + $0x1b8] sm:$0xff] %v7568
  %7633 = vst [vmem:[#allocation2 + $0x1c0] sm:$0xff] %v7569
  %7634 = vst [vmem:[#allocation2 + $0x1c8] sm:$0xff] %v7570
  %7635 = vst [vmem:[#allocation2 + $0x1d0] sm:$0xff] %v7571
  %7636 = vst [vmem:[#allocation2 + $0x1d8] sm:$0xff] %v7572
  %7637 = vst [vmem:[#allocation2 + $0x1e0] sm:$0xff] %v7573
  %7638 = vst [vmem:[#allocation2 + $0x1e8] sm:$0xff] %v7574
  %7639 = vst [vmem:[#allocation2 + $0x1f0] sm:$0xff] %v7575
  %7640 = vst [vmem:[#allocation2 + $0x1f8] sm:$0xff] %v7576
  %v7641 = vld [vmem:[#allocation2] sm:$0xff]
  %v7642 = vld [vmem:[#allocation2 + $0x8] sm:$0xff]
  %v7643 = vld [vmem:[#allocation2 + $0x10] sm:$0xff]
  %v7644 = vld [vmem:[#allocation2 + $0x18] sm:$0xff]
  %v7645 = vld [vmem:[#allocation2 + $0x20] sm:$0xff]
  %v7646 = vld [vmem:[#allocation2 + $0x28] sm:$0xff]
  %v7647 = vld [vmem:[#allocation2 + $0x30] sm:$0xff]
  %v7648 = vld [vmem:[#allocation2 + $0x38] sm:$0xff]
  %v7649 = vld [vmem:[#allocation2 + $0x40] sm:$0xff]
  %v7650 = vld [vmem:[#allocation2 + $0x48] sm:$0xff]
  %v7651 = vld [vmem:[#allocation2 + $0x50] sm:$0xff]
  %v7652 = vld [vmem:[#allocation2 + $0x58] sm:$0xff]
  %v7653 = vld [vmem:[#allocation2 + $0x60] sm:$0xff]
  %v7654 = vld [vmem:[#allocation2 + $0x68] sm:$0xff]
  %v7655 = vld [vmem:[#allocation2 + $0x70] sm:$0xff]
  %v7656 = vld [vmem:[#allocation2 + $0x78] sm:$0xff]
  %v7657 = vld [vmem:[#allocation2 + $0x80] sm:$0xff]
  %v7658 = vld [vmem:[#allocation2 + $0x88] sm:$0xff]
  %v7659 = vld [vmem:[#allocation2 + $0x90] sm:$0xff]
  %v7660 = vld [vmem:[#allocation2 + $0x98] sm:$0xff]
  %v7661 = vld [vmem:[#allocation2 + $0xa0] sm:$0xff]
  %v7662 = vld [vmem:[#allocation2 + $0xa8] sm:$0xff]
  %v7663 = vld [vmem:[#allocation2 + $0xb0] sm:$0xff]
  %v7664 = vld [vmem:[#allocation2 + $0xb8] sm:$0xff]
  %v7665 = vld [vmem:[#allocation2 + $0xc0] sm:$0xff]
  %v7666 = vld [vmem:[#allocation2 + $0xc8] sm:$0xff]
  %v7667 = vld [vmem:[#allocation2 + $0xd0] sm:$0xff]
  %v7668 = vld [vmem:[#allocation2 + $0xd8] sm:$0xff]
  %v7669 = vld [vmem:[#allocation2 + $0xe0] sm:$0xff]
  %v7670 = vld [vmem:[#allocation2 + $0xe8] sm:$0xff]
  %v7671 = vld [vmem:[#allocation2 + $0xf0] sm:$0xff]
  %v7672 = vld [vmem:[#allocation2 + $0xf8] sm:$0xff]
  %v7673 = vld [vmem:[#allocation2 + $0x100] sm:$0xff]
  %v7674 = vld [vmem:[#allocation2 + $0x108] sm:$0xff]
  %v7675 = vld [vmem:[#allocation2 + $0x110] sm:$0xff]
  %v7676 = vld [vmem:[#allocation2 + $0x118] sm:$0xff]
  %v7677 = vld [vmem:[#allocation2 + $0x120] sm:$0xff]
  %v7678 = vld [vmem:[#allocation2 + $0x128] sm:$0xff]
  %v7679 = vld [vmem:[#allocation2 + $0x130] sm:$0xff]
  %v7680 = vld [vmem:[#allocation2 + $0x138] sm:$0xff]
  %v7681 = vld [vmem:[#allocation2 + $0x140] sm:$0xff]
  %v7682 = vld [vmem:[#allocation2 + $0x148] sm:$0xff]
  %v7683 = vld [vmem:[#allocation2 + $0x150] sm:$0xff]
  %v7684 = vld [vmem:[#allocation2 + $0x158] sm:$0xff]
  %v7685 = vld [vmem:[#allocation2 + $0x160] sm:$0xff]
  %v7686 = vld [vmem:[#allocation2 + $0x168] sm:$0xff]
  %v7687 = vld [vmem:[#allocation2 + $0x170] sm:$0xff]
  %v7688 = vld [vmem:[#allocation2 + $0x178] sm:$0xff]
  %v7689 = vld [vmem:[#allocation2 + $0x180] sm:$0xff]
  %v7690 = vld [vmem:[#allocation2 + $0x188] sm:$0xff]
  %v7691 = vld [vmem:[#allocation2 + $0x190] sm:$0xff]
  %v7692 = vld [vmem:[#allocation2 + $0x198] sm:$0xff]
  %v7693 = vld [vmem:[#allocation2 + $0x1a0] sm:$0xff]
  %v7694 = vld [vmem:[#allocation2 + $0x1a8] sm:$0xff]
  %v7695 = vld [vmem:[#allocation2 + $0x1b0] sm:$0xff]
  %v7696 = vld [vmem:[#allocation2 + $0x1b8] sm:$0xff]
  %v7697 = vld [vmem:[#allocation2 + $0x1c0] sm:$0xff]
  %v7698 = vld [vmem:[#allocation2 + $0x1c8] sm:$0xff]
  %v7699 = vld [vmem:[#allocation2 + $0x1d0] sm:$0xff]
  %v7700 = vld [vmem:[#allocation2 + $0x1d8] sm:$0xff]
  %v7701 = vld [vmem:[#allocation2 + $0x1e0] sm:$0xff]
  %v7702 = vld [vmem:[#allocation2 + $0x1e8] sm:$0xff]
  %v7703 = vld [vmem:[#allocation2 + $0x1f0] sm:$0xff]
  %v7704 = vld [vmem:[#allocation2 + $0x1f8] sm:$0xff]
  %v7705 = vld [vmem:[%s2] sm:$0x1]
  %v7707 = vlaneseq
  %v7708 = vshrl.u32 %v7707, 7
  %v7709 = vsub.s32 0, %v7708
  %v7710 = vrot.slane %v7705, %v7709
  %v7712 = vadd.f32 %v7641, %v7710
  %v7713 = vadd.f32 %v7642, %v7710
  %v7714 = vadd.f32 %v7643, %v7710
  %v7715 = vadd.f32 %v7644, %v7710
  %v7716 = vadd.f32 %v7645, %v7710
  %v7717 = vadd.f32 %v7646, %v7710
  %v7718 = vadd.f32 %v7647, %v7710
  %v7719 = vadd.f32 %v7648, %v7710
  %v7720 = vadd.f32 %v7649, %v7710
  %v7721 = vadd.f32 %v7650, %v7710
  %v7722 = vadd.f32 %v7651, %v7710
  %v7723 = vadd.f32 %v7652, %v7710
  %v7724 = vadd.f32 %v7653, %v7710
  %v7725 = vadd.f32 %v7654, %v7710
  %v7726 = vadd.f32 %v7655, %v7710
  %v7727 = vadd.f32 %v7656, %v7710
  %v7728 = vadd.f32 %v7657, %v7710
  %v7729 = vadd.f32 %v7658, %v7710
  %v7730 = vadd.f32 %v7659, %v7710
  %v7731 = vadd.f32 %v7660, %v7710
  %v7732 = vadd.f32 %v7661, %v7710
  %v7733 = vadd.f32 %v7662, %v7710
  %v7734 = vadd.f32 %v7663, %v7710
  %v7735 = vadd.f32 %v7664, %v7710
  %v7736 = vadd.f32 %v7665, %v7710
  %v7737 = vadd.f32 %v7666, %v7710
  %v7738 = vadd.f32 %v7667, %v7710
  %v7739 = vadd.f32 %v7668, %v7710
  %v7740 = vadd.f32 %v7669, %v7710
  %v7741 = vadd.f32 %v7670, %v7710
  %v7742 = vadd.f32 %v7671, %v7710
  %v7743 = vadd.f32 %v7672, %v7710
  %v7744 = vadd.f32 %v7673, %v7710
  %v7745 = vadd.f32 %v7674, %v7710
  %v7746 = vadd.f32 %v7675, %v7710
  %v7747 = vadd.f32 %v7676, %v7710
  %v7748 = vadd.f32 %v7677, %v7710
  %v7749 = vadd.f32 %v7678, %v7710
  %v7750 = vadd.f32 %v7679, %v7710
  %v7751 = vadd.f32 %v7680, %v7710
  %v7752 = vadd.f32 %v7681, %v7710
  %v7753 = vadd.f32 %v7682, %v7710
  %v7754 = vadd.f32 %v7683, %v7710
  %v7755 = vadd.f32 %v7684, %v7710
  %v7756 = vadd.f32 %v7685, %v7710
  %v7757 = vadd.f32 %v7686, %v7710
  %v7758 = vadd.f32 %v7687, %v7710
  %v7759 = vadd.f32 %v7688, %v7710
  %v7760 = vadd.f32 %v7689, %v7710
  %v7761 = vadd.f32 %v7690, %v7710
  %v7762 = vadd.f32 %v7691, %v7710
  %v7763 = vadd.f32 %v7692, %v7710
  %v7764 = vadd.f32 %v7693, %v7710
  %v7765 = vadd.f32 %v7694, %v7710
  %v7766 = vadd.f32 %v7695, %v7710
  %v7767 = vadd.f32 %v7696, %v7710
  %v7768 = vadd.f32 %v7697, %v7710
  %v7769 = vadd.f32 %v7698, %v7710
  %v7770 = vadd.f32 %v7699, %v7710
  %v7771 = vadd.f32 %v7700, %v7710
  %v7772 = vadd.f32 %v7701, %v7710
  %v7773 = vadd.f32 %v7702, %v7710
  %v7774 = vadd.f32 %v7703, %v7710
  %v7775 = vadd.f32 %v7704, %v7710
  %v7776 = vadd.f32 %v7712, %v7713
  %v7777 = vadd.f32 %v7776, %v7714
  %v7778 = vadd.f32 %v7777, %v7715
  %v7779 = vadd.f32 %v7778, %v7716
  %v7780 = vadd.f32 %v7779, %v7717
  %v7781 = vadd.f32 %v7780, %v7718
  %v7782 = vadd.f32 %v7781, %v7719
  %v7783 = vadd.f32 %v7782, %v7720
  %v7784 = vadd.f32 %v7783, %v7721
  %v7785 = vadd.f32 %v7784, %v7722
  %v7786 = vadd.f32 %v7785, %v7723
  %v7787 = vadd.f32 %v7786, %v7724
  %v7788 = vadd.f32 %v7787, %v7725
  %v7789 = vadd.f32 %v7788, %v7726
  %v7790 = vadd.f32 %v7789, %v7727
  %v7791 = vadd.f32 %v7790, %v7728
  %v7792 = vadd.f32 %v7791, %v7729
  %v7793 = vadd.f32 %v7792, %v7730
  %v7794 = vadd.f32 %v7793, %v7731
  %v7795 = vadd.f32 %v7794, %v7732
  %v7796 = vadd.f32 %v7795, %v7733
  %v7797 = vadd.f32 %v7796, %v7734
  %v7798 = vadd.f32 %v7797, %v7735
  %v7799 = vadd.f32 %v7798, %v7736
  %v7800 = vadd.f32 %v7799, %v7737
  %v7801 = vadd.f32 %v7800, %v7738
  %v7802 = vadd.f32 %v7801, %v7739
  %v7803 = vadd.f32 %v7802, %v7740
  %v7804 = vadd.f32 %v7803, %v7741
  %v7805 = vadd.f32 %v7804, %v7742
  %v7806 = vadd.f32 %v7805, %v7743
  %v7807 = vadd.f32 %v7806, %v7744
  %v7808 = vadd.f32 %v7807, %v7745
  %v7809 = vadd.f32 %v7808, %v7746
  %v7810 = vadd.f32 %v7809, %v7747
  %v7811 = vadd.f32 %v7810, %v7748
  %v7812 = vadd.f32 %v7811, %v7749
  %v7813 = vadd.f32 %v7812, %v7750
  %v7814 = vadd.f32 %v7813, %v7751
  %v7815 = vadd.f32 %v7814, %v7752
  %v7816 = vadd.f32 %v7815, %v7753
  %v7817 = vadd.f32 %v7816, %v7754
  %v7818 = vadd.f32 %v7817, %v7755
  %v7819 = vadd.f32 %v7818, %v7756
  %v7820 = vadd.f32 %v7819, %v7757
  %v7821 = vadd.f32 %v7820, %v7758
  %v7822 = vadd.f32 %v7821, %v7759
  %v7823 = vadd.f32 %v7822, %v7760
  %v7824 = vadd.f32 %v7823, %v7761
  %v7825 = vadd.f32 %v7824, %v7762
  %v7826 = vadd.f32 %v7825, %v7763
  %v7827 = vadd.f32 %v7826, %v7764
  %v7828 = vadd.f32 %v7827, %v7765
  %v7829 = vadd.f32 %v7828, %v7766
  %v7830 = vadd.f32 %v7829, %v7767
  %v7831 = vadd.f32 %v7830, %v7768
  %v7832 = vadd.f32 %v7831, %v7769
  %v7833 = vadd.f32 %v7832, %v7770
  %v7834 = vadd.f32 %v7833, %v7771
  %v7835 = vadd.f32 %v7834, %v7772
  %v7836 = vadd.f32 %v7835, %v7773
  %v7837 = vadd.f32 %v7836, %v7774
  %v7838 = vadd.f32 %v7837, %v7775
  %v7839 = vrot.slane %v7838, 4
  %v7840 = vadd.f32 %v7838, %v7839
  %v7841 = vrot.slane %v7840, 2
  %v7842 = vadd.f32 %v7840, %v7841
  %v7843 = vrot.slane %v7842, 1
  %v7844 = vadd.f32 %v7842, %v7843
  %v7845 = vrcp.pop 512.0
  %v7846 = vmul.f32 %v7844, %v7845
  %v7847 = vsub.f32 %v7712, %v7846
  %v7848 = vsub.f32 %v7713, %v7846
  %v7849 = vsub.f32 %v7714, %v7846
  %v7850 = vsub.f32 %v7715, %v7846
  %v7851 = vsub.f32 %v7716, %v7846
  %v7852 = vsub.f32 %v7717, %v7846
  %v7853 = vsub.f32 %v7718, %v7846
  %v7854 = vsub.f32 %v7719, %v7846
  %v7855 = vsub.f32 %v7720, %v7846
  %v7856 = vsub.f32 %v7721, %v7846
  %v7857 = vsub.f32 %v7722, %v7846
  %v7858 = vsub.f32 %v7723, %v7846
  %v7859 = vsub.f32 %v7724, %v7846
  %v7860 = vsub.f32 %v7725, %v7846
  %v7861 = vsub.f32 %v7726, %v7846
  %v7862 = vsub.f32 %v7727, %v7846
  %v7863 = vsub.f32 %v7728, %v7846
  %v7864 = vsub.f32 %v7729, %v7846
  %v7865 = vsub.f32 %v7730, %v7846
  %v7866 = vsub.f32 %v7731, %v7846
  %v7867 = vsub.f32 %v7732, %v7846
  %v7868 = vsub.f32 %v7733, %v7846
  %v7869 = vsub.f32 %v7734, %v7846
  %v7870 = vsub.f32 %v7735, %v7846
  %v7871 = vsub.f32 %v7736, %v7846
  %v7872 = vsub.f32 %v7737, %v7846
  %v7873 = vsub.f32 %v7738, %v7846
  %v7874 = vsub.f32 %v7739, %v7846
  %v7875 = vsub.f32 %v7740, %v7846
  %v7876 = vsub.f32 %v7741, %v7846
  %v7877 = vsub.f32 %v7742, %v7846
  %v7878 = vsub.f32 %v7743, %v7846
  %v7879 = vsub.f32 %v7744, %v7846
  %v7880 = vsub.f32 %v7745, %v7846
  %v7881 = vsub.f32 %v7746, %v7846
  %v7882 = vsub.f32 %v7747, %v7846
  %v7883 = vsub.f32 %v7748, %v7846
  %v7884 = vsub.f32 %v7749, %v7846
  %v7885 = vsub.f32 %v7750, %v7846
  %v7886 = vsub.f32 %v7751, %v7846
  %v7887 = vsub.f32 %v7752, %v7846
  %v7888 = vsub.f32 %v7753, %v7846
  %v7889 = vsub.f32 %v7754, %v7846
  %v7890 = vsub.f32 %v7755, %v7846
  %v7891 = vsub.f32 %v7756, %v7846
  %v7892 = vsub.f32 %v7757, %v7846
  %v7893 = vsub.f32 %v7758, %v7846
  %v7894 = vsub.f32 %v7759, %v7846
  %v7895 = vsub.f32 %v7760, %v7846
  %v7896 = vsub.f32 %v7761, %v7846
  %v7897 = vsub.f32 %v7762, %v7846
  %v7898 = vsub.f32 %v7763, %v7846
  %v7899 = vsub.f32 %v7764, %v7846
  %v7900 = vsub.f32 %v7765, %v7846
  %v7901 = vsub.f32 %v7766, %v7846
  %v7902 = vsub.f32 %v7767, %v7846
  %v7903 = vsub.f32 %v7768, %v7846
  %v7904 = vsub.f32 %v7769, %v7846
  %v7905 = vsub.f32 %v7770, %v7846
  %v7906 = vsub.f32 %v7771, %v7846
  %v7907 = vsub.f32 %v7772, %v7846
  %v7908 = vsub.f32 %v7773, %v7846
  %v7909 = vsub.f32 %v7774, %v7846
  %v7910 = vsub.f32 %v7775, %v7846
  %v7911 = vmul.f32 %v7847, %v7847
  %v7912 = vmul.f32 %v7848, %v7848
  %v7913 = vmul.f32 %v7849, %v7849
  %v7914 = vmul.f32 %v7850, %v7850
  %v7915 = vmul.f32 %v7851, %v7851
  %v7916 = vmul.f32 %v7852, %v7852
  %v7917 = vmul.f32 %v7853, %v7853
  %v7918 = vmul.f32 %v7854, %v7854
  %v7919 = vmul.f32 %v7855, %v7855
  %v7920 = vmul.f32 %v7856, %v7856
  %v7921 = vmul.f32 %v7857, %v7857
  %v7922 = vmul.f32 %v7858, %v7858
  %v7923 = vmul.f32 %v7859, %v7859
  %v7924 = vmul.f32 %v7860, %v7860
  %v7925 = vmul.f32 %v7861, %v7861
  %v7926 = vmul.f32 %v7862, %v7862
  %v7927 = vmul.f32 %v7863, %v7863
  %v7928 = vmul.f32 %v7864, %v7864
  %v7929 = vmul.f32 %v7865, %v7865
  %v7930 = vmul.f32 %v7866, %v7866
  %v7931 = vmul.f32 %v7867, %v7867
  %v7932 = vmul.f32 %v7868, %v7868
  %v7933 = vmul.f32 %v7869, %v7869
  %v7934 = vmul.f32 %v7870, %v7870
  %v7935 = vmul.f32 %v7871, %v7871
  %v7936 = vmul.f32 %v7872, %v7872
  %v7937 = vmul.f32 %v7873, %v7873
  %v7938 = vmul.f32 %v7874, %v7874
  %v7939 = vmul.f32 %v7875, %v7875
  %v7940 = vmul.f32 %v7876, %v7876
  %v7941 = vmul.f32 %v7877, %v7877
  %v7942 = vmul.f32 %v7878, %v7878
  %v7943 = vmul.f32 %v7879, %v7879
  %v7944 = vmul.f32 %v7880, %v7880
  %v7945 = vmul.f32 %v7881, %v7881
  %v7946 = vmul.f32 %v7882, %v7882
  %v7947 = vmul.f32 %v7883, %v7883
  %v7948 = vmul.f32 %v7884, %v7884
  %v7949 = vmul.f32 %v7885, %v7885
  %v7950 = vmul.f32 %v7886, %v7886
  %v7951 = vmul.f32 %v7887, %v7887
  %v7952 = vmul.f32 %v7888, %v7888
  %v7953 = vmul.f32 %v7889, %v7889
  %v7954 = vmul.f32 %v7890, %v7890
  %v7955 = vmul.f32 %v7891, %v7891
  %v7956 = vmul.f32 %v7892, %v7892
  %v7957 = vmul.f32 %v7893, %v7893
  %v7958 = vmul.f32 %v7894, %v7894
  %v7959 = vmul.f32 %v7895, %v7895
  %v7960 = vmul.f32 %v7896, %v7896
  %v7961 = vmul.f32 %v7897, %v7897
  %v7962 = vmul.f32 %v7898, %v7898
  %v7963 = vmul.f32 %v7899, %v7899
  %v7964 = vmul.f32 %v7900, %v7900
  %v7965 = vmul.f32 %v7901, %v7901
  %v7966 = vmul.f32 %v7902, %v7902
  %v7967 = vmul.f32 %v7903, %v7903
  %v7968 = vmul.f32 %v7904, %v7904
  %v7969 = vmul.f32 %v7905, %v7905
  %v7970 = vmul.f32 %v7906, %v7906
  %v7971 = vmul.f32 %v7907, %v7907
  %v7972 = vmul.f32 %v7908, %v7908
  %v7973 = vmul.f32 %v7909, %v7909
  %v7974 = vmul.f32 %v7910, %v7910
  %v7975 = vadd.f32 %v7911, %v7912
  %v7976 = vadd.f32 %v7975, %v7913
  %v7977 = vadd.f32 %v7976, %v7914
  %v7978 = vadd.f32 %v7977, %v7915
  %v7979 = vadd.f32 %v7978, %v7916
  %v7980 = vadd.f32 %v7979, %v7917
  %v7981 = vadd.f32 %v7980, %v7918
  %v7982 = vadd.f32 %v7981, %v7919
  %v7983 = vadd.f32 %v7982, %v7920
  %v7984 = vadd.f32 %v7983, %v7921
  %v7985 = vadd.f32 %v7984, %v7922
  %v7986 = vadd.f32 %v7985, %v7923
  %v7987 = vadd.f32 %v7986, %v7924
  %v7988 = vadd.f32 %v7987, %v7925
  %v7989 = vadd.f32 %v7988, %v7926
  %v7990 = vadd.f32 %v7989, %v7927
  %v7991 = vadd.f32 %v7990, %v7928
  %v7992 = vadd.f32 %v7991, %v7929
  %v7993 = vadd.f32 %v7992, %v7930
  %v7994 = vadd.f32 %v7993, %v7931
  %v7995 = vadd.f32 %v7994, %v7932
  %v7996 = vadd.f32 %v7995, %v7933
  %v7997 = vadd.f32 %v7996, %v7934
  %v7998 = vadd.f32 %v7997, %v7935
  %v7999 = vadd.f32 %v7998, %v7936
  %v8000 = vadd.f32 %v7999, %v7937
  %v8001 = vadd.f32 %v8000, %v7938
  %v8002 = vadd.f32 %v8001, %v7939
  %v8003 = vadd.f32 %v8002, %v7940
  %v8004 = vadd.f32 %v8003, %v7941
  %v8005 = vadd.f32 %v8004, %v7942
  %v8006 = vadd.f32 %v8005, %v7943
  %v8007 = vadd.f32 %v8006, %v7944
  %v8008 = vadd.f32 %v8007, %v7945
  %v8009 = vadd.f32 %v8008, %v7946
  %v8010 = vadd.f32 %v8009, %v7947
  %v8011 = vadd.f32 %v8010, %v7948
  %v8012 = vadd.f32 %v8011, %v7949
  %v8013 = vadd.f32 %v8012, %v7950
  %v8014 = vadd.f32 %v8013, %v7951
  %v8015 = vadd.f32 %v8014, %v7952
  %v8016 = vadd.f32 %v8015, %v7953
  %v8017 = vadd.f32 %v8016, %v7954
  %v8018 = vadd.f32 %v8017, %v7955
  %v8019 = vadd.f32 %v8018, %v7956
  %v8020 = vadd.f32 %v8019, %v7957
  %v8021 = vadd.f32 %v8020, %v7958
  %v8022 = vadd.f32 %v8021, %v7959
  %v8023 = vadd.f32 %v8022, %v7960
  %v8024 = vadd.f32 %v8023, %v7961
  %v8025 = vadd.f32 %v8024, %v7962
  %v8026 = vadd.f32 %v8025, %v7963
  %v8027 = vadd.f32 %v8026, %v7964
  %v8028 = vadd.f32 %v8027, %v7965
  %v8029 = vadd.f32 %v8028, %v7966
  %v8030 = vadd.f32 %v8029, %v7967
  %v8031 = vadd.f32 %v8030, %v7968
  %v8032 = vadd.f32 %v8031, %v7969
  %v8033 = vadd.f32 %v8032, %v7970
  %v8034 = vadd.f32 %v8033, %v7971
  %v8035 = vadd.f32 %v8034, %v7972
  %v8036 = vadd.f32 %v8035, %v7973
  %v8037 = vadd.f32 %v8036, %v7974
  %v8038 = vrot.slane %v8037, 4
  %v8039 = vadd.f32 %v8037, %v8038
  %v8040 = vrot.slane %v8039, 2
  %v8041 = vadd.f32 %v8039, %v8040
  %v8042 = vrot.slane %v8041, 1
  %v8043 = vadd.f32 %v8041, %v8042
  %v8044 = vmul.f32 %v8043, %v7845
  %v8045 = vld [vmem:[%s3] sm:$0x1]
  %v8046 = vadd.f32 %v8044, 1e-05
  %v8047 = vrsqrt.pop %v8046
  %v8048 = vmul.f32 %v8045, %v8047
  %v8050 = vlaneseq
  %v8051 = vshrl.u32 %v8050, 7
  %v8052 = vsub.s32 0, %v8051
  %v8053 = vrot.slane %v8048, %v8052
  %v8055 = vmul.f32 %v7847, %v8053
  %v8056 = vmul.f32 %v7848, %v8053
  %v8057 = vmul.f32 %v7849, %v8053
  %v8058 = vmul.f32 %v7850, %v8053
  %v8059 = vmul.f32 %v7851, %v8053
  %v8060 = vmul.f32 %v7852, %v8053
  %v8061 = vmul.f32 %v7853, %v8053
  %v8062 = vmul.f32 %v7854, %v8053
  %v8063 = vmul.f32 %v7855, %v8053
  %v8064 = vmul.f32 %v7856, %v8053
  %v8065 = vmul.f32 %v7857, %v8053
  %v8066 = vmul.f32 %v7858, %v8053
  %v8067 = vmul.f32 %v7859, %v8053
  %v8068 = vmul.f32 %v7860, %v8053
  %v8069 = vmul.f32 %v7861, %v8053
  %v8070 = vmul.f32 %v7862, %v8053
  %v8071 = vmul.f32 %v7863, %v8053
  %v8072 = vmul.f32 %v7864, %v8053
  %v8073 = vmul.f32 %v7865, %v8053
  %v8074 = vmul.f32 %v7866, %v8053
  %v8075 = vmul.f32 %v7867, %v8053
  %v8076 = vmul.f32 %v7868, %v8053
  %v8077 = vmul.f32 %v7869, %v8053
  %v8078 = vmul.f32 %v7870, %v8053
  %v8079 = vmul.f32 %v7871, %v8053
  %v8080 = vmul.f32 %v7872, %v8053
  %v8081 = vmul.f32 %v7873, %v8053
  %v8082 = vmul.f32 %v7874, %v8053
  %v8083 = vmul.f32 %v7875, %v8053
  %v8084 = vmul.f32 %v7876, %v8053
  %v8085 = vmul.f32 %v7877, %v8053
  %v8086 = vmul.f32 %v7878, %v8053
  %v8087 = vmul.f32 %v7879, %v8053
  %v8088 = vmul.f32 %v7880, %v8053
  %v8089 = vmul.f32 %v7881, %v8053
  %v8090 = vmul.f32 %v7882, %v8053
  %v8091 = vmul.f32 %v7883, %v8053
  %v8092 = vmul.f32 %v7884, %v8053
  %v8093 = vmul.f32 %v7885, %v8053
  %v8094 = vmul.f32 %v7886, %v8053
  %v8095 = vmul.f32 %v7887, %v8053
  %v8096 = vmul.f32 %v7888, %v8053
  %v8097 = vmul.f32 %v7889, %v8053
  %v8098 = vmul.f32 %v7890, %v8053
  %v8099 = vmul.f32 %v7891, %v8053
  %v8100 = vmul.f32 %v7892, %v8053
  %v8101 = vmul.f32 %v7893, %v8053
  %v8102 = vmul.f32 %v7894, %v8053
  %v8103 = vmul.f32 %v7895, %v8053
  %v8104 = vmul.f32 %v7896, %v8053
  %v8105 = vmul.f32 %v7897, %v8053
  %v8106 = vmul.f32 %v7898, %v8053
  %v8107 = vmul.f32 %v7899, %v8053
  %v8108 = vmul.f32 %v7900, %v8053
  %v8109 = vmul.f32 %v7901, %v8053
  %v8110 = vmul.f32 %v7902, %v8053
  %v8111 = vmul.f32 %v7903, %v8053
  %v8112 = vmul.f32 %v7904, %v8053
  %v8113 = vmul.f32 %v7905, %v8053
  %v8114 = vmul.f32 %v7906, %v8053
  %v8115 = vmul.f32 %v7907, %v8053
  %v8116 = vmul.f32 %v7908, %v8053
  %v8117 = vmul.f32 %v7909, %v8053
  %v8118 = vmul.f32 %v7910, %v8053
  %v8119 = vld [vmem:[%s4] sm:$0x1]
  %v8121 = vlaneseq
  %v8122 = vshrl.u32 %v8121, 7
  %v8123 = vsub.s32 0, %v8122
  %v8124 = vrot.slane %v8119, %v8123
  %v8126 = vadd.f32 %v8055, %v8124
  %v8127 = vadd.f32 %v8056, %v8124
  %v8128 = vadd.f32 %v8057, %v8124
  %v8129 = vadd.f32 %v8058, %v8124
  %v8130 = vadd.f32 %v8059, %v8124
  %v8131 = vadd.f32 %v8060, %v8124
  %v8132 = vadd.f32 %v8061, %v8124
  %v8133 = vadd.f32 %v8062, %v8124
  %v8134 = vadd.f32 %v8063, %v8124
  %v8135 = vadd.f32 %v8064, %v8124
  %v8136 = vadd.f32 %v8065, %v8124
  %v8137 = vadd.f32 %v8066, %v8124
  %v8138 = vadd.f32 %v8067, %v8124
  %v8139 = vadd.f32 %v8068, %v8124
  %v8140 = vadd.f32 %v8069, %v8124
  %v8141 = vadd.f32 %v8070, %v8124
  %v8142 = vadd.f32 %v8071, %v8124
  %v8143 = vadd.f32 %v8072, %v8124
  %v8144 = vadd.f32 %v8073, %v8124
  %v8145 = vadd.f32 %v8074, %v8124
  %v8146 = vadd.f32 %v8075, %v8124
  %v8147 = vadd.f32 %v8076, %v8124
  %v8148 = vadd.f32 %v8077, %v8124
  %v8149 = vadd.f32 %v8078, %v8124
  %v8150 = vadd.f32 %v8079, %v8124
  %v8151 = vadd.f32 %v8080, %v8124
  %v8152 = vadd.f32 %v8081, %v8124
  %v8153 = vadd.f32 %v8082, %v8124
  %v8154 = vadd.f32 %v8083, %v8124
  %v8155 = vadd.f32 %v8084, %v8124
  %v8156 = vadd.f32 %v8085, %v8124
  %v8157 = vadd.f32 %v8086, %v8124
  %v8158 = vadd.f32 %v8087, %v8124
  %v8159 = vadd.f32 %v8088, %v8124
  %v8160 = vadd.f32 %v8089, %v8124
  %v8161 = vadd.f32 %v8090, %v8124
  %v8162 = vadd.f32 %v8091, %v8124
  %v8163 = vadd.f32 %v8092, %v8124
  %v8164 = vadd.f32 %v8093, %v8124
  %v8165 = vadd.f32 %v8094, %v8124
  %v8166 = vadd.f32 %v8095, %v8124
  %v8167 = vadd.f32 %v8096, %v8124
  %v8168 = vadd.f32 %v8097, %v8124
  %v8169 = vadd.f32 %v8098, %v8124
  %v8170 = vadd.f32 %v8099, %v8124
  %v8171 = vadd.f32 %v8100, %v8124
  %v8172 = vadd.f32 %v8101, %v8124
  %v8173 = vadd.f32 %v8102, %v8124
  %v8174 = vadd.f32 %v8103, %v8124
  %v8175 = vadd.f32 %v8104, %v8124
  %v8176 = vadd.f32 %v8105, %v8124
  %v8177 = vadd.f32 %v8106, %v8124
  %v8178 = vadd.f32 %v8107, %v8124
  %v8179 = vadd.f32 %v8108, %v8124
  %v8180 = vadd.f32 %v8109, %v8124
  %v8181 = vadd.f32 %v8110, %v8124
  %v8182 = vadd.f32 %v8111, %v8124
  %v8183 = vadd.f32 %v8112, %v8124
  %v8184 = vadd.f32 %v8113, %v8124
  %v8185 = vadd.f32 %v8114, %v8124
  %v8186 = vadd.f32 %v8115, %v8124
  %v8187 = vadd.f32 %v8116, %v8124
  %v8188 = vadd.f32 %v8117, %v8124
  %v8189 = vadd.f32 %v8118, %v8124
  %v8190 = vmax.f32 %v8126, 0.0
  %v8191 = vmax.f32 %v8127, 0.0
  %v8192 = vmax.f32 %v8128, 0.0
  %v8193 = vmax.f32 %v8129, 0.0
  %v8194 = vmax.f32 %v8130, 0.0
  %v8195 = vmax.f32 %v8131, 0.0
  %v8196 = vmax.f32 %v8132, 0.0
  %v8197 = vmax.f32 %v8133, 0.0
  %v8198 = vmax.f32 %v8134, 0.0
  %v8199 = vmax.f32 %v8135, 0.0
  %v8200 = vmax.f32 %v8136, 0.0
  %v8201 = vmax.f32 %v8137, 0.0
  %v8202 = vmax.f32 %v8138, 0.0
  %v8203 = vmax.f32 %v8139, 0.0
  %v8204 = vmax.f32 %v8140, 0.0
  %v8205 = vmax.f32 %v8141, 0.0
  %v8206 = vmax.f32 %v8142, 0.0
  %v8207 = vmax.f32 %v8143, 0.0
  %v8208 = vmax.f32 %v8144, 0.0
  %v8209 = vmax.f32 %v8145, 0.0
  %v8210 = vmax.f32 %v8146, 0.0
  %v8211 = vmax.f32 %v8147, 0.0
  %v8212 = vmax.f32 %v8148, 0.0
  %v8213 = vmax.f32 %v8149, 0.0
  %v8214 = vmax.f32 %v8150, 0.0
  %v8215 = vmax.f32 %v8151, 0.0
  %v8216 = vmax.f32 %v8152, 0.0
  %v8217 = vmax.f32 %v8153, 0.0
  %v8218 = vmax.f32 %v8154, 0.0
  %v8219 = vmax.f32 %v8155, 0.0
  %v8220 = vmax.f32 %v8156, 0.0
  %v8221 = vmax.f32 %v8157, 0.0
  %v8222 = vmax.f32 %v8158, 0.0
  %v8223 = vmax.f32 %v8159, 0.0
  %v8224 = vmax.f32 %v8160, 0.0
  %v8225 = vmax.f32 %v8161, 0.0
  %v8226 = vmax.f32 %v8162, 0.0
  %v8227 = vmax.f32 %v8163, 0.0
  %v8228 = vmax.f32 %v8164, 0.0
  %v8229 = vmax.f32 %v8165, 0.0
  %v8230 = vmax.f32 %v8166, 0.0
  %v8231 = vmax.f32 %v8167, 0.0
  %v8232 = vmax.f32 %v8168, 0.0
  %v8233 = vmax.f32 %v8169, 0.0
  %v8234 = vmax.f32 %v8170, 0.0
  %v8235 = vmax.f32 %v8171, 0.0
  %v8236 = vmax.f32 %v8172, 0.0
  %v8237 = vmax.f32 %v8173, 0.0
  %v8238 = vmax.f32 %v8174, 0.0
  %v8239 = vmax.f32 %v8175, 0.0
  %v8240 = vmax.f32 %v8176, 0.0
  %v8241 = vmax.f32 %v8177, 0.0
  %v8242 = vmax.f32 %v8178, 0.0
  %v8243 = vmax.f32 %v8179, 0.0
  %v8244 = vmax.f32 %v8180, 0.0
  %v8245 = vmax.f32 %v8181, 0.0
  %v8246 = vmax.f32 %v8182, 0.0
  %v8247 = vmax.f32 %v8183, 0.0
  %v8248 = vmax.f32 %v8184, 0.0
  %v8249 = vmax.f32 %v8185, 0.0
  %v8250 = vmax.f32 %v8186, 0.0
  %v8251 = vmax.f32 %v8187, 0.0
  %v8252 = vmax.f32 %v8188, 0.0
  %v8253 = vmax.f32 %v8189, 0.0
  %8254 = vst [vmem:[#allocation3] sm:$0xff] 0.0
  %8255 = vst [vmem:[#allocation3 + $0x8] sm:$0xff] 0.0
  %8256 = vst [vmem:[#allocation3 + $0x10] sm:$0x3] 0.0
  %8257 = vst [vmem:[#allocation3 + $0x18] sm:$0xff] 0.0
  %8258 = vst [vmem:[#allocation3 + $0x20] sm:$0xff] 0.0
  %8259 = vst [vmem:[#allocation3 + $0x28] sm:$0x3] 0.0
  %8260 = vst [vmem:[#allocation3 + $0x30] sm:$0xff] 0.0
  %8261 = vst [vmem:[#allocation3 + $0x38] sm:$0xff] 0.0
  %8262 = vst [vmem:[#allocation3 + $0x40] sm:$0x3] 0.0
  %8263 = vst [vmem:[#allocation3 + $0x48] sm:$0xff] 0.0
  %8264 = vst [vmem:[#allocation3 + $0x50] sm:$0xff] 0.0
  %8265 = vst [vmem:[#allocation3 + $0x58] sm:$0x3] 0.0
  %8266 = vst [vmem:[#allocation3 + $0x60] sm:$0xff] 0.0
  %8267 = vst [vmem:[#allocation3 + $0x68] sm:$0xff] 0.0
  %8268 = vst [vmem:[#allocation3 + $0x70] sm:$0x3] 0.0
  %8269 = vst [vmem:[#allocation3 + $0x78] sm:$0xff] 0.0
  %8270 = vst [vmem:[#allocation3 + $0x80] sm:$0xff] 0.0
  %8271 = vst [vmem:[#allocation3 + $0x88] sm:$0x3] 0.0
  %8272 = vst [vmem:[#allocation3 + $0x90] sm:$0xff] 0.0
  %8273 = vst [vmem:[#allocation3 + $0x98] sm:$0xff] 0.0
  %8274 = vst [vmem:[#allocation3 + $0xa0] sm:$0x3] 0.0
  %8275 = vst [vmem:[#allocation3 + $0xa8] sm:$0xff] 0.0
  %8276 = vst [vmem:[#allocation3 + $0xb0] sm:$0xff] 0.0
  %8277 = vst [vmem:[#allocation3 + $0xb8] sm:$0x3] 0.0
  %8278 = vst [vmem:[#allocation3 + $0xc0] sm:$0xff] 0.0
  %8279 = vst [vmem:[#allocation3 + $0xc8] sm:$0xff] 0.0
  %8280 = vst [vmem:[#allocation3 + $0xd0] sm:$0x3] 0.0
  %8281 = vst [vmem:[#allocation3 + $0xd8] sm:$0xff] 0.0
  %8282 = vst [vmem:[#allocation3 + $0xe0] sm:$0xff] 0.0
  %8283 = vst [vmem:[#allocation3 + $0xe8] sm:$0x3] 0.0
  %8284 = vst [vmem:[#allocation3 + $0xf0] sm:$0xff] 0.0
  %8285 = vst [vmem:[#allocation3 + $0xf8] sm:$0xff] 0.0
  %8286 = vst [vmem:[#allocation3 + $0x100] sm:$0x3] 0.0
  %8287 = vst [vmem:[#allocation3 + $0x108] sm:$0xff] 0.0
  %8288 = vst [vmem:[#allocation3 + $0x110] sm:$0xff] 0.0
  %8289 = vst [vmem:[#allocation3 + $0x118] sm:$0x3] 0.0
  %8290 = vst [vmem:[#allocation3 + $0x120] sm:$0xff] 0.0
  %8291 = vst [vmem:[#allocation3 + $0x128] sm:$0xff] 0.0
  %8292 = vst [vmem:[#allocation3 + $0x130] sm:$0x3] 0.0
  %8293 = vst [vmem:[#allocation3 + $0x138] sm:$0xff] 0.0
  %8294 = vst [vmem:[#allocation3 + $0x140] sm:$0xff] 0.0
  %8295 = vst [vmem:[#allocation3 + $0x148] sm:$0x3] 0.0
  %8296 = vst [vmem:[#allocation3 + $0x150] sm:$0xff] 0.0
  %8297 = vst [vmem:[#allocation3 + $0x158] sm:$0xff] 0.0
  %8298 = vst [vmem:[#allocation3 + $0x160] sm:$0x3] 0.0
  %8299 = vst [vmem:[#allocation3 + $0x168] sm:$0xff] 0.0
  %8300 = vst [vmem:[#allocation3 + $0x170] sm:$0xff] 0.0
  %8301 = vst [vmem:[#allocation3 + $0x178] sm:$0x3] 0.0
  %8302 = vst [vmem:[#allocation3 + $0x180] sm:$0xff] 0.0
  %8303 = vst [vmem:[#allocation3 + $0x188] sm:$0xff] 0.0
  %8304 = vst [vmem:[#allocation3 + $0x190] sm:$0x3] 0.0
  %8305 = vst [vmem:[#allocation3 + $0x198] sm:$0xff] 0.0
  %8306 = vst [vmem:[#allocation3 + $0x1a0] sm:$0xff] 0.0
  %8307 = vst [vmem:[#allocation3 + $0x1a8] sm:$0x3] 0.0
  %8308 = vst [vmem:[#allocation3 + $0x1b0] sm:$0xff] 0.0
  %8309 = vst [vmem:[#allocation3 + $0x1b8] sm:$0xff] 0.0
  %8310 = vst [vmem:[#allocation3 + $0x1c0] sm:$0x3] 0.0
  %8311 = vst [vmem:[#allocation3 + $0x1c8] sm:$0xff] 0.0
  %8312 = vst [vmem:[#allocation3 + $0x1d0] sm:$0xff] 0.0
  %8313 = vst [vmem:[#allocation3 + $0x1d8] sm:$0x3] 0.0
  %8314 = vst [vmem:[#allocation3 + $0x1e0] sm:$0xff] 0.0
  %8315 = vst [vmem:[#allocation3 + $0x1e8] sm:$0xff] 0.0
  %8316 = vst [vmem:[#allocation3 + $0x1f0] sm:$0x3] 0.0
  %8317 = vst [vmem:[#allocation3 + $0x1f8] sm:$0xff] 0.0
  %8318 = vst [vmem:[#allocation3 + $0x200] sm:$0xff] 0.0
  %8319 = vst [vmem:[#allocation3 + $0x208] sm:$0x3] 0.0
  %8320 = vst [vmem:[#allocation3 + $0x210] sm:$0xff] 0.0
  %8321 = vst [vmem:[#allocation3 + $0x218] sm:$0xff] 0.0
  %8322 = vst [vmem:[#allocation3 + $0x220] sm:$0x3] 0.0
  %8323 = vst [vmem:[#allocation3 + $0x228] sm:$0xff] 0.0
  %8324 = vst [vmem:[#allocation3 + $0x230] sm:$0xff] 0.0
  %8325 = vst [vmem:[#allocation3 + $0x238] sm:$0x3] 0.0
  %8326 = vst [vmem:[#allocation3 + $0x240] sm:$0xff] 0.0
  %8327 = vst [vmem:[#allocation3 + $0x248] sm:$0xff] 0.0
  %8328 = vst [vmem:[#allocation3 + $0x250] sm:$0x3] 0.0
  %8329 = vst [vmem:[#allocation3 + $0x258] sm:$0xff] 0.0
  %8330 = vst [vmem:[#allocation3 + $0x260] sm:$0xff] 0.0
  %8331 = vst [vmem:[#allocation3 + $0x268] sm:$0x3] 0.0
  %8332 = vst [vmem:[#allocation3 + $0x270] sm:$0xff] 0.0
  %8333 = vst [vmem:[#allocation3 + $0x278] sm:$0xff] 0.0
  %8334 = vst [vmem:[#allocation3 + $0x280] sm:$0x3] 0.0
  %8335 = vst [vmem:[#allocation3 + $0x288] sm:$0xff] 0.0
  %8336 = vst [vmem:[#allocation3 + $0x290] sm:$0xff] 0.0
  %8337 = vst [vmem:[#allocation3 + $0x298] sm:$0x3] 0.0
  %8338 = vst [vmem:[#allocation3 + $0x2a0] sm:$0xff] 0.0
  %8339 = vst [vmem:[#allocation3 + $0x2a8] sm:$0xff] 0.0
  %8340 = vst [vmem:[#allocation3 + $0x2b0] sm:$0x3] 0.0
  %8341 = vst [vmem:[#allocation3 + $0x2b8] sm:$0xff] 0.0
  %8342 = vst [vmem:[#allocation3 + $0x2c0] sm:$0xff] 0.0
  %8343 = vst [vmem:[#allocation3 + $0x2c8] sm:$0x3] 0.0
  %8344 = vst [vmem:[#allocation3 + $0x2d0] sm:$0xff] 0.0
  %8345 = vst [vmem:[#allocation3 + $0x2d8] sm:$0xff] 0.0
  %8346 = vst [vmem:[#allocation3 + $0x2e0] sm:$0x3] 0.0
  %8347 = vst [vmem:[#allocation3 + $0x2e8] sm:$0xff] 0.0
  %8348 = vst [vmem:[#allocation3 + $0x2f0] sm:$0xff] 0.0
  %8349 = vst [vmem:[#allocation3 + $0x2f8] sm:$0x3] 0.0
  %8350 = vst [vmem:[#allocation3 + $0x300] sm:$0xff] 0.0
  %8351 = vst [vmem:[#allocation3 + $0x308] sm:$0xff] 0.0
  %8352 = vst [vmem:[#allocation3 + $0x310] sm:$0x3] 0.0
  %8353 = vst [vmem:[#allocation3 + $0x318] sm:$0xff] 0.0
  %8354 = vst [vmem:[#allocation3 + $0x320] sm:$0xff] 0.0
  %8355 = vst [vmem:[#allocation3 + $0x328] sm:$0x3] 0.0
  %8356 = vst [vmem:[#allocation3 + $0x330] sm:$0xff] 0.0
  %8357 = vst [vmem:[#allocation3 + $0x338] sm:$0xff] 0.0
  %8358 = vst [vmem:[#allocation3 + $0x340] sm:$0x3] 0.0
  %8359 = vst [vmem:[#allocation3 + $0x348] sm:$0xff] 0.0
  %8360 = vst [vmem:[#allocation3 + $0x350] sm:$0xff] 0.0
  %8361 = vst [vmem:[#allocation3 + $0x358] sm:$0x3] 0.0
  %s8362 = scalar_lea.vmem [#allocation3], 24
  %8363 = vst [vmem:[%s8362 + $0x1] sm:$0xff] %v8190
  %8364 = vst [vmem:[%s8362 + $0x9] sm:$0xff] %v8191
  %8365 = vst [vmem:[%s8362 + $0x19] sm:$0xff] %v8192
  %8366 = vst [vmem:[%s8362 + $0x21] sm:$0xff] %v8193
  %8367 = vst [vmem:[%s8362 + $0x31] sm:$0xff] %v8194
  %8368 = vst [vmem:[%s8362 + $0x39] sm:$0xff] %v8195
  %8369 = vst [vmem:[%s8362 + $0x49] sm:$0xff] %v8196
  %8370 = vst [vmem:[%s8362 + $0x51] sm:$0xff] %v8197
  %8371 = vst [vmem:[%s8362 + $0x61] sm:$0xff] %v8198
  %8372 = vst [vmem:[%s8362 + $0x69] sm:$0xff] %v8199
  %8373 = vst [vmem:[%s8362 + $0x79] sm:$0xff] %v8200
  %8374 = vst [vmem:[%s8362 + $0x81] sm:$0xff] %v8201
  %8375 = vst [vmem:[%s8362 + $0x91] sm:$0xff] %v8202
  %8376 = vst [vmem:[%s8362 + $0x99] sm:$0xff] %v8203
  %8377 = vst [vmem:[%s8362 + $0xa9] sm:$0xff] %v8204
  %8378 = vst [vmem:[%s8362 + $0xb1] sm:$0xff] %v8205
  %8379 = vst [vmem:[%s8362 + $0xc1] sm:$0xff] %v8206
  %8380 = vst [vmem:[%s8362 + $0xc9] sm:$0xff] %v8207
  %8381 = vst [vmem:[%s8362 + $0xd9] sm:$0xff] %v8208
  %8382 = vst [vmem:[%s8362 + $0xe1] sm:$0xff] %v8209
  %8383 = vst [vmem:[%s8362 + $0xf1] sm:$0xff] %v8210
  %8384 = vst [vmem:[%s8362 + $0xf9] sm:$0xff] %v8211
  %8385 = vst [vmem:[%s8362 + $0x109] sm:$0xff] %v8212
  %8386 = vst [vmem:[%s8362 + $0x111] sm:$0xff] %v8213
  %8387 = vst [vmem:[%s8362 + $0x121] sm:$0xff] %v8214
  %8388 = vst [vmem:[%s8362 + $0x129] sm:$0xff] %v8215
  %8389 = vst [vmem:[%s8362 + $0x139] sm:$0xff] %v8216
  %8390 = vst [vmem:[%s8362 + $0x141] sm:$0xff] %v8217
  %8391 = vst [vmem:[%s8362 + $0x151] sm:$0xff] %v8218
  %8392 = vst [vmem:[%s8362 + $0x159] sm:$0xff] %v8219
  %8393 = vst [vmem:[%s8362 + $0x169] sm:$0xff] %v8220
  %8394 = vst [vmem:[%s8362 + $0x171] sm:$0xff] %v8221
  %8395 = vst [vmem:[%s8362 + $0x1b1] sm:$0xff] %v8222
  %8396 = vst [vmem:[%s8362 + $0x1b9] sm:$0xff] %v8223
  %8397 = vst [vmem:[%s8362 + $0x1c9] sm:$0xff] %v8224
  %8398 = vst [vmem:[%s8362 + $0x1d1] sm:$0xff] %v8225
  %8399 = vst [vmem:[%s8362 + $0x1e1] sm:$0xff] %v8226
  %8400 = vst [vmem:[%s8362 + $0x1e9] sm:$0xff] %v8227
  %8401 = vst [vmem:[%s8362 + $0x1f9] sm:$0xff] %v8228
  %8402 = vst [vmem:[%s8362 + $0x201] sm:$0xff] %v8229
  %8403 = vst [vmem:[%s8362 + $0x211] sm:$0xff] %v8230
  %8404 = vst [vmem:[%s8362 + $0x219] sm:$0xff] %v8231
  %8405 = vst [vmem:[%s8362 + $0x229] sm:$0xff] %v8232
  %8406 = vst [vmem:[%s8362 + $0x231] sm:$0xff] %v8233
  %8407 = vst [vmem:[%s8362 + $0x241] sm:$0xff] %v8234
  %8408 = vst [vmem:[%s8362 + $0x249] sm:$0xff] %v8235
  %8409 = vst [vmem:[%s8362 + $0x259] sm:$0xff] %v8236
  %8410 = vst [vmem:[%s8362 + $0x261] sm:$0xff] %v8237
  %8411 = vst [vmem:[%s8362 + $0x271] sm:$0xff] %v8238
  %8412 = vst [vmem:[%s8362 + $0x279] sm:$0xff] %v8239
  %8413 = vst [vmem:[%s8362 + $0x289] sm:$0xff] %v8240
  %8414 = vst [vmem:[%s8362 + $0x291] sm:$0xff] %v8241
  %8415 = vst [vmem:[%s8362 + $0x2a1] sm:$0xff] %v8242
  %8416 = vst [vmem:[%s8362 + $0x2a9] sm:$0xff] %v8243
  %8417 = vst [vmem:[%s8362 + $0x2b9] sm:$0xff] %v8244
  %8418 = vst [vmem:[%s8362 + $0x2c1] sm:$0xff] %v8245
  %8419 = vst [vmem:[%s8362 + $0x2d1] sm:$0xff] %v8246
  %8420 = vst [vmem:[%s8362 + $0x2d9] sm:$0xff] %v8247
  %8421 = vst [vmem:[%s8362 + $0x2e9] sm:$0xff] %v8248
  %8422 = vst [vmem:[%s8362 + $0x2f1] sm:$0xff] %v8249
  %8423 = vst [vmem:[%s8362 + $0x301] sm:$0xff] %v8250
  %8424 = vst [vmem:[%s8362 + $0x309] sm:$0xff] %v8251
  %8425 = vst [vmem:[%s8362 + $0x319] sm:$0xff] %v8252
  %8426 = vst [vmem:[%s8362 + $0x321] sm:$0xff] %v8253
  %8427 = vst [vmem:[#allocation4] sm:$0xff] 0.0
  %8428 = vst [vmem:[#allocation4 + $0x8] sm:$0xff] 0.0
  %8429 = vst [vmem:[#allocation4 + $0x10] sm:$0xff] 0.0
  %8430 = vst [vmem:[#allocation4 + $0x18] sm:$0xff] 0.0
  %8431 = vst [vmem:[#allocation4 + $0x20] sm:$0xff] 0.0
  %8432 = vst [vmem:[#allocation4 + $0x28] sm:$0xff] 0.0
  %8433 = vst [vmem:[#allocation4 + $0x30] sm:$0xff] 0.0
  %8434 = vst [vmem:[#allocation4 + $0x38] sm:$0xff] 0.0
  %8435 = vst [vmem:[#allocation4 + $0x40] sm:$0xff] 0.0
  %8436 = vst [vmem:[#allocation4 + $0x48] sm:$0xff] 0.0
  %8437 = vst [vmem:[#allocation4 + $0x50] sm:$0xff] 0.0
  %8438 = vst [vmem:[#allocation4 + $0x58] sm:$0xff] 0.0
  %8439 = vst [vmem:[#allocation4 + $0x60] sm:$0xff] 0.0
  %8440 = vst [vmem:[#allocation4 + $0x68] sm:$0xff] 0.0
  %8441 = vst [vmem:[#allocation4 + $0x70] sm:$0xff] 0.0
  %8442 = vst [vmem:[#allocation4 + $0x78] sm:$0xff] 0.0
  %v8443 = vld [vmem:[#allocation3] ss:$2 sm:$0xff]
  %s8444 = scalar_lea.vmem [#allocation3], 48
  %v8445 = vld [vmem:[%s8444] ss:$2 sm:$0xff]
  %s8446 = scalar_lea.vmem [#allocation3], 96
  %v8447 = vld [vmem:[%s8446] ss:$2 sm:$0xff]
  %s8448 = scalar_lea.vmem [#allocation3], 144
  %v8449 = vld [vmem:[%s8448] ss:$2 sm:$0xff]
  %s8450 = scalar_lea.vmem [#allocation3], 192
  %v8451 = vld [vmem:[%s8450] ss:$2 sm:$0xff]
  %s8452 = scalar_lea.vmem [#allocation3], 240
  %v8453 = vld [vmem:[%s8452] ss:$2 sm:$0xff]
  %s8454 = scalar_lea.vmem [#allocation3], 288
  %v8455 = vld [vmem:[%s8454] ss:$2 sm:$0xff]
  %s8456 = scalar_lea.vmem [#allocation3], 336
  %v8457 = vld [vmem:[%s8456] ss:$2 sm:$0xff]
  %s8458 = scalar_lea.vmem [#allocation3], 432
  %v8459 = vld [vmem:[%s8458] ss:$2 sm:$0xff]
  %s8460 = scalar_lea.vmem [#allocation3], 480
  %v8461 = vld [vmem:[%s8460] ss:$2 sm:$0xff]
  %s8462 = scalar_lea.vmem [#allocation3], 528
  %v8463 = vld [vmem:[%s8462] ss:$2 sm:$0xff]
  %s8464 = scalar_lea.vmem [#allocation3], 576
  %v8465 = vld [vmem:[%s8464] ss:$2 sm:$0xff]
  %s8466 = scalar_lea.vmem [#allocation3], 624
  %v8467 = vld [vmem:[%s8466] ss:$2 sm:$0xff]
  %s8468 = scalar_lea.vmem [#allocation3], 672
  %v8469 = vld [vmem:[%s8468] ss:$2 sm:$0xff]
  %s8470 = scalar_lea.vmem [#allocation3], 720
  %v8471 = vld [vmem:[%s8470] ss:$2 sm:$0xff]
  %s8472 = scalar_lea.vmem [#allocation3], 768
  %v8473 = vld [vmem:[%s8472] ss:$2 sm:$0xff]
  %v8474 = vld [vmem:[#allocation4] sm:$0xff]
  %v8475 = vld [vmem:[#allocation4 + $0x8] sm:$0xff]
  %v8476 = vld [vmem:[#allocation4 + $0x10] sm:$0xff]
  %v8477 = vld [vmem:[#allocation4 + $0x18] sm:$0xff]
  %v8478 = vld [vmem:[#allocation4 + $0x20] sm:$0xff]
  %v8479 = vld [vmem:[#allocation4 + $0x28] sm:$0xff]
  %v8480 = vld [vmem:[#allocation4 + $0x30] sm:$0xff]
  %v8481 = vld [vmem:[#allocation4 + $0x38] sm:$0xff]
  %v8482 = vld [vmem:[#allocation4 + $0x40] sm:$0xff]
  %v8483 = vld [vmem:[#allocation4 + $0x48] sm:$0xff]
  %v8484 = vld [vmem:[#allocation4 + $0x50] sm:$0xff]
  %v8485 = vld [vmem:[#allocation4 + $0x58] sm:$0xff]
  %v8486 = vld [vmem:[#allocation4 + $0x60] sm:$0xff]
  %v8487 = vld [vmem:[#allocation4 + $0x68] sm:$0xff]
  %v8488 = vld [vmem:[#allocation4 + $0x70] sm:$0xff]
  %v8489 = vld [vmem:[#allocation4 + $0x78] sm:$0xff]
  %v8490 = vld [vmem:[%s5] sm:$0xff]
  %v8491 = vld [vmem:[%s5 + $0x8] sm:$0xff]
  %v8492 = vld [vmem:[%s5 + $0x10] sm:$0xff]
  %v8493 = vld [vmem:[%s5 + $0x18] sm:$0xff]
  %v8494 = vld [vmem:[%s5 + $0x20] sm:$0xff]
  %v8495 = vld [vmem:[%s5 + $0x28] sm:$0xff]
  %v8496 = vld [vmem:[%s5 + $0x30] sm:$0xff]
  %v8497 = vld [vmem:[%s5 + $0x38] sm:$0xff]
  %v8498 = vld [vmem:[%s5 + $0x40] sm:$0xff]
  %v8499 = vld [vmem:[%s5 + $0x48] sm:$0xff]
  %v8500 = vld [vmem:[%s5 + $0x50] sm:$0xff]
  %v8501 = vld [vmem:[%s5 + $0x58] sm:$0xff]
  %v8502 = vld [vmem:[%s5 + $0x60] sm:$0xff]
  %v8503 = vld [vmem:[%s5 + $0x68] sm:$0xff]
  %v8504 = vld [vmem:[%s5 + $0x70] sm:$0xff]
  %v8505 = vld [vmem:[%s5 + $0x78] sm:$0xff]
  %8506 = vmatprep.subr.mxu0 0.0
  %8507 = vmatpush1.msra.mxu0 %v8490
  %8508 = vmatprep.subr.mxu0 0.0
  %8509 = vmatpush1.msra.mxu0 %v8491
  %8510 = vmatprep.subr.mxu0 0.0
  %8511 = vmatpush1.msra.mxu0 %v8492
  %8512 = vmatprep.subr.mxu0 0.0
  %8513 = vmatpush1.msra.mxu0 %v8493
  %8514 = vmatprep.subr.mxu0 0.0
  %8515 = vmatpush1.msra.mxu0 %v8494
  %8516 = vmatprep.subr.mxu0 0.0
  %8517 = vmatpush1.msra.mxu0 %v8495
  %8518 = vmatprep.subr.mxu0 0.0
  %8519 = vmatpush1.msra.mxu0 %v8496
  %8520 = vmatprep.subr.mxu0 0.0
  %8521 = vmatpush1.msra.mxu0 %v8497
  %8522 = vmatprep.subr.mxu0 0.0
  %8523 = vmatpush1.msra.mxu0 %v8498
  %8524 = vmatprep.subr.mxu0 0.0
  %8525 = vmatpush1.msra.mxu0 %v8499
  %8526 = vmatprep.subr.mxu0 0.0
  %8527 = vmatpush1.msra.mxu0 %v8500
  %8528 = vmatprep.subr.mxu0 0.0
  %8529 = vmatpush1.msra.mxu0 %v8501
  %8530 = vmatprep.subr.mxu0 0.0
  %8531 = vmatpush1.msra.mxu0 %v8502
  %8532 = vmatprep.subr.mxu0 0.0
  %8533 = vmatpush1.msra.mxu0 %v8503
  %8534 = vmatprep.subr.mxu0 0.0
  %8535 = vmatpush1.msra.mxu0 %v8504
  %8536 = vmatprep.subr.mxu0 0.0
  %8537 = vmatpush1.msra.mxu0 %v8505
  %8538 = vmatprep.subr.mxu0 0.0
  %8539 = vmatpush1.msra.mxu0 0.0
  %8540 = vmatprep.subr.mxu0 0.0
  %8541 = vmatpush1.msra.mxu0 0.0
  %8542 = vmatprep.subr.mxu0 0.0
  %8543 = vmatpush1.msra.mxu0 0.0
  %8544 = vmatprep.subr.mxu0 0.0
  %8545 = vmatpush1.msra.mxu0 0.0
  %8546 = vmatprep.subr.mxu0 0.0
  %8547 = vmatpush1.msra.mxu0 0.0
  %8548 = vmatprep.subr.mxu0 0.0
  %8549 = vmatpush1.msra.mxu0 0.0
  %8550 = vmatprep.subr.mxu0 0.0
  %8551 = vmatpush1.msra.mxu0 0.0
  %8552 = vmatprep.subr.mxu0 0.0
  %8553 = vmatpush1.msra.mxu0 0.0
  %8554 = vmatprep.subr.mxu0 0.0
  %8555 = vmatpush1.msra.mxu0 0.0
  %8556 = vmatprep.subr.mxu0 0.0
  %8557 = vmatpush1.msra.mxu0 0.0
  %8558 = vmatprep.subr.mxu0 0.0
  %8559 = vmatpush1.msra.mxu0 0.0
  %8560 = vmatprep.subr.mxu0 0.0
  %8561 = vmatpush1.msra.mxu0 0.0
  %8562 = vmatprep.subr.mxu0 0.0
  %8563 = vmatpush1.msra.mxu0 0.0
  %8564 = vmatprep.subr.mxu0 0.0
  %8565 = vmatpush1.msra.mxu0 0.0
  %8566 = vmatprep.subr.mxu0 0.0
  %8567 = vmatpush1.msra.mxu0 0.0
  %8568 = vmatprep.subr.mxu0 0.0
  %8569 = vmatpush1.msra.mxu0 0.0
  %8570 = vmatprep.mubr.f32.mxu0 0.0
  %8571 = vmatmul.mubr.f32.gmra.mrb[0].mxu0 %v8443
  %v8572 = vpop.f32.mrb[0].mxu0
  %v8573 = vadd.f32 0.0, %v8572
  %v8574 = vpop.f32.mrb[0].mxu0
  %8575 = vmatprep.mubr.f32.mxu0 0.0
  %8576 = vmatmul.mubr.f32.gmra.mrb[0].mxu0 %v8445
  %v8577 = vpop.f32.mrb[0].mxu0
  %v8578 = vadd.f32 0.0, %v8577
  %v8579 = vpop.f32.mrb[0].mxu0
  %8580 = vmatprep.mubr.f32.mxu0 0.0
  %8581 = vmatmul.mubr.f32.gmra.mrb[0].mxu0 %v8447
  %v8582 = vpop.f32.mrb[0].mxu0
  %v8583 = vadd.f32 0.0, %v8582
  %v8584 = vpop.f32.mrb[0].mxu0
  %8585 = vmatprep.mubr.f32.mxu0 0.0
  %8586 = vmatmul.mubr.f32.gmra.mrb[0].mxu0 %v8449
  %v8587 = vpop.f32.mrb[0].mxu0
  %v8588 = vadd.f32 0.0, %v8587
  %v8589 = vpop.f32.mrb[0].mxu0
  %8590 = vmatprep.mubr.f32.mxu0 0.0
  %8591 = vmatmul.mubr.f32.gmra.mrb[0].mxu0 %v8451
  %v8592 = vpop.f32.mrb[0].mxu0
  %v8593 = vadd.f32 0.0, %v8592
  %v8594 = vpop.f32.mrb[0].mxu0
  %8595 = vmatprep.mubr.f32.mxu0 0.0
  %8596 = vmatmul.mubr.f32.gmra.mrb[0].mxu0 %v8453
  %v8597 = vpop.f32.mrb[0].mxu0
  %v8598 = vadd.f32 0.0, %v8597
  %v8599 = vpop.f32.mrb[0].mxu0
  %8600 = vmatprep.mubr.f32.mxu0 0.0
  %8601 = vmatmul.mubr.f32.gmra.mrb[0].mxu0 %v8455
  %v8602 = vpop.f32.mrb[0].mxu0
  %v8603 = vadd.f32 0.0, %v8602
  %v8604 = vpop.f32.mrb[0].mxu0
  %8605 = vmatprep.mubr.f32.mxu0 0.0
  %8606 = vmatmul.mubr.f32.gmra.mrb[0].mxu0 %v8457
  %v8607 = vpop.f32.mrb[0].mxu0
  %v8608 = vadd.f32 0.0, %v8607
  %v8609 = vpop.f32.mrb[0].mxu0
  %8610 = vmatprep.mubr.f32.mxu0 0.0
  %8611 = vmatmul.mubr.f32.gmra.mrb[0].mxu0 %v8459
  %v8612 = vpop.f32.mrb[0].mxu0
  %v8613 = vadd.f32 0.0, %v8612
  %v8614 = vpop.f32.mrb[0].mxu0
  %8615 = vmatprep.mubr.f32.mxu0 0.0
  %8616 = vmatmul.mubr.f32.gmra.mrb[0].mxu0 %v8461
  %v8617 = vpop.f32.mrb[0].mxu0
  %v8618 = vadd.f32 0.0, %v8617
  %v8619 = vpop.f32.mrb[0].mxu0
  %8620 = vmatprep.mubr.f32.mxu0 0.0
  %8621 = vmatmul.mubr.f32.gmra.mrb[0].mxu0 %v8463
  %v8622 = vpop.f32.mrb[0].mxu0
  %v8623 = vadd.f32 0.0, %v8622
  %v8624 = vpop.f32.mrb[0].mxu0
  %8625 = vmatprep.mubr.f32.mxu0 0.0
  %8626 = vmatmul.mubr.f32.gmra.mrb[0].mxu0 %v8465
  %v8627 = vpop.f32.mrb[0].mxu0
  %v8628 = vadd.f32 0.0, %v8627
  %v8629 = vpop.f32.mrb[0].mxu0
  %8630 = vmatprep.mubr.f32.mxu0 0.0
  %8631 = vmatmul.mubr.f32.gmra.mrb[0].mxu0 %v8467
  %v8632 = vpop.f32.mrb[0].mxu0
  %v8633 = vadd.f32 0.0, %v8632
  %v8634 = vpop.f32.mrb[0].mxu0
  %8635 = vmatprep.mubr.f32.mxu0 0.0
  %8636 = vmatmul.mubr.f32.gmra.mrb[0].mxu0 %v8469
  %v8637 = vpop.f32.mrb[0].mxu0
  %v8638 = vadd.f32 0.0, %v8637
  %v8639 = vpop.f32.mrb[0].mxu0
  %8640 = vmatprep.mubr.f32.mxu0 0.0
  %8641 = vmatmul.mubr.f32.gmra.mrb[0].mxu0 %v8471
  %v8642 = vpop.f32.mrb[0].mxu0
  %v8643 = vadd.f32 0.0, %v8642
  %v8644 = vpop.f32.mrb[0].mxu0
  %8645 = vmatprep.mubr.f32.mxu0 0.0
  %8646 = vmatmul.mubr.f32.gmra.mrb[0].mxu0 %v8473
  %v8647 = vpop.f32.mrb[0].mxu0
  %v8648 = vadd.f32 0.0, %v8647
  %v8649 = vpop.f32.mrb[0].mxu0
  %8650 = vdwg.mxu0
  %v8651 = vadd.f32 %v8474, %v8573
  %v8652 = vadd.f32 %v8475, %v8578
  %v8653 = vadd.f32 %v8476, %v8583
  %v8654 = vadd.f32 %v8477, %v8588
  %v8655 = vadd.f32 %v8478, %v8593
  %v8656 = vadd.f32 %v8479, %v8598
  %v8657 = vadd.f32 %v8480, %v8603
  %v8658 = vadd.f32 %v8481, %v8608
  %v8659 = vadd.f32 %v8482, %v8613
  %v8660 = vadd.f32 %v8483, %v8618
  %v8661 = vadd.f32 %v8484, %v8623
  %v8662 = vadd.f32 %v8485, %v8628
  %v8663 = vadd.f32 %v8486, %v8633
  %v8664 = vadd.f32 %v8487, %v8638
  %v8665 = vadd.f32 %v8488, %v8643
  %v8666 = vadd.f32 %v8489, %v8648
  %8667 = vst [vmem:[#allocation4] sm:$0xff] %v8651
  %8668 = vst [vmem:[#allocation4 + $0x8] sm:$0xff] %v8652
  %8669 = vst [vmem:[#allocation4 + $0x10] sm:$0xff] %v8653
  %8670 = vst [vmem:[#allocation4 + $0x18] sm:$0xff] %v8654
  %8671 = vst [vmem:[#allocation4 + $0x20] sm:$0xff] %v8655
  %8672 = vst [vmem:[#allocation4 + $0x28] sm:$0xff] %v8656
  %8673 = vst [vmem:[#allocation4 + $0x30] sm:$0xff] %v8657
  %8674 = vst [vmem:[#allocation4 + $0x38] sm:$0xff] %v8658
  %8675 = vst [vmem:[#allocation4 + $0x40] sm:$0xff] %v8659
  %8676 = vst [vmem:[#allocation4 + $0x48] sm:$0xff] %v8660
  %8677 = vst [vmem:[#allocation4 + $0x50] sm:$0xff] %v8661
  %8678 = vst [vmem:[#allocation4 + $0x58] sm:$0xff] %v8662
  %8679 = vst [vmem:[#allocation4 + $0x60] sm:$0xff] %v8663
  %8680 = vst [vmem:[#allocation4 + $0x68] sm:$0xff] %v8664
  %8681 = vst [vmem:[#allocation4 + $0x70] sm:$0xff] %v8665
  %8682 = vst [vmem:[#allocation4 + $0x78] sm:$0xff] %v8666
  %s8683 = scalar_lea.vmem [#allocation3], 1
  %v8684 = vld [vmem:[%s8683] ss:$2 sm:$0xff]
  %s8685 = scalar_lea.vmem [#allocation3], 49
  %v8686 = vld [vmem:[%s8685] ss:$2 sm:$0xff]
  %s8687 = scalar_lea.vmem [#allocation3], 97
  %v8688 = vld [vmem:[%s8687] ss:$2 sm:$0xff]
  %s8689 = scalar_lea.vmem [#allocation3], 145
  %v8690 = vld [vmem:[%s8689] ss:$2 sm:$0xff]
  %s8691 = scalar_lea.vmem [#allocation3], 193
  %v8692 = vld [vmem:[%s8691] ss:$2 sm:$0xff]
  %s8693 = scalar_lea.vmem [#allocation3], 241
  %v8694 = vld [vmem:[%s8693] ss:$2 sm:$0xff]
  %s8695 = scalar_lea.vmem [#allocation3], 289
  %v8696 = vld [vmem:[%s8695] ss:$2 sm:$0xff]
  %s8697 = scalar_lea.vmem [#allocation3], 337
  %v8698 = vld [vmem:[%s8697] ss:$2 sm:$0xff]
  %s8699 = scalar_lea.vmem [#allocation3], 433
  %v8700 = vld [vmem:[%s8699] ss:$2 sm:$0xff]
  %s8701 = scalar_lea.vmem [#allocation3], 481
  %v8702 = vld [vmem:[%s8701] ss:$2 sm:$0xff]
  %s8703 = scalar_lea.vmem [#allocation3], 529
  %v8704 = vld [vmem:[%s8703] ss:$2 sm:$0xff]
  %s8705 = scalar_lea.vmem [#allocation3], 577
  %v8706 = vld [vmem:[%s8705] ss:$2 sm:$0xff]
  %s8707 = scalar_lea.vmem [#allocation3], 625
  %v8708 = vld [vmem:[%s8707] ss:$2 sm:$0xff]
  %s8709 = scalar_lea.vmem [#allocation3], 673
  %v8710 = vld [vmem:[%s8709] ss:$2 sm:$0xff]
  %s8711 = scalar_lea.vmem [#allocation3], 721
  %v8712 = vld [vmem:[%s8711] ss:$2 sm:$0xff]
  %s8713 = scalar_lea.vmem [#allocation3], 769
  %v8714 = vld [vmem:[%s8713] ss:$2 sm:$0xff]
  %v8715 = vld [vmem:[#allocation4] sm:$0xff]
  %v8716 = vld [vmem:[#allocation4 + $0x8] sm:$0xff]
  %v8717 = vld [vmem:[#allocation4 + $0x10] sm:$0xff]
  %v8718 = vld [vmem:[#allocation4 + $0x18] sm:$0xff]
  %v8719 = vld [vmem:[#allocation4 + $0x20] sm:$0xff]
  %v8720 = vld [vmem:[#allocation4 + $0x28] sm:$0xff]
  %v8721 = vld [vmem:[#allocation4 + $0x30] sm:$0xff]
  %v8722 = vld [vmem:[#allocation4 + $0x38] sm:$0xff]
  %v8723 = vld [vmem:[#allocation4 + $0x40] sm:$0xff]
  %v8724 = vld [vmem:[#allocation4 + $0x48] sm:$0xff]
  %v8725 = vld [vmem:[#allocation4 + $0x50] sm:$0xff]
  %v8726 = vld [vmem:[#allocation4 + $0x58] sm:$0xff]
  %v8727 = vld [vmem:[#allocation4 + $0x60] sm:$0xff]
  %v8728 = vld [vmem:[#allocation4 + $0x68] sm:$0xff]
  %v8729 = vld [vmem:[#allocation4 + $0x70] sm:$0xff]
  %v8730 = vld [vmem:[#allocation4 + $0x78] sm:$0xff]
  %s8731 = scalar_lea.vmem %s5, 128
  %v8732 = vld [vmem:[%s8731] sm:$0xff]
  %v8733 = vld [vmem:[%s8731 + $0x8] sm:$0xff]
  %v8734 = vld [vmem:[%s8731 + $0x10] sm:$0xff]
  %v8735 = vld [vmem:[%s8731 + $0x18] sm:$0xff]
  %v8736 = vld [vmem:[%s8731 + $0x20] sm:$0xff]
  %v8737 = vld [vmem:[%s8731 + $0x28] sm:$0xff]
  %v8738 = vld [vmem:[%s8731 + $0x30] sm:$0xff]
  %v8739 = vld [vmem:[%s8731 + $0x38] sm:$0xff]
  %v8740 = vld [vmem:[%s8731 + $0x40] sm:$0xff]
  %v8741 = vld [vmem:[%s8731 + $0x48] sm:$0xff]
  %v8742 = vld [vmem:[%s8731 + $0x50] sm:$0xff]
  %v8743 = vld [vmem:[%s8731 + $0x58] sm:$0xff]
  %v8744 = vld [vmem:[%s8731 + $0x60] sm:$0xff]
  %v8745 = vld [vmem:[%s8731 + $0x68] sm:$0xff]
  %v8746 = vld [vmem:[%s8731 + $0x70] sm:$0xff]
  %v8747 = vld [vmem:[%s8731 + $0x78] sm:$0xff]
  %8748 = vmatprep.subr.mxu0 0.0
  %8749 = vmatpush1.msra.mxu0 %v8732
  %8750 = vmatprep.subr.mxu0 0.0
  %8751 = vmatpush1.msra.mxu0 %v8733
  %8752 = vmatprep.subr.mxu0 0.0
  %8753 = vmatpush1.msra.mxu0 %v8734
  %8754 = vmatprep.subr.mxu0 0.0
  %8755 = vmatpush1.msra.mxu0 %v8735
  %8756 = vmatprep.subr.mxu0 0.0
  %8757 = vmatpush1.msra.mxu0 %v8736
  %8758 = vmatprep.subr.mxu0 0.0
  %8759 = vmatpush1.msra.mxu0 %v8737
  %8760 = vmatprep.subr.mxu0 0.0
  %8761 = vmatpush1.msra.mxu0 %v8738
  %8762 = vmatprep.subr.mxu0 0.0
  %8763 = vmatpush1.msra.mxu0 %v8739
  %8764 = vmatprep.subr.mxu0 0.0
  %8765 = vmatpush1.msra.mxu0 %v8740
  %8766 = vmatprep.subr.mxu0 0.0
  %8767 = vmatpush1.msra.mxu0 %v8741
  %8768 = vmatprep.subr.mxu0 0.0
  %8769 = vmatpush1.msra.mxu0 %v8742
  %8770 = vmatprep.subr.mxu0 0.0
  %8771 = vmatpush1.msra.mxu0 %v8743
  %8772 = vmatprep.subr.mxu0 0.0
  %8773 = vmatpush1.msra.mxu0 %v8744
  %8774 = vmatprep.subr.mxu0 0.0
  %8775 = vmatpush1.msra.mxu0 %v8745
  %8776 = vmatprep.subr.mxu0 0.0
  %8777 = vmatpush1.msra.mxu0 %v8746
  %8778 = vmatprep.subr.mxu0 0.0
  %8779 = vmatpush1.msra.mxu0 %v8747
  %8780 = vmatprep.subr.mxu0 0.0
  %8781 = vmatpush1.msra.mxu0 0.0
  %8782 = vmatprep.subr.mxu0 0.0
  %8783 = vmatpush1.msra.mxu0 0.0
  %8784 = vmatprep.subr.mxu0 0.0
  %8785 = vmatpush1.msra.mxu0 0.0
  %8786 = vmatprep.subr.mxu0 0.0
  %8787 = vmatpush1.msra.mxu0 0.0
  %8788 = vmatprep.subr.mxu0 0.0
  %8789 = vmatpush1.msra.mxu0 0.0
  %8790 = vmatprep.subr.mxu0 0.0
  %8791 = vmatpush1.msra.mxu0 0.0
  %8792 = vmatprep.subr.mxu0 0.0
  %8793 = vmatpush1.msra.mxu0 0.0
  %8794 = vmatprep.subr.mxu0 0.0
  %8795 = vmatpush1.msra.mxu0 0.0
  %8796 = vmatprep.subr.mxu0 0.0
  %8797 = vmatpush1.msra.mxu0 0.0
  %8798 = vmatprep.subr.mxu0 0.0
  %8799 = vmatpush1.msra.mxu0 0.0
  %8800 = vmatprep.subr.mxu0 0.0
  %8801 = vmatpush1.msra.mxu0 0.0
  %8802 = vmatprep.subr.mxu0 0.0
  %8803 = vmatpush1.msra.mxu0 0.0
  %8804 = vmatprep.subr.mxu0 0.0
  %8805 = vmatpush1.msra.mxu0 0.0
  %8806 = vmatprep.subr.mxu0 0.0
  %8807 = vmatpush1.msra.mxu0 0.0
  %8808 = vmatprep.subr.mxu0 0.0
  %8809 = vmatpush1.msra.mxu0 0.0
  %8810 = vmatprep.subr.mxu0 0.0
  %8811 = vmatpush1.msra.mxu0 0.0
  %8812 = vmatprep.mubr.f32.mxu0 0.0
  %8813 = vmatmul.mubr.f32.gmra.mrb[0].mxu0 %v8684
  %v8814 = vpop.f32.mrb[0].mxu0
  %v8815 = vadd.f32 0.0, %v8814
  %v8816 = vpop.f32.mrb[0].mxu0
  %8817 = vmatprep.mubr.f32.mxu0 0.0
  %8818 = vmatmul.mubr.f32.gmra.mrb[0].mxu0 %v8686
  %v8819 = vpop.f32.mrb[0].mxu0
  %v8820 = vadd.f32 0.0, %v8819
  %v8821 = vpop.f32.mrb[0].mxu0
  %8822 = vmatprep.mubr.f32.mxu0 0.0
  %8823 = vmatmul.mubr.f32.gmra.mrb[0].mxu0 %v8688
  %v8824 = vpop.f32.mrb[0].mxu0
  %v8825 = vadd.f32 0.0, %v8824
  %v8826 = vpop.f32.mrb[0].mxu0
  %8827 = vmatprep.mubr.f32.mxu0 0.0
  %8828 = vmatmul.mubr.f32.gmra.mrb[0].mxu0 %v8690
  %v8829 = vpop.f32.mrb[0].mxu0
  %v8830 = vadd.f32 0.0, %v8829
  %v8831 = vpop.f32.mrb[0].mxu0
  %8832 = vmatprep.mubr.f32.mxu0 0.0
  %8833 = vmatmul.mubr.f32.gmra.mrb[0].mxu0 %v8692
  %v8834 = vpop.f32.mrb[0].mxu0
  %v8835 = vadd.f32 0.0, %v8834
  %v8836 = vpop.f32.mrb[0].mxu0
  %8837 = vmatprep.mubr.f32.mxu0 0.0
  %8838 = vmatmul.mubr.f32.gmra.mrb[0].mxu0 %v8694
  %v8839 = vpop.f32.mrb[0].mxu0
  %v8840 = vadd.f32 0.0, %v8839
  %v8841 = vpop.f32.mrb[0].mxu0
  %8842 = vmatprep.mubr.f32.mxu0 0.0
  %8843 = vmatmul.mubr.f32.gmra.mrb[0].mxu0 %v8696
  %v8844 = vpop.f32.mrb[0].mxu0
  %v8845 = vadd.f32 0.0, %v8844
  %v8846 = vpop.f32.mrb[0].mxu0
  %8847 = vmatprep.mubr.f32.mxu0 0.0
  %8848 = vmatmul.mubr.f32.gmra.mrb[0].mxu0 %v8698
  %v8849 = vpop.f32.mrb[0].mxu0
  %v8850 = vadd.f32 0.0, %v8849
  %v8851 = vpop.f32.mrb[0].mxu0
  %8852 = vmatprep.mubr.f32.mxu0 0.0
  %8853 = vmatmul.mubr.f32.gmra.mrb[0].mxu0 %v8700
  %v8854 = vpop.f32.mrb[0].mxu0
  %v8855 = vadd.f32 0.0, %v8854
  %v8856 = vpop.f32.mrb[0].mxu0
  %8857 = vmatprep.mubr.f32.mxu0 0.0
  %8858 = vmatmul.mubr.f32.gmra.mrb[0].mxu0 %v8702
  %v8859 = vpop.f32.mrb[0].mxu0
  %v8860 = vadd.f32 0.0, %v8859
  %v8861 = vpop.f32.mrb[0].mxu0
  %8862 = vmatprep.mubr.f32.mxu0 0.0
  %8863 = vmatmul.mubr.f32.gmra.mrb[0].mxu0 %v8704
  %v8864 = vpop.f32.mrb[0].mxu0
  %v8865 = vadd.f32 0.0, %v8864
  %v8866 = vpop.f32.mrb[0].mxu0
  %8867 = vmatprep.mubr.f32.mxu0 0.0
  %8868 = vmatmul.mubr.f32.gmra.mrb[0].mxu0 %v8706
  %v8869 = vpop.f32.mrb[0].mxu0
  %v8870 = vadd.f32 0.0, %v8869
  %v8871 = vpop.f32.mrb[0].mxu0
  %8872 = vmatprep.mubr.f32.mxu0 0.0
  %8873 = vmatmul.mubr.f32.gmra.mrb[0].mxu0 %v8708
  %v8874 = vpop.f32.mrb[0].mxu0
  %v8875 = vadd.f32 0.0, %v8874
  %v8876 = vpop.f32.mrb[0].mxu0
  %8877 = vmatprep.mubr.f32.mxu0 0.0
  %8878 = vmatmul.mubr.f32.gmra.mrb[0].mxu0 %v8710
  %v8879 = vpop.f32.mrb[0].mxu0
  %v8880 = vadd.f32 0.0, %v8879
  %v8881 = vpop.f32.mrb[0].mxu0
  %8882 = vmatprep.mubr.f32.mxu0 0.0
  %8883 = vmatmul.mubr.f32.gmra.mrb[0].mxu0 %v8712
  %v8884 = vpop.f32.mrb[0].mxu0
  %v8885 = vadd.f32 0.0, %v8884
  %v8886 = vpop.f32.mrb[0].mxu0
  %8887 = vmatprep.mubr.f32.mxu0 0.0
  %8888 = vmatmul.mubr.f32.gmra.mrb[0].mxu0 %v8714
  %v8889 = vpop.f32.mrb[0].mxu0
  %v8890 = vadd.f32 0.0, %v8889
  %v8891 = vpop.f32.mrb[0].mxu0
  %8892 = vdwg.mxu0
  %v8893 = vadd.f32 %v8715, %v8815
  %v8894 = vadd.f32 %v8716, %v8820
  %v8895 = vadd.f32 %v8717, %v8825
  %v8896 = vadd.f32 %v8718, %v8830
  %v8897 = vadd.f32 %v8719, %v8835
  %v8898 = vadd.f32 %v8720, %v8840
  %v8899 = vadd.f32 %v8721, %v8845
  %v8900 = vadd.f32 %v8722, %v8850
  %v8901 = vadd.f32 %v8723, %v8855
  %v8902 = vadd.f32 %v8724, %v8860
  %v8903 = vadd.f32 %v8725, %v8865
  %v8904 = vadd.f32 %v8726, %v8870
  %v8905 = vadd.f32 %v8727, %v8875
  %v8906 = vadd.f32 %v8728, %v8880
  %v8907 = vadd.f32 %v8729, %v8885
  %v8908 = vadd.f32 %v8730, %v8890
  %8909 = vst [vmem:[#allocation4] sm:$0xff] %v8893
  %8910 = vst [vmem:[#allocation4 + $0x8] sm:$0xff] %v8894
  %8911 = vst [vmem:[#allocation4 + $0x10] sm:$0xff] %v8895
  %8912 = vst [vmem:[#allocation4 + $0x18] sm:$0xff] %v8896
  %8913 = vst [vmem:[#allocation4 + $0x20] sm:$0xff] %v8897
  %8914 = vst [vmem:[#allocation4 + $0x28] sm:$0xff] %v8898
  %8915 = vst [vmem:[#allocation4 + $0x30] sm:$0xff] %v8899
  %8916 = vst [vmem:[#allocation4 + $0x38] sm:$0xff] %v8900
  %8917 = vst [vmem:[#allocation4 + $0x40] sm:$0xff] %v8901
  %8918 = vst [vmem:[#allocation4 + $0x48] sm:$0xff] %v8902
  %8919 = vst [vmem:[#allocation4 + $0x50] sm:$0xff] %v8903
  %8920 = vst [vmem:[#allocation4 + $0x58] sm:$0xff] %v8904
  %8921 = vst [vmem:[#allocation4 + $0x60] sm:$0xff] %v8905
  %8922 = vst [vmem:[#allocation4 + $0x68] sm:$0xff] %v8906
  %8923 = vst [vmem:[#allocation4 + $0x70] sm:$0xff] %v8907
  %8924 = vst [vmem:[#allocation4 + $0x78] sm:$0xff] %v8908
  %s8925 = scalar_lea.vmem [#allocation3], 2
  %v8926 = vld [vmem:[%s8925] ss:$2 sm:$0xff]
  %s8927 = scalar_lea.vmem [#allocation3], 50
  %v8928 = vld [vmem:[%s8927] ss:$2 sm:$0xff]
  %s8929 = scalar_lea.vmem [#allocation3], 98
  %v8930 = vld [vmem:[%s8929] ss:$2 sm:$0xff]
  %s8931 = scalar_lea.vmem [#allocation3], 146
  %v8932 = vld [vmem:[%s8931] ss:$2 sm:$0xff]
  %s8933 = scalar_lea.vmem [#allocation3], 194
  %v8934 = vld [vmem:[%s8933] ss:$2 sm:$0xff]
  %s8935 = scalar_lea.vmem [#allocation3], 242
  %v8936 = vld [vmem:[%s8935] ss:$2 sm:$0xff]
  %s8937 = scalar_lea.vmem [#allocation3], 290
  %v8938 = vld [vmem:[%s8937] ss:$2 sm:$0xff]
  %s8939 = scalar_lea.vmem [#allocation3], 338
  %v8940 = vld [vmem:[%s8939] ss:$2 sm:$0xff]
  %s8941 = scalar_lea.vmem [#allocation3], 434
  %v8942 = vld [vmem:[%s8941] ss:$2 sm:$0xff]
  %s8943 = scalar_lea.vmem [#allocation3], 482
  %v8944 = vld [vmem:[%s8943] ss:$2 sm:$0xff]
  %s8945 = scalar_lea.vmem [#allocation3], 530
  %v8946 = vld [vmem:[%s8945] ss:$2 sm:$0xff]
  %s8947 = scalar_lea.vmem [#allocation3], 578
  %v8948 = vld [vmem:[%s8947] ss:$2 sm:$0xff]
  %s8949 = scalar_lea.vmem [#allocation3], 626
  %v8950 = vld [vmem:[%s8949] ss:$2 sm:$0xff]
  %s8951 = scalar_lea.vmem [#allocation3], 674
  %v8952 = vld [vmem:[%s8951] ss:$2 sm:$0xff]
  %s8953 = scalar_lea.vmem [#allocation3], 722
  %v8954 = vld [vmem:[%s8953] ss:$2 sm:$0xff]
  %s8955 = scalar_lea.vmem [#allocation3], 770
  %v8956 = vld [vmem:[%s8955] ss:$2 sm:$0xff]
  %v8957 = vld [vmem:[#allocation4] sm:$0xff]
  %v8958 = vld [vmem:[#allocation4 + $0x8] sm:$0xff]
  %v8959 = vld [vmem:[#allocation4 + $0x10] sm:$0xff]
  %v8960 = vld [vmem:[#allocation4 + $0x18] sm:$0xff]
  %v8961 = vld [vmem:[#allocation4 + $0x20] sm:$0xff]
  %v8962 = vld [vmem:[#allocation4 + $0x28] sm:$0xff]
  %v8963 = vld [vmem:[#allocation4 + $0x30] sm:$0xff]
  %v8964 = vld [vmem:[#allocation4 + $0x38] sm:$0xff]
  %v8965 = vld [vmem:[#allocation4 + $0x40] sm:$0xff]
  %v8966 = vld [vmem:[#allocation4 + $0x48] sm:$0xff]
  %v8967 = vld [vmem:[#allocation4 + $0x50] sm:$0xff]
  %v8968 = vld [vmem:[#allocation4 + $0x58] sm:$0xff]
  %v8969 = vld [vmem:[#allocation4 + $0x60] sm:$0xff]
  %v8970 = vld [vmem:[#allocation4 + $0x68] sm:$0xff]
  %v8971 = vld [vmem:[#allocation4 + $0x70] sm:$0xff]
  %v8972 = vld [vmem:[#allocation4 + $0x78] sm:$0xff]
  %s8973 = scalar_lea.vmem %s5, 256
  %v8974 = vld [vmem:[%s8973] sm:$0xff]
  %v8975 = vld [vmem:[%s8973 + $0x8] sm:$0xff]
  %v8976 = vld [vmem:[%s8973 + $0x10] sm:$0xff]
  %v8977 = vld [vmem:[%s8973 + $0x18] sm:$0xff]
  %v8978 = vld [vmem:[%s8973 + $0x20] sm:$0xff]
  %v8979 = vld [vmem:[%s8973 + $0x28] sm:$0xff]
  %v8980 = vld [vmem:[%s8973 + $0x30] sm:$0xff]
  %v8981 = vld [vmem:[%s8973 + $0x38] sm:$0xff]
  %v8982 = vld [vmem:[%s8973 + $0x40] sm:$0xff]
  %v8983 = vld [vmem:[%s8973 + $0x48] sm:$0xff]
  %v8984 = vld [vmem:[%s8973 + $0x50] sm:$0xff]
  %v8985 = vld [vmem:[%s8973 + $0x58] sm:$0xff]
  %v8986 = vld [vmem:[%s8973 + $0x60] sm:$0xff]
  %v8987 = vld [vmem:[%s8973 + $0x68] sm:$0xff]
  %v8988 = vld [vmem:[%s8973 + $0x70] sm:$0xff]
  %v8989 = vld [vmem:[%s8973 + $0x78] sm:$0xff]
  %8990 = vmatprep.subr.mxu0 0.0
  %8991 = vmatpush1.msra.mxu0 %v8974
  %8992 = vmatprep.subr.mxu0 0.0
  %8993 = vmatpush1.msra.mxu0 %v8975
  %8994 = vmatprep.subr.mxu0 0.0
  %8995 = vmatpush1.msra.mxu0 %v8976
  %8996 = vmatprep.subr.mxu0 0.0
  %8997 = vmatpush1.msra.mxu0 %v8977
  %8998 = vmatprep.subr.mxu0 0.0
  %8999 = vmatpush1.msra.mxu0 %v8978
  %9000 = vmatprep.subr.mxu0 0.0
  %9001 = vmatpush1.msra.mxu0 %v8979
  %9002 = vmatprep.subr.mxu0 0.0
  %9003 = vmatpush1.msra.mxu0 %v8980
  %9004 = vmatprep.subr.mxu0 0.0
  %9005 = vmatpush1.msra.mxu0 %v8981
  %9006 = vmatprep.subr.mxu0 0.0
  %9007 = vmatpush1.msra.mxu0 %v8982
  %9008 = vmatprep.subr.mxu0 0.0
  %9009 = vmatpush1.msra.mxu0 %v8983
  %9010 = vmatprep.subr.mxu0 0.0
  %9011 = vmatpush1.msra.mxu0 %v8984
  %9012 = vmatprep.subr.mxu0 0.0
  %9013 = vmatpush1.msra.mxu0 %v8985
  %9014 = vmatprep.subr.mxu0 0.0
  %9015 = vmatpush1.msra.mxu0 %v8986
  %9016 = vmatprep.subr.mxu0 0.0
  %9017 = vmatpush1.msra.mxu0 %v8987
  %9018 = vmatprep.subr.mxu0 0.0
  %9019 = vmatpush1.msra.mxu0 %v8988
  %9020 = vmatprep.subr.mxu0 0.0
  %9021 = vmatpush1.msra.mxu0 %v8989
  %9022 = vmatprep.subr.mxu0 0.0
  %9023 = vmatpush1.msra.mxu0 0.0
  %9024 = vmatprep.subr.mxu0 0.0
  %9025 = vmatpush1.msra.mxu0 0.0
  %9026 = vmatprep.subr.mxu0 0.0
  %9027 = vmatpush1.msra.mxu0 0.0
  %9028 = vmatprep.subr.mxu0 0.0
  %9029 = vmatpush1.msra.mxu0 0.0
  %9030 = vmatprep.subr.mxu0 0.0
  %9031 = vmatpush1.msra.mxu0 0.0
  %9032 = vmatprep.subr.mxu0 0.0
  %9033 = vmatpush1.msra.mxu0 0.0
  %9034 = vmatprep.subr.mxu0 0.0
  %9035 = vmatpush1.msra.mxu0 0.0
  %9036 = vmatprep.subr.mxu0 0.0
  %9037 = vmatpush1.msra.mxu0 0.0
  %9038 = vmatprep.subr.mxu0 0.0
  %9039 = vmatpush1.msra.mxu0 0.0
  %9040 = vmatprep.subr.mxu0 0.0
  %9041 = vmatpush1.msra.mxu0 0.0
  %9042 = vmatprep.subr.mxu0 0.0
  %9043 = vmatpush1.msra.mxu0 0.0
  %9044 = vmatprep.subr.mxu0 0.0
  %9045 = vmatpush1.msra.mxu0 0.0
  %9046 = vmatprep.subr.mxu0 0.0
  %9047 = vmatpush1.msra.mxu0 0.0
  %9048 = vmatprep.subr.mxu0 0.0
  %9049 = vmatpush1.msra.mxu0 0.0
  %9050 = vmatprep.subr.mxu0 0.0
  %9051 = vmatpush1.msra.mxu0 0.0
  %9052 = vmatprep.subr.mxu0 0.0
  %9053 = vmatpush1.msra.mxu0 0.0
  %9054 = vmatprep.mubr.f32.mxu0 0.0
  %9055 = vmatmul.mubr.f32.gmra.mrb[0].mxu0 %v8926
  %v9056 = vpop.f32.mrb[0].mxu0
  %v9057 = vadd.f32 0.0, %v9056
  %v9058 = vpop.f32.mrb[0].mxu0
  %9059 = vmatprep.mubr.f32.mxu0 0.0
  %9060 = vmatmul.mubr.f32.gmra.mrb[0].mxu0 %v8928
  %v9061 = vpop.f32.mrb[0].mxu0
  %v9062 = vadd.f32 0.0, %v9061
  %v9063 = vpop.f32.mrb[0].mxu0
  %9064 = vmatprep.mubr.f32.mxu0 0.0
  %9065 = vmatmul.mubr.f32.gmra.mrb[0].mxu0 %v8930
  %v9066 = vpop.f32.mrb[0].mxu0
  %v9067 = vadd.f32 0.0, %v9066
  %v9068 = vpop.f32.mrb[0].mxu0
  %9069 = vmatprep.mubr.f32.mxu0 0.0
  %9070 = vmatmul.mubr.f32.gmra.mrb[0].mxu0 %v8932
  %v9071 = vpop.f32.mrb[0].mxu0
  %v9072 = vadd.f32 0.0, %v9071
  %v9073 = vpop.f32.mrb[0].mxu0
  %9074 = vmatprep.mubr.f32.mxu0 0.0
  %9075 = vmatmul.mubr.f32.gmra.mrb[0].mxu0 %v8934
  %v9076 = vpop.f32.mrb[0].mxu0
  %v9077 = vadd.f32 0.0, %v9076
  %v9078 = vpop.f32.mrb[0].mxu0
  %9079 = vmatprep.mubr.f32.mxu0 0.0
  %9080 = vmatmul.mubr.f32.gmra.mrb[0].mxu0 %v8936
  %v9081 = vpop.f32.mrb[0].mxu0
  %v9082 = vadd.f32 0.0, %v9081
  %v9083 = vpop.f32.mrb[0].mxu0
  %9084 = vmatprep.mubr.f32.mxu0 0.0
  %9085 = vmatmul.mubr.f32.gmra.mrb[0].mxu0 %v8938
  %v9086 = vpop.f32.mrb[0].mxu0
  %v9087 = vadd.f32 0.0, %v9086
  %v9088 = vpop.f32.mrb[0].mxu0
  %9089 = vmatprep.mubr.f32.mxu0 0.0
  %9090 = vmatmul.mubr.f32.gmra.mrb[0].mxu0 %v8940
  %v9091 = vpop.f32.mrb[0].mxu0
  %v9092 = vadd.f32 0.0, %v9091
  %v9093 = vpop.f32.mrb[0].mxu0
  %9094 = vmatprep.mubr.f32.mxu0 0.0
  %9095 = vmatmul.mubr.f32.gmra.mrb[0].mxu0 %v8942
  %v9096 = vpop.f32.mrb[0].mxu0
  %v9097 = vadd.f32 0.0, %v9096
  %v9098 = vpop.f32.mrb[0].mxu0
  %9099 = vmatprep.mubr.f32.mxu0 0.0
  %9100 = vmatmul.mubr.f32.gmra.mrb[0].mxu0 %v8944
  %v9101 = vpop.f32.mrb[0].mxu0
  %v9102 = vadd.f32 0.0, %v9101
  %v9103 = vpop.f32.mrb[0].mxu0
  %9104 = vmatprep.mubr.f32.mxu0 0.0
  %9105 = vmatmul.mubr.f32.gmra.mrb[0].mxu0 %v8946
  %v9106 = vpop.f32.mrb[0].mxu0
  %v9107 = vadd.f32 0.0, %v9106
  %v9108 = vpop.f32.mrb[0].mxu0
  %9109 = vmatprep.mubr.f32.mxu0 0.0
  %9110 = vmatmul.mubr.f32.gmra.mrb[0].mxu0 %v8948
  %v9111 = vpop.f32.mrb[0].mxu0
  %v9112 = vadd.f32 0.0, %v9111
  %v9113 = vpop.f32.mrb[0].mxu0
  %9114 = vmatprep.mubr.f32.mxu0 0.0
  %9115 = vmatmul.mubr.f32.gmra.mrb[0].mxu0 %v8950
  %v9116 = vpop.f32.mrb[0].mxu0
  %v9117 = vadd.f32 0.0, %v9116
  %v9118 = vpop.f32.mrb[0].mxu0
  %9119 = vmatprep.mubr.f32.mxu0 0.0
  %9120 = vmatmul.mubr.f32.gmra.mrb[0].mxu0 %v8952
  %v9121 = vpop.f32.mrb[0].mxu0
  %v9122 = vadd.f32 0.0, %v9121
  %v9123 = vpop.f32.mrb[0].mxu0
  %9124 = vmatprep.mubr.f32.mxu0 0.0
  %9125 = vmatmul.mubr.f32.gmra.mrb[0].mxu0 %v8954
  %v9126 = vpop.f32.mrb[0].mxu0
  %v9127 = vadd.f32 0.0, %v9126
  %v9128 = vpop.f32.mrb[0].mxu0
  %9129 = vmatprep.mubr.f32.mxu0 0.0
  %9130 = vmatmul.mubr.f32.gmra.mrb[0].mxu0 %v8956
  %v9131 = vpop.f32.mrb[0].mxu0
  %v9132 = vadd.f32 0.0, %v9131
  %v9133 = vpop.f32.mrb[0].mxu0
  %9134 = vdwg.mxu0
  %v9135 = vadd.f32 %v8957, %v9057
  %v9136 = vadd.f32 %v8958, %v9062
  %v9137 = vadd.f32 %v8959, %v9067
  %v9138 = vadd.f32 %v8960, %v9072
  %v9139 = vadd.f32 %v8961, %v9077
  %v9140 = vadd.f32 %v8962, %v9082
  %v9141 = vadd.f32 %v8963, %v9087
  %v9142 = vadd.f32 %v8964, %v9092
  %v9143 = vadd.f32 %v8965, %v9097
  %v9144 = vadd.f32 %v8966, %v9102
  %v9145 = vadd.f32 %v8967, %v9107
  %v9146 = vadd.f32 %v8968, %v9112
  %v9147 = vadd.f32 %v8969, %v9117
  %v9148 = vadd.f32 %v8970, %v9122
  %v9149 = vadd.f32 %v8971, %v9127
  %v9150 = vadd.f32 %v8972, %v9132
  %9151 = vst [vmem:[#allocation4] sm:$0xff] %v9135
  %9152 = vst [vmem:[#allocation4 + $0x8] sm:$0xff] %v9136
  %9153 = vst [vmem:[#allocation4 + $0x10] sm:$0xff] %v9137
  %9154 = vst [vmem:[#allocation4 + $0x18] sm:$0xff] %v9138
  %9155 = vst [vmem:[#allocation4 + $0x20] sm:$0xff] %v9139
  %9156 = vst [vmem:[#allocation4 + $0x28] sm:$0xff] %v9140
  %9157 = vst [vmem:[#allocation4 + $0x30] sm:$0xff] %v9141
  %9158 = vst [vmem:[#allocation4 + $0x38] sm:$0xff] %v9142
  %9159 = vst [vmem:[#allocation4 + $0x40] sm:$0xff] %v9143
  %9160 = vst [vmem:[#allocation4 + $0x48] sm:$0xff] %v9144
  %9161 = vst [vmem:[#allocation4 + $0x50] sm:$0xff] %v9145
  %9162 = vst [vmem:[#allocation4 + $0x58] sm:$0xff] %v9146
  %9163 = vst [vmem:[#allocation4 + $0x60] sm:$0xff] %v9147
  %9164 = vst [vmem:[#allocation4 + $0x68] sm:$0xff] %v9148
  %9165 = vst [vmem:[#allocation4 + $0x70] sm:$0xff] %v9149
  %9166 = vst [vmem:[#allocation4 + $0x78] sm:$0xff] %v9150
  %v9167 = vld [vmem:[%s8362] ss:$2 sm:$0xff]
  %s9168 = scalar_lea.vmem %s8362, 48 [#allocation3]
  %v9169 = vld [vmem:[%s9168] ss:$2 sm:$0xff]
  %s9170 = scalar_lea.vmem %s8362, 96 [#allocation3]
  %v9171 = vld [vmem:[%s9170] ss:$2 sm:$0xff]
  %s9172 = scalar_lea.vmem %s8362, 144 [#allocation3]
  %v9173 = vld [vmem:[%s9172] ss:$2 sm:$0xff]
  %s9174 = scalar_lea.vmem %s8362, 192 [#allocation3]
  %v9175 = vld [vmem:[%s9174] ss:$2 sm:$0xff]
  %s9176 = scalar_lea.vmem %s8362, 240 [#allocation3]
  %v9177 = vld [vmem:[%s9176] ss:$2 sm:$0xff]
  %s9178 = scalar_lea.vmem %s8362, 288 [#allocation3]
  %v9179 = vld [vmem:[%s9178] ss:$2 sm:$0xff]
  %s9180 = scalar_lea.vmem %s8362, 336 [#allocation3]
  %v9181 = vld [vmem:[%s9180] ss:$2 sm:$0xff]
  %s9182 = scalar_lea.vmem %s8362, 432 [#allocation3]
  %v9183 = vld [vmem:[%s9182] ss:$2 sm:$0xff]
  %s9184 = scalar_lea.vmem %s8362, 480 [#allocation3]
  %v9185 = vld [vmem:[%s9184] ss:$2 sm:$0xff]
  %s9186 = scalar_lea.vmem %s8362, 528 [#allocation3]
  %v9187 = vld [vmem:[%s9186] ss:$2 sm:$0xff]
  %s9188 = scalar_lea.vmem %s8362, 576 [#allocation3]
  %v9189 = vld [vmem:[%s9188] ss:$2 sm:$0xff]
  %s9190 = scalar_lea.vmem %s8362, 624 [#allocation3]
  %v9191 = vld [vmem:[%s9190] ss:$2 sm:$0xff]
  %s9192 = scalar_lea.vmem %s8362, 672 [#allocation3]
  %v9193 = vld [vmem:[%s9192] ss:$2 sm:$0xff]
  %s9194 = scalar_lea.vmem %s8362, 720 [#allocation3]
  %v9195 = vld [vmem:[%s9194] ss:$2 sm:$0xff]
  %s9196 = scalar_lea.vmem %s8362, 768 [#allocation3]
  %v9197 = vld [vmem:[%s9196] ss:$2 sm:$0xff]
  %v9198 = vld [vmem:[#allocation4] sm:$0xff]
  %v9199 = vld [vmem:[#allocation4 + $0x8] sm:$0xff]
  %v9200 = vld [vmem:[#allocation4 + $0x10] sm:$0xff]
  %v9201 = vld [vmem:[#allocation4 + $0x18] sm:$0xff]
  %v9202 = vld [vmem:[#allocation4 + $0x20] sm:$0xff]
  %v9203 = vld [vmem:[#allocation4 + $0x28] sm:$0xff]
  %v9204 = vld [vmem:[#allocation4 + $0x30] sm:$0xff]
  %v9205 = vld [vmem:[#allocation4 + $0x38] sm:$0xff]
  %v9206 = vld [vmem:[#allocation4 + $0x40] sm:$0xff]
  %v9207 = vld [vmem:[#allocation4 + $0x48] sm:$0xff]
  %v9208 = vld [vmem:[#allocation4 + $0x50] sm:$0xff]
  %v9209 = vld [vmem:[#allocation4 + $0x58] sm:$0xff]
  %v9210 = vld [vmem:[#allocation4 + $0x60] sm:$0xff]
  %v9211 = vld [vmem:[#allocation4 + $0x68] sm:$0xff]
  %v9212 = vld [vmem:[#allocation4 + $0x70] sm:$0xff]
  %v9213 = vld [vmem:[#allocation4 + $0x78] sm:$0xff]
  %s9214 = scalar_lea.vmem %s5, 384
  %v9215 = vld [vmem:[%s9214] sm:$0xff]
  %v9216 = vld [vmem:[%s9214 + $0x8] sm:$0xff]
  %v9217 = vld [vmem:[%s9214 + $0x10] sm:$0xff]
  %v9218 = vld [vmem:[%s9214 + $0x18] sm:$0xff]
  %v9219 = vld [vmem:[%s9214 + $0x20] sm:$0xff]
  %v9220 = vld [vmem:[%s9214 + $0x28] sm:$0xff]
  %v9221 = vld [vmem:[%s9214 + $0x30] sm:$0xff]
  %v9222 = vld [vmem:[%s9214 + $0x38] sm:$0xff]
  %v9223 = vld [vmem:[%s9214 + $0x40] sm:$0xff]
  %v9224 = vld [vmem:[%s9214 + $0x48] sm:$0xff]
  %v9225 = vld [vmem:[%s9214 + $0x50] sm:$0xff]
  %v9226 = vld [vmem:[%s9214 + $0x58] sm:$0xff]
  %v9227 = vld [vmem:[%s9214 + $0x60] sm:$0xff]
  %v9228 = vld [vmem:[%s9214 + $0x68] sm:$0xff]
  %v9229 = vld [vmem:[%s9214 + $0x70] sm:$0xff]
  %v9230 = vld [vmem:[%s9214 + $0x78] sm:$0xff]
  %9231 = vmatprep.subr.mxu0 0.0
  %9232 = vmatpush1.msra.mxu0 %v9215
  %9233 = vmatprep.subr.mxu0 0.0
  %9234 = vmatpush1.msra.mxu0 %v9216
  %9235 = vmatprep.subr.mxu0 0.0
  %9236 = vmatpush1.msra.mxu0 %v9217
  %9237 = vmatprep.subr.mxu0 0.0
  %9238 = vmatpush1.msra.mxu0 %v9218
  %9239 = vmatprep.subr.mxu0 0.0
  %9240 = vmatpush1.msra.mxu0 %v9219
  %9241 = vmatprep.subr.mxu0 0.0
  %9242 = vmatpush1.msra.mxu0 %v9220
  %9243 = vmatprep.subr.mxu0 0.0
  %9244 = vmatpush1.msra.mxu0 %v9221
  %9245 = vmatprep.subr.mxu0 0.0
  %9246 = vmatpush1.msra.mxu0 %v9222
  %9247 = vmatprep.subr.mxu0 0.0
  %9248 = vmatpush1.msra.mxu0 %v9223
  %9249 = vmatprep.subr.mxu0 0.0
  %9250 = vmatpush1.msra.mxu0 %v9224
  %9251 = vmatprep.subr.mxu0 0.0
  %9252 = vmatpush1.msra.mxu0 %v9225
  %9253 = vmatprep.subr.mxu0 0.0
  %9254 = vmatpush1.msra.mxu0 %v9226
  %9255 = vmatprep.subr.mxu0 0.0
  %9256 = vmatpush1.msra.mxu0 %v9227
  %9257 = vmatprep.subr.mxu0 0.0
  %9258 = vmatpush1.msra.mxu0 %v9228
  %9259 = vmatprep.subr.mxu0 0.0
  %9260 = vmatpush1.msra.mxu0 %v9229
  %9261 = vmatprep.subr.mxu0 0.0
  %9262 = vmatpush1.msra.mxu0 %v9230
  %9263 = vmatprep.subr.mxu0 0.0
  %9264 = vmatpush1.msra.mxu0 0.0
  %9265 = vmatprep.subr.mxu0 0.0
  %9266 = vmatpush1.msra.mxu0 0.0
  %9267 = vmatprep.subr.mxu0 0.0
  %9268 = vmatpush1.msra.mxu0 0.0
  %9269 = vmatprep.subr.mxu0 0.0
  %9270 = vmatpush1.msra.mxu0 0.0
  %9271 = vmatprep.subr.mxu0 0.0
  %9272 = vmatpush1.msra.mxu0 0.0
  %9273 = vmatprep.subr.mxu0 0.0
  %9274 = vmatpush1.msra.mxu0 0.0
  %9275 = vmatprep.subr.mxu0 0.0
  %9276 = vmatpush1.msra.mxu0 0.0
  %9277 = vmatprep.subr.mxu0 0.0
  %9278 = vmatpush1.msra.mxu0 0.0
  %9279 = vmatprep.subr.mxu0 0.0
  %9280 = vmatpush1.msra.mxu0 0.0
  %9281 = vmatprep.subr.mxu0 0.0
  %9282 = vmatpush1.msra.mxu0 0.0
  %9283 = vmatprep.subr.mxu0 0.0
  %9284 = vmatpush1.msra.mxu0 0.0
  %9285 = vmatprep.subr.mxu0 0.0
  %9286 = vmatpush1.msra.mxu0 0.0
  %9287 = vmatprep.subr.mxu0 0.0
  %9288 = vmatpush1.msra.mxu0 0.0
  %9289 = vmatprep.subr.mxu0 0.0
  %9290 = vmatpush1.msra.mxu0 0.0
  %9291 = vmatprep.subr.mxu0 0.0
  %9292 = vmatpush1.msra.mxu0 0.0
  %9293 = vmatprep.subr.mxu0 0.0
  %9294 = vmatpush1.msra.mxu0 0.0
  %9295 = vmatprep.mubr.f32.mxu0 0.0
  %9296 = vmatmul.mubr.f32.gmra.mrb[0].mxu0 %v9167
  %v9297 = vpop.f32.mrb[0].mxu0
  %v9298 = vadd.f32 0.0, %v9297
  %v9299 = vpop.f32.mrb[0].mxu0
  %9300 = vmatprep.mubr.f32.mxu0 0.0
  %9301 = vmatmul.mubr.f32.gmra.mrb[0].mxu0 %v9169
  %v9302 = vpop.f32.mrb[0].mxu0
  %v9303 = vadd.f32 0.0, %v9302
  %v9304 = vpop.f32.mrb[0].mxu0
  %9305 = vmatprep.mubr.f32.mxu0 0.0
  %9306 = vmatmul.mubr.f32.gmra.mrb[0].mxu0 %v9171
  %v9307 = vpop.f32.mrb[0].mxu0
  %v9308 = vadd.f32 0.0, %v9307
  %v9309 = vpop.f32.mrb[0].mxu0
  %9310 = vmatprep.mubr.f32.mxu0 0.0
  %9311 = vmatmul.mubr.f32.gmra.mrb[0].mxu0 %v9173
  %v9312 = vpop.f32.mrb[0].mxu0
  %v9313 = vadd.f32 0.0, %v9312
  %v9314 = vpop.f32.mrb[0].mxu0
  %9315 = vmatprep.mubr.f32.mxu0 0.0
  %9316 = vmatmul.mubr.f32.gmra.mrb[0].mxu0 %v9175
  %v9317 = vpop.f32.mrb[0].mxu0
  %v9318 = vadd.f32 0.0, %v9317
  %v9319 = vpop.f32.mrb[0].mxu0
  %9320 = vmatprep.mubr.f32.mxu0 0.0
  %9321 = vmatmul.mubr.f32.gmra.mrb[0].mxu0 %v9177
  %v9322 = vpop.f32.mrb[0].mxu0
  %v9323 = vadd.f32 0.0, %v9322
  %v9324 = vpop.f32.mrb[0].mxu0
  %9325 = vmatprep.mubr.f32.mxu0 0.0
  %9326 = vmatmul.mubr.f32.gmra.mrb[0].mxu0 %v9179
  %v9327 = vpop.f32.mrb[0].mxu0
  %v9328 = vadd.f32 0.0, %v9327
  %v9329 = vpop.f32.mrb[0].mxu0
  %9330 = vmatprep.mubr.f32.mxu0 0.0
  %9331 = vmatmul.mubr.f32.gmra.mrb[0].mxu0 %v9181
  %v9332 = vpop.f32.mrb[0].mxu0
  %v9333 = vadd.f32 0.0, %v9332
  %v9334 = vpop.f32.mrb[0].mxu0
  %9335 = vmatprep.mubr.f32.mxu0 0.0
  %9336 = vmatmul.mubr.f32.gmra.mrb[0].mxu0 %v9183
  %v9337 = vpop.f32.mrb[0].mxu0
  %v9338 = vadd.f32 0.0, %v9337
  %v9339 = vpop.f32.mrb[0].mxu0
  %9340 = vmatprep.mubr.f32.mxu0 0.0
  %9341 = vmatmul.mubr.f32.gmra.mrb[0].mxu0 %v9185
  %v9342 = vpop.f32.mrb[0].mxu0
  %v9343 = vadd.f32 0.0, %v9342
  %v9344 = vpop.f32.mrb[0].mxu0
  %9345 = vmatprep.mubr.f32.mxu0 0.0
  %9346 = vmatmul.mubr.f32.gmra.mrb[0].mxu0 %v9187
  %v9347 = vpop.f32.mrb[0].mxu0
  %v9348 = vadd.f32 0.0, %v9347
  %v9349 = vpop.f32.mrb[0].mxu0
  %9350 = vmatprep.mubr.f32.mxu0 0.0
  %9351 = vmatmul.mubr.f32.gmra.mrb[0].mxu0 %v9189
  %v9352 = vpop.f32.mrb[0].mxu0
  %v9353 = vadd.f32 0.0, %v9352
  %v9354 = vpop.f32.mrb[0].mxu0
  %9355 = vmatprep.mubr.f32.mxu0 0.0
  %9356 = vmatmul.mubr.f32.gmra.mrb[0].mxu0 %v9191
  %v9357 = vpop.f32.mrb[0].mxu0
  %v9358 = vadd.f32 0.0, %v9357
  %v9359 = vpop.f32.mrb[0].mxu0
  %9360 = vmatprep.mubr.f32.mxu0 0.0
  %9361 = vmatmul.mubr.f32.gmra.mrb[0].mxu0 %v9193
  %v9362 = vpop.f32.mrb[0].mxu0
  %v9363 = vadd.f32 0.0, %v9362
  %v9364 = vpop.f32.mrb[0].mxu0
  %9365 = vmatprep.mubr.f32.mxu0 0.0
  %9366 = vmatmul.mubr.f32.gmra.mrb[0].mxu0 %v9195
  %v9367 = vpop.f32.mrb[0].mxu0
  %v9368 = vadd.f32 0.0, %v9367
  %v9369 = vpop.f32.mrb[0].mxu0
  %9370 = vmatprep.mubr.f32.mxu0 0.0
  %9371 = vmatmul.mubr.f32.gmra.mrb[0].mxu0 %v9197
  %v9372 = vpop.f32.mrb[0].mxu0
  %v9373 = vadd.f32 0.0, %v9372
  %v9374 = vpop.f32.mrb[0].mxu0
  %9375 = vdwg.mxu0
  %v9376 = vadd.f32 %v9198, %v9298
  %v9377 = vadd.f32 %v9199, %v9303
  %v9378 = vadd.f32 %v9200, %v9308
  %v9379 = vadd.f32 %v9201, %v9313
  %v9380 = vadd.f32 %v9202, %v9318
  %v9381 = vadd.f32 %v9203, %v9323
  %v9382 = vadd.f32 %v9204, %v9328
  %v9383 = vadd.f32 %v9205, %v9333
  %v9384 = vadd.f32 %v9206, %v9338
  %v9385 = vadd.f32 %v9207, %v9343
  %v9386 = vadd.f32 %v9208, %v9348
  %v9387 = vadd.f32 %v9209, %v9353
  %v9388 = vadd.f32 %v9210, %v9358
  %v9389 = vadd.f32 %v9211, %v9363
  %v9390 = vadd.f32 %v9212, %v9368
  %v9391 = vadd.f32 %v9213, %v9373
  %9392 = vst [vmem:[#allocation4] sm:$0xff] %v9376
  %9393 = vst [vmem:[#allocation4 + $0x8] sm:$0xff] %v9377
  %9394 = vst [vmem:[#allocation4 + $0x10] sm:$0xff] %v9378
  %9395 = vst [vmem:[#allocation4 + $0x18] sm:$0xff] %v9379
  %9396 = vst [vmem:[#allocation4 + $0x20] sm:$0xff] %v9380
  %9397 = vst [vmem:[#allocation4 + $0x28] sm:$0xff] %v9381
  %9398 = vst [vmem:[#allocation4 + $0x30] sm:$0xff] %v9382
  %9399 = vst [vmem:[#allocation4 + $0x38] sm:$0xff] %v9383
  %9400 = vst [vmem:[#allocation4 + $0x40] sm:$0xff] %v9384
  %9401 = vst [vmem:[#allocation4 + $0x48] sm:$0xff] %v9385
  %9402 = vst [vmem:[#allocation4 + $0x50] sm:$0xff] %v9386
  %9403 = vst [vmem:[#allocation4 + $0x58] sm:$0xff] %v9387
  %9404 = vst [vmem:[#allocation4 + $0x60] sm:$0xff] %v9388
  %9405 = vst [vmem:[#allocation4 + $0x68] sm:$0xff] %v9389
  %9406 = vst [vmem:[#allocation4 + $0x70] sm:$0xff] %v9390
  %9407 = vst [vmem:[#allocation4 + $0x78] sm:$0xff] %v9391
  %s9408 = scalar_lea.vmem %s8362, 1 [#allocation3]
  %v9409 = vld [vmem:[%s9408] ss:$2 sm:$0xff]
  %s9410 = scalar_lea.vmem %s8362, 49 [#allocation3]
  %v9411 = vld [vmem:[%s9410] ss:$2 sm:$0xff]
  %s9412 = scalar_lea.vmem %s8362, 97 [#allocation3]
  %v9413 = vld [vmem:[%s9412] ss:$2 sm:$0xff]
  %s9414 = scalar_lea.vmem %s8362, 145 [#allocation3]
  %v9415 = vld [vmem:[%s9414] ss:$2 sm:$0xff]
  %s9416 = scalar_lea.vmem %s8362, 193 [#allocation3]
  %v9417 = vld [vmem:[%s9416] ss:$2 sm:$0xff]
  %s9418 = scalar_lea.vmem %s8362, 241 [#allocation3]
  %v9419 = vld [vmem:[%s9418] ss:$2 sm:$0xff]
  %s9420 = scalar_lea.vmem %s8362, 289 [#allocation3]
  %v9421 = vld [vmem:[%s9420] ss:$2 sm:$0xff]
  %s9422 = scalar_lea.vmem %s8362, 337 [#allocation3]
  %v9423 = vld [vmem:[%s9422] ss:$2 sm:$0xff]
  %s9424 = scalar_lea.vmem %s8362, 433 [#allocation3]
  %v9425 = vld [vmem:[%s9424] ss:$2 sm:$0xff]
  %s9426 = scalar_lea.vmem %s8362, 481 [#allocation3]
  %v9427 = vld [vmem:[%s9426] ss:$2 sm:$0xff]
  %s9428 = scalar_lea.vmem %s8362, 529 [#allocation3]
  %v9429 = vld [vmem:[%s9428] ss:$2 sm:$0xff]
  %s9430 = scalar_lea.vmem %s8362, 577 [#allocation3]
  %v9431 = vld [vmem:[%s9430] ss:$2 sm:$0xff]
  %s9432 = scalar_lea.vmem %s8362, 625 [#allocation3]
  %v9433 = vld [vmem:[%s9432] ss:$2 sm:$0xff]
  %s9434 = scalar_lea.vmem %s8362, 673 [#allocation3]
  %v9435 = vld [vmem:[%s9434] ss:$2 sm:$0xff]
  %s9436 = scalar_lea.vmem %s8362, 721 [#allocation3]
  %v9437 = vld [vmem:[%s9436] ss:$2 sm:$0xff]
  %s9438 = scalar_lea.vmem %s8362, 769 [#allocation3]
  %v9439 = vld [vmem:[%s9438] ss:$2 sm:$0xff]
  %v9440 = vld [vmem:[#allocation4] sm:$0xff]
  %v9441 = vld [vmem:[#allocation4 + $0x8] sm:$0xff]
  %v9442 = vld [vmem:[#allocation4 + $0x10] sm:$0xff]
  %v9443 = vld [vmem:[#allocation4 + $0x18] sm:$0xff]
  %v9444 = vld [vmem:[#allocation4 + $0x20] sm:$0xff]
  %v9445 = vld [vmem:[#allocation4 + $0x28] sm:$0xff]
  %v9446 = vld [vmem:[#allocation4 + $0x30] sm:$0xff]
  %v9447 = vld [vmem:[#allocation4 + $0x38] sm:$0xff]
  %v9448 = vld [vmem:[#allocation4 + $0x40] sm:$0xff]
  %v9449 = vld [vmem:[#allocation4 + $0x48] sm:$0xff]
  %v9450 = vld [vmem:[#allocation4 + $0x50] sm:$0xff]
  %v9451 = vld [vmem:[#allocation4 + $0x58] sm:$0xff]
  %v9452 = vld [vmem:[#allocation4 + $0x60] sm:$0xff]
  %v9453 = vld [vmem:[#allocation4 + $0x68] sm:$0xff]
  %v9454 = vld [vmem:[#allocation4 + $0x70] sm:$0xff]
  %v9455 = vld [vmem:[#allocation4 + $0x78] sm:$0xff]
  %s9456 = scalar_lea.vmem %s5, 512
  %v9457 = vld [vmem:[%s9456] sm:$0xff]
  %v9458 = vld [vmem:[%s9456 + $0x8] sm:$0xff]
  %v9459 = vld [vmem:[%s9456 + $0x10] sm:$0xff]
  %v9460 = vld [vmem:[%s9456 + $0x18] sm:$0xff]
  %v9461 = vld [vmem:[%s9456 + $0x20] sm:$0xff]
  %v9462 = vld [vmem:[%s9456 + $0x28] sm:$0xff]
  %v9463 = vld [vmem:[%s9456 + $0x30] sm:$0xff]
  %v9464 = vld [vmem:[%s9456 + $0x38] sm:$0xff]
  %v9465 = vld [vmem:[%s9456 + $0x40] sm:$0xff]
  %v9466 = vld [vmem:[%s9456 + $0x48] sm:$0xff]
  %v9467 = vld [vmem:[%s9456 + $0x50] sm:$0xff]
  %v9468 = vld [vmem:[%s9456 + $0x58] sm:$0xff]
  %v9469 = vld [vmem:[%s9456 + $0x60] sm:$0xff]
  %v9470 = vld [vmem:[%s9456 + $0x68] sm:$0xff]
  %v9471 = vld [vmem:[%s9456 + $0x70] sm:$0xff]
  %v9472 = vld [vmem:[%s9456 + $0x78] sm:$0xff]
  %9473 = vmatprep.subr.mxu0 0.0
  %9474 = vmatpush1.msra.mxu0 %v9457
  %9475 = vmatprep.subr.mxu0 0.0
  %9476 = vmatpush1.msra.mxu0 %v9458
  %9477 = vmatprep.subr.mxu0 0.0
  %9478 = vmatpush1.msra.mxu0 %v9459
  %9479 = vmatprep.subr.mxu0 0.0
  %9480 = vmatpush1.msra.mxu0 %v9460
  %9481 = vmatprep.subr.mxu0 0.0
  %9482 = vmatpush1.msra.mxu0 %v9461
  %9483 = vmatprep.subr.mxu0 0.0
  %9484 = vmatpush1.msra.mxu0 %v9462
  %9485 = vmatprep.subr.mxu0 0.0
  %9486 = vmatpush1.msra.mxu0 %v9463
  %9487 = vmatprep.subr.mxu0 0.0
  %9488 = vmatpush1.msra.mxu0 %v9464
  %9489 = vmatprep.subr.mxu0 0.0
  %9490 = vmatpush1.msra.mxu0 %v9465
  %9491 = vmatprep.subr.mxu0 0.0
  %9492 = vmatpush1.msra.mxu0 %v9466
  %9493 = vmatprep.subr.mxu0 0.0
  %9494 = vmatpush1.msra.mxu0 %v9467
  %9495 = vmatprep.subr.mxu0 0.0
  %9496 = vmatpush1.msra.mxu0 %v9468
  %9497 = vmatprep.subr.mxu0 0.0
  %9498 = vmatpush1.msra.mxu0 %v9469
  %9499 = vmatprep.subr.mxu0 0.0
  %9500 = vmatpush1.msra.mxu0 %v9470
  %9501 = vmatprep.subr.mxu0 0.0
  %9502 = vmatpush1.msra.mxu0 %v9471
  %9503 = vmatprep.subr.mxu0 0.0
  %9504 = vmatpush1.msra.mxu0 %v9472
  %9505 = vmatprep.subr.mxu0 0.0
  %9506 = vmatpush1.msra.mxu0 0.0
  %9507 = vmatprep.subr.mxu0 0.0
  %9508 = vmatpush1.msra.mxu0 0.0
  %9509 = vmatprep.subr.mxu0 0.0
  %9510 = vmatpush1.msra.mxu0 0.0
  %9511 = vmatprep.subr.mxu0 0.0
  %9512 = vmatpush1.msra.mxu0 0.0
  %9513 = vmatprep.subr.mxu0 0.0
  %9514 = vmatpush1.msra.mxu0 0.0
  %9515 = vmatprep.subr.mxu0 0.0
  %9516 = vmatpush1.msra.mxu0 0.0
  %9517 = vmatprep.subr.mxu0 0.0
  %9518 = vmatpush1.msra.mxu0 0.0
  %9519 = vmatprep.subr.mxu0 0.0
  %9520 = vmatpush1.msra.mxu0 0.0
  %9521 = vmatprep.subr.mxu0 0.0
  %9522 = vmatpush1.msra.mxu0 0.0
  %9523 = vmatprep.subr.mxu0 0.0
  %9524 = vmatpush1.msra.mxu0 0.0
  %9525 = vmatprep.subr.mxu0 0.0
  %9526 = vmatpush1.msra.mxu0 0.0
  %9527 = vmatprep.subr.mxu0 0.0
  %9528 = vmatpush1.msra.mxu0 0.0
  %9529 = vmatprep.subr.mxu0 0.0
  %9530 = vmatpush1.msra.mxu0 0.0
  %9531 = vmatprep.subr.mxu0 0.0
  %9532 = vmatpush1.msra.mxu0 0.0
  %9533 = vmatprep.subr.mxu0 0.0
  %9534 = vmatpush1.msra.mxu0 0.0
  %9535 = vmatprep.subr.mxu0 0.0
  %9536 = vmatpush1.msra.mxu0 0.0
  %9537 = vmatprep.mubr.f32.mxu0 0.0
  %9538 = vmatmul.mubr.f32.gmra.mrb[0].mxu0 %v9409
  %v9539 = vpop.f32.mrb[0].mxu0
  %v9540 = vadd.f32 0.0, %v9539
  %v9541 = vpop.f32.mrb[0].mxu0
  %9542 = vmatprep.mubr.f32.mxu0 0.0
  %9543 = vmatmul.mubr.f32.gmra.mrb[0].mxu0 %v9411
  %v9544 = vpop.f32.mrb[0].mxu0
  %v9545 = vadd.f32 0.0, %v9544
  %v9546 = vpop.f32.mrb[0].mxu0
  %9547 = vmatprep.mubr.f32.mxu0 0.0
  %9548 = vmatmul.mubr.f32.gmra.mrb[0].mxu0 %v9413
  %v9549 = vpop.f32.mrb[0].mxu0
  %v9550 = vadd.f32 0.0, %v9549
  %v9551 = vpop.f32.mrb[0].mxu0
  %9552 = vmatprep.mubr.f32.mxu0 0.0
  %9553 = vmatmul.mubr.f32.gmra.mrb[0].mxu0 %v9415
  %v9554 = vpop.f32.mrb[0].mxu0
  %v9555 = vadd.f32 0.0, %v9554
  %v9556 = vpop.f32.mrb[0].mxu0
  %9557 = vmatprep.mubr.f32.mxu0 0.0
  %9558 = vmatmul.mubr.f32.gmra.mrb[0].mxu0 %v9417
  %v9559 = vpop.f32.mrb[0].mxu0
  %v9560 = vadd.f32 0.0, %v9559
  %v9561 = vpop.f32.mrb[0].mxu0
  %9562 = vmatprep.mubr.f32.mxu0 0.0
  %9563 = vmatmul.mubr.f32.gmra.mrb[0].mxu0 %v9419
  %v9564 = vpop.f32.mrb[0].mxu0
  %v9565 = vadd.f32 0.0, %v9564
  %v9566 = vpop.f32.mrb[0].mxu0
  %9567 = vmatprep.mubr.f32.mxu0 0.0
  %9568 = vmatmul.mubr.f32.gmra.mrb[0].mxu0 %v9421
  %v9569 = vpop.f32.mrb[0].mxu0
  %v9570 = vadd.f32 0.0, %v9569
  %v9571 = vpop.f32.mrb[0].mxu0
  %9572 = vmatprep.mubr.f32.mxu0 0.0
  %9573 = vmatmul.mubr.f32.gmra.mrb[0].mxu0 %v9423
  %v9574 = vpop.f32.mrb[0].mxu0
  %v9575 = vadd.f32 0.0, %v9574
  %v9576 = vpop.f32.mrb[0].mxu0
  %9577 = vmatprep.mubr.f32.mxu0 0.0
  %9578 = vmatmul.mubr.f32.gmra.mrb[0].mxu0 %v9425
  %v9579 = vpop.f32.mrb[0].mxu0
  %v9580 = vadd.f32 0.0, %v9579
  %v9581 = vpop.f32.mrb[0].mxu0
  %9582 = vmatprep.mubr.f32.mxu0 0.0
  %9583 = vmatmul.mubr.f32.gmra.mrb[0].mxu0 %v9427
  %v9584 = vpop.f32.mrb[0].mxu0
  %v9585 = vadd.f32 0.0, %v9584
  %v9586 = vpop.f32.mrb[0].mxu0
  %9587 = vmatprep.mubr.f32.mxu0 0.0
  %9588 = vmatmul.mubr.f32.gmra.mrb[0].mxu0 %v9429
  %v9589 = vpop.f32.mrb[0].mxu0
  %v9590 = vadd.f32 0.0, %v9589
  %v9591 = vpop.f32.mrb[0].mxu0
  %9592 = vmatprep.mubr.f32.mxu0 0.0
  %9593 = vmatmul.mubr.f32.gmra.mrb[0].mxu0 %v9431
  %v9594 = vpop.f32.mrb[0].mxu0
  %v9595 = vadd.f32 0.0, %v9594
  %v9596 = vpop.f32.mrb[0].mxu0
  %9597 = vmatprep.mubr.f32.mxu0 0.0
  %9598 = vmatmul.mubr.f32.gmra.mrb[0].mxu0 %v9433
  %v9599 = vpop.f32.mrb[0].mxu0
  %v9600 = vadd.f32 0.0, %v9599
  %v9601 = vpop.f32.mrb[0].mxu0
  %9602 = vmatprep.mubr.f32.mxu0 0.0
  %9603 = vmatmul.mubr.f32.gmra.mrb[0].mxu0 %v9435
  %v9604 = vpop.f32.mrb[0].mxu0
  %v9605 = vadd.f32 0.0, %v9604
  %v9606 = vpop.f32.mrb[0].mxu0
  %9607 = vmatprep.mubr.f32.mxu0 0.0
  %9608 = vmatmul.mubr.f32.gmra.mrb[0].mxu0 %v9437
  %v9609 = vpop.f32.mrb[0].mxu0
  %v9610 = vadd.f32 0.0, %v9609
  %v9611 = vpop.f32.mrb[0].mxu0
  %9612 = vmatprep.mubr.f32.mxu0 0.0
  %9613 = vmatmul.mubr.f32.gmra.mrb[0].mxu0 %v9439
  %v9614 = vpop.f32.mrb[0].mxu0
  %v9615 = vadd.f32 0.0, %v9614
  %v9616 = vpop.f32.mrb[0].mxu0
  %9617 = vdwg.mxu0
  %v9618 = vadd.f32 %v9440, %v9540
  %v9619 = vadd.f32 %v9441, %v9545
  %v9620 = vadd.f32 %v9442, %v9550
  %v9621 = vadd.f32 %v9443, %v9555
  %v9622 = vadd.f32 %v9444, %v9560
  %v9623 = vadd.f32 %v9445, %v9565
  %v9624 = vadd.f32 %v9446, %v9570
  %v9625 = vadd.f32 %v9447, %v9575
  %v9626 = vadd.f32 %v9448, %v9580
  %v9627 = vadd.f32 %v9449, %v9585
  %v9628 = vadd.f32 %v9450, %v9590
  %v9629 = vadd.f32 %v9451, %v9595
  %v9630 = vadd.f32 %v9452, %v9600
  %v9631 = vadd.f32 %v9453, %v9605
  %v9632 = vadd.f32 %v9454, %v9610
  %v9633 = vadd.f32 %v9455, %v9615
  %9634 = vst [vmem:[#allocation4] sm:$0xff] %v9618
  %9635 = vst [vmem:[#allocation4 + $0x8] sm:$0xff] %v9619
  %9636 = vst [vmem:[#allocation4 + $0x10] sm:$0xff] %v9620
  %9637 = vst [vmem:[#allocation4 + $0x18] sm:$0xff] %v9621
  %9638 = vst [vmem:[#allocation4 + $0x20] sm:$0xff] %v9622
  %9639 = vst [vmem:[#allocation4 + $0x28] sm:$0xff] %v9623
  %9640 = vst [vmem:[#allocation4 + $0x30] sm:$0xff] %v9624
  %9641 = vst [vmem:[#allocation4 + $0x38] sm:$0xff] %v9625
  %9642 = vst [vmem:[#allocation4 + $0x40] sm:$0xff] %v9626
  %9643 = vst [vmem:[#allocation4 + $0x48] sm:$0xff] %v9627
  %9644 = vst [vmem:[#allocation4 + $0x50] sm:$0xff] %v9628
  %9645 = vst [vmem:[#allocation4 + $0x58] sm:$0xff] %v9629
  %9646 = vst [vmem:[#allocation4 + $0x60] sm:$0xff] %v9630
  %9647 = vst [vmem:[#allocation4 + $0x68] sm:$0xff] %v9631
  %9648 = vst [vmem:[#allocation4 + $0x70] sm:$0xff] %v9632
  %9649 = vst [vmem:[#allocation4 + $0x78] sm:$0xff] %v9633
  %s9650 = scalar_lea.vmem %s8362, 2 [#allocation3]
  %v9651 = vld [vmem:[%s9650] ss:$2 sm:$0xff]
  %s9652 = scalar_lea.vmem %s8362, 50 [#allocation3]
  %v9653 = vld [vmem:[%s9652] ss:$2 sm:$0xff]
  %s9654 = scalar_lea.vmem %s8362, 98 [#allocation3]
  %v9655 = vld [vmem:[%s9654] ss:$2 sm:$0xff]
  %s9656 = scalar_lea.vmem %s8362, 146 [#allocation3]
  %v9657 = vld [vmem:[%s9656] ss:$2 sm:$0xff]
  %s9658 = scalar_lea.vmem %s8362, 194 [#allocation3]
  %v9659 = vld [vmem:[%s9658] ss:$2 sm:$0xff]
  %s9660 = scalar_lea.vmem %s8362, 242 [#allocation3]
  %v9661 = vld [vmem:[%s9660] ss:$2 sm:$0xff]
  %s9662 = scalar_lea.vmem %s8362, 290 [#allocation3]
  %v9663 = vld [vmem:[%s9662] ss:$2 sm:$0xff]
  %s9664 = scalar_lea.vmem %s8362, 338 [#allocation3]
  %v9665 = vld [vmem:[%s9664] ss:$2 sm:$0xff]
  %s9666 = scalar_lea.vmem %s8362, 434 [#allocation3]
  %v9667 = vld [vmem:[%s9666] ss:$2 sm:$0xff]
  %s9668 = scalar_lea.vmem %s8362, 482 [#allocation3]
  %v9669 = vld [vmem:[%s9668] ss:$2 sm:$0xff]
  %s9670 = scalar_lea.vmem %s8362, 530 [#allocation3]
  %v9671 = vld [vmem:[%s9670] ss:$2 sm:$0xff]
  %s9672 = scalar_lea.vmem %s8362, 578 [#allocation3]
  %v9673 = vld [vmem:[%s9672] ss:$2 sm:$0xff]
  %s9674 = scalar_lea.vmem %s8362, 626 [#allocation3]
  %v9675 = vld [vmem:[%s9674] ss:$2 sm:$0xff]
  %s9676 = scalar_lea.vmem %s8362, 674 [#allocation3]
  %v9677 = vld [vmem:[%s9676] ss:$2 sm:$0xff]
  %s9678 = scalar_lea.vmem %s8362, 722 [#allocation3]
  %v9679 = vld [vmem:[%s9678] ss:$2 sm:$0xff]
  %s9680 = scalar_lea.vmem %s8362, 770 [#allocation3]
  %v9681 = vld [vmem:[%s9680] ss:$2 sm:$0xff]
  %v9682 = vld [vmem:[#allocation4] sm:$0xff]
  %v9683 = vld [vmem:[#allocation4 + $0x8] sm:$0xff]
  %v9684 = vld [vmem:[#allocation4 + $0x10] sm:$0xff]
  %v9685 = vld [vmem:[#allocation4 + $0x18] sm:$0xff]
  %v9686 = vld [vmem:[#allocation4 + $0x20] sm:$0xff]
  %v9687 = vld [vmem:[#allocation4 + $0x28] sm:$0xff]
  %v9688 = vld [vmem:[#allocation4 + $0x30] sm:$0xff]
  %v9689 = vld [vmem:[#allocation4 + $0x38] sm:$0xff]
  %v9690 = vld [vmem:[#allocation4 + $0x40] sm:$0xff]
  %v9691 = vld [vmem:[#allocation4 + $0x48] sm:$0xff]
  %v9692 = vld [vmem:[#allocation4 + $0x50] sm:$0xff]
  %v9693 = vld [vmem:[#allocation4 + $0x58] sm:$0xff]
  %v9694 = vld [vmem:[#allocation4 + $0x60] sm:$0xff]
  %v9695 = vld [vmem:[#allocation4 + $0x68] sm:$0xff]
  %v9696 = vld [vmem:[#allocation4 + $0x70] sm:$0xff]
  %v9697 = vld [vmem:[#allocation4 + $0x78] sm:$0xff]
  %s9698 = scalar_lea.vmem %s5, 640
  %v9699 = vld [vmem:[%s9698] sm:$0xff]
  %v9700 = vld [vmem:[%s9698 + $0x8] sm:$0xff]
  %v9701 = vld [vmem:[%s9698 + $0x10] sm:$0xff]
  %v9702 = vld [vmem:[%s9698 + $0x18] sm:$0xff]
  %v9703 = vld [vmem:[%s9698 + $0x20] sm:$0xff]
  %v9704 = vld [vmem:[%s9698 + $0x28] sm:$0xff]
  %v9705 = vld [vmem:[%s9698 + $0x30] sm:$0xff]
  %v9706 = vld [vmem:[%s9698 + $0x38] sm:$0xff]
  %v9707 = vld [vmem:[%s9698 + $0x40] sm:$0xff]
  %v9708 = vld [vmem:[%s9698 + $0x48] sm:$0xff]
  %v9709 = vld [vmem:[%s9698 + $0x50] sm:$0xff]
  %v9710 = vld [vmem:[%s9698 + $0x58] sm:$0xff]
  %v9711 = vld [vmem:[%s9698 + $0x60] sm:$0xff]
  %v9712 = vld [vmem:[%s9698 + $0x68] sm:$0xff]
  %v9713 = vld [vmem:[%s9698 + $0x70] sm:$0xff]
  %v9714 = vld [vmem:[%s9698 + $0x78] sm:$0xff]
  %9715 = vmatprep.subr.mxu0 0.0
  %9716 = vmatpush1.msra.mxu0 %v9699
  %9717 = vmatprep.subr.mxu0 0.0
  %9718 = vmatpush1.msra.mxu0 %v9700
  %9719 = vmatprep.subr.mxu0 0.0
  %9720 = vmatpush1.msra.mxu0 %v9701
  %9721 = vmatprep.subr.mxu0 0.0
  %9722 = vmatpush1.msra.mxu0 %v9702
  %9723 = vmatprep.subr.mxu0 0.0
  %9724 = vmatpush1.msra.mxu0 %v9703
  %9725 = vmatprep.subr.mxu0 0.0
  %9726 = vmatpush1.msra.mxu0 %v9704
  %9727 = vmatprep.subr.mxu0 0.0
  %9728 = vmatpush1.msra.mxu0 %v9705
  %9729 = vmatprep.subr.mxu0 0.0
  %9730 = vmatpush1.msra.mxu0 %v9706
  %9731 = vmatprep.subr.mxu0 0.0
  %9732 = vmatpush1.msra.mxu0 %v9707
  %9733 = vmatprep.subr.mxu0 0.0
  %9734 = vmatpush1.msra.mxu0 %v9708
  %9735 = vmatprep.subr.mxu0 0.0
  %9736 = vmatpush1.msra.mxu0 %v9709
  %9737 = vmatprep.subr.mxu0 0.0
  %9738 = vmatpush1.msra.mxu0 %v9710
  %9739 = vmatprep.subr.mxu0 0.0
  %9740 = vmatpush1.msra.mxu0 %v9711
  %9741 = vmatprep.subr.mxu0 0.0
  %9742 = vmatpush1.msra.mxu0 %v9712
  %9743 = vmatprep.subr.mxu0 0.0
  %9744 = vmatpush1.msra.mxu0 %v9713
  %9745 = vmatprep.subr.mxu0 0.0
  %9746 = vmatpush1.msra.mxu0 %v9714
  %9747 = vmatprep.subr.mxu0 0.0
  %9748 = vmatpush1.msra.mxu0 0.0
  %9749 = vmatprep.subr.mxu0 0.0
  %9750 = vmatpush1.msra.mxu0 0.0
  %9751 = vmatprep.subr.mxu0 0.0
  %9752 = vmatpush1.msra.mxu0 0.0
  %9753 = vmatprep.subr.mxu0 0.0
  %9754 = vmatpush1.msra.mxu0 0.0
  %9755 = vmatprep.subr.mxu0 0.0
  %9756 = vmatpush1.msra.mxu0 0.0
  %9757 = vmatprep.subr.mxu0 0.0
  %9758 = vmatpush1.msra.mxu0 0.0
  %9759 = vmatprep.subr.mxu0 0.0
  %9760 = vmatpush1.msra.mxu0 0.0
  %9761 = vmatprep.subr.mxu0 0.0
  %9762 = vmatpush1.msra.mxu0 0.0
  %9763 = vmatprep.subr.mxu0 0.0
  %9764 = vmatpush1.msra.mxu0 0.0
  %9765 = vmatprep.subr.mxu0 0.0
  %9766 = vmatpush1.msra.mxu0 0.0
  %9767 = vmatprep.subr.mxu0 0.0
  %9768 = vmatpush1.msra.mxu0 0.0
  %9769 = vmatprep.subr.mxu0 0.0
  %9770 = vmatpush1.msra.mxu0 0.0
  %9771 = vmatprep.subr.mxu0 0.0
  %9772 = vmatpush1.msra.mxu0 0.0
  %9773 = vmatprep.subr.mxu0 0.0
  %9774 = vmatpush1.msra.mxu0 0.0
  %9775 = vmatprep.subr.mxu0 0.0
  %9776 = vmatpush1.msra.mxu0 0.0
  %9777 = vmatprep.subr.mxu0 0.0
  %9778 = vmatpush1.msra.mxu0 0.0
  %9779 = vmatprep.mubr.f32.mxu0 0.0
  %9780 = vmatmul.mubr.f32.gmra.mrb[0].mxu0 %v9651
  %v9781 = vpop.f32.mrb[0].mxu0
  %v9782 = vadd.f32 0.0, %v9781
  %v9783 = vpop.f32.mrb[0].mxu0
  %9784 = vmatprep.mubr.f32.mxu0 0.0
  %9785 = vmatmul.mubr.f32.gmra.mrb[0].mxu0 %v9653
  %v9786 = vpop.f32.mrb[0].mxu0
  %v9787 = vadd.f32 0.0, %v9786
  %v9788 = vpop.f32.mrb[0].mxu0
  %9789 = vmatprep.mubr.f32.mxu0 0.0
  %9790 = vmatmul.mubr.f32.gmra.mrb[0].mxu0 %v9655
  %v9791 = vpop.f32.mrb[0].mxu0
  %v9792 = vadd.f32 0.0, %v9791
  %v9793 = vpop.f32.mrb[0].mxu0
  %9794 = vmatprep.mubr.f32.mxu0 0.0
  %9795 = vmatmul.mubr.f32.gmra.mrb[0].mxu0 %v9657
  %v9796 = vpop.f32.mrb[0].mxu0
  %v9797 = vadd.f32 0.0, %v9796
  %v9798 = vpop.f32.mrb[0].mxu0
  %9799 = vmatprep.mubr.f32.mxu0 0.0
  %9800 = vmatmul.mubr.f32.gmra.mrb[0].mxu0 %v9659
  %v9801 = vpop.f32.mrb[0].mxu0
  %v9802 = vadd.f32 0.0, %v9801
  %v9803 = vpop.f32.mrb[0].mxu0
  %9804 = vmatprep.mubr.f32.mxu0 0.0
  %9805 = vmatmul.mubr.f32.gmra.mrb[0].mxu0 %v9661
  %v9806 = vpop.f32.mrb[0].mxu0
  %v9807 = vadd.f32 0.0, %v9806
  %v9808 = vpop.f32.mrb[0].mxu0
  %9809 = vmatprep.mubr.f32.mxu0 0.0
  %9810 = vmatmul.mubr.f32.gmra.mrb[0].mxu0 %v9663
  %v9811 = vpop.f32.mrb[0].mxu0
  %v9812 = vadd.f32 0.0, %v9811
  %v9813 = vpop.f32.mrb[0].mxu0
  %9814 = vmatprep.mubr.f32.mxu0 0.0
  %9815 = vmatmul.mubr.f32.gmra.mrb[0].mxu0 %v9665
  %v9816 = vpop.f32.mrb[0].mxu0
  %v9817 = vadd.f32 0.0, %v9816
  %v9818 = vpop.f32.mrb[0].mxu0
  %9819 = vmatprep.mubr.f32.mxu0 0.0
  %9820 = vmatmul.mubr.f32.gmra.mrb[0].mxu0 %v9667
  %v9821 = vpop.f32.mrb[0].mxu0
  %v9822 = vadd.f32 0.0, %v9821
  %v9823 = vpop.f32.mrb[0].mxu0
  %9824 = vmatprep.mubr.f32.mxu0 0.0
  %9825 = vmatmul.mubr.f32.gmra.mrb[0].mxu0 %v9669
  %v9826 = vpop.f32.mrb[0].mxu0
  %v9827 = vadd.f32 0.0, %v9826
  %v9828 = vpop.f32.mrb[0].mxu0
  %9829 = vmatprep.mubr.f32.mxu0 0.0
  %9830 = vmatmul.mubr.f32.gmra.mrb[0].mxu0 %v9671
  %v9831 = vpop.f32.mrb[0].mxu0
  %v9832 = vadd.f32 0.0, %v9831
  %v9833 = vpop.f32.mrb[0].mxu0
  %9834 = vmatprep.mubr.f32.mxu0 0.0
  %9835 = vmatmul.mubr.f32.gmra.mrb[0].mxu0 %v9673
  %v9836 = vpop.f32.mrb[0].mxu0
  %v9837 = vadd.f32 0.0, %v9836
  %v9838 = vpop.f32.mrb[0].mxu0
  %9839 = vmatprep.mubr.f32.mxu0 0.0
  %9840 = vmatmul.mubr.f32.gmra.mrb[0].mxu0 %v9675
  %v9841 = vpop.f32.mrb[0].mxu0
  %v9842 = vadd.f32 0.0, %v9841
  %v9843 = vpop.f32.mrb[0].mxu0
  %9844 = vmatprep.mubr.f32.mxu0 0.0
  %9845 = vmatmul.mubr.f32.gmra.mrb[0].mxu0 %v9677
  %v9846 = vpop.f32.mrb[0].mxu0
  %v9847 = vadd.f32 0.0, %v9846
  %v9848 = vpop.f32.mrb[0].mxu0
  %9849 = vmatprep.mubr.f32.mxu0 0.0
  %9850 = vmatmul.mubr.f32.gmra.mrb[0].mxu0 %v9679
  %v9851 = vpop.f32.mrb[0].mxu0
  %v9852 = vadd.f32 0.0, %v9851
  %v9853 = vpop.f32.mrb[0].mxu0
  %9854 = vmatprep.mubr.f32.mxu0 0.0
  %9855 = vmatmul.mubr.f32.gmra.mrb[0].mxu0 %v9681
  %v9856 = vpop.f32.mrb[0].mxu0
  %v9857 = vadd.f32 0.0, %v9856
  %v9858 = vpop.f32.mrb[0].mxu0
  %9859 = vdwg.mxu0
  %v9860 = vadd.f32 %v9682, %v9782
  %v9861 = vadd.f32 %v9683, %v9787
  %v9862 = vadd.f32 %v9684, %v9792
  %v9863 = vadd.f32 %v9685, %v9797
  %v9864 = vadd.f32 %v9686, %v9802
  %v9865 = vadd.f32 %v9687, %v9807
  %v9866 = vadd.f32 %v9688, %v9812
  %v9867 = vadd.f32 %v9689, %v9817
  %v9868 = vadd.f32 %v9690, %v9822
  %v9869 = vadd.f32 %v9691, %v9827
  %v9870 = vadd.f32 %v9692, %v9832
  %v9871 = vadd.f32 %v9693, %v9837
  %v9872 = vadd.f32 %v9694, %v9842
  %v9873 = vadd.f32 %v9695, %v9847
  %v9874 = vadd.f32 %v9696, %v9852
  %v9875 = vadd.f32 %v9697, %v9857
  %9876 = vst [vmem:[#allocation4] sm:$0xff] %v9860
  %9877 = vst [vmem:[#allocation4 + $0x8] sm:$0xff] %v9861
  %9878 = vst [vmem:[#allocation4 + $0x10] sm:$0xff] %v9862
  %9879 = vst [vmem:[#allocation4 + $0x18] sm:$0xff] %v9863
  %9880 = vst [vmem:[#allocation4 + $0x20] sm:$0xff] %v9864
  %9881 = vst [vmem:[#allocation4 + $0x28] sm:$0xff] %v9865
  %9882 = vst [vmem:[#allocation4 + $0x30] sm:$0xff] %v9866
  %9883 = vst [vmem:[#allocation4 + $0x38] sm:$0xff] %v9867
  %9884 = vst [vmem:[#allocation4 + $0x40] sm:$0xff] %v9868
  %9885 = vst [vmem:[#allocation4 + $0x48] sm:$0xff] %v9869
  %9886 = vst [vmem:[#allocation4 + $0x50] sm:$0xff] %v9870
  %9887 = vst [vmem:[#allocation4 + $0x58] sm:$0xff] %v9871
  %9888 = vst [vmem:[#allocation4 + $0x60] sm:$0xff] %v9872
  %9889 = vst [vmem:[#allocation4 + $0x68] sm:$0xff] %v9873
  %9890 = vst [vmem:[#allocation4 + $0x70] sm:$0xff] %v9874
  %9891 = vst [vmem:[#allocation4 + $0x78] sm:$0xff] %v9875
  %s9892 = scalar_lea.vmem [#allocation3], 48
  %v9893 = vld [vmem:[%s9892] ss:$2 sm:$0xff]
  %s9894 = scalar_lea.vmem %s9892, 48 [#allocation3]
  %v9895 = vld [vmem:[%s9894] ss:$2 sm:$0xff]
  %s9896 = scalar_lea.vmem %s9892, 96 [#allocation3]
  %v9897 = vld [vmem:[%s9896] ss:$2 sm:$0xff]
  %s9898 = scalar_lea.vmem %s9892, 144 [#allocation3]
  %v9899 = vld [vmem:[%s9898] ss:$2 sm:$0xff]
  %s9900 = scalar_lea.vmem %s9892, 192 [#allocation3]
  %v9901 = vld [vmem:[%s9900] ss:$2 sm:$0xff]
  %s9902 = scalar_lea.vmem %s9892, 240 [#allocation3]
  %v9903 = vld [vmem:[%s9902] ss:$2 sm:$0xff]
  %s9904 = scalar_lea.vmem %s9892, 288 [#allocation3]
  %v9905 = vld [vmem:[%s9904] ss:$2 sm:$0xff]
  %s9906 = scalar_lea.vmem %s9892, 336 [#allocation3]
  %v9907 = vld [vmem:[%s9906] ss:$2 sm:$0xff]
  %s9908 = scalar_lea.vmem %s9892, 432 [#allocation3]
  %v9909 = vld [vmem:[%s9908] ss:$2 sm:$0xff]
  %s9910 = scalar_lea.vmem %s9892, 480 [#allocation3]
  %v9911 = vld [vmem:[%s9910] ss:$2 sm:$0xff]
  %s9912 = scalar_lea.vmem %s9892, 528 [#allocation3]
  %v9913 = vld [vmem:[%s9912] ss:$2 sm:$0xff]
  %s9914 = scalar_lea.vmem %s9892, 576 [#allocation3]
  %v9915 = vld [vmem:[%s9914] ss:$2 sm:$0xff]
  %s9916 = scalar_lea.vmem %s9892, 624 [#allocation3]
  %v9917 = vld [vmem:[%s9916] ss:$2 sm:$0xff]
  %s9918 = scalar_lea.vmem %s9892, 672 [#allocation3]
  %v9919 = vld [vmem:[%s9918] ss:$2 sm:$0xff]
  %s9920 = scalar_lea.vmem %s9892, 720 [#allocation3]
  %v9921 = vld [vmem:[%s9920] ss:$2 sm:$0xff]
  %s9922 = scalar_lea.vmem %s9892, 768 [#allocation3]
  %v9923 = vld [vmem:[%s9922] ss:$2 sm:$0xff]
  %v9924 = vld [vmem:[#allocation4] sm:$0xff]
  %v9925 = vld [vmem:[#allocation4 + $0x8] sm:$0xff]
  %v9926 = vld [vmem:[#allocation4 + $0x10] sm:$0xff]
  %v9927 = vld [vmem:[#allocation4 + $0x18] sm:$0xff]
  %v9928 = vld [vmem:[#allocation4 + $0x20] sm:$0xff]
  %v9929 = vld [vmem:[#allocation4 + $0x28] sm:$0xff]
  %v9930 = vld [vmem:[#allocation4 + $0x30] sm:$0xff]
  %v9931 = vld [vmem:[#allocation4 + $0x38] sm:$0xff]
  %v9932 = vld [vmem:[#allocation4 + $0x40] sm:$0xff]
  %v9933 = vld [vmem:[#allocation4 + $0x48] sm:$0xff]
  %v9934 = vld [vmem:[#allocation4 + $0x50] sm:$0xff]
  %v9935 = vld [vmem:[#allocation4 + $0x58] sm:$0xff]
  %v9936 = vld [vmem:[#allocation4 + $0x60] sm:$0xff]
  %v9937 = vld [vmem:[#allocation4 + $0x68] sm:$0xff]
  %v9938 = vld [vmem:[#allocation4 + $0x70] sm:$0xff]
  %v9939 = vld [vmem:[#allocation4 + $0x78] sm:$0xff]
  %s9940 = scalar_lea.vmem %s5, 768
  %v9941 = vld [vmem:[%s9940] sm:$0xff]
  %v9942 = vld [vmem:[%s9940 + $0x8] sm:$0xff]
  %v9943 = vld [vmem:[%s9940 + $0x10] sm:$0xff]
  %v9944 = vld [vmem:[%s9940 + $0x18] sm:$0xff]
  %v9945 = vld [vmem:[%s9940 + $0x20] sm:$0xff]
  %v9946 = vld [vmem:[%s9940 + $0x28] sm:$0xff]
  %v9947 = vld [vmem:[%s9940 + $0x30] sm:$0xff]
  %v9948 = vld [vmem:[%s9940 + $0x38] sm:$0xff]
  %v9949 = vld [vmem:[%s9940 + $0x40] sm:$0xff]
  %v9950 = vld [vmem:[%s9940 + $0x48] sm:$0xff]
  %v9951 = vld [vmem:[%s9940 + $0x50] sm:$0xff]
  %v9952 = vld [vmem:[%s9940 + $0x58] sm:$0xff]
  %v9953 = vld [vmem:[%s9940 + $0x60] sm:$0xff]
  %v9954 = vld [vmem:[%s9940 + $0x68] sm:$0xff]
  %v9955 = vld [vmem:[%s9940 + $0x70] sm:$0xff]
  %v9956 = vld [vmem:[%s9940 + $0x78] sm:$0xff]
  %9957 = vmatprep.subr.mxu0 0.0
  %9958 = vmatpush1.msra.mxu0 %v9941
  %9959 = vmatprep.subr.mxu0 0.0
  %9960 = vmatpush1.msra.mxu0 %v9942
  %9961 = vmatprep.subr.mxu0 0.0
  %9962 = vmatpush1.msra.mxu0 %v9943
  %9963 = vmatprep.subr.mxu0 0.0
  %9964 = vmatpush1.msra.mxu0 %v9944
  %9965 = vmatprep.subr.mxu0 0.0
  %9966 = vmatpush1.msra.mxu0 %v9945
  %9967 = vmatprep.subr.mxu0 0.0
  %9968 = vmatpush1.msra.mxu0 %v9946
  %9969 = vmatprep.subr.mxu0 0.0
  %9970 = vmatpush1.msra.mxu0 %v9947
  %9971 = vmatprep.subr.mxu0 0.0
  %9972 = vmatpush1.msra.mxu0 %v9948
  %9973 = vmatprep.subr.mxu0 0.0
  %9974 = vmatpush1.msra.mxu0 %v9949
  %9975 = vmatprep.subr.mxu0 0.0
  %9976 = vmatpush1.msra.mxu0 %v9950
  %9977 = vmatprep.subr.mxu0 0.0
  %9978 = vmatpush1.msra.mxu0 %v9951
  %9979 = vmatprep.subr.mxu0 0.0
  %9980 = vmatpush1.msra.mxu0 %v9952
  %9981 = vmatprep.subr.mxu0 0.0
  %9982 = vmatpush1.msra.mxu0 %v9953
  %9983 = vmatprep.subr.mxu0 0.0
  %9984 = vmatpush1.msra.mxu0 %v9954
  %9985 = vmatprep.subr.mxu0 0.0
  %9986 = vmatpush1.msra.mxu0 %v9955
  %9987 = vmatprep.subr.mxu0 0.0
  %9988 = vmatpush1.msra.mxu0 %v9956
  %9989 = vmatprep.subr.mxu0 0.0
  %9990 = vmatpush1.msra.mxu0 0.0
  %9991 = vmatprep.subr.mxu0 0.0
  %9992 = vmatpush1.msra.mxu0 0.0
  %9993 = vmatprep.subr.mxu0 0.0
  %9994 = vmatpush1.msra.mxu0 0.0
  %9995 = vmatprep.subr.mxu0 0.0
  %9996 = vmatpush1.msra.mxu0 0.0
  %9997 = vmatprep.subr.mxu0 0.0
  %9998 = vmatpush1.msra.mxu0 0.0
  %9999 = vmatprep.subr.mxu0 0.0
  %10000 = vmatpush1.msra.mxu0 0.0
  %10001 = vmatprep.subr.mxu0 0.0
  %10002 = vmatpush1.msra.mxu0 0.0
  %10003 = vmatprep.subr.mxu0 0.0
  %10004 = vmatpush1.msra.mxu0 0.0
  %10005 = vmatprep.subr.mxu0 0.0
  %10006 = vmatpush1.msra.mxu0 0.0
  %10007 = vmatprep.subr.mxu0 0.0
  %10008 = vmatpush1.msra.mxu0 0.0
  %10009 = vmatprep.subr.mxu0 0.0
  %10010 = vmatpush1.msra.mxu0 0.0
  %10011 = vmatprep.subr.mxu0 0.0
  %10012 = vmatpush1.msra.mxu0 0.0
  %10013 = vmatprep.subr.mxu0 0.0
  %10014 = vmatpush1.msra.mxu0 0.0
  %10015 = vmatprep.subr.mxu0 0.0
  %10016 = vmatpush1.msra.mxu0 0.0
  %10017 = vmatprep.subr.mxu0 0.0
  %10018 = vmatpush1.msra.mxu0 0.0
  %10019 = vmatprep.subr.mxu0 0.0
  %10020 = vmatpush1.msra.mxu0 0.0
  %10021 = vmatprep.mubr.f32.mxu0 0.0
  %10022 = vmatmul.mubr.f32.gmra.mrb[0].mxu0 %v9893
  %v10023 = vpop.f32.mrb[0].mxu0
  %v10024 = vadd.f32 0.0, %v10023
  %v10025 = vpop.f32.mrb[0].mxu0
  %10026 = vmatprep.mubr.f32.mxu0 0.0
  %10027 = vmatmul.mubr.f32.gmra.mrb[0].mxu0 %v9895
  %v10028 = vpop.f32.mrb[0].mxu0
  %v10029 = vadd.f32 0.0, %v10028
  %v10030 = vpop.f32.mrb[0].mxu0
  %10031 = vmatprep.mubr.f32.mxu0 0.0
  %10032 = vmatmul.mubr.f32.gmra.mrb[0].mxu0 %v9897
  %v10033 = vpop.f32.mrb[0].mxu0
  %v10034 = vadd.f32 0.0, %v10033
  %v10035 = vpop.f32.mrb[0].mxu0
  %10036 = vmatprep.mubr.f32.mxu0 0.0
  %10037 = vmatmul.mubr.f32.gmra.mrb[0].mxu0 %v9899
  %v10038 = vpop.f32.mrb[0].mxu0
  %v10039 = vadd.f32 0.0, %v10038
  %v10040 = vpop.f32.mrb[0].mxu0
  %10041 = vmatprep.mubr.f32.mxu0 0.0
  %10042 = vmatmul.mubr.f32.gmra.mrb[0].mxu0 %v9901
  %v10043 = vpop.f32.mrb[0].mxu0
  %v10044 = vadd.f32 0.0, %v10043
  %v10045 = vpop.f32.mrb[0].mxu0
  %10046 = vmatprep.mubr.f32.mxu0 0.0
  %10047 = vmatmul.mubr.f32.gmra.mrb[0].mxu0 %v9903
  %v10048 = vpop.f32.mrb[0].mxu0
  %v10049 = vadd.f32 0.0, %v10048
  %v10050 = vpop.f32.mrb[0].mxu0
  %10051 = vmatprep.mubr.f32.mxu0 0.0
  %10052 = vmatmul.mubr.f32.gmra.mrb[0].mxu0 %v9905
  %v10053 = vpop.f32.mrb[0].mxu0
  %v10054 = vadd.f32 0.0, %v10053
  %v10055 = vpop.f32.mrb[0].mxu0
  %10056 = vmatprep.mubr.f32.mxu0 0.0
  %10057 = vmatmul.mubr.f32.gmra.mrb[0].mxu0 %v9907
  %v10058 = vpop.f32.mrb[0].mxu0
  %v10059 = vadd.f32 0.0, %v10058
  %v10060 = vpop.f32.mrb[0].mxu0
  %10061 = vmatprep.mubr.f32.mxu0 0.0
  %10062 = vmatmul.mubr.f32.gmra.mrb[0].mxu0 %v9909
  %v10063 = vpop.f32.mrb[0].mxu0
  %v10064 = vadd.f32 0.0, %v10063
  %v10065 = vpop.f32.mrb[0].mxu0
  %10066 = vmatprep.mubr.f32.mxu0 0.0
  %10067 = vmatmul.mubr.f32.gmra.mrb[0].mxu0 %v9911
  %v10068 = vpop.f32.mrb[0].mxu0
  %v10069 = vadd.f32 0.0, %v10068
  %v10070 = vpop.f32.mrb[0].mxu0
  %10071 = vmatprep.mubr.f32.mxu0 0.0
  %10072 = vmatmul.mubr.f32.gmra.mrb[0].mxu0 %v9913
  %v10073 = vpop.f32.mrb[0].mxu0
  %v10074 = vadd.f32 0.0, %v10073
  %v10075 = vpop.f32.mrb[0].mxu0
  %10076 = vmatprep.mubr.f32.mxu0 0.0
  %10077 = vmatmul.mubr.f32.gmra.mrb[0].mxu0 %v9915
  %v10078 = vpop.f32.mrb[0].mxu0
  %v10079 = vadd.f32 0.0, %v10078
  %v10080 = vpop.f32.mrb[0].mxu0
  %10081 = vmatprep.mubr.f32.mxu0 0.0
  %10082 = vmatmul.mubr.f32.gmra.mrb[0].mxu0 %v9917
  %v10083 = vpop.f32.mrb[0].mxu0
  %v10084 = vadd.f32 0.0, %v10083
  %v10085 = vpop.f32.mrb[0].mxu0
  %10086 = vmatprep.mubr.f32.mxu0 0.0
  %10087 = vmatmul.mubr.f32.gmra.mrb[0].mxu0 %v9919
  %v10088 = vpop.f32.mrb[0].mxu0
  %v10089 = vadd.f32 0.0, %v10088
  %v10090 = vpop.f32.mrb[0].mxu0
  %10091 = vmatprep.mubr.f32.mxu0 0.0
  %10092 = vmatmul.mubr.f32.gmra.mrb[0].mxu0 %v9921
  %v10093 = vpop.f32.mrb[0].mxu0
  %v10094 = vadd.f32 0.0, %v10093
  %v10095 = vpop.f32.mrb[0].mxu0
  %10096 = vmatprep.mubr.f32.mxu0 0.0
  %10097 = vmatmul.mubr.f32.gmra.mrb[0].mxu0 %v9923
  %v10098 = vpop.f32.mrb[0].mxu0
  %v10099 = vadd.f32 0.0, %v10098
  %v10100 = vpop.f32.mrb[0].mxu0
  %10101 = vdwg.mxu0
  %v10102 = vadd.f32 %v9924, %v10024
  %v10103 = vadd.f32 %v9925, %v10029
  %v10104 = vadd.f32 %v9926, %v10034
  %v10105 = vadd.f32 %v9927, %v10039
  %v10106 = vadd.f32 %v9928, %v10044
  %v10107 = vadd.f32 %v9929, %v10049
  %v10108 = vadd.f32 %v9930, %v10054
  %v10109 = vadd.f32 %v9931, %v10059
  %v10110 = vadd.f32 %v9932, %v10064
  %v10111 = vadd.f32 %v9933, %v10069
  %v10112 = vadd.f32 %v9934, %v10074
  %v10113 = vadd.f32 %v9935, %v10079
  %v10114 = vadd.f32 %v9936, %v10084
  %v10115 = vadd.f32 %v9937, %v10089
  %v10116 = vadd.f32 %v9938, %v10094
  %v10117 = vadd.f32 %v9939, %v10099
  %10118 = vst [vmem:[#allocation4] sm:$0xff] %v10102
  %10119 = vst [vmem:[#allocation4 + $0x8] sm:$0xff] %v10103
  %10120 = vst [vmem:[#allocation4 + $0x10] sm:$0xff] %v10104
  %10121 = vst [vmem:[#allocation4 + $0x18] sm:$0xff] %v10105
  %10122 = vst [vmem:[#allocation4 + $0x20] sm:$0xff] %v10106
  %10123 = vst [vmem:[#allocation4 + $0x28] sm:$0xff] %v10107
  %10124 = vst [vmem:[#allocation4 + $0x30] sm:$0xff] %v10108
  %10125 = vst [vmem:[#allocation4 + $0x38] sm:$0xff] %v10109
  %10126 = vst [vmem:[#allocation4 + $0x40] sm:$0xff] %v10110
  %10127 = vst [vmem:[#allocation4 + $0x48] sm:$0xff] %v10111
  %10128 = vst [vmem:[#allocation4 + $0x50] sm:$0xff] %v10112
  %10129 = vst [vmem:[#allocation4 + $0x58] sm:$0xff] %v10113
  %10130 = vst [vmem:[#allocation4 + $0x60] sm:$0xff] %v10114
  %10131 = vst [vmem:[#allocation4 + $0x68] sm:$0xff] %v10115
  %10132 = vst [vmem:[#allocation4 + $0x70] sm:$0xff] %v10116
  %10133 = vst [vmem:[#allocation4 + $0x78] sm:$0xff] %v10117
  %s10134 = scalar_lea.vmem %s9892, 1 [#allocation3]
  %v10135 = vld [vmem:[%s10134] ss:$2 sm:$0xff]
  %s10136 = scalar_lea.vmem %s9892, 49 [#allocation3]
  %v10137 = vld [vmem:[%s10136] ss:$2 sm:$0xff]
  %s10138 = scalar_lea.vmem %s9892, 97 [#allocation3]
  %v10139 = vld [vmem:[%s10138] ss:$2 sm:$0xff]
  %s10140 = scalar_lea.vmem %s9892, 145 [#allocation3]
  %v10141 = vld [vmem:[%s10140] ss:$2 sm:$0xff]
  %s10142 = scalar_lea.vmem %s9892, 193 [#allocation3]
  %v10143 = vld [vmem:[%s10142] ss:$2 sm:$0xff]
  %s10144 = scalar_lea.vmem %s9892, 241 [#allocation3]
  %v10145 = vld [vmem:[%s10144] ss:$2 sm:$0xff]
  %s10146 = scalar_lea.vmem %s9892, 289 [#allocation3]
  %v10147 = vld [vmem:[%s10146] ss:$2 sm:$0xff]
  %s10148 = scalar_lea.vmem %s9892, 337 [#allocation3]
  %v10149 = vld [vmem:[%s10148] ss:$2 sm:$0xff]
  %s10150 = scalar_lea.vmem %s9892, 433 [#allocation3]
  %v10151 = vld [vmem:[%s10150] ss:$2 sm:$0xff]
  %s10152 = scalar_lea.vmem %s9892, 481 [#allocation3]
  %v10153 = vld [vmem:[%s10152] ss:$2 sm:$0xff]
  %s10154 = scalar_lea.vmem %s9892, 529 [#allocation3]
  %v10155 = vld [vmem:[%s10154] ss:$2 sm:$0xff]
  %s10156 = scalar_lea.vmem %s9892, 577 [#allocation3]
  %v10157 = vld [vmem:[%s10156] ss:$2 sm:$0xff]
  %s10158 = scalar_lea.vmem %s9892, 625 [#allocation3]
  %v10159 = vld [vmem:[%s10158] ss:$2 sm:$0xff]
  %s10160 = scalar_lea.vmem %s9892, 673 [#allocation3]
  %v10161 = vld [vmem:[%s10160] ss:$2 sm:$0xff]
  %s10162 = scalar_lea.vmem %s9892, 721 [#allocation3]
  %v10163 = vld [vmem:[%s10162] ss:$2 sm:$0xff]
  %s10164 = scalar_lea.vmem %s9892, 769 [#allocation3]
  %v10165 = vld [vmem:[%s10164] ss:$2 sm:$0xff]
  %v10166 = vld [vmem:[#allocation4] sm:$0xff]
  %v10167 = vld [vmem:[#allocation4 + $0x8] sm:$0xff]
  %v10168 = vld [vmem:[#allocation4 + $0x10] sm:$0xff]
  %v10169 = vld [vmem:[#allocation4 + $0x18] sm:$0xff]
  %v10170 = vld [vmem:[#allocation4 + $0x20] sm:$0xff]
  %v10171 = vld [vmem:[#allocation4 + $0x28] sm:$0xff]
  %v10172 = vld [vmem:[#allocation4 + $0x30] sm:$0xff]
  %v10173 = vld [vmem:[#allocation4 + $0x38] sm:$0xff]
  %v10174 = vld [vmem:[#allocation4 + $0x40] sm:$0xff]
  %v10175 = vld [vmem:[#allocation4 + $0x48] sm:$0xff]
  %v10176 = vld [vmem:[#allocation4 + $0x50] sm:$0xff]
  %v10177 = vld [vmem:[#allocation4 + $0x58] sm:$0xff]
  %v10178 = vld [vmem:[#allocation4 + $0x60] sm:$0xff]
  %v10179 = vld [vmem:[#allocation4 + $0x68] sm:$0xff]
  %v10180 = vld [vmem:[#allocation4 + $0x70] sm:$0xff]
  %v10181 = vld [vmem:[#allocation4 + $0x78] sm:$0xff]
  %s10182 = scalar_lea.vmem %s5, 896
  %v10183 = vld [vmem:[%s10182] sm:$0xff]
  %v10184 = vld [vmem:[%s10182 + $0x8] sm:$0xff]
  %v10185 = vld [vmem:[%s10182 + $0x10] sm:$0xff]
  %v10186 = vld [vmem:[%s10182 + $0x18] sm:$0xff]
  %v10187 = vld [vmem:[%s10182 + $0x20] sm:$0xff]
  %v10188 = vld [vmem:[%s10182 + $0x28] sm:$0xff]
  %v10189 = vld [vmem:[%s10182 + $0x30] sm:$0xff]
  %v10190 = vld [vmem:[%s10182 + $0x38] sm:$0xff]
  %v10191 = vld [vmem:[%s10182 + $0x40] sm:$0xff]
  %v10192 = vld [vmem:[%s10182 + $0x48] sm:$0xff]
  %v10193 = vld [vmem:[%s10182 + $0x50] sm:$0xff]
  %v10194 = vld [vmem:[%s10182 + $0x58] sm:$0xff]
  %v10195 = vld [vmem:[%s10182 + $0x60] sm:$0xff]
  %v10196 = vld [vmem:[%s10182 + $0x68] sm:$0xff]
  %v10197 = vld [vmem:[%s10182 + $0x70] sm:$0xff]
  %v10198 = vld [vmem:[%s10182 + $0x78] sm:$0xff]
  %10199 = vmatprep.subr.mxu0 0.0
  %10200 = vmatpush1.msra.mxu0 %v10183
  %10201 = vmatprep.subr.mxu0 0.0
  %10202 = vmatpush1.msra.mxu0 %v10184
  %10203 = vmatprep.subr.mxu0 0.0
  %10204 = vmatpush1.msra.mxu0 %v10185
  %10205 = vmatprep.subr.mxu0 0.0
  %10206 = vmatpush1.msra.mxu0 %v10186
  %10207 = vmatprep.subr.mxu0 0.0
  %10208 = vmatpush1.msra.mxu0 %v10187
  %10209 = vmatprep.subr.mxu0 0.0
  %10210 = vmatpush1.msra.mxu0 %v10188
  %10211 = vmatprep.subr.mxu0 0.0
  %10212 = vmatpush1.msra.mxu0 %v10189
  %10213 = vmatprep.subr.mxu0 0.0
  %10214 = vmatpush1.msra.mxu0 %v10190
  %10215 = vmatprep.subr.mxu0 0.0
  %10216 = vmatpush1.msra.mxu0 %v10191
  %10217 = vmatprep.subr.mxu0 0.0
  %10218 = vmatpush1.msra.mxu0 %v10192
  %10219 = vmatprep.subr.mxu0 0.0
  %10220 = vmatpush1.msra.mxu0 %v10193
  %10221 = vmatprep.subr.mxu0 0.0
  %10222 = vmatpush1.msra.mxu0 %v10194
  %10223 = vmatprep.subr.mxu0 0.0
  %10224 = vmatpush1.msra.mxu0 %v10195
  %10225 = vmatprep.subr.mxu0 0.0
  %10226 = vmatpush1.msra.mxu0 %v10196
  %10227 = vmatprep.subr.mxu0 0.0
  %10228 = vmatpush1.msra.mxu0 %v10197
  %10229 = vmatprep.subr.mxu0 0.0
  %10230 = vmatpush1.msra.mxu0 %v10198
  %10231 = vmatprep.subr.mxu0 0.0
  %10232 = vmatpush1.msra.mxu0 0.0
  %10233 = vmatprep.subr.mxu0 0.0
  %10234 = vmatpush1.msra.mxu0 0.0
  %10235 = vmatprep.subr.mxu0 0.0
  %10236 = vmatpush1.msra.mxu0 0.0
  %10237 = vmatprep.subr.mxu0 0.0
  %10238 = vmatpush1.msra.mxu0 0.0
  %10239 = vmatprep.subr.mxu0 0.0
  %10240 = vmatpush1.msra.mxu0 0.0
  %10241 = vmatprep.subr.mxu0 0.0
  %10242 = vmatpush1.msra.mxu0 0.0
  %10243 = vmatprep.subr.mxu0 0.0
  %10244 = vmatpush1.msra.mxu0 0.0
  %10245 = vmatprep.subr.mxu0 0.0
  %10246 = vmatpush1.msra.mxu0 0.0
  %10247 = vmatprep.subr.mxu0 0.0
  %10248 = vmatpush1.msra.mxu0 0.0
  %10249 = vmatprep.subr.mxu0 0.0
  %10250 = vmatpush1.msra.mxu0 0.0
  %10251 = vmatprep.subr.mxu0 0.0
  %10252 = vmatpush1.msra.mxu0 0.0
  %10253 = vmatprep.subr.mxu0 0.0
  %10254 = vmatpush1.msra.mxu0 0.0
  %10255 = vmatprep.subr.mxu0 0.0
  %10256 = vmatpush1.msra.mxu0 0.0
  %10257 = vmatprep.subr.mxu0 0.0
  %10258 = vmatpush1.msra.mxu0 0.0
  %10259 = vmatprep.subr.mxu0 0.0
  %10260 = vmatpush1.msra.mxu0 0.0
  %10261 = vmatprep.subr.mxu0 0.0
  %10262 = vmatpush1.msra.mxu0 0.0
  %10263 = vmatprep.mubr.f32.mxu0 0.0
  %10264 = vmatmul.mubr.f32.gmra.mrb[0].mxu0 %v10135
  %v10265 = vpop.f32.mrb[0].mxu0
  %v10266 = vadd.f32 0.0, %v10265
  %v10267 = vpop.f32.mrb[0].mxu0
  %10268 = vmatprep.mubr.f32.mxu0 0.0
  %10269 = vmatmul.mubr.f32.gmra.mrb[0].mxu0 %v10137
  %v10270 = vpop.f32.mrb[0].mxu0
  %v10271 = vadd.f32 0.0, %v10270
  %v10272 = vpop.f32.mrb[0].mxu0
  %10273 = vmatprep.mubr.f32.mxu0 0.0
  %10274 = vmatmul.mubr.f32.gmra.mrb[0].mxu0 %v10139
  %v10275 = vpop.f32.mrb[0].mxu0
  %v10276 = vadd.f32 0.0, %v10275
  %v10277 = vpop.f32.mrb[0].mxu0
  %10278 = vmatprep.mubr.f32.mxu0 0.0
  %10279 = vmatmul.mubr.f32.gmra.mrb[0].mxu0 %v10141
  %v10280 = vpop.f32.mrb[0].mxu0
  %v10281 = vadd.f32 0.0, %v10280
  %v10282 = vpop.f32.mrb[0].mxu0
  %10283 = vmatprep.mubr.f32.mxu0 0.0
  %10284 = vmatmul.mubr.f32.gmra.mrb[0].mxu0 %v10143
  %v10285 = vpop.f32.mrb[0].mxu0
  %v10286 = vadd.f32 0.0, %v10285
  %v10287 = vpop.f32.mrb[0].mxu0
  %10288 = vmatprep.mubr.f32.mxu0 0.0
  %10289 = vmatmul.mubr.f32.gmra.mrb[0].mxu0 %v10145
  %v10290 = vpop.f32.mrb[0].mxu0
  %v10291 = vadd.f32 0.0, %v10290
  %v10292 = vpop.f32.mrb[0].mxu0
  %10293 = vmatprep.mubr.f32.mxu0 0.0
  %10294 = vmatmul.mubr.f32.gmra.mrb[0].mxu0 %v10147
  %v10295 = vpop.f32.mrb[0].mxu0
  %v10296 = vadd.f32 0.0, %v10295
  %v10297 = vpop.f32.mrb[0].mxu0
  %10298 = vmatprep.mubr.f32.mxu0 0.0
  %10299 = vmatmul.mubr.f32.gmra.mrb[0].mxu0 %v10149
  %v10300 = vpop.f32.mrb[0].mxu0
  %v10301 = vadd.f32 0.0, %v10300
  %v10302 = vpop.f32.mrb[0].mxu0
  %10303 = vmatprep.mubr.f32.mxu0 0.0
  %10304 = vmatmul.mubr.f32.gmra.mrb[0].mxu0 %v10151
  %v10305 = vpop.f32.mrb[0].mxu0
  %v10306 = vadd.f32 0.0, %v10305
  %v10307 = vpop.f32.mrb[0].mxu0
  %10308 = vmatprep.mubr.f32.mxu0 0.0
  %10309 = vmatmul.mubr.f32.gmra.mrb[0].mxu0 %v10153
  %v10310 = vpop.f32.mrb[0].mxu0
  %v10311 = vadd.f32 0.0, %v10310
  %v10312 = vpop.f32.mrb[0].mxu0
  %10313 = vmatprep.mubr.f32.mxu0 0.0
  %10314 = vmatmul.mubr.f32.gmra.mrb[0].mxu0 %v10155
  %v10315 = vpop.f32.mrb[0].mxu0
  %v10316 = vadd.f32 0.0, %v10315
  %v10317 = vpop.f32.mrb[0].mxu0
  %10318 = vmatprep.mubr.f32.mxu0 0.0
  %10319 = vmatmul.mubr.f32.gmra.mrb[0].mxu0 %v10157
  %v10320 = vpop.f32.mrb[0].mxu0
  %v10321 = vadd.f32 0.0, %v10320
  %v10322 = vpop.f32.mrb[0].mxu0
  %10323 = vmatprep.mubr.f32.mxu0 0.0
  %10324 = vmatmul.mubr.f32.gmra.mrb[0].mxu0 %v10159
  %v10325 = vpop.f32.mrb[0].mxu0
  %v10326 = vadd.f32 0.0, %v10325
  %v10327 = vpop.f32.mrb[0].mxu0
  %10328 = vmatprep.mubr.f32.mxu0 0.0
  %10329 = vmatmul.mubr.f32.gmra.mrb[0].mxu0 %v10161
  %v10330 = vpop.f32.mrb[0].mxu0
  %v10331 = vadd.f32 0.0, %v10330
  %v10332 = vpop.f32.mrb[0].mxu0
  %10333 = vmatprep.mubr.f32.mxu0 0.0
  %10334 = vmatmul.mubr.f32.gmra.mrb[0].mxu0 %v10163
  %v10335 = vpop.f32.mrb[0].mxu0
  %v10336 = vadd.f32 0.0, %v10335
  %v10337 = vpop.f32.mrb[0].mxu0
  %10338 = vmatprep.mubr.f32.mxu0 0.0
  %10339 = vmatmul.mubr.f32.gmra.mrb[0].mxu0 %v10165
  %v10340 = vpop.f32.mrb[0].mxu0
  %v10341 = vadd.f32 0.0, %v10340
  %v10342 = vpop.f32.mrb[0].mxu0
  %10343 = vdwg.mxu0
  %v10344 = vadd.f32 %v10166, %v10266
  %v10345 = vadd.f32 %v10167, %v10271
  %v10346 = vadd.f32 %v10168, %v10276
  %v10347 = vadd.f32 %v10169, %v10281
  %v10348 = vadd.f32 %v10170, %v10286
  %v10349 = vadd.f32 %v10171, %v10291
  %v10350 = vadd.f32 %v10172, %v10296
  %v10351 = vadd.f32 %v10173, %v10301
  %v10352 = vadd.f32 %v10174, %v10306
  %v10353 = vadd.f32 %v10175, %v10311
  %v10354 = vadd.f32 %v10176, %v10316
  %v10355 = vadd.f32 %v10177, %v10321
  %v10356 = vadd.f32 %v10178, %v10326
  %v10357 = vadd.f32 %v10179, %v10331
  %v10358 = vadd.f32 %v10180, %v10336
  %v10359 = vadd.f32 %v10181, %v10341
  %10360 = vst [vmem:[#allocation4] sm:$0xff] %v10344
  %10361 = vst [vmem:[#allocation4 + $0x8] sm:$0xff] %v10345
  %10362 = vst [vmem:[#allocation4 + $0x10] sm:$0xff] %v10346
  %10363 = vst [vmem:[#allocation4 + $0x18] sm:$0xff] %v10347
  %10364 = vst [vmem:[#allocation4 + $0x20] sm:$0xff] %v10348
  %10365 = vst [vmem:[#allocation4 + $0x28] sm:$0xff] %v10349
  %10366 = vst [vmem:[#allocation4 + $0x30] sm:$0xff] %v10350
  %10367 = vst [vmem:[#allocation4 + $0x38] sm:$0xff] %v10351
  %10368 = vst [vmem:[#allocation4 + $0x40] sm:$0xff] %v10352
  %10369 = vst [vmem:[#allocation4 + $0x48] sm:$0xff] %v10353
  %10370 = vst [vmem:[#allocation4 + $0x50] sm:$0xff] %v10354
  %10371 = vst [vmem:[#allocation4 + $0x58] sm:$0xff] %v10355
  %10372 = vst [vmem:[#allocation4 + $0x60] sm:$0xff] %v10356
  %10373 = vst [vmem:[#allocation4 + $0x68] sm:$0xff] %v10357
  %10374 = vst [vmem:[#allocation4 + $0x70] sm:$0xff] %v10358
  %10375 = vst [vmem:[#allocation4 + $0x78] sm:$0xff] %v10359
  %s10376 = scalar_lea.vmem %s9892, 2 [#allocation3]
  %v10377 = vld [vmem:[%s10376] ss:$2 sm:$0xff]
  %s10378 = scalar_lea.vmem %s9892, 50 [#allocation3]
  %v10379 = vld [vmem:[%s10378] ss:$2 sm:$0xff]
  %s10380 = scalar_lea.vmem %s9892, 98 [#allocation3]
  %v10381 = vld [vmem:[%s10380] ss:$2 sm:$0xff]
  %s10382 = scalar_lea.vmem %s9892, 146 [#allocation3]
  %v10383 = vld [vmem:[%s10382] ss:$2 sm:$0xff]
  %s10384 = scalar_lea.vmem %s9892, 194 [#allocation3]
  %v10385 = vld [vmem:[%s10384] ss:$2 sm:$0xff]
  %s10386 = scalar_lea.vmem %s9892, 242 [#allocation3]
  %v10387 = vld [vmem:[%s10386] ss:$2 sm:$0xff]
  %s10388 = scalar_lea.vmem %s9892, 290 [#allocation3]
  %v10389 = vld [vmem:[%s10388] ss:$2 sm:$0xff]
  %s10390 = scalar_lea.vmem %s9892, 338 [#allocation3]
  %v10391 = vld [vmem:[%s10390] ss:$2 sm:$0xff]
  %s10392 = scalar_lea.vmem %s9892, 434 [#allocation3]
  %v10393 = vld [vmem:[%s10392] ss:$2 sm:$0xff]
  %s10394 = scalar_lea.vmem %s9892, 482 [#allocation3]
  %v10395 = vld [vmem:[%s10394] ss:$2 sm:$0xff]
  %s10396 = scalar_lea.vmem %s9892, 530 [#allocation3]
  %v10397 = vld [vmem:[%s10396] ss:$2 sm:$0xff]
  %s10398 = scalar_lea.vmem %s9892, 578 [#allocation3]
  %v10399 = vld [vmem:[%s10398] ss:$2 sm:$0xff]
  %s10400 = scalar_lea.vmem %s9892, 626 [#allocation3]
  %v10401 = vld [vmem:[%s10400] ss:$2 sm:$0xff]
  %s10402 = scalar_lea.vmem %s9892, 674 [#allocation3]
  %v10403 = vld [vmem:[%s10402] ss:$2 sm:$0xff]
  %s10404 = scalar_lea.vmem %s9892, 722 [#allocation3]
  %v10405 = vld [vmem:[%s10404] ss:$2 sm:$0xff]
  %s10406 = scalar_lea.vmem %s9892, 770 [#allocation3]
  %v10407 = vld [vmem:[%s10406] ss:$2 sm:$0xff]
  %v10408 = vld [vmem:[#allocation4] sm:$0xff]
  %v10409 = vld [vmem:[#allocation4 + $0x8] sm:$0xff]
  %v10410 = vld [vmem:[#allocation4 + $0x10] sm:$0xff]
  %v10411 = vld [vmem:[#allocation4 + $0x18] sm:$0xff]
  %v10412 = vld [vmem:[#allocation4 + $0x20] sm:$0xff]
  %v10413 = vld [vmem:[#allocation4 + $0x28] sm:$0xff]
  %v10414 = vld [vmem:[#allocation4 + $0x30] sm:$0xff]
  %v10415 = vld [vmem:[#allocation4 + $0x38] sm:$0xff]
  %v10416 = vld [vmem:[#allocation4 + $0x40] sm:$0xff]
  %v10417 = vld [vmem:[#allocation4 + $0x48] sm:$0xff]
  %v10418 = vld [vmem:[#allocation4 + $0x50] sm:$0xff]
  %v10419 = vld [vmem:[#allocation4 + $0x58] sm:$0xff]
  %v10420 = vld [vmem:[#allocation4 + $0x60] sm:$0xff]
  %v10421 = vld [vmem:[#allocation4 + $0x68] sm:$0xff]
  %v10422 = vld [vmem:[#allocation4 + $0x70] sm:$0xff]
  %v10423 = vld [vmem:[#allocation4 + $0x78] sm:$0xff]
  %s10424 = scalar_lea.vmem %s5, 1024
  %v10425 = vld [vmem:[%s10424] sm:$0xff]
  %v10426 = vld [vmem:[%s10424 + $0x8] sm:$0xff]
  %v10427 = vld [vmem:[%s10424 + $0x10] sm:$0xff]
  %v10428 = vld [vmem:[%s10424 + $0x18] sm:$0xff]
  %v10429 = vld [vmem:[%s10424 + $0x20] sm:$0xff]
  %v10430 = vld [vmem:[%s10424 + $0x28] sm:$0xff]
  %v10431 = vld [vmem:[%s10424 + $0x30] sm:$0xff]
  %v10432 = vld [vmem:[%s10424 + $0x38] sm:$0xff]
  %v10433 = vld [vmem:[%s10424 + $0x40] sm:$0xff]
  %v10434 = vld [vmem:[%s10424 + $0x48] sm:$0xff]
  %v10435 = vld [vmem:[%s10424 + $0x50] sm:$0xff]
  %v10436 = vld [vmem:[%s10424 + $0x58] sm:$0xff]
  %v10437 = vld [vmem:[%s10424 + $0x60] sm:$0xff]
  %v10438 = vld [vmem:[%s10424 + $0x68] sm:$0xff]
  %v10439 = vld [vmem:[%s10424 + $0x70] sm:$0xff]
  %v10440 = vld [vmem:[%s10424 + $0x78] sm:$0xff]
  %10441 = vmatprep.subr.mxu0 0.0
  %10442 = vmatpush1.msra.mxu0 %v10425
  %10443 = vmatprep.subr.mxu0 0.0
  %10444 = vmatpush1.msra.mxu0 %v10426
  %10445 = vmatprep.subr.mxu0 0.0
  %10446 = vmatpush1.msra.mxu0 %v10427
  %10447 = vmatprep.subr.mxu0 0.0
  %10448 = vmatpush1.msra.mxu0 %v10428
  %10449 = vmatprep.subr.mxu0 0.0
  %10450 = vmatpush1.msra.mxu0 %v10429
  %10451 = vmatprep.subr.mxu0 0.0
  %10452 = vmatpush1.msra.mxu0 %v10430
  %10453 = vmatprep.subr.mxu0 0.0
  %10454 = vmatpush1.msra.mxu0 %v10431
  %10455 = vmatprep.subr.mxu0 0.0
  %10456 = vmatpush1.msra.mxu0 %v10432
  %10457 = vmatprep.subr.mxu0 0.0
  %10458 = vmatpush1.msra.mxu0 %v10433
  %10459 = vmatprep.subr.mxu0 0.0
  %10460 = vmatpush1.msra.mxu0 %v10434
  %10461 = vmatprep.subr.mxu0 0.0
  %10462 = vmatpush1.msra.mxu0 %v10435
  %10463 = vmatprep.subr.mxu0 0.0
  %10464 = vmatpush1.msra.mxu0 %v10436
  %10465 = vmatprep.subr.mxu0 0.0
  %10466 = vmatpush1.msra.mxu0 %v10437
  %10467 = vmatprep.subr.mxu0 0.0
  %10468 = vmatpush1.msra.mxu0 %v10438
  %10469 = vmatprep.subr.mxu0 0.0
  %10470 = vmatpush1.msra.mxu0 %v10439
  %10471 = vmatprep.subr.mxu0 0.0
  %10472 = vmatpush1.msra.mxu0 %v10440
  %10473 = vmatprep.subr.mxu0 0.0
  %10474 = vmatpush1.msra.mxu0 0.0
  %10475 = vmatprep.subr.mxu0 0.0
  %10476 = vmatpush1.msra.mxu0 0.0
  %10477 = vmatprep.subr.mxu0 0.0
  %10478 = vmatpush1.msra.mxu0 0.0
  %10479 = vmatprep.subr.mxu0 0.0
  %10480 = vmatpush1.msra.mxu0 0.0
  %10481 = vmatprep.subr.mxu0 0.0
  %10482 = vmatpush1.msra.mxu0 0.0
  %10483 = vmatprep.subr.mxu0 0.0
  %10484 = vmatpush1.msra.mxu0 0.0
  %10485 = vmatprep.subr.mxu0 0.0
  %10486 = vmatpush1.msra.mxu0 0.0
  %10487 = vmatprep.subr.mxu0 0.0
  %10488 = vmatpush1.msra.mxu0 0.0
  %10489 = vmatprep.subr.mxu0 0.0
  %10490 = vmatpush1.msra.mxu0 0.0
  %10491 = vmatprep.subr.mxu0 0.0
  %10492 = vmatpush1.msra.mxu0 0.0
  %10493 = vmatprep.subr.mxu0 0.0
  %10494 = vmatpush1.msra.mxu0 0.0
  %10495 = vmatprep.subr.mxu0 0.0
  %10496 = vmatpush1.msra.mxu0 0.0
  %10497 = vmatprep.subr.mxu0 0.0
  %10498 = vmatpush1.msra.mxu0 0.0
  %10499 = vmatprep.subr.mxu0 0.0
  %10500 = vmatpush1.msra.mxu0 0.0
  %10501 = vmatprep.subr.mxu0 0.0
  %10502 = vmatpush1.msra.mxu0 0.0
  %10503 = vmatprep.subr.mxu0 0.0
  %10504 = vmatpush1.msra.mxu0 0.0
  %10505 = vmatprep.mubr.f32.mxu0 0.0
  %10506 = vmatmul.mubr.f32.gmra.mrb[0].mxu0 %v10377
  %v10507 = vpop.f32.mrb[0].mxu0
  %v10508 = vadd.f32 0.0, %v10507
  %v10509 = vpop.f32.mrb[0].mxu0
  %10510 = vmatprep.mubr.f32.mxu0 0.0
  %10511 = vmatmul.mubr.f32.gmra.mrb[0].mxu0 %v10379
  %v10512 = vpop.f32.mrb[0].mxu0
  %v10513 = vadd.f32 0.0, %v10512
  %v10514 = vpop.f32.mrb[0].mxu0
  %10515 = vmatprep.mubr.f32.mxu0 0.0
  %10516 = vmatmul.mubr.f32.gmra.mrb[0].mxu0 %v10381
  %v10517 = vpop.f32.mrb[0].mxu0
  %v10518 = vadd.f32 0.0, %v10517
  %v10519 = vpop.f32.mrb[0].mxu0
  %10520 = vmatprep.mubr.f32.mxu0 0.0
  %10521 = vmatmul.mubr.f32.gmra.mrb[0].mxu0 %v10383
  %v10522 = vpop.f32.mrb[0].mxu0
  %v10523 = vadd.f32 0.0, %v10522
  %v10524 = vpop.f32.mrb[0].mxu0
  %10525 = vmatprep.mubr.f32.mxu0 0.0
  %10526 = vmatmul.mubr.f32.gmra.mrb[0].mxu0 %v10385
  %v10527 = vpop.f32.mrb[0].mxu0
  %v10528 = vadd.f32 0.0, %v10527
  %v10529 = vpop.f32.mrb[0].mxu0
  %10530 = vmatprep.mubr.f32.mxu0 0.0
  %10531 = vmatmul.mubr.f32.gmra.mrb[0].mxu0 %v10387
  %v10532 = vpop.f32.mrb[0].mxu0
  %v10533 = vadd.f32 0.0, %v10532
  %v10534 = vpop.f32.mrb[0].mxu0
  %10535 = vmatprep.mubr.f32.mxu0 0.0
  %10536 = vmatmul.mubr.f32.gmra.mrb[0].mxu0 %v10389
  %v10537 = vpop.f32.mrb[0].mxu0
  %v10538 = vadd.f32 0.0, %v10537
  %v10539 = vpop.f32.mrb[0].mxu0
  %10540 = vmatprep.mubr.f32.mxu0 0.0
  %10541 = vmatmul.mubr.f32.gmra.mrb[0].mxu0 %v10391
  %v10542 = vpop.f32.mrb[0].mxu0
  %v10543 = vadd.f32 0.0, %v10542
  %v10544 = vpop.f32.mrb[0].mxu0
  %10545 = vmatprep.mubr.f32.mxu0 0.0
  %10546 = vmatmul.mubr.f32.gmra.mrb[0].mxu0 %v10393
  %v10547 = vpop.f32.mrb[0].mxu0
  %v10548 = vadd.f32 0.0, %v10547
  %v10549 = vpop.f32.mrb[0].mxu0
  %10550 = vmatprep.mubr.f32.mxu0 0.0
  %10551 = vmatmul.mubr.f32.gmra.mrb[0].mxu0 %v10395
  %v10552 = vpop.f32.mrb[0].mxu0
  %v10553 = vadd.f32 0.0, %v10552
  %v10554 = vpop.f32.mrb[0].mxu0
  %10555 = vmatprep.mubr.f32.mxu0 0.0
  %10556 = vmatmul.mubr.f32.gmra.mrb[0].mxu0 %v10397
  %v10557 = vpop.f32.mrb[0].mxu0
  %v10558 = vadd.f32 0.0, %v10557
  %v10559 = vpop.f32.mrb[0].mxu0
  %10560 = vmatprep.mubr.f32.mxu0 0.0
  %10561 = vmatmul.mubr.f32.gmra.mrb[0].mxu0 %v10399
  %v10562 = vpop.f32.mrb[0].mxu0
  %v10563 = vadd.f32 0.0, %v10562
  %v10564 = vpop.f32.mrb[0].mxu0
  %10565 = vmatprep.mubr.f32.mxu0 0.0
  %10566 = vmatmul.mubr.f32.gmra.mrb[0].mxu0 %v10401
  %v10567 = vpop.f32.mrb[0].mxu0
  %v10568 = vadd.f32 0.0, %v10567
  %v10569 = vpop.f32.mrb[0].mxu0
  %10570 = vmatprep.mubr.f32.mxu0 0.0
  %10571 = vmatmul.mubr.f32.gmra.mrb[0].mxu0 %v10403
  %v10572 = vpop.f32.mrb[0].mxu0
  %v10573 = vadd.f32 0.0, %v10572
  %v10574 = vpop.f32.mrb[0].mxu0
  %10575 = vmatprep.mubr.f32.mxu0 0.0
  %10576 = vmatmul.mubr.f32.gmra.mrb[0].mxu0 %v10405
  %v10577 = vpop.f32.mrb[0].mxu0
  %v10578 = vadd.f32 0.0, %v10577
  %v10579 = vpop.f32.mrb[0].mxu0
  %10580 = vmatprep.mubr.f32.mxu0 0.0
  %10581 = vmatmul.mubr.f32.gmra.mrb[0].mxu0 %v10407
  %v10582 = vpop.f32.mrb[0].mxu0
  %v10583 = vadd.f32 0.0, %v10582
  %v10584 = vpop.f32.mrb[0].mxu0
  %10585 = vdwg.mxu0
  %v10586 = vadd.f32 %v10408, %v10508
  %v10587 = vadd.f32 %v10409, %v10513
  %v10588 = vadd.f32 %v10410, %v10518
  %v10589 = vadd.f32 %v10411, %v10523
  %v10590 = vadd.f32 %v10412, %v10528
  %v10591 = vadd.f32 %v10413, %v10533
  %v10592 = vadd.f32 %v10414, %v10538
  %v10593 = vadd.f32 %v10415, %v10543
  %v10594 = vadd.f32 %v10416, %v10548
  %v10595 = vadd.f32 %v10417, %v10553
  %v10596 = vadd.f32 %v10418, %v10558
  %v10597 = vadd.f32 %v10419, %v10563
  %v10598 = vadd.f32 %v10420, %v10568
  %v10599 = vadd.f32 %v10421, %v10573
  %v10600 = vadd.f32 %v10422, %v10578
  %v10601 = vadd.f32 %v10423, %v10583
  %10602 = vst [vmem:[#allocation4] sm:$0xff] %v10586
  %10603 = vst [vmem:[#allocation4 + $0x8] sm:$0xff] %v10587
  %10604 = vst [vmem:[#allocation4 + $0x10] sm:$0xff] %v10588
  %10605 = vst [vmem:[#allocation4 + $0x18] sm:$0xff] %v10589
  %10606 = vst [vmem:[#allocation4 + $0x20] sm:$0xff] %v10590
  %10607 = vst [vmem:[#allocation4 + $0x28] sm:$0xff] %v10591
  %10608 = vst [vmem:[#allocation4 + $0x30] sm:$0xff] %v10592
  %10609 = vst [vmem:[#allocation4 + $0x38] sm:$0xff] %v10593
  %10610 = vst [vmem:[#allocation4 + $0x40] sm:$0xff] %v10594
  %10611 = vst [vmem:[#allocation4 + $0x48] sm:$0xff] %v10595
  %10612 = vst [vmem:[#allocation4 + $0x50] sm:$0xff] %v10596
  %10613 = vst [vmem:[#allocation4 + $0x58] sm:$0xff] %v10597
  %10614 = vst [vmem:[#allocation4 + $0x60] sm:$0xff] %v10598
  %10615 = vst [vmem:[#allocation4 + $0x68] sm:$0xff] %v10599
  %10616 = vst [vmem:[#allocation4 + $0x70] sm:$0xff] %v10600
  %10617 = vst [vmem:[#allocation4 + $0x78] sm:$0xff] %v10601
  %v10618 = vld [vmem:[#allocation4] sm:$0xff]
  %v10619 = vld [vmem:[#allocation4 + $0x8] sm:$0xff]
  %v10620 = vld [vmem:[#allocation4 + $0x10] sm:$0xff]
  %v10621 = vld [vmem:[#allocation4 + $0x18] sm:$0xff]
  %v10622 = vld [vmem:[#allocation4 + $0x20] sm:$0xff]
  %v10623 = vld [vmem:[#allocation4 + $0x28] sm:$0xff]
  %v10624 = vld [vmem:[#allocation4 + $0x30] sm:$0xff]
  %v10625 = vld [vmem:[#allocation4 + $0x38] sm:$0xff]
  %v10626 = vld [vmem:[#allocation4 + $0x40] sm:$0xff]
  %v10627 = vld [vmem:[#allocation4 + $0x48] sm:$0xff]
  %v10628 = vld [vmem:[#allocation4 + $0x50] sm:$0xff]
  %v10629 = vld [vmem:[#allocation4 + $0x58] sm:$0xff]
  %v10630 = vld [vmem:[#allocation4 + $0x60] sm:$0xff]
  %v10631 = vld [vmem:[#allocation4 + $0x68] sm:$0xff]
  %v10632 = vld [vmem:[#allocation4 + $0x70] sm:$0xff]
  %v10633 = vld [vmem:[#allocation4 + $0x78] sm:$0xff]
  %v10634 = vld [vmem:[%s6] sm:$0x1]
  %v10636 = vlaneseq
  %v10637 = vshrl.u32 %v10636, 7
  %v10638 = vsub.s32 0, %v10637
  %v10639 = vrot.slane %v10634, %v10638
  %v10641 = vadd.f32 %v10618, %v10639
  %v10642 = vadd.f32 %v10619, %v10639
  %v10643 = vadd.f32 %v10620, %v10639
  %v10644 = vadd.f32 %v10621, %v10639
  %v10645 = vadd.f32 %v10622, %v10639
  %v10646 = vadd.f32 %v10623, %v10639
  %v10647 = vadd.f32 %v10624, %v10639
  %v10648 = vadd.f32 %v10625, %v10639
  %v10649 = vadd.f32 %v10626, %v10639
  %v10650 = vadd.f32 %v10627, %v10639
  %v10651 = vadd.f32 %v10628, %v10639
  %v10652 = vadd.f32 %v10629, %v10639
  %v10653 = vadd.f32 %v10630, %v10639
  %v10654 = vadd.f32 %v10631, %v10639
  %v10655 = vadd.f32 %v10632, %v10639
  %v10656 = vadd.f32 %v10633, %v10639
  %v10657 = vadd.f32 %v10641, %v10642
  %v10658 = vadd.f32 %v10657, %v10643
  %v10659 = vadd.f32 %v10658, %v10644
  %v10660 = vadd.f32 %v10659, %v10645
  %v10661 = vadd.f32 %v10660, %v10646
  %v10662 = vadd.f32 %v10661, %v10647
  %v10663 = vadd.f32 %v10662, %v10648
  %v10664 = vadd.f32 %v10663, %v10649
  %v10665 = vadd.f32 %v10664, %v10650
  %v10666 = vadd.f32 %v10665, %v10651
  %v10667 = vadd.f32 %v10666, %v10652
  %v10668 = vadd.f32 %v10667, %v10653
  %v10669 = vadd.f32 %v10668, %v10654
  %v10670 = vadd.f32 %v10669, %v10655
  %v10671 = vadd.f32 %v10670, %v10656
  %v10672 = vrot.slane %v10671, 4
  %v10673 = vadd.f32 %v10671, %v10672
  %v10674 = vrot.slane %v10673, 2
  %v10675 = vadd.f32 %v10673, %v10674
  %v10676 = vrot.slane %v10675, 1
  %v10677 = vadd.f32 %v10675, %v10676
  %v10678 = vrcp.pop 128.0
  %v10679 = vmul.f32 %v10677, %v10678
  %v10680 = vsub.f32 %v10641, %v10679
  %v10681 = vsub.f32 %v10642, %v10679
  %v10682 = vsub.f32 %v10643, %v10679
  %v10683 = vsub.f32 %v10644, %v10679
  %v10684 = vsub.f32 %v10645, %v10679
  %v10685 = vsub.f32 %v10646, %v10679
  %v10686 = vsub.f32 %v10647, %v10679
  %v10687 = vsub.f32 %v10648, %v10679
  %v10688 = vsub.f32 %v10649, %v10679
  %v10689 = vsub.f32 %v10650, %v10679
  %v10690 = vsub.f32 %v10651, %v10679
  %v10691 = vsub.f32 %v10652, %v10679
  %v10692 = vsub.f32 %v10653, %v10679
  %v10693 = vsub.f32 %v10654, %v10679
  %v10694 = vsub.f32 %v10655, %v10679
  %v10695 = vsub.f32 %v10656, %v10679
  %v10696 = vmul.f32 %v10680, %v10680
  %v10697 = vmul.f32 %v10681, %v10681
  %v10698 = vmul.f32 %v10682, %v10682
  %v10699 = vmul.f32 %v10683, %v10683
  %v10700 = vmul.f32 %v10684, %v10684
  %v10701 = vmul.f32 %v10685, %v10685
  %v10702 = vmul.f32 %v10686, %v10686
  %v10703 = vmul.f32 %v10687, %v10687
  %v10704 = vmul.f32 %v10688, %v10688
  %v10705 = vmul.f32 %v10689, %v10689
  %v10706 = vmul.f32 %v10690, %v10690
  %v10707 = vmul.f32 %v10691, %v10691
  %v10708 = vmul.f32 %v10692, %v10692
  %v10709 = vmul.f32 %v10693, %v10693
  %v10710 = vmul.f32 %v10694, %v10694
  %v10711 = vmul.f32 %v10695, %v10695
  %v10712 = vadd.f32 %v10696, %v10697
  %v10713 = vadd.f32 %v10712, %v10698
  %v10714 = vadd.f32 %v10713, %v10699
  %v10715 = vadd.f32 %v10714, %v10700
  %v10716 = vadd.f32 %v10715, %v10701
  %v10717 = vadd.f32 %v10716, %v10702
  %v10718 = vadd.f32 %v10717, %v10703
  %v10719 = vadd.f32 %v10718, %v10704
  %v10720 = vadd.f32 %v10719, %v10705
  %v10721 = vadd.f32 %v10720, %v10706
  %v10722 = vadd.f32 %v10721, %v10707
  %v10723 = vadd.f32 %v10722, %v10708
  %v10724 = vadd.f32 %v10723, %v10709
  %v10725 = vadd.f32 %v10724, %v10710
  %v10726 = vadd.f32 %v10725, %v10711
  %v10727 = vrot.slane %v10726, 4
  %v10728 = vadd.f32 %v10726, %v10727
  %v10729 = vrot.slane %v10728, 2
  %v10730 = vadd.f32 %v10728, %v10729
  %v10731 = vrot.slane %v10730, 1
  %v10732 = vadd.f32 %v10730, %v10731
  %v10733 = vmul.f32 %v10732, %v10678
  %v10734 = vld [vmem:[%s7] sm:$0x1]
  %v10735 = vadd.f32 %v10733, 1e-05
  %v10736 = vrsqrt.pop %v10735
  %v10737 = vmul.f32 %v10734, %v10736
  %v10739 = vlaneseq
  %v10740 = vshrl.u32 %v10739, 7
  %v10741 = vsub.s32 0, %v10740
  %v10742 = vrot.slane %v10737, %v10741
  %v10744 = vmul.f32 %v10680, %v10742
  %v10745 = vmul.f32 %v10681, %v10742
  %v10746 = vmul.f32 %v10682, %v10742
  %v10747 = vmul.f32 %v10683, %v10742
  %v10748 = vmul.f32 %v10684, %v10742
  %v10749 = vmul.f32 %v10685, %v10742
  %v10750 = vmul.f32 %v10686, %v10742
  %v10751 = vmul.f32 %v10687, %v10742
  %v10752 = vmul.f32 %v10688, %v10742
  %v10753 = vmul.f32 %v10689, %v10742
  %v10754 = vmul.f32 %v10690, %v10742
  %v10755 = vmul.f32 %v10691, %v10742
  %v10756 = vmul.f32 %v10692, %v10742
  %v10757 = vmul.f32 %v10693, %v10742
  %v10758 = vmul.f32 %v10694, %v10742
  %v10759 = vmul.f32 %v10695, %v10742
  %v10760 = vld [vmem:[%s8] sm:$0x1]
  %v10762 = vlaneseq
  %v10763 = vshrl.u32 %v10762, 7
  %v10764 = vsub.s32 0, %v10763
  %v10765 = vrot.slane %v10760, %v10764
  %v10767 = vadd.f32 %v10744, %v10765
  %v10768 = vadd.f32 %v10745, %v10765
  %v10769 = vadd.f32 %v10746, %v10765
  %v10770 = vadd.f32 %v10747, %v10765
  %v10771 = vadd.f32 %v10748, %v10765
  %v10772 = vadd.f32 %v10749, %v10765
  %v10773 = vadd.f32 %v10750, %v10765
  %v10774 = vadd.f32 %v10751, %v10765
  %v10775 = vadd.f32 %v10752, %v10765
  %v10776 = vadd.f32 %v10753, %v10765
  %v10777 = vadd.f32 %v10754, %v10765
  %v10778 = vadd.f32 %v10755, %v10765
  %v10779 = vadd.f32 %v10756, %v10765
  %v10780 = vadd.f32 %v10757, %v10765
  %v10781 = vadd.f32 %v10758, %v10765
  %v10782 = vadd.f32 %v10759, %v10765
  %v10783 = vmax.f32 %v10767, 0.0
  %v10784 = vmax.f32 %v10768, 0.0
  %v10785 = vmax.f32 %v10769, 0.0
  %v10786 = vmax.f32 %v10770, 0.0
  %v10787 = vmax.f32 %v10771, 0.0
  %v10788 = vmax.f32 %v10772, 0.0
  %v10789 = vmax.f32 %v10773, 0.0
  %v10790 = vmax.f32 %v10774, 0.0
  %v10791 = vmax.f32 %v10775, 0.0
  %v10792 = vmax.f32 %v10776, 0.0
  %v10793 = vmax.f32 %v10777, 0.0
  %v10794 = vmax.f32 %v10778, 0.0
  %v10795 = vmax.f32 %v10779, 0.0
  %v10796 = vmax.f32 %v10780, 0.0
  %v10797 = vmax.f32 %v10781, 0.0
  %v10798 = vmax.f32 %v10782, 0.0
  %10799 = vst [vmem:[%s9] sm:$0xff] %v10783
  %10800 = vst [vmem:[%s9 + $0x8] sm:$0xff] %v10784
  %10801 = vst [vmem:[%s9 + $0x10] sm:$0xff] %v10785
  %10802 = vst [vmem:[%s9 + $0x18] sm:$0xff] %v10786
  %10803 = vst [vmem:[%s9 + $0x20] sm:$0xff] %v10787
  %10804 = vst [vmem:[%s9 + $0x28] sm:$0xff] %v10788
  %10805 = vst [vmem:[%s9 + $0x30] sm:$0xff] %v10789
  %10806 = vst [vmem:[%s9 + $0x38] sm:$0xff] %v10790
  %10807 = vst [vmem:[%s9 + $0x40] sm:$0xff] %v10791
  %10808 = vst [vmem:[%s9 + $0x48] sm:$0xff] %v10792
  %10809 = vst [vmem:[%s9 + $0x50] sm:$0xff] %v10793
  %10810 = vst [vmem:[%s9 + $0x58] sm:$0xff] %v10794
  %10811 = vst [vmem:[%s9 + $0x60] sm:$0xff] %v10795
  %10812 = vst [vmem:[%s9 + $0x68] sm:$0xff] %v10796
  %10813 = vst [vmem:[%s9 + $0x70] sm:$0xff] %v10797
  %10814 = vst [vmem:[%s9 + $0x78] sm:$0xff] %v10798
  // Predicated region
  $region38: #{down_conv_v2.1} parent=0 // pred_check
    _
  $region39: #{down_conv_v2.1} parent=0 // pred_check_branch
    %10816 = sbr.rel (0) target = $region41
  $region40: #{down_conv_v2.1} parent=0 // pred_region
    _
  $region41: #{down_conv_v2.1} parent=0 // pred_fallthru
    _
  // Predicated region
  $region42: #{down_conv_v2.1} parent=0 // pred_check
    _
  $region43: #{down_conv_v2.1} parent=0 // pred_check_branch
    %10818 = sbr.rel (0) target = $region45
  $region44: #{down_conv_v2.1} parent=0 // pred_region
    _
  $region45: #{down_conv_v2.1} parent=0 // pred_fallthru
    _

</llo_original>
